<compile_context>
chip_gen: v7x
topology: tpu7x:2x2x1
jax: 0.10.0
libtpu: 0.0.40
codegen_flags: <defaults>
</compile_context>

<pallas_src>
import functools

import jax
import jax.numpy as jnp
from jax.experimental import pallas as pl
from jax.experimental.pallas import tpu as pltpu

SUB = 2                      # sub_sample_factor = (2, 2)
BN_EPS = 1e-5
VMEM_LIMIT = 32 * 1024 * 1024


def _round_up(x, m):
    return ((x + m - 1) // m) * m


# ----------------------------------------------------------------------------
# Kernel 1: "scores" — theta patch-matmul + phi_up add + relu + psi + sigmoid,
# both gates at once (weights stacked / block-diagonal), row-tiled coarse plane.
# ----------------------------------------------------------------------------
def _scores_kernel(patches_ref, phi_ref, theta_w_ref, psi_w_ref, psi_b_ref,
                   sig_ref):
    theta = jnp.dot(patches_ref[0], theta_w_ref[...],
                    preferred_element_type=jnp.float32)        # (tp2, 2Cint)
    f = jnp.maximum(theta + phi_ref[0], 0.0)
    s = jnp.dot(f, psi_w_ref[...],
                preferred_element_type=jnp.float32) + psi_b_ref[...]
    sig_ref[0] = 1.0 / (1.0 + jnp.exp(-s))                     # (tp2, 2)


def _scores(patches, phi_up, theta_w, psi_w, psi_b, tp2):
    B, P2p, K4 = patches.shape
    C2I = theta_w.shape[1]
    nt2 = P2p // tp2
    flops = 2 * B * P2p * K4 * C2I + 2 * B * P2p * C2I * 2
    bytes_acc = (patches.size * 2 + phi_up.size * 4 + B * P2p * 2 * 4
                 + theta_w.size * 2 + psi_w.size * 4)
    return pl.pallas_call(
        _scores_kernel,
        out_shape=jax.ShapeDtypeStruct((B, P2p, 2), jnp.float32),
        grid_spec=pltpu.PrefetchScalarGridSpec(
            num_scalar_prefetch=0,
            grid=(B, nt2),
            in_specs=[
                pl.BlockSpec((1, tp2, K4), lambda b, i: (b, i, 0)),
                pl.BlockSpec((1, tp2, C2I), lambda b, i: (b, i, 0)),
                pl.BlockSpec((K4, C2I), lambda b, i: (0, 0)),
                pl.BlockSpec((C2I, 2), lambda b, i: (0, 0)),
                pl.BlockSpec((1, 2), lambda b, i: (0, 0)),
            ],
            out_specs=pl.BlockSpec((1, tp2, 2), lambda b, i: (b, i, 0)),
        ),
        compiler_params=pltpu.CompilerParams(
            dimension_semantics=("parallel", "parallel"),
            vmem_limit_bytes=VMEM_LIMIT),
        cost_estimate=pl.CostEstimate(flops=int(flops),
                                      transcendentals=int(2 * B * P2p),
                                      bytes_accessed=int(bytes_acc)),
    )(patches, phi_up, theta_w, psi_w, psi_b)


# ----------------------------------------------------------------------------
# Kernel 2: "gate + W" — sig*(x@W)+b per gate (gating commutes with the 1x1
# conv), row-tiled over B*H*W, with masked W-BN partial statistics.
# ----------------------------------------------------------------------------
def _gate_w_kernel(x_ref, s1_ref, s2_ref, w1_ref, w2_ref, b1_ref, b2_ref,
                   z1_ref, z2_ref, sum1_ref, sq1_ref, sum2_ref, sq2_ref,
                   *, m_total, tm):
    i = pl.program_id(0)
    x = x_ref[...]                                             # (tm, Cin) bf16
    xw1 = jnp.dot(x, w1_ref[...], preferred_element_type=jnp.float32)
    xw2 = jnp.dot(x, w2_ref[...], preferred_element_type=jnp.float32)
    z1 = s1_ref[...] * xw1 + b1_ref[...]
    z2 = s2_ref[...] * xw2 + b2_ref[...]
    z1_ref[...] = z1.astype(z1_ref.dtype)
    z2_ref[...] = z2.astype(z2_ref.dtype)
    # masked partial stats (tail rows of the last tile are zero-padded input,
    # but z = bias there, so they must be excluded explicitly).
    row = i * tm + jax.lax.broadcasted_iota(jnp.int32, (tm, 1), 0)
    valid = row < m_total
    z1m = jnp.where(valid, z1, 0.0)
    z2m = jnp.where(valid, z2, 0.0)
    sum1_ref[0] = jnp.sum(z1m, axis=0, keepdims=True)
    sq1_ref[0] = jnp.sum(z1m * z1m, axis=0, keepdims=True)
    sum2_ref[0] = jnp.sum(z2m, axis=0, keepdims=True)
    sq2_ref[0] = jnp.sum(z2m * z2m, axis=0, keepdims=True)


def _gate_w(x_rows, s1, s2, w1, w2, b1, b2, tm, m_total):
    M_pad, Cin = x_rows.shape
    nt = M_pad // tm
    flops = 2 * 2 * M_pad * Cin * Cin
    bytes_acc = (x_rows.size * 2 + (s1.size + s2.size) * 4
                 + 2 * M_pad * Cin * 2 + 4 * nt * Cin * 4 + 2 * Cin * Cin * 2)
    kernel = functools.partial(_gate_w_kernel, m_total=m_total, tm=tm)
    stat = jax.ShapeDtypeStruct((nt, 1, Cin), jnp.float32)
    stat_spec = pl.BlockSpec((1, 1, Cin), lambda i: (i, 0, 0))
    return pl.pallas_call(
        kernel,
        out_shape=(
            jax.ShapeDtypeStruct((M_pad, Cin), jnp.bfloat16),
            jax.ShapeDtypeStruct((M_pad, Cin), jnp.bfloat16),
            stat, stat, stat, stat,
        ),
        grid_spec=pltpu.PrefetchScalarGridSpec(
            num_scalar_prefetch=0,
            grid=(nt,),
            in_specs=[
                pl.BlockSpec((tm, Cin), lambda i: (i, 0)),
                pl.BlockSpec((tm, 1), lambda i: (i, 0)),
                pl.BlockSpec((tm, 1), lambda i: (i, 0)),
                pl.BlockSpec((Cin, Cin), lambda i: (0, 0)),
                pl.BlockSpec((Cin, Cin), lambda i: (0, 0)),
                pl.BlockSpec((1, Cin), lambda i: (0, 0)),
                pl.BlockSpec((1, Cin), lambda i: (0, 0)),
            ],
            out_specs=[
                pl.BlockSpec((tm, Cin), lambda i: (i, 0)),
                pl.BlockSpec((tm, Cin), lambda i: (i, 0)),
                stat_spec, stat_spec, stat_spec, stat_spec,
            ],
        ),
        compiler_params=pltpu.CompilerParams(
            dimension_semantics=("parallel",),
            vmem_limit_bytes=VMEM_LIMIT),
        cost_estimate=pl.CostEstimate(flops=int(flops), transcendentals=0,
                                      bytes_accessed=int(bytes_acc)),
    )(x_rows, s1, s2, w1, w2, b1, b2)


# ----------------------------------------------------------------------------
# Kernel 3: "combine" — folded W-BN affines + split combine 1x1 conv
# (2*Cin -> Cin as two (Cin,Cin) matmuls) + combine-BN partial statistics.
# ----------------------------------------------------------------------------
def _combine_kernel(z1_ref, z2_ref, a1_ref, t1_ref, a2_ref, t2_ref,
                    wc1_ref, wc2_ref, bc_ref,
                    c_ref, csum_ref, csq_ref, *, m_total, tm):
    i = pl.program_id(0)
    za1 = (z1_ref[...].astype(jnp.float32) * a1_ref[...]
           + t1_ref[...]).astype(jnp.bfloat16)
    za2 = (z2_ref[...].astype(jnp.float32) * a2_ref[...]
           + t2_ref[...]).astype(jnp.bfloat16)
    c = (jnp.dot(za1, wc1_ref[...], preferred_element_type=jnp.float32)
         + jnp.dot(za2, wc2_ref[...], preferred_element_type=jnp.float32)
         + bc_ref[...])
    c_ref[...] = c
    row = i * tm + jax.lax.broadcasted_iota(jnp.int32, (tm, 1), 0)
    cm = jnp.where(row < m_total, c, 0.0)
    csum_ref[0] = jnp.sum(cm, axis=0, keepdims=True)
    csq_ref[0] = jnp.sum(cm * cm, axis=0, keepdims=True)


def _combine(z1, z2, a1, t1, a2, t2, wc1, wc2, bc, tm, m_total):
    M_pad, Cin = z1.shape
    nt = M_pad // tm
    flops = 2 * 2 * M_pad * Cin * Cin
    bytes_acc = 2 * M_pad * Cin * 2 + M_pad * Cin * 4 + 2 * nt * Cin * 4
    kernel = functools.partial(_combine_kernel, m_total=m_total, tm=tm)
    stat = jax.ShapeDtypeStruct((nt, 1, Cin), jnp.float32)
    stat_spec = pl.BlockSpec((1, 1, Cin), lambda i: (i, 0, 0))
    vec_spec = pl.BlockSpec((1, Cin), lambda i: (0, 0))
    return pl.pallas_call(
        kernel,
        out_shape=(jax.ShapeDtypeStruct((M_pad, Cin), jnp.float32), stat, stat),
        grid_spec=pltpu.PrefetchScalarGridSpec(
            num_scalar_prefetch=0,
            grid=(nt,),
            in_specs=[
                pl.BlockSpec((tm, Cin), lambda i: (i, 0)),
                pl.BlockSpec((tm, Cin), lambda i: (i, 0)),
                vec_spec, vec_spec, vec_spec, vec_spec,
                pl.BlockSpec((Cin, Cin), lambda i: (0, 0)),
                pl.BlockSpec((Cin, Cin), lambda i: (0, 0)),
                vec_spec,
            ],
            out_specs=[
                pl.BlockSpec((tm, Cin), lambda i: (i, 0)),
                stat_spec, stat_spec,
            ],
        ),
        compiler_params=pltpu.CompilerParams(
            dimension_semantics=("parallel",),
            vmem_limit_bytes=VMEM_LIMIT),
        cost_estimate=pl.CostEstimate(flops=int(flops), transcendentals=0,
                                      bytes_accessed=int(bytes_acc)),
    )(z1, z2, a1, t1, a2, t2, wc1, wc2, bc)


# ----------------------------------------------------------------------------
# 1-D bilinear interpolation matrix (align_corners=False, matches modern
# F.interpolate).  Applied separably in the wrapper — linear cost in the plane.
# ----------------------------------------------------------------------------
def _interp_matrix(n_out, n_in):
    if n_out == n_in:
        return jnp.eye(n_in, dtype=jnp.float32)
    scale = n_in / n_out
    i = jnp.arange(n_out, dtype=jnp.float32)
    src = jnp.clip((i + 0.5) * scale - 0.5, 0.0, n_in - 1)
    lo = jnp.floor(src).astype(jnp.int32)
    hi = jnp.minimum(lo + 1, n_in - 1)
    w_hi = src - lo.astype(jnp.float32)
    w_lo = 1.0 - w_hi
    idx = jnp.arange(n_out)
    m = jnp.zeros((n_out, n_in), jnp.float32)
    m = m.at[idx, lo].add(w_lo)
    m = m.at[idx, hi].add(w_hi)
    return m


def _upsample_nhwc(x, h_out, w_out):
    # x: (B, Hin, Win, C) -> (B, h_out, w_out, C), separable bilinear.
    _, h_in, w_in, _ = x.shape
    ah = _interp_matrix(h_out, h_in)
    aw = _interp_matrix(w_out, w_in)
    x = jnp.einsum("oh,bhwc->bowc", ah, x)
    return jnp.einsum("pw,bowc->bopc", aw, x)


# ----------------------------------------------------------------------------
# Forward pass (matches MultiAttentionBlock2D, mode='concatenation', training BN)
# ----------------------------------------------------------------------------
def multi_attention_block_2d(x_nchw, g_nchw, params):
    B, Cin, H, W = x_nchw.shape
    _, Cg, Hg, Wg = g_nchw.shape
    H2, W2 = H // SUB, W // SUB
    P2 = H2 * W2
    M = B * H * W
    p1, p2 = params["gate1"], params["gate2"]
    Cint = p1["theta_w"].shape[0]
    C2I = 2 * Cint

    # ---- one-time layout prep (XLA glue), shared by BOTH gates --------------
    x_nhwc = jnp.transpose(x_nchw, (0, 2, 3, 1))
    g_nhwc = jnp.transpose(g_nchw, (0, 2, 3, 1))
    patches = (x_nhwc.reshape(B, H2, SUB, W2, SUB, Cin)
               .transpose(0, 1, 3, 2, 4, 5)
               .reshape(B, P2, SUB * SUB * Cin)).astype(jnp.bfloat16)
    x_rows = x_nhwc.reshape(M, Cin).astype(jnp.bfloat16)

    # ---- stacked / block-diagonal weights (both gates in one pass) ----------
    def theta_mat(p):
        return jnp.transpose(p["theta_w"], (2, 3, 1, 0)).reshape(SUB * SUB * Cin, Cint)

    theta_w = jnp.concatenate([theta_mat(p1), theta_mat(p2)],
                              axis=1).astype(jnp.bfloat16)          # (4Cin, 2Cint)
    phi_w = jnp.concatenate([p1["phi_w"].reshape(Cint, Cg).T,
                             p2["phi_w"].reshape(Cint, Cg).T], axis=1)   # (Cg, 2Cint)
    phi_b = jnp.concatenate([p1["phi_b"], p2["phi_b"]]).reshape(1, 1, 1, C2I)
    psi_w = jnp.zeros((C2I, 2), jnp.float32)
    psi_w = psi_w.at[:Cint, 0].set(p1["psi_w"].reshape(Cint))
    psi_w = psi_w.at[Cint:, 1].set(p2["psi_w"].reshape(Cint))
    psi_b = jnp.concatenate([p1["psi_b"], p2["psi_b"]]).reshape(1, 2)
    w1 = p1["W_w"].reshape(Cin, Cin).T.astype(jnp.bfloat16)
    w2 = p2["W_w"].reshape(Cin, Cin).T.astype(jnp.bfloat16)
    b1 = p1["W_b"].reshape(1, Cin)
    b2 = p2["W_b"].reshape(1, Cin)

    # ---- phi(g) + separable bilinear upsample to theta resolution (coarse,
    #      tiny plane — kept in XLA glue instead of a quadratic kron matmul) ---
    phi = jnp.einsum("bhwg,gc->bhwc", g_nhwc, phi_w) + phi_b
    phi_up = _upsample_nhwc(phi, H2, W2).reshape(B, P2, C2I)

    # ---- kernel 1: scores (row-tiled coarse plane) ---------------------------
    tp2 = min(512, _round_up(P2, 16))
    P2p = _round_up(P2, tp2)
    if P2p != P2:
        patches = jnp.pad(patches, ((0, 0), (0, P2p - P2), (0, 0)))
        phi_up = jnp.pad(phi_up, ((0, 0), (0, P2p - P2), (0, 0)))
    sig = _scores(patches, phi_up, theta_w, psi_w, psi_b, tp2)[:, :P2, :]

    # ---- separable bilinear upsample of the 2 attention maps ----------------
    sig_up = _upsample_nhwc(sig.reshape(B, H2, W2, 2), H, W)        # (B,H,W,2)
    attn = jnp.transpose(sig_up, (0, 3, 1, 2))                      # (B,2,H,W)
    s1 = sig_up[..., 0].reshape(M, 1)
    s2 = sig_up[..., 1].reshape(M, 1)

    # ---- shared row tiling over B*H*W (explicit zero padding, no OOB reads) -
    tm = min(1024, _round_up(M, 16))
    M_pad = _round_up(M, tm)
    if M_pad != M:
        x_rows = jnp.pad(x_rows, ((0, M_pad - M), (0, 0)))
        s1 = jnp.pad(s1, ((0, M_pad - M), (0, 0)))
        s2 = jnp.pad(s2, ((0, M_pad - M), (0, 0)))

    # ---- kernel 2: gating + per-gate W 1x1 conv + W-BN partials --------------
    z1, z2, sum1, sq1, sum2, sq2 = _gate_w(x_rows, s1, s2, w1, w2, b1, b2, tm, M)

    # ---- W BatchNorm (training-mode batch stats) folded to per-gate affines --
    # NOTE: E[x^2]-E[x]^2 in f32; fine for unit-scale activations (see review).
    count = jnp.float32(M)

    def bn_affine(zsum, zsq, gamma, beta):
        mean = jnp.sum(zsum, axis=(0, 1)) / count
        var = jnp.maximum(jnp.sum(zsq, axis=(0, 1)) / count - mean * mean, 0.0)
        a = gamma / jnp.sqrt(var + BN_EPS)
        return a.reshape(1, Cin), (beta - mean * a).reshape(1, Cin)

    a1, t1 = bn_affine(sum1, sq1, p1["W_bn_gamma"], p1["W_bn_beta"])
    a2, t2 = bn_affine(sum2, sq2, p2["W_bn_gamma"], p2["W_bn_beta"])

    # ---- kernel 3: combine conv (row-tiled) + combine-BN partials ------------
    wc = params["combine_w"].reshape(Cin, 2 * Cin)
    wc1 = wc[:, :Cin].T.astype(jnp.bfloat16)
    wc2 = wc[:, Cin:].T.astype(jnp.bfloat16)
    bc = params["combine_b"].reshape(1, Cin)
    c, csum, csq = _combine(z1, z2, a1, t1, a2, t2, wc1, wc2, bc, tm, M)

    # ---- combine BatchNorm + ReLU epilogue (elementwise; fuses with the one
    #      unavoidable channel-last -> NCHW layout pass) ----------------------
    mean_c = jnp.sum(csum, axis=(0, 1)) / count
    var_c = jnp.maximum(jnp.sum(csq, axis=(0, 1)) / count - mean_c * mean_c, 0.0)
    sc = params["combine_bn_gamma"] / jnp.sqrt(var_c + BN_EPS)
    tc = params["combine_bn_beta"] - mean_c * sc
    out_rows = jnp.maximum(c[:M] * sc + tc, 0.0)
    out = jnp.transpose(out_rows.reshape(B, H, W, Cin), (0, 3, 1, 2))
    return out, attn


# ----------------------------------------------------------------------------
# Deterministic parameter init (shapes follow the PyTorch module __init__)
# ----------------------------------------------------------------------------
def init_params(key, in_size, gate_size, inter_size):
    def gate_params(k):
        ks = jax.random.split(k, 9)
        return dict(
            theta_w=0.1 * jax.random.normal(ks[0], (inter_size, in_size, SUB, SUB), jnp.float32),
            phi_w=0.1 * jax.random.normal(ks[1], (inter_size, gate_size, 1, 1), jnp.float32),
            phi_b=0.1 * jax.random.normal(ks[2], (inter_size,), jnp.float32),
            psi_w=0.1 * jax.random.normal(ks[3], (1, inter_size, 1, 1), jnp.float32),
            psi_b=0.1 * jax.random.normal(ks[4], (1,), jnp.float32),
            W_w=0.1 * jax.random.normal(ks[5], (in_size, in_size, 1, 1), jnp.float32),
            W_b=0.1 * jax.random.normal(ks[6], (in_size,), jnp.float32),
            W_bn_gamma=1.0 + 0.05 * jax.random.normal(ks[7], (in_size,), jnp.float32),
            W_bn_beta=0.05 * jax.random.normal(ks[8], (in_size,), jnp.float32),
        )

    k1, k2, k3, k4, k5, k6 = jax.random.split(key, 6)
    return dict(
        gate1=gate_params(k1),
        gate2=gate_params(k2),
        combine_w=0.1 * jax.random.normal(k3, (in_size, 2 * in_size, 1, 1), jnp.float32),
        combine_b=0.1 * jax.random.normal(k4, (in_size,), jnp.float32),
        combine_bn_gamma=1.0 + 0.05 * jax.random.normal(k5, (in_size,), jnp.float32),
        combine_bn_beta=0.05 * jax.random.normal(k6, (in_size,), jnp.float32),
    )


# ----------------------------------------------------------------------------
if __name__ == "__main__":
    B, in_size, gate_size, inter_size = 2, 8, 16, 8
    H = W = 16
    Hg = Wg = 8   # gating signal at half resolution (typical attention-gated UNet)

    key = jax.random.PRNGKey(0)
    kx, kg, kp = jax.random.split(key, 3)
    x = jax.random.normal(kx, (B, in_size, H, W), jnp.float32)       # NCHW
    g = jax.random.normal(kg, (B, gate_size, Hg, Wg), jnp.float32)   # NCHW
    params = init_params(kp, in_size, gate_size, inter_size)

    fwd = jax.jit(multi_attention_block_2d)
    out, attn = fwd(x, g, params)
    jax.block_until_ready((out, attn))

    assert out.shape == (B, in_size, H, W)
    assert attn.shape == (B, 2, H, W)
    assert bool(jnp.all(jnp.isfinite(out))) and bool(jnp.all(jnp.isfinite(attn)))
    print("KERNEL_OK")
</pallas_src>

<mosaic_0001>
module attributes {stable_mosaic.version = 11 : i64} {
  func.func private @main(%arg0: i32) attributes {dimension_semantics = [#tpu.dimension_semantics<core_parallel>], iteration_bounds = array<i64: 2>, tpu.core_type = #tpu.core_type<sc_scalar_subcore>, window_params = []} {
    return
  }
}

module attributes {stable_mosaic.version = 11 : i64} {
  func.func private @main(%arg0: i32) attributes {dimension_semantics = [#tpu.dimension_semantics<core_parallel>], iteration_bounds = array<i64: 2>, tpu.core_type = #tpu.core_type<sc_scalar_subcore>, window_params = []} {
    return
  }
}

module attributes {stable_mosaic.version = 11 : i64} {
  func.func @_scores_kernel(%arg0: i32, %arg1: i32, %arg2: memref<1x64x32xbf16, #tpu.memory_space<vmem>>, %arg3: memref<1x64x16xf32, #tpu.memory_space<vmem>>, %arg4: memref<32x16xbf16, #tpu.memory_space<vmem>>, %arg5: memref<16x2xf32, #tpu.memory_space<vmem>>, %arg6: memref<1x2xf32, #tpu.memory_space<vmem>>, %arg7: memref<1x64x2xf32, #tpu.memory_space<vmem>>) attributes {dimension_semantics = [#tpu.dimension_semantics<parallel>, #tpu.dimension_semantics<parallel>], iteration_bounds = array<i64: 2, 1>, scalar_prefetch = 0 : i64, scratch_operands = 0 : i64, tpu.core_type = #tpu.core_type<tc>, window_params = [{transform_indices = @transform_0, window_bounds = array<i64: 1, 64, 32>}, {transform_indices = @transform_1, window_bounds = array<i64: 1, 64, 16>}, {pipeline_mode = #tpu.pipeline_mode<synchronous>, transform_indices = @transform_2, window_bounds = array<i64: 32, 16>}, {pipeline_mode = #tpu.pipeline_mode<synchronous>, transform_indices = @transform_3, window_bounds = array<i64: 16, 2>}, {pipeline_mode = #tpu.pipeline_mode<synchronous>, transform_indices = @transform_4, window_bounds = array<i64: 1, 2>}, {transform_indices = @transform_5, window_bounds = array<i64: 1, 64, 2>}]} {
    %c0 = arith.constant 0 : index
    %c0_0 = arith.constant 0 : index
    %c0_1 = arith.constant 0 : index
    %0 = vector.load %arg2[%c0, %c0_0, %c0_1] : memref<1x64x32xbf16, #tpu.memory_space<vmem>>, vector<1x64x32xbf16>
    %1 = vector.shape_cast %0 : vector<1x64x32xbf16> to vector<64x32xbf16>
    %c0_2 = arith.constant 0 : index
    %c0_3 = arith.constant 0 : index
    %2 = vector.load %arg4[%c0_2, %c0_3] : memref<32x16xbf16, #tpu.memory_space<vmem>>, vector<32x16xbf16>
    %cst = arith.constant dense<0.000000e+00> : vector<64x16xf32>
    %3 = tpu.matmul %1, %2, %cst {dimension_numbers = #tpu.dot_dimension_numbers<[1], [0], [0], [1], [0, 0, 1, 1], [], []>} : vector<64x32xbf16>, vector<32x16xbf16>, vector<64x16xf32> -> vector<64x16xf32>
    %c0_4 = arith.constant 0 : index
    %c0_5 = arith.constant 0 : index
    %c0_6 = arith.constant 0 : index
    %4 = vector.load %arg3[%c0_4, %c0_5, %c0_6] : memref<1x64x16xf32, #tpu.memory_space<vmem>>, vector<1x64x16xf32>
    %5 = vector.shape_cast %4 : vector<1x64x16xf32> to vector<64x16xf32>
    %6 = arith.addf %3, %5 : vector<64x16xf32>
    %cst_7 = arith.constant 0.000000e+00 : f32
    %7 = vector.broadcast %cst_7 : f32 to vector<64x16xf32>
    %8 = arith.maximumf %6, %7 : vector<64x16xf32>
    %c0_8 = arith.constant 0 : index
    %c0_9 = arith.constant 0 : index
    %9 = vector.load %arg5[%c0_8, %c0_9] : memref<16x2xf32, #tpu.memory_space<vmem>>, vector<16x2xf32>
    %cst_10 = arith.constant dense<0.000000e+00> : vector<64x2xf32>
    %10 = tpu.matmul %8, %9, %cst_10 {dimension_numbers = #tpu.dot_dimension_numbers<[1], [0], [0], [1], [0, 0, 1, 1], [], []>} : vector<64x16xf32>, vector<16x2xf32>, vector<64x2xf32> -> vector<64x2xf32>
    %c0_11 = arith.constant 0 : index
    %c0_12 = arith.constant 0 : index
    %11 = vector.load %arg6[%c0_11, %c0_12] : memref<1x2xf32, #tpu.memory_space<vmem>>, vector<1x2xf32>
    %12 = vector.broadcast %11 : vector<1x2xf32> to vector<64x2xf32>
    %13 = arith.addf %10, %12 : vector<64x2xf32>
    %cst_13 = arith.constant 0.000000e+00 : f32
    %14 = vector.broadcast %cst_13 : f32 to vector<64x2xf32>
    %15 = arith.subf %14, %13 : vector<64x2xf32>
    %16 = math.exp %15 : vector<64x2xf32>
    %cst_14 = arith.constant 1.000000e+00 : f32
    %17 = vector.broadcast %cst_14 : f32 to vector<64x2xf32>
    %18 = arith.addf %17, %16 : vector<64x2xf32>
    %cst_15 = arith.constant 1.000000e+00 : f32
    %19 = vector.broadcast %cst_15 : f32 to vector<64x2xf32>
    %20 = arith.divf %19, %18 : vector<64x2xf32>
    %c0_16 = arith.constant 0 : index
    %c0_17 = arith.constant 0 : index
    %c0_18 = arith.constant 0 : index
    %21 = vector.load %arg7[%c0_16, %c0_17, %c0_18] : memref<1x64x2xf32, #tpu.memory_space<vmem>>, vector<1x64x2xf32>
    %22 = vector.shape_cast %21 : vector<1x64x2xf32> to vector<64x2xf32>
    %23 = vector.shape_cast %20 : vector<64x2xf32> to vector<1x64x2xf32>
    tpu.vector_store %arg7[%c0_16, %c0_17, %c0_18], %23 {strides = array<i32>} : memref<1x64x2xf32, #tpu.memory_space<vmem>>, vector<1x64x2xf32>,
    return
  }
  func.func @transform_0(%arg0: i32, %arg1: i32) -> (i32, i32, i32) {
    %c0_i32 = arith.constant 0 : i32
    %c0_i32_0 = arith.constant 0 : i32
    return %arg0, %arg1, %c0_i32 : i32, i32, i32
  }
  func.func @transform_1(%arg0: i32, %arg1: i32) -> (i32, i32, i32) {
    %c0_i32 = arith.constant 0 : i32
    %c0_i32_0 = arith.constant 0 : i32
    return %arg0, %arg1, %c0_i32 : i32, i32, i32
  }
  func.func @transform_2(%arg0: i32, %arg1: i32) -> (i32, i32) {
    %c0_i32 = arith.constant 0 : i32
    %c0_i32_0 = arith.constant 0 : i32
    %c0_i32_1 = arith.constant 0 : i32
    return %c0_i32, %c0_i32_0 : i32, i32
  }
  func.func @transform_3(%arg0: i32, %arg1: i32) -> (i32, i32) {
    %c0_i32 = arith.constant 0 : i32
    %c0_i32_0 = arith.constant 0 : i32
    %c0_i32_1 = arith.constant 0 : i32
    return %c0_i32, %c0_i32_0 : i32, i32
  }
  func.func @transform_4(%arg0: i32, %arg1: i32) -> (i32, i32) {
    %c0_i32 = arith.constant 0 : i32
    %c0_i32_0 = arith.constant 0 : i32
    %c0_i32_1 = arith.constant 0 : i32
    return %c0_i32, %c0_i32_0 : i32, i32
  }
  func.func @transform_5(%arg0: i32, %arg1: i32) -> (i32, i32, i32) {
    %c0_i32 = arith.constant 0 : i32
    %c0_i32_0 = arith.constant 0 : i32
    return %arg0, %arg1, %c0_i32 : i32, i32, i32
  }
}

module attributes {stable_mosaic.version = 11 : i64} {
  func.func @_gate_w_kernel(%arg0: i32, %arg1: memref<512x8xbf16, #tpu.memory_space<vmem>>, %arg2: memref<512x1xf32, #tpu.memory_space<vmem>>, %arg3: memref<512x1xf32, #tpu.memory_space<vmem>>, %arg4: memref<8x8xbf16, #tpu.memory_space<vmem>>, %arg5: memref<8x8xbf16, #tpu.memory_space<vmem>>, %arg6: memref<1x8xf32, #tpu.memory_space<vmem>>, %arg7: memref<1x8xf32, #tpu.memory_space<vmem>>, %arg8: memref<512x8xbf16, #tpu.memory_space<vmem>>, %arg9: memref<512x8xbf16, #tpu.memory_space<vmem>>, %arg10: memref<1x1x8xf32, #tpu.memory_space<vmem>>, %arg11: memref<1x1x8xf32, #tpu.memory_space<vmem>>, %arg12: memref<1x1x8xf32, #tpu.memory_space<vmem>>, %arg13: memref<1x1x8xf32, #tpu.memory_space<vmem>>) attributes {dimension_semantics = [#tpu.dimension_semantics<parallel>], iteration_bounds = array<i64: 1>, scalar_prefetch = 0 : i64, scratch_operands = 0 : i64, tpu.core_type = #tpu.core_type<tc>, window_params = [{transform_indices = @transform_0, window_bounds = array<i64: 512, 8>}, {transform_indices = @transform_1, window_bounds = array<i64: 512, 1>}, {transform_indices = @transform_2, window_bounds = array<i64: 512, 1>}, {pipeline_mode = #tpu.pipeline_mode<synchronous>, transform_indices = @transform_3, window_bounds = array<i64: 8, 8>}, {pipeline_mode = #tpu.pipeline_mode<synchronous>, transform_indices = @transform_4, window_bounds = array<i64: 8, 8>}, {pipeline_mode = #tpu.pipeline_mode<synchronous>, transform_indices = @transform_5, window_bounds = array<i64: 1, 8>}, {pipeline_mode = #tpu.pipeline_mode<synchronous>, transform_indices = @transform_6, window_bounds = array<i64: 1, 8>}, {transform_indices = @transform_7, window_bounds = array<i64: 512, 8>}, {transform_indices = @transform_8, window_bounds = array<i64: 512, 8>}, {transform_indices = @transform_9, window_bounds = array<i64: 1, 1, 8>}, {transform_indices = @transform_10, window_bounds = array<i64: 1, 1, 8>}, {transform_indices = @transform_11, window_bounds = array<i64: 1, 1, 8>}, {transform_indices = @transform_12, window_bounds = array<i64: 1, 1, 8>}]} {
    %c0 = arith.constant 0 : index
    %c0_0 = arith.constant 0 : index
    %0 = vector.load %arg1[%c0, %c0_0] : memref<512x8xbf16, #tpu.memory_space<vmem>>, vector<512x8xbf16>
    %c0_1 = arith.constant 0 : index
    %c0_2 = arith.constant 0 : index
    %1 = vector.load %arg4[%c0_1, %c0_2] : memref<8x8xbf16, #tpu.memory_space<vmem>>, vector<8x8xbf16>
    %cst = arith.constant dense<0.000000e+00> : vector<512x8xf32>
    %2 = tpu.matmul %0, %1, %cst {dimension_numbers = #tpu.dot_dimension_numbers<[1], [0], [0], [1], [0, 0, 1, 1], [], []>} : vector<512x8xbf16>, vector<8x8xbf16>, vector<512x8xf32> -> vector<512x8xf32>
    %c0_3 = arith.constant 0 : index
    %c0_4 = arith.constant 0 : index
    %3 = vector.load %arg5[%c0_3, %c0_4] : memref<8x8xbf16, #tpu.memory_space<vmem>>, vector<8x8xbf16>
    %cst_5 = arith.constant dense<0.000000e+00> : vector<512x8xf32>
    %4 = tpu.matmul %0, %3, %cst_5 {dimension_numbers = #tpu.dot_dimension_numbers<[1], [0], [0], [1], [0, 0, 1, 1], [], []>} : vector<512x8xbf16>, vector<8x8xbf16>, vector<512x8xf32> -> vector<512x8xf32>
    %c0_6 = arith.constant 0 : index
    %c0_7 = arith.constant 0 : index
    %5 = vector.load %arg2[%c0_6, %c0_7] : memref<512x1xf32, #tpu.memory_space<vmem>>, vector<512x1xf32>
    %6 = vector.broadcast %5 : vector<512x1xf32> to vector<512x8xf32>
    %7 = arith.mulf %6, %2 : vector<512x8xf32>
    %c0_8 = arith.constant 0 : index
    %c0_9 = arith.constant 0 : index
    %8 = vector.load %arg6[%c0_8, %c0_9] : memref<1x8xf32, #tpu.memory_space<vmem>>, vector<1x8xf32>
    %9 = vector.broadcast %8 : vector<1x8xf32> to vector<512x8xf32>
    %10 = arith.addf %7, %9 : vector<512x8xf32>
    %c0_10 = arith.constant 0 : index
    %c0_11 = arith.constant 0 : index
    %11 = vector.load %arg3[%c0_10, %c0_11] : memref<512x1xf32, #tpu.memory_space<vmem>>, vector<512x1xf32>
    %12 = vector.broadcast %11 : vector<512x1xf32> to vector<512x8xf32>
    %13 = arith.mulf %12, %4 : vector<512x8xf32>
    %c0_12 = arith.constant 0 : index
    %c0_13 = arith.constant 0 : index
    %14 = vector.load %arg7[%c0_12, %c0_13] : memref<1x8xf32, #tpu.memory_space<vmem>>, vector<1x8xf32>
    %15 = vector.broadcast %14 : vector<1x8xf32> to vector<512x8xf32>
    %16 = arith.addf %13, %15 : vector<512x8xf32>
    %17 = arith.truncf %10 : vector<512x8xf32> to vector<512x8xbf16>
    %c0_14 = arith.constant 0 : index
    %c0_15 = arith.constant 0 : index
    %18 = vector.load %arg8[%c0_14, %c0_15] : memref<512x8xbf16, #tpu.memory_space<vmem>>, vector<512x8xbf16>
    tpu.vector_store %arg8[%c0_14, %c0_15], %17 {strides = array<i32>} : memref<512x8xbf16, #tpu.memory_space<vmem>>, vector<512x8xbf16>,
    %19 = arith.truncf %16 : vector<512x8xf32> to vector<512x8xbf16>
    %c0_16 = arith.constant 0 : index
    %c0_17 = arith.constant 0 : index
    %20 = vector.load %arg9[%c0_16, %c0_17] : memref<512x8xbf16, #tpu.memory_space<vmem>>, vector<512x8xbf16>
    tpu.vector_store %arg9[%c0_16, %c0_17], %19 {strides = array<i32>} : memref<512x8xbf16, #tpu.memory_space<vmem>>, vector<512x8xbf16>,
    %c512_i32 = arith.constant 512 : i32
    %21 = arith.muli %arg0, %c512_i32 : i32
    %22 = tpu.iota {dimensions = array<i32: 0>} : vector<512x1xi32>
    %23 = vector.broadcast %21 : i32 to vector<512x1xi32>
    %24 = arith.addi %23, %22 : vector<512x1xi32>
    %c512_i32_18 = arith.constant 512 : i32
    %25 = vector.broadcast %c512_i32_18 : i32 to vector<512x1xi32>
    %26 = arith.cmpi slt, %24, %25 : vector<512x1xi32>
    %cst_19 = arith.constant 0.000000e+00 : f32
    %27 = vector.shape_cast %26 : vector<512x1xi1> to vector<512x1xi1>
    %28 = vector.broadcast %27 : vector<512x1xi1> to vector<512x8xi1>
    %29 = vector.broadcast %cst_19 : f32 to vector<512x8xf32>
    %30 = arith.select %28, %10, %29 : vector<512x8xi1>, vector<512x8xf32>
    %cst_20 = arith.constant 0.000000e+00 : f32
    %31 = vector.shape_cast %26 : vector<512x1xi1> to vector<512x1xi1>
    %32 = vector.broadcast %31 : vector<512x1xi1> to vector<512x8xi1>
    %33 = vector.broadcast %cst_20 : f32 to vector<512x8xf32>
    %34 = arith.select %32, %16, %33 : vector<512x8xi1>, vector<512x8xf32>
    %cst_21 = arith.constant dense<0.000000e+00> : vector<8xf32>
    %35 = vector.multi_reduction <add>, %30, %cst_21 [0] : vector<512x8xf32> to vector<8xf32>
    %36 = vector.shape_cast %35 : vector<8xf32> to vector<1x8xf32>
    %c0_22 = arith.constant 0 : index
    %c0_23 = arith.constant 0 : index
    %c0_24 = arith.constant 0 : index
    %37 = vector.load %arg10[%c0_22, %c0_23, %c0_24] : memref<1x1x8xf32, #tpu.memory_space<vmem>>, vector<1x1x8xf32>
    %38 = vector.shape_cast %37 : vector<1x1x8xf32> to vector<1x8xf32>
    %39 = vector.shape_cast %36 : vector<1x8xf32> to vector<1x1x8xf32>
    tpu.vector_store %arg10[%c0_22, %c0_23, %c0_24], %39 {strides = array<i32>} : memref<1x1x8xf32, #tpu.memory_space<vmem>>, vector<1x1x8xf32>,
    %40 = arith.mulf %30, %30 : vector<512x8xf32>
    %cst_25 = arith.constant dense<0.000000e+00> : vector<8xf32>
    %41 = vector.multi_reduction <add>, %40, %cst_25 [0] : vector<512x8xf32> to vector<8xf32>
    %42 = vector.shape_cast %41 : vector<8xf32> to vector<1x8xf32>
    %c0_26 = arith.constant 0 : index
    %c0_27 = arith.constant 0 : index
    %c0_28 = arith.constant 0 : index
    %43 = vector.load %arg11[%c0_26, %c0_27, %c0_28] : memref<1x1x8xf32, #tpu.memory_space<vmem>>, vector<1x1x8xf32>
    %44 = vector.shape_cast %43 : vector<1x1x8xf32> to vector<1x8xf32>
    %45 = vector.shape_cast %42 : vector<1x8xf32> to vector<1x1x8xf32>
    tpu.vector_store %arg11[%c0_26, %c0_27, %c0_28], %45 {strides = array<i32>} : memref<1x1x8xf32, #tpu.memory_space<vmem>>, vector<1x1x8xf32>,
    %cst_29 = arith.constant dense<0.000000e+00> : vector<8xf32>
    %46 = vector.multi_reduction <add>, %34, %cst_29 [0] : vector<512x8xf32> to vector<8xf32>
    %47 = vector.shape_cast %46 : vector<8xf32> to vector<1x8xf32>
    %c0_30 = arith.constant 0 : index
    %c0_31 = arith.constant 0 : index
    %c0_32 = arith.constant 0 : index
    %48 = vector.load %arg12[%c0_30, %c0_31, %c0_32] : memref<1x1x8xf32, #tpu.memory_space<vmem>>, vector<1x1x8xf32>
    %49 = vector.shape_cast %48 : vector<1x1x8xf32> to vector<1x8xf32>
    %50 = vector.shape_cast %47 : vector<1x8xf32> to vector<1x1x8xf32>
    tpu.vector_store %arg12[%c0_30, %c0_31, %c0_32], %50 {strides = array<i32>} : memref<1x1x8xf32, #tpu.memory_space<vmem>>, vector<1x1x8xf32>,
    %51 = arith.mulf %34, %34 : vector<512x8xf32>
    %cst_33 = arith.constant dense<0.000000e+00> : vector<8xf32>
    %52 = vector.multi_reduction <add>, %51, %cst_33 [0] : vector<512x8xf32> to vector<8xf32>
    %53 = vector.shape_cast %52 : vector<8xf32> to vector<1x8xf32>
    %c0_34 = arith.constant 0 : index
    %c0_35 = arith.constant 0 : index
    %c0_36 = arith.constant 0 : index
    %54 = vector.load %arg13[%c0_34, %c0_35, %c0_36] : memref<1x1x8xf32, #tpu.memory_space<vmem>>, vector<1x1x8xf32>
    %55 = vector.shape_cast %54 : vector<1x1x8xf32> to vector<1x8xf32>
    %56 = vector.shape_cast %53 : vector<1x8xf32> to vector<1x1x8xf32>
    tpu.vector_store %arg13[%c0_34, %c0_35, %c0_36], %56 {strides = array<i32>} : memref<1x1x8xf32, #tpu.memory_space<vmem>>, vector<1x1x8xf32>,
    return
  }
  func.func @transform_0(%arg0: i32) -> (i32, i32) {
    %c0_i32 = arith.constant 0 : i32
    %c0_i32_0 = arith.constant 0 : i32
    return %arg0, %c0_i32 : i32, i32
  }
  func.func @transform_1(%arg0: i32) -> (i32, i32) {
    %c0_i32 = arith.constant 0 : i32
    %c0_i32_0 = arith.constant 0 : i32
    return %arg0, %c0_i32 : i32, i32
  }
  func.func @transform_2(%arg0: i32) -> (i32, i32) {
    %c0_i32 = arith.constant 0 : i32
    %c0_i32_0 = arith.constant 0 : i32
    return %arg0, %c0_i32 : i32, i32
  }
  func.func @transform_3(%arg0: i32) -> (i32, i32) {
    %c0_i32 = arith.constant 0 : i32
    %c0_i32_0 = arith.constant 0 : i32
    %c0_i32_1 = arith.constant 0 : i32
    return %c0_i32, %c0_i32_0 : i32, i32
  }
  func.func @transform_4(%arg0: i32) -> (i32, i32) {
    %c0_i32 = arith.constant 0 : i32
    %c0_i32_0 = arith.constant 0 : i32
    %c0_i32_1 = arith.constant 0 : i32
    return %c0_i32, %c0_i32_0 : i32, i32
  }
  func.func @transform_5(%arg0: i32) -> (i32, i32) {
    %c0_i32 = arith.constant 0 : i32
    %c0_i32_0 = arith.constant 0 : i32
    %c0_i32_1 = arith.constant 0 : i32
    return %c0_i32, %c0_i32_0 : i32, i32
  }
  func.func @transform_6(%arg0: i32) -> (i32, i32) {
    %c0_i32 = arith.constant 0 : i32
    %c0_i32_0 = arith.constant 0 : i32
    %c0_i32_1 = arith.constant 0 : i32
    return %c0_i32, %c0_i32_0 : i32, i32
  }
  func.func @transform_7(%arg0: i32) -> (i32, i32) {
    %c0_i32 = arith.constant 0 : i32
    %c0_i32_0 = arith.constant 0 : i32
    return %arg0, %c0_i32 : i32, i32
  }
  func.func @transform_8(%arg0: i32) -> (i32, i32) {
    %c0_i32 = arith.constant 0 : i32
    %c0_i32_0 = arith.constant 0 : i32
    return %arg0, %c0_i32 : i32, i32
  }
  func.func @transform_9(%arg0: i32) -> (i32, i32, i32) {
    %c0_i32 = arith.constant 0 : i32
    %c0_i32_0 = arith.constant 0 : i32
    %c0_i32_1 = arith.constant 0 : i32
    return %arg0, %c0_i32, %c0_i32_0 : i32, i32, i32
  }
  func.func @transform_10(%arg0: i32) -> (i32, i32, i32) {
    %c0_i32 = arith.constant 0 : i32
    %c0_i32_0 = arith.constant 0 : i32
    %c0_i32_1 = arith.constant 0 : i32
    return %arg0, %c0_i32, %c0_i32_0 : i32, i32, i32
  }
  func.func @transform_11(%arg0: i32) -> (i32, i32, i32) {
    %c0_i32 = arith.constant 0 : i32
    %c0_i32_0 = arith.constant 0 : i32
    %c0_i32_1 = arith.constant 0 : i32
    return %arg0, %c0_i32, %c0_i32_0 : i32, i32, i32
  }
  func.func @transform_12(%arg0: i32) -> (i32, i32, i32) {
    %c0_i32 = arith.constant 0 : i32
    %c0_i32_0 = arith.constant 0 : i32
    %c0_i32_1 = arith.constant 0 : i32
    return %arg0, %c0_i32, %c0_i32_0 : i32, i32, i32
  }
}

module attributes {stable_mosaic.version = 11 : i64} {
  func.func @_combine_kernel(%arg0: i32, %arg1: memref<512x8xbf16, #tpu.memory_space<vmem>>, %arg2: memref<512x8xbf16, #tpu.memory_space<vmem>>, %arg3: memref<1x8xf32, #tpu.memory_space<vmem>>, %arg4: memref<1x8xf32, #tpu.memory_space<vmem>>, %arg5: memref<1x8xf32, #tpu.memory_space<vmem>>, %arg6: memref<1x8xf32, #tpu.memory_space<vmem>>, %arg7: memref<8x8xbf16, #tpu.memory_space<vmem>>, %arg8: memref<8x8xbf16, #tpu.memory_space<vmem>>, %arg9: memref<1x8xf32, #tpu.memory_space<vmem>>, %arg10: memref<512x8xf32, #tpu.memory_space<vmem>>, %arg11: memref<1x1x8xf32, #tpu.memory_space<vmem>>, %arg12: memref<1x1x8xf32, #tpu.memory_space<vmem>>) attributes {dimension_semantics = [#tpu.dimension_semantics<parallel>], iteration_bounds = array<i64: 1>, scalar_prefetch = 0 : i64, scratch_operands = 0 : i64, tpu.core_type = #tpu.core_type<tc>, window_params = [{transform_indices = @transform_0, window_bounds = array<i64: 512, 8>}, {transform_indices = @transform_1, window_bounds = array<i64: 512, 8>}, {pipeline_mode = #tpu.pipeline_mode<synchronous>, transform_indices = @transform_2, window_bounds = array<i64: 1, 8>}, {pipeline_mode = #tpu.pipeline_mode<synchronous>, transform_indices = @transform_3, window_bounds = array<i64: 1, 8>}, {pipeline_mode = #tpu.pipeline_mode<synchronous>, transform_indices = @transform_4, window_bounds = array<i64: 1, 8>}, {pipeline_mode = #tpu.pipeline_mode<synchronous>, transform_indices = @transform_5, window_bounds = array<i64: 1, 8>}, {pipeline_mode = #tpu.pipeline_mode<synchronous>, transform_indices = @transform_6, window_bounds = array<i64: 8, 8>}, {pipeline_mode = #tpu.pipeline_mode<synchronous>, transform_indices = @transform_7, window_bounds = array<i64: 8, 8>}, {pipeline_mode = #tpu.pipeline_mode<synchronous>, transform_indices = @transform_8, window_bounds = array<i64: 1, 8>}, {transform_indices = @transform_9, window_bounds = array<i64: 512, 8>}, {transform_indices = @transform_10, window_bounds = array<i64: 1, 1, 8>}, {transform_indices = @transform_11, window_bounds = array<i64: 1, 1, 8>}]} {
    %c0 = arith.constant 0 : index
    %c0_0 = arith.constant 0 : index
    %0 = vector.load %arg1[%c0, %c0_0] : memref<512x8xbf16, #tpu.memory_space<vmem>>, vector<512x8xbf16>
    %1 = arith.extf %0 : vector<512x8xbf16> to vector<512x8xf32>
    %c0_1 = arith.constant 0 : index
    %c0_2 = arith.constant 0 : index
    %2 = vector.load %arg3[%c0_1, %c0_2] : memref<1x8xf32, #tpu.memory_space<vmem>>, vector<1x8xf32>
    %3 = vector.broadcast %2 : vector<1x8xf32> to vector<512x8xf32>
    %4 = arith.mulf %1, %3 : vector<512x8xf32>
    %c0_3 = arith.constant 0 : index
    %c0_4 = arith.constant 0 : index
    %5 = vector.load %arg4[%c0_3, %c0_4] : memref<1x8xf32, #tpu.memory_space<vmem>>, vector<1x8xf32>
    %6 = vector.broadcast %5 : vector<1x8xf32> to vector<512x8xf32>
    %7 = arith.addf %4, %6 : vector<512x8xf32>
    %8 = arith.truncf %7 : vector<512x8xf32> to vector<512x8xbf16>
    %c0_5 = arith.constant 0 : index
    %c0_6 = arith.constant 0 : index
    %9 = vector.load %arg2[%c0_5, %c0_6] : memref<512x8xbf16, #tpu.memory_space<vmem>>, vector<512x8xbf16>
    %10 = arith.extf %9 : vector<512x8xbf16> to vector<512x8xf32>
    %c0_7 = arith.constant 0 : index
    %c0_8 = arith.constant 0 : index
    %11 = vector.load %arg5[%c0_7, %c0_8] : memref<1x8xf32, #tpu.memory_space<vmem>>, vector<1x8xf32>
    %12 = vector.broadcast %11 : vector<1x8xf32> to vector<512x8xf32>
    %13 = arith.mulf %10, %12 : vector<512x8xf32>
    %c0_9 = arith.constant 0 : index
    %c0_10 = arith.constant 0 : index
    %14 = vector.load %arg6[%c0_9, %c0_10] : memref<1x8xf32, #tpu.memory_space<vmem>>, vector<1x8xf32>
    %15 = vector.broadcast %14 : vector<1x8xf32> to vector<512x8xf32>
    %16 = arith.addf %13, %15 : vector<512x8xf32>
    %17 = arith.truncf %16 : vector<512x8xf32> to vector<512x8xbf16>
    %c0_11 = arith.constant 0 : index
    %c0_12 = arith.constant 0 : index
    %18 = vector.load %arg7[%c0_11, %c0_12] : memref<8x8xbf16, #tpu.memory_space<vmem>>, vector<8x8xbf16>
    %cst = arith.constant dense<0.000000e+00> : vector<512x8xf32>
    %19 = tpu.matmul %8, %18, %cst {dimension_numbers = #tpu.dot_dimension_numbers<[1], [0], [0], [1], [0, 0, 1, 1], [], []>} : vector<512x8xbf16>, vector<8x8xbf16>, vector<512x8xf32> -> vector<512x8xf32>
    %c0_13 = arith.constant 0 : index
    %c0_14 = arith.constant 0 : index
    %20 = vector.load %arg8[%c0_13, %c0_14] : memref<8x8xbf16, #tpu.memory_space<vmem>>, vector<8x8xbf16>
    %cst_15 = arith.constant dense<0.000000e+00> : vector<512x8xf32>
    %21 = tpu.matmul %17, %20, %cst_15 {dimension_numbers = #tpu.dot_dimension_numbers<[1], [0], [0], [1], [0, 0, 1, 1], [], []>} : vector<512x8xbf16>, vector<8x8xbf16>, vector<512x8xf32> -> vector<512x8xf32>
    %22 = arith.addf %19, %21 : vector<512x8xf32>
    %c0_16 = arith.constant 0 : index
    %c0_17 = arith.constant 0 : index
    %23 = vector.load %arg9[%c0_16, %c0_17] : memref<1x8xf32, #tpu.memory_space<vmem>>, vector<1x8xf32>
    %24 = vector.broadcast %23 : vector<1x8xf32> to vector<512x8xf32>
    %25 = arith.addf %22, %24 : vector<512x8xf32>
    %c0_18 = arith.constant 0 : index
    %c0_19 = arith.constant 0 : index
    %26 = vector.load %arg10[%c0_18, %c0_19] : memref<512x8xf32, #tpu.memory_space<vmem>>, vector<512x8xf32>
    tpu.vector_store %arg10[%c0_18, %c0_19], %25 {strides = array<i32>} : memref<512x8xf32, #tpu.memory_space<vmem>>, vector<512x8xf32>,
    %c512_i32 = arith.constant 512 : i32
    %27 = arith.muli %arg0, %c512_i32 : i32
    %28 = tpu.iota {dimensions = array<i32: 0>} : vector<512x1xi32>
    %29 = vector.broadcast %27 : i32 to vector<512x1xi32>
    %30 = arith.addi %29, %28 : vector<512x1xi32>
    %c512_i32_20 = arith.constant 512 : i32
    %31 = vector.broadcast %c512_i32_20 : i32 to vector<512x1xi32>
    %32 = arith.cmpi slt, %30, %31 : vector<512x1xi32>
    %cst_21 = arith.constant 0.000000e+00 : f32
    %33 = vector.shape_cast %32 : vector<512x1xi1> to vector<512x1xi1>
    %34 = vector.broadcast %33 : vector<512x1xi1> to vector<512x8xi1>
    %35 = vector.broadcast %cst_21 : f32 to vector<512x8xf32>
    %36 = arith.select %34, %25, %35 : vector<512x8xi1>, vector<512x8xf32>
    %cst_22 = arith.constant dense<0.000000e+00> : vector<8xf32>
    %37 = vector.multi_reduction <add>, %36, %cst_22 [0] : vector<512x8xf32> to vector<8xf32>
    %38 = vector.shape_cast %37 : vector<8xf32> to vector<1x8xf32>
    %c0_23 = arith.constant 0 : index
    %c0_24 = arith.constant 0 : index
    %c0_25 = arith.constant 0 : index
    %39 = vector.load %arg11[%c0_23, %c0_24, %c0_25] : memref<1x1x8xf32, #tpu.memory_space<vmem>>, vector<1x1x8xf32>
    %40 = vector.shape_cast %39 : vector<1x1x8xf32> to vector<1x8xf32>
    %41 = vector.shape_cast %38 : vector<1x8xf32> to vector<1x1x8xf32>
    tpu.vector_store %arg11[%c0_23, %c0_24, %c0_25], %41 {strides = array<i32>} : memref<1x1x8xf32, #tpu.memory_space<vmem>>, vector<1x1x8xf32>,
    %42 = arith.mulf %36, %36 : vector<512x8xf32>
    %cst_26 = arith.constant dense<0.000000e+00> : vector<8xf32>
    %43 = vector.multi_reduction <add>, %42, %cst_26 [0] : vector<512x8xf32> to vector<8xf32>
    %44 = vector.shape_cast %43 : vector<8xf32> to vector<1x8xf32>
    %c0_27 = arith.constant 0 : index
    %c0_28 = arith.constant 0 : index
    %c0_29 = arith.constant 0 : index
    %45 = vector.load %arg12[%c0_27, %c0_28, %c0_29] : memref<1x1x8xf32, #tpu.memory_space<vmem>>, vector<1x1x8xf32>
    %46 = vector.shape_cast %45 : vector<1x1x8xf32> to vector<1x8xf32>
    %47 = vector.shape_cast %44 : vector<1x8xf32> to vector<1x1x8xf32>
    tpu.vector_store %arg12[%c0_27, %c0_28, %c0_29], %47 {strides = array<i32>} : memref<1x1x8xf32, #tpu.memory_space<vmem>>, vector<1x1x8xf32>,
    return
  }
  func.func @transform_0(%arg0: i32) -> (i32, i32) {
    %c0_i32 = arith.constant 0 : i32
    %c0_i32_0 = arith.constant 0 : i32
    return %arg0, %c0_i32 : i32, i32
  }
  func.func @transform_1(%arg0: i32) -> (i32, i32) {
    %c0_i32 = arith.constant 0 : i32
    %c0_i32_0 = arith.constant 0 : i32
    return %arg0, %c0_i32 : i32, i32
  }
  func.func @transform_2(%arg0: i32) -> (i32, i32) {
    %c0_i32 = arith.constant 0 : i32
    %c0_i32_0 = arith.constant 0 : i32
    %c0_i32_1 = arith.constant 0 : i32
    return %c0_i32, %c0_i32_0 : i32, i32
  }
  func.func @transform_3(%arg0: i32) -> (i32, i32) {
    %c0_i32 = arith.constant 0 : i32
    %c0_i32_0 = arith.constant 0 : i32
    %c0_i32_1 = arith.constant 0 : i32
    return %c0_i32, %c0_i32_0 : i32, i32
  }
  func.func @transform_4(%arg0: i32) -> (i32, i32) {
    %c0_i32 = arith.constant 0 : i32
    %c0_i32_0 = arith.constant 0 : i32
    %c0_i32_1 = arith.constant 0 : i32
    return %c0_i32, %c0_i32_0 : i32, i32
  }
  func.func @transform_5(%arg0: i32) -> (i32, i32) {
    %c0_i32 = arith.constant 0 : i32
    %c0_i32_0 = arith.constant 0 : i32
    %c0_i32_1 = arith.constant 0 : i32
    return %c0_i32, %c0_i32_0 : i32, i32
  }
  func.func @transform_6(%arg0: i32) -> (i32, i32) {
    %c0_i32 = arith.constant 0 : i32
    %c0_i32_0 = arith.constant 0 : i32
    %c0_i32_1 = arith.constant 0 : i32
    return %c0_i32, %c0_i32_0 : i32, i32
  }
  func.func @transform_7(%arg0: i32) -> (i32, i32) {
    %c0_i32 = arith.constant 0 : i32
    %c0_i32_0 = arith.constant 0 : i32
    %c0_i32_1 = arith.constant 0 : i32
    return %c0_i32, %c0_i32_0 : i32, i32
  }
  func.func @transform_8(%arg0: i32) -> (i32, i32) {
    %c0_i32 = arith.constant 0 : i32
    %c0_i32_0 = arith.constant 0 : i32
    %c0_i32_1 = arith.constant 0 : i32
    return %c0_i32, %c0_i32_0 : i32, i32
  }
  func.func @transform_9(%arg0: i32) -> (i32, i32) {
    %c0_i32 = arith.constant 0 : i32
    %c0_i32_0 = arith.constant 0 : i32
    return %arg0, %c0_i32 : i32, i32
  }
  func.func @transform_10(%arg0: i32) -> (i32, i32, i32) {
    %c0_i32 = arith.constant 0 : i32
    %c0_i32_0 = arith.constant 0 : i32
    %c0_i32_1 = arith.constant 0 : i32
    return %arg0, %c0_i32, %c0_i32_0 : i32, i32, i32
  }
  func.func @transform_11(%arg0: i32) -> (i32, i32, i32) {
    %c0_i32 = arith.constant 0 : i32
    %c0_i32_0 = arith.constant 0 : i32
    %c0_i32_1 = arith.constant 0 : i32
    return %arg0, %c0_i32, %c0_i32_0 : i32, i32, i32
  }
}

</mosaic_0001>

<llo_original>
// kernel: squeeze.0
$region0: #{squeeze.0}
  %s0 = inlined_call_operand.vmem [shape: f32[2,16,16,1], index: 0, kind: input, shape index: {}]
  %s1 = inlined_call_operand.vmem [shape: f32[512,1], index: 1, kind: output, shape index: {}]
  %v2 = vld [vmem:[%s0] sm:$0xff]
  %vm3 = vcmask 7168
  %4 = vst.msk [vmem:[%s1] ss:$16 sm:$0x3] %vm3, %v2
  %5 = vst.msk [vmem:[%s1] ss:$16 sm:$0xc] %vm3, %v2
  %6 = vst.msk [vmem:[%s1] ss:$16 sm:$0x30] %vm3, %v2
  %7 = vst.msk [vmem:[%s1] ss:$16 sm:$0xc0] %vm3, %v2
  %s8 = scalar_lea.vmem %s0, 8
  %v9 = vld [vmem:[%s8] sm:$0xff]
  %vm10 = vcmask 7168
  %s11 = scalar_lea.vmem %s1, 128
  %12 = vst.msk [vmem:[%s11] ss:$16 sm:$0x3] %vm10, %v9
  %s13 = scalar_lea.vmem %s1, 128
  %14 = vst.msk [vmem:[%s13] ss:$16 sm:$0xc] %vm10, %v9
  %s15 = scalar_lea.vmem %s1, 128
  %16 = vst.msk [vmem:[%s15] ss:$16 sm:$0x30] %vm10, %v9
  %s17 = scalar_lea.vmem %s1, 128
  %18 = vst.msk [vmem:[%s17] ss:$16 sm:$0xc0] %vm10, %v9
  %s19 = scalar_lea.vmem %s0, 16
  %v20 = vld [vmem:[%s19] sm:$0xff]
  %vm21 = vcmask 7168
  %s22 = scalar_lea.vmem %s1, 256
  %23 = vst.msk [vmem:[%s22] ss:$16 sm:$0x3] %vm21, %v20
  %s24 = scalar_lea.vmem %s1, 256
  %25 = vst.msk [vmem:[%s24] ss:$16 sm:$0xc] %vm21, %v20
  %s26 = scalar_lea.vmem %s1, 256
  %27 = vst.msk [vmem:[%s26] ss:$16 sm:$0x30] %vm21, %v20
  %s28 = scalar_lea.vmem %s1, 256
  %29 = vst.msk [vmem:[%s28] ss:$16 sm:$0xc0] %vm21, %v20
  %s30 = scalar_lea.vmem %s0, 24
  %v31 = vld [vmem:[%s30] sm:$0xff]
  %vm32 = vcmask 7168
  %s33 = scalar_lea.vmem %s1, 384
  %34 = vst.msk [vmem:[%s33] ss:$16 sm:$0x3] %vm32, %v31
  %s35 = scalar_lea.vmem %s1, 384
  %36 = vst.msk [vmem:[%s35] ss:$16 sm:$0xc] %vm32, %v31
  %s37 = scalar_lea.vmem %s1, 384
  %38 = vst.msk [vmem:[%s37] ss:$16 sm:$0x30] %vm32, %v31
  %s39 = scalar_lea.vmem %s1, 384
  %40 = vst.msk [vmem:[%s39] ss:$16 sm:$0xc0] %vm32, %v31
  %v41 = vld [vmem:[%s0] sm:$0xff]
  %42 = vrot.lane.b32.xlu0 %v41, 127
  %v43 = vpop.permute.xlu0 %42
  %vm44 = vcmask 7168
  %s45 = scalar_lea.vmem %s1, 1
  %46 = vst.msk [vmem:[%s45] ss:$16 sm:$0x3] %vm44, %v43
  %s47 = scalar_lea.vmem %s1, 1
  %48 = vst.msk [vmem:[%s47] ss:$16 sm:$0xc] %vm44, %v43
  %s49 = scalar_lea.vmem %s1, 1
  %50 = vst.msk [vmem:[%s49] ss:$16 sm:$0x30] %vm44, %v43
  %s51 = scalar_lea.vmem %s1, 1
  %52 = vst.msk [vmem:[%s51] ss:$16 sm:$0xc0] %vm44, %v43
  %s53 = scalar_lea.vmem %s0, 8
  %v54 = vld [vmem:[%s53] sm:$0xff]
  %55 = vrot.lane.b32.xlu0 %v54, 127
  %v56 = vpop.permute.xlu0 %55
  %vm57 = vcmask 7168
  %s58 = scalar_lea.vmem %s1, 129
  %59 = vst.msk [vmem:[%s58] ss:$16 sm:$0x3] %vm57, %v56
  %s60 = scalar_lea.vmem %s1, 129
  %61 = vst.msk [vmem:[%s60] ss:$16 sm:$0xc] %vm57, %v56
  %s62 = scalar_lea.vmem %s1, 129
  %63 = vst.msk [vmem:[%s62] ss:$16 sm:$0x30] %vm57, %v56
  %s64 = scalar_lea.vmem %s1, 129
  %65 = vst.msk [vmem:[%s64] ss:$16 sm:$0xc0] %vm57, %v56
  %s66 = scalar_lea.vmem %s0, 16
  %v67 = vld [vmem:[%s66] sm:$0xff]
  %68 = vrot.lane.b32.xlu0 %v67, 127
  %v69 = vpop.permute.xlu0 %68
  %vm70 = vcmask 7168
  %s71 = scalar_lea.vmem %s1, 257
  %72 = vst.msk [vmem:[%s71] ss:$16 sm:$0x3] %vm70, %v69
  %s73 = scalar_lea.vmem %s1, 257
  %74 = vst.msk [vmem:[%s73] ss:$16 sm:$0xc] %vm70, %v69
  %s75 = scalar_lea.vmem %s1, 257
  %76 = vst.msk [vmem:[%s75] ss:$16 sm:$0x30] %vm70, %v69
  %s77 = scalar_lea.vmem %s1, 257
  %78 = vst.msk [vmem:[%s77] ss:$16 sm:$0xc0] %vm70, %v69
  %s79 = scalar_lea.vmem %s0, 24
  %v80 = vld [vmem:[%s79] sm:$0xff]
  %81 = vrot.lane.b32.xlu0 %v80, 127
  %v82 = vpop.permute.xlu0 %81
  %vm83 = vcmask 7168
  %s84 = scalar_lea.vmem %s1, 385
  %85 = vst.msk [vmem:[%s84] ss:$16 sm:$0x3] %vm83, %v82
  %s86 = scalar_lea.vmem %s1, 385
  %87 = vst.msk [vmem:[%s86] ss:$16 sm:$0xc] %vm83, %v82
  %s88 = scalar_lea.vmem %s1, 385
  %89 = vst.msk [vmem:[%s88] ss:$16 sm:$0x30] %vm83, %v82
  %s90 = scalar_lea.vmem %s1, 385
  %91 = vst.msk [vmem:[%s90] ss:$16 sm:$0xc0] %vm83, %v82
  %v92 = vld [vmem:[%s0] sm:$0xff]
  %93 = vrot.lane.b32.xlu0 %v92, 126
  %v94 = vpop.permute.xlu0 %93
  %vm95 = vcmask 7168
  %s96 = scalar_lea.vmem %s1, 2
  %97 = vst.msk [vmem:[%s96] ss:$16 sm:$0x3] %vm95, %v94
  %s98 = scalar_lea.vmem %s1, 2
  %99 = vst.msk [vmem:[%s98] ss:$16 sm:$0xc] %vm95, %v94
  %s100 = scalar_lea.vmem %s1, 2
  %101 = vst.msk [vmem:[%s100] ss:$16 sm:$0x30] %vm95, %v94
  %s102 = scalar_lea.vmem %s1, 2
  %103 = vst.msk [vmem:[%s102] ss:$16 sm:$0xc0] %vm95, %v94
  %s104 = scalar_lea.vmem %s0, 8
  %v105 = vld [vmem:[%s104] sm:$0xff]
  %106 = vrot.lane.b32.xlu0 %v105, 126
  %v107 = vpop.permute.xlu0 %106
  %vm108 = vcmask 7168
  %s109 = scalar_lea.vmem %s1, 130
  %110 = vst.msk [vmem:[%s109] ss:$16 sm:$0x3] %vm108, %v107
  %s111 = scalar_lea.vmem %s1, 130
  %112 = vst.msk [vmem:[%s111] ss:$16 sm:$0xc] %vm108, %v107
  %s113 = scalar_lea.vmem %s1, 130
  %114 = vst.msk [vmem:[%s113] ss:$16 sm:$0x30] %vm108, %v107
  %s115 = scalar_lea.vmem %s1, 130
  %116 = vst.msk [vmem:[%s115] ss:$16 sm:$0xc0] %vm108, %v107
  %s117 = scalar_lea.vmem %s0, 16
  %v118 = vld [vmem:[%s117] sm:$0xff]
  %119 = vrot.lane.b32.xlu0 %v118, 126
  %v120 = vpop.permute.xlu0 %119
  %vm121 = vcmask 7168
  %s122 = scalar_lea.vmem %s1, 258
  %123 = vst.msk [vmem:[%s122] ss:$16 sm:$0x3] %vm121, %v120
  %s124 = scalar_lea.vmem %s1, 258
  %125 = vst.msk [vmem:[%s124] ss:$16 sm:$0xc] %vm121, %v120
  %s126 = scalar_lea.vmem %s1, 258
  %127 = vst.msk [vmem:[%s126] ss:$16 sm:$0x30] %vm121, %v120
  %s128 = scalar_lea.vmem %s1, 258
  %129 = vst.msk [vmem:[%s128] ss:$16 sm:$0xc0] %vm121, %v120
  %s130 = scalar_lea.vmem %s0, 24
  %v131 = vld [vmem:[%s130] sm:$0xff]
  %132 = vrot.lane.b32.xlu0 %v131, 126
  %v133 = vpop.permute.xlu0 %132
  %vm134 = vcmask 7168
  %s135 = scalar_lea.vmem %s1, 386
  %136 = vst.msk [vmem:[%s135] ss:$16 sm:$0x3] %vm134, %v133
  %s137 = scalar_lea.vmem %s1, 386
  %138 = vst.msk [vmem:[%s137] ss:$16 sm:$0xc] %vm134, %v133
  %s139 = scalar_lea.vmem %s1, 386
  %140 = vst.msk [vmem:[%s139] ss:$16 sm:$0x30] %vm134, %v133
  %s141 = scalar_lea.vmem %s1, 386
  %142 = vst.msk [vmem:[%s141] ss:$16 sm:$0xc0] %vm134, %v133
  %v143 = vld [vmem:[%s0] sm:$0xff]
  %144 = vrot.lane.b32.xlu0 %v143, 125
  %v145 = vpop.permute.xlu0 %144
  %vm146 = vcmask 7168
  %s147 = scalar_lea.vmem %s1, 3
  %148 = vst.msk [vmem:[%s147] ss:$16 sm:$0x3] %vm146, %v145
  %s149 = scalar_lea.vmem %s1, 3
  %150 = vst.msk [vmem:[%s149] ss:$16 sm:$0xc] %vm146, %v145
  %s151 = scalar_lea.vmem %s1, 3
  %152 = vst.msk [vmem:[%s151] ss:$16 sm:$0x30] %vm146, %v145
  %s153 = scalar_lea.vmem %s1, 3
  %154 = vst.msk [vmem:[%s153] ss:$16 sm:$0xc0] %vm146, %v145
  %s155 = scalar_lea.vmem %s0, 8
  %v156 = vld [vmem:[%s155] sm:$0xff]
  %157 = vrot.lane.b32.xlu0 %v156, 125
  %v158 = vpop.permute.xlu0 %157
  %vm159 = vcmask 7168
  %s160 = scalar_lea.vmem %s1, 131
  %161 = vst.msk [vmem:[%s160] ss:$16 sm:$0x3] %vm159, %v158
  %s162 = scalar_lea.vmem %s1, 131
  %163 = vst.msk [vmem:[%s162] ss:$16 sm:$0xc] %vm159, %v158
  %s164 = scalar_lea.vmem %s1, 131
  %165 = vst.msk [vmem:[%s164] ss:$16 sm:$0x30] %vm159, %v158
  %s166 = scalar_lea.vmem %s1, 131
  %167 = vst.msk [vmem:[%s166] ss:$16 sm:$0xc0] %vm159, %v158
  %s168 = scalar_lea.vmem %s0, 16
  %v169 = vld [vmem:[%s168] sm:$0xff]
  %170 = vrot.lane.b32.xlu0 %v169, 125
  %v171 = vpop.permute.xlu0 %170
  %vm172 = vcmask 7168
  %s173 = scalar_lea.vmem %s1, 259
  %174 = vst.msk [vmem:[%s173] ss:$16 sm:$0x3] %vm172, %v171
  %s175 = scalar_lea.vmem %s1, 259
  %176 = vst.msk [vmem:[%s175] ss:$16 sm:$0xc] %vm172, %v171
  %s177 = scalar_lea.vmem %s1, 259
  %178 = vst.msk [vmem:[%s177] ss:$16 sm:$0x30] %vm172, %v171
  %s179 = scalar_lea.vmem %s1, 259
  %180 = vst.msk [vmem:[%s179] ss:$16 sm:$0xc0] %vm172, %v171
  %s181 = scalar_lea.vmem %s0, 24
  %v182 = vld [vmem:[%s181] sm:$0xff]
  %183 = vrot.lane.b32.xlu0 %v182, 125
  %v184 = vpop.permute.xlu0 %183
  %vm185 = vcmask 7168
  %s186 = scalar_lea.vmem %s1, 387
  %187 = vst.msk [vmem:[%s186] ss:$16 sm:$0x3] %vm185, %v184
  %s188 = scalar_lea.vmem %s1, 387
  %189 = vst.msk [vmem:[%s188] ss:$16 sm:$0xc] %vm185, %v184
  %s190 = scalar_lea.vmem %s1, 387
  %191 = vst.msk [vmem:[%s190] ss:$16 sm:$0x30] %vm185, %v184
  %s192 = scalar_lea.vmem %s1, 387
  %193 = vst.msk [vmem:[%s192] ss:$16 sm:$0xc0] %vm185, %v184
  %v194 = vld [vmem:[%s0] sm:$0xff]
  %195 = vrot.lane.b32.xlu0 %v194, 124
  %v196 = vpop.permute.xlu0 %195
  %vm197 = vcmask 7168
  %s198 = scalar_lea.vmem %s1, 4
  %199 = vst.msk [vmem:[%s198] ss:$16 sm:$0x3] %vm197, %v196
  %s200 = scalar_lea.vmem %s1, 4
  %201 = vst.msk [vmem:[%s200] ss:$16 sm:$0xc] %vm197, %v196
  %s202 = scalar_lea.vmem %s1, 4
  %203 = vst.msk [vmem:[%s202] ss:$16 sm:$0x30] %vm197, %v196
  %s204 = scalar_lea.vmem %s1, 4
  %205 = vst.msk [vmem:[%s204] ss:$16 sm:$0xc0] %vm197, %v196
  %s206 = scalar_lea.vmem %s0, 8
  %v207 = vld [vmem:[%s206] sm:$0xff]
  %208 = vrot.lane.b32.xlu0 %v207, 124
  %v209 = vpop.permute.xlu0 %208
  %vm210 = vcmask 7168
  %s211 = scalar_lea.vmem %s1, 132
  %212 = vst.msk [vmem:[%s211] ss:$16 sm:$0x3] %vm210, %v209
  %s213 = scalar_lea.vmem %s1, 132
  %214 = vst.msk [vmem:[%s213] ss:$16 sm:$0xc] %vm210, %v209
  %s215 = scalar_lea.vmem %s1, 132
  %216 = vst.msk [vmem:[%s215] ss:$16 sm:$0x30] %vm210, %v209
  %s217 = scalar_lea.vmem %s1, 132
  %218 = vst.msk [vmem:[%s217] ss:$16 sm:$0xc0] %vm210, %v209
  %s219 = scalar_lea.vmem %s0, 16
  %v220 = vld [vmem:[%s219] sm:$0xff]
  %221 = vrot.lane.b32.xlu0 %v220, 124
  %v222 = vpop.permute.xlu0 %221
  %vm223 = vcmask 7168
  %s224 = scalar_lea.vmem %s1, 260
  %225 = vst.msk [vmem:[%s224] ss:$16 sm:$0x3] %vm223, %v222
  %s226 = scalar_lea.vmem %s1, 260
  %227 = vst.msk [vmem:[%s226] ss:$16 sm:$0xc] %vm223, %v222
  %s228 = scalar_lea.vmem %s1, 260
  %229 = vst.msk [vmem:[%s228] ss:$16 sm:$0x30] %vm223, %v222
  %s230 = scalar_lea.vmem %s1, 260
  %231 = vst.msk [vmem:[%s230] ss:$16 sm:$0xc0] %vm223, %v222
  %s232 = scalar_lea.vmem %s0, 24
  %v233 = vld [vmem:[%s232] sm:$0xff]
  %234 = vrot.lane.b32.xlu0 %v233, 124
  %v235 = vpop.permute.xlu0 %234
  %vm236 = vcmask 7168
  %s237 = scalar_lea.vmem %s1, 388
  %238 = vst.msk [vmem:[%s237] ss:$16 sm:$0x3] %vm236, %v235
  %s239 = scalar_lea.vmem %s1, 388
  %240 = vst.msk [vmem:[%s239] ss:$16 sm:$0xc] %vm236, %v235
  %s241 = scalar_lea.vmem %s1, 388
  %242 = vst.msk [vmem:[%s241] ss:$16 sm:$0x30] %vm236, %v235
  %s243 = scalar_lea.vmem %s1, 388
  %244 = vst.msk [vmem:[%s243] ss:$16 sm:$0xc0] %vm236, %v235
  %v245 = vld [vmem:[%s0] sm:$0xff]
  %246 = vrot.lane.b32.xlu0 %v245, 123
  %v247 = vpop.permute.xlu0 %246
  %vm248 = vcmask 7168
  %s249 = scalar_lea.vmem %s1, 5
  %250 = vst.msk [vmem:[%s249] ss:$16 sm:$0x3] %vm248, %v247
  %s251 = scalar_lea.vmem %s1, 5
  %252 = vst.msk [vmem:[%s251] ss:$16 sm:$0xc] %vm248, %v247
  %s253 = scalar_lea.vmem %s1, 5
  %254 = vst.msk [vmem:[%s253] ss:$16 sm:$0x30] %vm248, %v247
  %s255 = scalar_lea.vmem %s1, 5
  %256 = vst.msk [vmem:[%s255] ss:$16 sm:$0xc0] %vm248, %v247
  %s257 = scalar_lea.vmem %s0, 8
  %v258 = vld [vmem:[%s257] sm:$0xff]
  %259 = vrot.lane.b32.xlu0 %v258, 123
  %v260 = vpop.permute.xlu0 %259
  %vm261 = vcmask 7168
  %s262 = scalar_lea.vmem %s1, 133
  %263 = vst.msk [vmem:[%s262] ss:$16 sm:$0x3] %vm261, %v260
  %s264 = scalar_lea.vmem %s1, 133
  %265 = vst.msk [vmem:[%s264] ss:$16 sm:$0xc] %vm261, %v260
  %s266 = scalar_lea.vmem %s1, 133
  %267 = vst.msk [vmem:[%s266] ss:$16 sm:$0x30] %vm261, %v260
  %s268 = scalar_lea.vmem %s1, 133
  %269 = vst.msk [vmem:[%s268] ss:$16 sm:$0xc0] %vm261, %v260
  %s270 = scalar_lea.vmem %s0, 16
  %v271 = vld [vmem:[%s270] sm:$0xff]
  %272 = vrot.lane.b32.xlu0 %v271, 123
  %v273 = vpop.permute.xlu0 %272
  %vm274 = vcmask 7168
  %s275 = scalar_lea.vmem %s1, 261
  %276 = vst.msk [vmem:[%s275] ss:$16 sm:$0x3] %vm274, %v273
  %s277 = scalar_lea.vmem %s1, 261
  %278 = vst.msk [vmem:[%s277] ss:$16 sm:$0xc] %vm274, %v273
  %s279 = scalar_lea.vmem %s1, 261
  %280 = vst.msk [vmem:[%s279] ss:$16 sm:$0x30] %vm274, %v273
  %s281 = scalar_lea.vmem %s1, 261
  %282 = vst.msk [vmem:[%s281] ss:$16 sm:$0xc0] %vm274, %v273
  %s283 = scalar_lea.vmem %s0, 24
  %v284 = vld [vmem:[%s283] sm:$0xff]
  %285 = vrot.lane.b32.xlu0 %v284, 123
  %v286 = vpop.permute.xlu0 %285
  %vm287 = vcmask 7168
  %s288 = scalar_lea.vmem %s1, 389
  %289 = vst.msk [vmem:[%s288] ss:$16 sm:$0x3] %vm287, %v286
  %s290 = scalar_lea.vmem %s1, 389
  %291 = vst.msk [vmem:[%s290] ss:$16 sm:$0xc] %vm287, %v286
  %s292 = scalar_lea.vmem %s1, 389
  %293 = vst.msk [vmem:[%s292] ss:$16 sm:$0x30] %vm287, %v286
  %s294 = scalar_lea.vmem %s1, 389
  %295 = vst.msk [vmem:[%s294] ss:$16 sm:$0xc0] %vm287, %v286
  %v296 = vld [vmem:[%s0] sm:$0xff]
  %297 = vrot.lane.b32.xlu0 %v296, 122
  %v298 = vpop.permute.xlu0 %297
  %vm299 = vcmask 7168
  %s300 = scalar_lea.vmem %s1, 6
  %301 = vst.msk [vmem:[%s300] ss:$16 sm:$0x3] %vm299, %v298
  %s302 = scalar_lea.vmem %s1, 6
  %303 = vst.msk [vmem:[%s302] ss:$16 sm:$0xc] %vm299, %v298
  %s304 = scalar_lea.vmem %s1, 6
  %305 = vst.msk [vmem:[%s304] ss:$16 sm:$0x30] %vm299, %v298
  %s306 = scalar_lea.vmem %s1, 6
  %307 = vst.msk [vmem:[%s306] ss:$16 sm:$0xc0] %vm299, %v298
  %s308 = scalar_lea.vmem %s0, 8
  %v309 = vld [vmem:[%s308] sm:$0xff]
  %310 = vrot.lane.b32.xlu0 %v309, 122
  %v311 = vpop.permute.xlu0 %310
  %vm312 = vcmask 7168
  %s313 = scalar_lea.vmem %s1, 134
  %314 = vst.msk [vmem:[%s313] ss:$16 sm:$0x3] %vm312, %v311
  %s315 = scalar_lea.vmem %s1, 134
  %316 = vst.msk [vmem:[%s315] ss:$16 sm:$0xc] %vm312, %v311
  %s317 = scalar_lea.vmem %s1, 134
  %318 = vst.msk [vmem:[%s317] ss:$16 sm:$0x30] %vm312, %v311
  %s319 = scalar_lea.vmem %s1, 134
  %320 = vst.msk [vmem:[%s319] ss:$16 sm:$0xc0] %vm312, %v311
  %s321 = scalar_lea.vmem %s0, 16
  %v322 = vld [vmem:[%s321] sm:$0xff]
  %323 = vrot.lane.b32.xlu0 %v322, 122
  %v324 = vpop.permute.xlu0 %323
  %vm325 = vcmask 7168
  %s326 = scalar_lea.vmem %s1, 262
  %327 = vst.msk [vmem:[%s326] ss:$16 sm:$0x3] %vm325, %v324
  %s328 = scalar_lea.vmem %s1, 262
  %329 = vst.msk [vmem:[%s328] ss:$16 sm:$0xc] %vm325, %v324
  %s330 = scalar_lea.vmem %s1, 262
  %331 = vst.msk [vmem:[%s330] ss:$16 sm:$0x30] %vm325, %v324
  %s332 = scalar_lea.vmem %s1, 262
  %333 = vst.msk [vmem:[%s332] ss:$16 sm:$0xc0] %vm325, %v324
  %s334 = scalar_lea.vmem %s0, 24
  %v335 = vld [vmem:[%s334] sm:$0xff]
  %336 = vrot.lane.b32.xlu0 %v335, 122
  %v337 = vpop.permute.xlu0 %336
  %vm338 = vcmask 7168
  %s339 = scalar_lea.vmem %s1, 390
  %340 = vst.msk [vmem:[%s339] ss:$16 sm:$0x3] %vm338, %v337
  %s341 = scalar_lea.vmem %s1, 390
  %342 = vst.msk [vmem:[%s341] ss:$16 sm:$0xc] %vm338, %v337
  %s343 = scalar_lea.vmem %s1, 390
  %344 = vst.msk [vmem:[%s343] ss:$16 sm:$0x30] %vm338, %v337
  %s345 = scalar_lea.vmem %s1, 390
  %346 = vst.msk [vmem:[%s345] ss:$16 sm:$0xc0] %vm338, %v337
  %v347 = vld [vmem:[%s0] sm:$0xff]
  %348 = vrot.lane.b32.xlu0 %v347, 121
  %v349 = vpop.permute.xlu0 %348
  %vm350 = vcmask 7168
  %s351 = scalar_lea.vmem %s1, 7
  %352 = vst.msk [vmem:[%s351] ss:$16 sm:$0x3] %vm350, %v349
  %s353 = scalar_lea.vmem %s1, 7
  %354 = vst.msk [vmem:[%s353] ss:$16 sm:$0xc] %vm350, %v349
  %s355 = scalar_lea.vmem %s1, 7
  %356 = vst.msk [vmem:[%s355] ss:$16 sm:$0x30] %vm350, %v349
  %s357 = scalar_lea.vmem %s1, 7
  %358 = vst.msk [vmem:[%s357] ss:$16 sm:$0xc0] %vm350, %v349
  %s359 = scalar_lea.vmem %s0, 8
  %v360 = vld [vmem:[%s359] sm:$0xff]
  %361 = vrot.lane.b32.xlu0 %v360, 121
  %v362 = vpop.permute.xlu0 %361
  %vm363 = vcmask 7168
  %s364 = scalar_lea.vmem %s1, 135
  %365 = vst.msk [vmem:[%s364] ss:$16 sm:$0x3] %vm363, %v362
  %s366 = scalar_lea.vmem %s1, 135
  %367 = vst.msk [vmem:[%s366] ss:$16 sm:$0xc] %vm363, %v362
  %s368 = scalar_lea.vmem %s1, 135
  %369 = vst.msk [vmem:[%s368] ss:$16 sm:$0x30] %vm363, %v362
  %s370 = scalar_lea.vmem %s1, 135
  %371 = vst.msk [vmem:[%s370] ss:$16 sm:$0xc0] %vm363, %v362
  %s372 = scalar_lea.vmem %s0, 16
  %v373 = vld [vmem:[%s372] sm:$0xff]
  %374 = vrot.lane.b32.xlu0 %v373, 121
  %v375 = vpop.permute.xlu0 %374
  %vm376 = vcmask 7168
  %s377 = scalar_lea.vmem %s1, 263
  %378 = vst.msk [vmem:[%s377] ss:$16 sm:$0x3] %vm376, %v375
  %s379 = scalar_lea.vmem %s1, 263
  %380 = vst.msk [vmem:[%s379] ss:$16 sm:$0xc] %vm376, %v375
  %s381 = scalar_lea.vmem %s1, 263
  %382 = vst.msk [vmem:[%s381] ss:$16 sm:$0x30] %vm376, %v375
  %s383 = scalar_lea.vmem %s1, 263
  %384 = vst.msk [vmem:[%s383] ss:$16 sm:$0xc0] %vm376, %v375
  %s385 = scalar_lea.vmem %s0, 24
  %v386 = vld [vmem:[%s385] sm:$0xff]
  %387 = vrot.lane.b32.xlu0 %v386, 121
  %v388 = vpop.permute.xlu0 %387
  %vm389 = vcmask 7168
  %s390 = scalar_lea.vmem %s1, 391
  %391 = vst.msk [vmem:[%s390] ss:$16 sm:$0x3] %vm389, %v388
  %s392 = scalar_lea.vmem %s1, 391
  %393 = vst.msk [vmem:[%s392] ss:$16 sm:$0xc] %vm389, %v388
  %s394 = scalar_lea.vmem %s1, 391
  %395 = vst.msk [vmem:[%s394] ss:$16 sm:$0x30] %vm389, %v388
  %s396 = scalar_lea.vmem %s1, 391
  %397 = vst.msk [vmem:[%s396] ss:$16 sm:$0xc0] %vm389, %v388
  %v398 = vld [vmem:[%s0] sm:$0xff]
  %399 = vrot.lane.b32.xlu0 %v398, 120
  %v400 = vpop.permute.xlu0 %399
  %vm401 = vcmask 7168
  %s402 = scalar_lea.vmem %s1, 8
  %403 = vst.msk [vmem:[%s402] ss:$16 sm:$0x3] %vm401, %v400
  %s404 = scalar_lea.vmem %s1, 8
  %405 = vst.msk [vmem:[%s404] ss:$16 sm:$0xc] %vm401, %v400
  %s406 = scalar_lea.vmem %s1, 8
  %407 = vst.msk [vmem:[%s406] ss:$16 sm:$0x30] %vm401, %v400
  %s408 = scalar_lea.vmem %s1, 8
  %409 = vst.msk [vmem:[%s408] ss:$16 sm:$0xc0] %vm401, %v400
  %s410 = scalar_lea.vmem %s0, 8
  %v411 = vld [vmem:[%s410] sm:$0xff]
  %412 = vrot.lane.b32.xlu0 %v411, 120
  %v413 = vpop.permute.xlu0 %412
  %vm414 = vcmask 7168
  %s415 = scalar_lea.vmem %s1, 136
  %416 = vst.msk [vmem:[%s415] ss:$16 sm:$0x3] %vm414, %v413
  %s417 = scalar_lea.vmem %s1, 136
  %418 = vst.msk [vmem:[%s417] ss:$16 sm:$0xc] %vm414, %v413
  %s419 = scalar_lea.vmem %s1, 136
  %420 = vst.msk [vmem:[%s419] ss:$16 sm:$0x30] %vm414, %v413
  %s421 = scalar_lea.vmem %s1, 136
  %422 = vst.msk [vmem:[%s421] ss:$16 sm:$0xc0] %vm414, %v413
  %s423 = scalar_lea.vmem %s0, 16
  %v424 = vld [vmem:[%s423] sm:$0xff]
  %425 = vrot.lane.b32.xlu0 %v424, 120
  %v426 = vpop.permute.xlu0 %425
  %vm427 = vcmask 7168
  %s428 = scalar_lea.vmem %s1, 264
  %429 = vst.msk [vmem:[%s428] ss:$16 sm:$0x3] %vm427, %v426
  %s430 = scalar_lea.vmem %s1, 264
  %431 = vst.msk [vmem:[%s430] ss:$16 sm:$0xc] %vm427, %v426
  %s432 = scalar_lea.vmem %s1, 264
  %433 = vst.msk [vmem:[%s432] ss:$16 sm:$0x30] %vm427, %v426
  %s434 = scalar_lea.vmem %s1, 264
  %435 = vst.msk [vmem:[%s434] ss:$16 sm:$0xc0] %vm427, %v426
  %s436 = scalar_lea.vmem %s0, 24
  %v437 = vld [vmem:[%s436] sm:$0xff]
  %438 = vrot.lane.b32.xlu0 %v437, 120
  %v439 = vpop.permute.xlu0 %438
  %vm440 = vcmask 7168
  %s441 = scalar_lea.vmem %s1, 392
  %442 = vst.msk [vmem:[%s441] ss:$16 sm:$0x3] %vm440, %v439
  %s443 = scalar_lea.vmem %s1, 392
  %444 = vst.msk [vmem:[%s443] ss:$16 sm:$0xc] %vm440, %v439
  %s445 = scalar_lea.vmem %s1, 392
  %446 = vst.msk [vmem:[%s445] ss:$16 sm:$0x30] %vm440, %v439
  %s447 = scalar_lea.vmem %s1, 392
  %448 = vst.msk [vmem:[%s447] ss:$16 sm:$0xc0] %vm440, %v439
  %v449 = vld [vmem:[%s0] sm:$0xff]
  %450 = vrot.lane.b32.xlu0 %v449, 119
  %v451 = vpop.permute.xlu0 %450
  %vm452 = vcmask 7168
  %s453 = scalar_lea.vmem %s1, 9
  %454 = vst.msk [vmem:[%s453] ss:$16 sm:$0x3] %vm452, %v451
  %s455 = scalar_lea.vmem %s1, 9
  %456 = vst.msk [vmem:[%s455] ss:$16 sm:$0xc] %vm452, %v451
  %s457 = scalar_lea.vmem %s1, 9
  %458 = vst.msk [vmem:[%s457] ss:$16 sm:$0x30] %vm452, %v451
  %s459 = scalar_lea.vmem %s1, 9
  %460 = vst.msk [vmem:[%s459] ss:$16 sm:$0xc0] %vm452, %v451
  %s461 = scalar_lea.vmem %s0, 8
  %v462 = vld [vmem:[%s461] sm:$0xff]
  %463 = vrot.lane.b32.xlu0 %v462, 119
  %v464 = vpop.permute.xlu0 %463
  %vm465 = vcmask 7168
  %s466 = scalar_lea.vmem %s1, 137
  %467 = vst.msk [vmem:[%s466] ss:$16 sm:$0x3] %vm465, %v464
  %s468 = scalar_lea.vmem %s1, 137
  %469 = vst.msk [vmem:[%s468] ss:$16 sm:$0xc] %vm465, %v464
  %s470 = scalar_lea.vmem %s1, 137
  %471 = vst.msk [vmem:[%s470] ss:$16 sm:$0x30] %vm465, %v464
  %s472 = scalar_lea.vmem %s1, 137
  %473 = vst.msk [vmem:[%s472] ss:$16 sm:$0xc0] %vm465, %v464
  %s474 = scalar_lea.vmem %s0, 16
  %v475 = vld [vmem:[%s474] sm:$0xff]
  %476 = vrot.lane.b32.xlu0 %v475, 119
  %v477 = vpop.permute.xlu0 %476
  %vm478 = vcmask 7168
  %s479 = scalar_lea.vmem %s1, 265
  %480 = vst.msk [vmem:[%s479] ss:$16 sm:$0x3] %vm478, %v477
  %s481 = scalar_lea.vmem %s1, 265
  %482 = vst.msk [vmem:[%s481] ss:$16 sm:$0xc] %vm478, %v477
  %s483 = scalar_lea.vmem %s1, 265
  %484 = vst.msk [vmem:[%s483] ss:$16 sm:$0x30] %vm478, %v477
  %s485 = scalar_lea.vmem %s1, 265
  %486 = vst.msk [vmem:[%s485] ss:$16 sm:$0xc0] %vm478, %v477
  %s487 = scalar_lea.vmem %s0, 24
  %v488 = vld [vmem:[%s487] sm:$0xff]
  %489 = vrot.lane.b32.xlu0 %v488, 119
  %v490 = vpop.permute.xlu0 %489
  %vm491 = vcmask 7168
  %s492 = scalar_lea.vmem %s1, 393
  %493 = vst.msk [vmem:[%s492] ss:$16 sm:$0x3] %vm491, %v490
  %s494 = scalar_lea.vmem %s1, 393
  %495 = vst.msk [vmem:[%s494] ss:$16 sm:$0xc] %vm491, %v490
  %s496 = scalar_lea.vmem %s1, 393
  %497 = vst.msk [vmem:[%s496] ss:$16 sm:$0x30] %vm491, %v490
  %s498 = scalar_lea.vmem %s1, 393
  %499 = vst.msk [vmem:[%s498] ss:$16 sm:$0xc0] %vm491, %v490
  %v500 = vld [vmem:[%s0] sm:$0xff]
  %501 = vrot.lane.b32.xlu0 %v500, 118
  %v502 = vpop.permute.xlu0 %501
  %vm503 = vcmask 7168
  %s504 = scalar_lea.vmem %s1, 10
  %505 = vst.msk [vmem:[%s504] ss:$16 sm:$0x3] %vm503, %v502
  %s506 = scalar_lea.vmem %s1, 10
  %507 = vst.msk [vmem:[%s506] ss:$16 sm:$0xc] %vm503, %v502
  %s508 = scalar_lea.vmem %s1, 10
  %509 = vst.msk [vmem:[%s508] ss:$16 sm:$0x30] %vm503, %v502
  %s510 = scalar_lea.vmem %s1, 10
  %511 = vst.msk [vmem:[%s510] ss:$16 sm:$0xc0] %vm503, %v502
  %s512 = scalar_lea.vmem %s0, 8
  %v513 = vld [vmem:[%s512] sm:$0xff]
  %514 = vrot.lane.b32.xlu0 %v513, 118
  %v515 = vpop.permute.xlu0 %514
  %vm516 = vcmask 7168
  %s517 = scalar_lea.vmem %s1, 138
  %518 = vst.msk [vmem:[%s517] ss:$16 sm:$0x3] %vm516, %v515
  %s519 = scalar_lea.vmem %s1, 138
  %520 = vst.msk [vmem:[%s519] ss:$16 sm:$0xc] %vm516, %v515
  %s521 = scalar_lea.vmem %s1, 138
  %522 = vst.msk [vmem:[%s521] ss:$16 sm:$0x30] %vm516, %v515
  %s523 = scalar_lea.vmem %s1, 138
  %524 = vst.msk [vmem:[%s523] ss:$16 sm:$0xc0] %vm516, %v515
  %s525 = scalar_lea.vmem %s0, 16
  %v526 = vld [vmem:[%s525] sm:$0xff]
  %527 = vrot.lane.b32.xlu0 %v526, 118
  %v528 = vpop.permute.xlu0 %527
  %vm529 = vcmask 7168
  %s530 = scalar_lea.vmem %s1, 266
  %531 = vst.msk [vmem:[%s530] ss:$16 sm:$0x3] %vm529, %v528
  %s532 = scalar_lea.vmem %s1, 266
  %533 = vst.msk [vmem:[%s532] ss:$16 sm:$0xc] %vm529, %v528
  %s534 = scalar_lea.vmem %s1, 266
  %535 = vst.msk [vmem:[%s534] ss:$16 sm:$0x30] %vm529, %v528
  %s536 = scalar_lea.vmem %s1, 266
  %537 = vst.msk [vmem:[%s536] ss:$16 sm:$0xc0] %vm529, %v528
  %s538 = scalar_lea.vmem %s0, 24
  %v539 = vld [vmem:[%s538] sm:$0xff]
  %540 = vrot.lane.b32.xlu0 %v539, 118
  %v541 = vpop.permute.xlu0 %540
  %vm542 = vcmask 7168
  %s543 = scalar_lea.vmem %s1, 394
  %544 = vst.msk [vmem:[%s543] ss:$16 sm:$0x3] %vm542, %v541
  %s545 = scalar_lea.vmem %s1, 394
  %546 = vst.msk [vmem:[%s545] ss:$16 sm:$0xc] %vm542, %v541
  %s547 = scalar_lea.vmem %s1, 394
  %548 = vst.msk [vmem:[%s547] ss:$16 sm:$0x30] %vm542, %v541
  %s549 = scalar_lea.vmem %s1, 394
  %550 = vst.msk [vmem:[%s549] ss:$16 sm:$0xc0] %vm542, %v541
  %v551 = vld [vmem:[%s0] sm:$0xff]
  %552 = vrot.lane.b32.xlu0 %v551, 117
  %v553 = vpop.permute.xlu0 %552
  %vm554 = vcmask 7168
  %s555 = scalar_lea.vmem %s1, 11
  %556 = vst.msk [vmem:[%s555] ss:$16 sm:$0x3] %vm554, %v553
  %s557 = scalar_lea.vmem %s1, 11
  %558 = vst.msk [vmem:[%s557] ss:$16 sm:$0xc] %vm554, %v553
  %s559 = scalar_lea.vmem %s1, 11
  %560 = vst.msk [vmem:[%s559] ss:$16 sm:$0x30] %vm554, %v553
  %s561 = scalar_lea.vmem %s1, 11
  %562 = vst.msk [vmem:[%s561] ss:$16 sm:$0xc0] %vm554, %v553
  %s563 = scalar_lea.vmem %s0, 8
  %v564 = vld [vmem:[%s563] sm:$0xff]
  %565 = vrot.lane.b32.xlu0 %v564, 117
  %v566 = vpop.permute.xlu0 %565
  %vm567 = vcmask 7168
  %s568 = scalar_lea.vmem %s1, 139
  %569 = vst.msk [vmem:[%s568] ss:$16 sm:$0x3] %vm567, %v566
  %s570 = scalar_lea.vmem %s1, 139
  %571 = vst.msk [vmem:[%s570] ss:$16 sm:$0xc] %vm567, %v566
  %s572 = scalar_lea.vmem %s1, 139
  %573 = vst.msk [vmem:[%s572] ss:$16 sm:$0x30] %vm567, %v566
  %s574 = scalar_lea.vmem %s1, 139
  %575 = vst.msk [vmem:[%s574] ss:$16 sm:$0xc0] %vm567, %v566
  %s576 = scalar_lea.vmem %s0, 16
  %v577 = vld [vmem:[%s576] sm:$0xff]
  %578 = vrot.lane.b32.xlu0 %v577, 117
  %v579 = vpop.permute.xlu0 %578
  %vm580 = vcmask 7168
  %s581 = scalar_lea.vmem %s1, 267
  %582 = vst.msk [vmem:[%s581] ss:$16 sm:$0x3] %vm580, %v579
  %s583 = scalar_lea.vmem %s1, 267
  %584 = vst.msk [vmem:[%s583] ss:$16 sm:$0xc] %vm580, %v579
  %s585 = scalar_lea.vmem %s1, 267
  %586 = vst.msk [vmem:[%s585] ss:$16 sm:$0x30] %vm580, %v579
  %s587 = scalar_lea.vmem %s1, 267
  %588 = vst.msk [vmem:[%s587] ss:$16 sm:$0xc0] %vm580, %v579
  %s589 = scalar_lea.vmem %s0, 24
  %v590 = vld [vmem:[%s589] sm:$0xff]
  %591 = vrot.lane.b32.xlu0 %v590, 117
  %v592 = vpop.permute.xlu0 %591
  %vm593 = vcmask 7168
  %s594 = scalar_lea.vmem %s1, 395
  %595 = vst.msk [vmem:[%s594] ss:$16 sm:$0x3] %vm593, %v592
  %s596 = scalar_lea.vmem %s1, 395
  %597 = vst.msk [vmem:[%s596] ss:$16 sm:$0xc] %vm593, %v592
  %s598 = scalar_lea.vmem %s1, 395
  %599 = vst.msk [vmem:[%s598] ss:$16 sm:$0x30] %vm593, %v592
  %s600 = scalar_lea.vmem %s1, 395
  %601 = vst.msk [vmem:[%s600] ss:$16 sm:$0xc0] %vm593, %v592
  %v602 = vld [vmem:[%s0] sm:$0xff]
  %603 = vrot.lane.b32.xlu0 %v602, 116
  %v604 = vpop.permute.xlu0 %603
  %vm605 = vcmask 7168
  %s606 = scalar_lea.vmem %s1, 12
  %607 = vst.msk [vmem:[%s606] ss:$16 sm:$0x3] %vm605, %v604
  %s608 = scalar_lea.vmem %s1, 12
  %609 = vst.msk [vmem:[%s608] ss:$16 sm:$0xc] %vm605, %v604
  %s610 = scalar_lea.vmem %s1, 12
  %611 = vst.msk [vmem:[%s610] ss:$16 sm:$0x30] %vm605, %v604
  %s612 = scalar_lea.vmem %s1, 12
  %613 = vst.msk [vmem:[%s612] ss:$16 sm:$0xc0] %vm605, %v604
  %s614 = scalar_lea.vmem %s0, 8
  %v615 = vld [vmem:[%s614] sm:$0xff]
  %616 = vrot.lane.b32.xlu0 %v615, 116
  %v617 = vpop.permute.xlu0 %616
  %vm618 = vcmask 7168
  %s619 = scalar_lea.vmem %s1, 140
  %620 = vst.msk [vmem:[%s619] ss:$16 sm:$0x3] %vm618, %v617
  %s621 = scalar_lea.vmem %s1, 140
  %622 = vst.msk [vmem:[%s621] ss:$16 sm:$0xc] %vm618, %v617
  %s623 = scalar_lea.vmem %s1, 140
  %624 = vst.msk [vmem:[%s623] ss:$16 sm:$0x30] %vm618, %v617
  %s625 = scalar_lea.vmem %s1, 140
  %626 = vst.msk [vmem:[%s625] ss:$16 sm:$0xc0] %vm618, %v617
  %s627 = scalar_lea.vmem %s0, 16
  %v628 = vld [vmem:[%s627] sm:$0xff]
  %629 = vrot.lane.b32.xlu0 %v628, 116
  %v630 = vpop.permute.xlu0 %629
  %vm631 = vcmask 7168
  %s632 = scalar_lea.vmem %s1, 268
  %633 = vst.msk [vmem:[%s632] ss:$16 sm:$0x3] %vm631, %v630
  %s634 = scalar_lea.vmem %s1, 268
  %635 = vst.msk [vmem:[%s634] ss:$16 sm:$0xc] %vm631, %v630
  %s636 = scalar_lea.vmem %s1, 268
  %637 = vst.msk [vmem:[%s636] ss:$16 sm:$0x30] %vm631, %v630
  %s638 = scalar_lea.vmem %s1, 268
  %639 = vst.msk [vmem:[%s638] ss:$16 sm:$0xc0] %vm631, %v630
  %s640 = scalar_lea.vmem %s0, 24
  %v641 = vld [vmem:[%s640] sm:$0xff]
  %642 = vrot.lane.b32.xlu0 %v641, 116
  %v643 = vpop.permute.xlu0 %642
  %vm644 = vcmask 7168
  %s645 = scalar_lea.vmem %s1, 396
  %646 = vst.msk [vmem:[%s645] ss:$16 sm:$0x3] %vm644, %v643
  %s647 = scalar_lea.vmem %s1, 396
  %648 = vst.msk [vmem:[%s647] ss:$16 sm:$0xc] %vm644, %v643
  %s649 = scalar_lea.vmem %s1, 396
  %650 = vst.msk [vmem:[%s649] ss:$16 sm:$0x30] %vm644, %v643
  %s651 = scalar_lea.vmem %s1, 396
  %652 = vst.msk [vmem:[%s651] ss:$16 sm:$0xc0] %vm644, %v643
  %v653 = vld [vmem:[%s0] sm:$0xff]
  %654 = vrot.lane.b32.xlu0 %v653, 115
  %v655 = vpop.permute.xlu0 %654
  %vm656 = vcmask 7168
  %s657 = scalar_lea.vmem %s1, 13
  %658 = vst.msk [vmem:[%s657] ss:$16 sm:$0x3] %vm656, %v655
  %s659 = scalar_lea.vmem %s1, 13
  %660 = vst.msk [vmem:[%s659] ss:$16 sm:$0xc] %vm656, %v655
  %s661 = scalar_lea.vmem %s1, 13
  %662 = vst.msk [vmem:[%s661] ss:$16 sm:$0x30] %vm656, %v655
  %s663 = scalar_lea.vmem %s1, 13
  %664 = vst.msk [vmem:[%s663] ss:$16 sm:$0xc0] %vm656, %v655
  %s665 = scalar_lea.vmem %s0, 8
  %v666 = vld [vmem:[%s665] sm:$0xff]
  %667 = vrot.lane.b32.xlu0 %v666, 115
  %v668 = vpop.permute.xlu0 %667
  %vm669 = vcmask 7168
  %s670 = scalar_lea.vmem %s1, 141
  %671 = vst.msk [vmem:[%s670] ss:$16 sm:$0x3] %vm669, %v668
  %s672 = scalar_lea.vmem %s1, 141
  %673 = vst.msk [vmem:[%s672] ss:$16 sm:$0xc] %vm669, %v668
  %s674 = scalar_lea.vmem %s1, 141
  %675 = vst.msk [vmem:[%s674] ss:$16 sm:$0x30] %vm669, %v668
  %s676 = scalar_lea.vmem %s1, 141
  %677 = vst.msk [vmem:[%s676] ss:$16 sm:$0xc0] %vm669, %v668
  %s678 = scalar_lea.vmem %s0, 16
  %v679 = vld [vmem:[%s678] sm:$0xff]
  %680 = vrot.lane.b32.xlu0 %v679, 115
  %v681 = vpop.permute.xlu0 %680
  %vm682 = vcmask 7168
  %s683 = scalar_lea.vmem %s1, 269
  %684 = vst.msk [vmem:[%s683] ss:$16 sm:$0x3] %vm682, %v681
  %s685 = scalar_lea.vmem %s1, 269
  %686 = vst.msk [vmem:[%s685] ss:$16 sm:$0xc] %vm682, %v681
  %s687 = scalar_lea.vmem %s1, 269
  %688 = vst.msk [vmem:[%s687] ss:$16 sm:$0x30] %vm682, %v681
  %s689 = scalar_lea.vmem %s1, 269
  %690 = vst.msk [vmem:[%s689] ss:$16 sm:$0xc0] %vm682, %v681
  %s691 = scalar_lea.vmem %s0, 24
  %v692 = vld [vmem:[%s691] sm:$0xff]
  %693 = vrot.lane.b32.xlu0 %v692, 115
  %v694 = vpop.permute.xlu0 %693
  %vm695 = vcmask 7168
  %s696 = scalar_lea.vmem %s1, 397
  %697 = vst.msk [vmem:[%s696] ss:$16 sm:$0x3] %vm695, %v694
  %s698 = scalar_lea.vmem %s1, 397
  %699 = vst.msk [vmem:[%s698] ss:$16 sm:$0xc] %vm695, %v694
  %s700 = scalar_lea.vmem %s1, 397
  %701 = vst.msk [vmem:[%s700] ss:$16 sm:$0x30] %vm695, %v694
  %s702 = scalar_lea.vmem %s1, 397
  %703 = vst.msk [vmem:[%s702] ss:$16 sm:$0xc0] %vm695, %v694
  %v704 = vld [vmem:[%s0] sm:$0xff]
  %705 = vrot.lane.b32.xlu0 %v704, 114
  %v706 = vpop.permute.xlu0 %705
  %vm707 = vcmask 7168
  %s708 = scalar_lea.vmem %s1, 14
  %709 = vst.msk [vmem:[%s708] ss:$16 sm:$0x3] %vm707, %v706
  %s710 = scalar_lea.vmem %s1, 14
  %711 = vst.msk [vmem:[%s710] ss:$16 sm:$0xc] %vm707, %v706
  %s712 = scalar_lea.vmem %s1, 14
  %713 = vst.msk [vmem:[%s712] ss:$16 sm:$0x30] %vm707, %v706
  %s714 = scalar_lea.vmem %s1, 14
  %715 = vst.msk [vmem:[%s714] ss:$16 sm:$0xc0] %vm707, %v706
  %s716 = scalar_lea.vmem %s0, 8
  %v717 = vld [vmem:[%s716] sm:$0xff]
  %718 = vrot.lane.b32.xlu0 %v717, 114
  %v719 = vpop.permute.xlu0 %718
  %vm720 = vcmask 7168
  %s721 = scalar_lea.vmem %s1, 142
  %722 = vst.msk [vmem:[%s721] ss:$16 sm:$0x3] %vm720, %v719
  %s723 = scalar_lea.vmem %s1, 142
  %724 = vst.msk [vmem:[%s723] ss:$16 sm:$0xc] %vm720, %v719
  %s725 = scalar_lea.vmem %s1, 142
  %726 = vst.msk [vmem:[%s725] ss:$16 sm:$0x30] %vm720, %v719
  %s727 = scalar_lea.vmem %s1, 142
  %728 = vst.msk [vmem:[%s727] ss:$16 sm:$0xc0] %vm720, %v719
  %s729 = scalar_lea.vmem %s0, 16
  %v730 = vld [vmem:[%s729] sm:$0xff]
  %731 = vrot.lane.b32.xlu0 %v730, 114
  %v732 = vpop.permute.xlu0 %731
  %vm733 = vcmask 7168
  %s734 = scalar_lea.vmem %s1, 270
  %735 = vst.msk [vmem:[%s734] ss:$16 sm:$0x3] %vm733, %v732
  %s736 = scalar_lea.vmem %s1, 270
  %737 = vst.msk [vmem:[%s736] ss:$16 sm:$0xc] %vm733, %v732
  %s738 = scalar_lea.vmem %s1, 270
  %739 = vst.msk [vmem:[%s738] ss:$16 sm:$0x30] %vm733, %v732
  %s740 = scalar_lea.vmem %s1, 270
  %741 = vst.msk [vmem:[%s740] ss:$16 sm:$0xc0] %vm733, %v732
  %s742 = scalar_lea.vmem %s0, 24
  %v743 = vld [vmem:[%s742] sm:$0xff]
  %744 = vrot.lane.b32.xlu0 %v743, 114
  %v745 = vpop.permute.xlu0 %744
  %vm746 = vcmask 7168
  %s747 = scalar_lea.vmem %s1, 398
  %748 = vst.msk [vmem:[%s747] ss:$16 sm:$0x3] %vm746, %v745
  %s749 = scalar_lea.vmem %s1, 398
  %750 = vst.msk [vmem:[%s749] ss:$16 sm:$0xc] %vm746, %v745
  %s751 = scalar_lea.vmem %s1, 398
  %752 = vst.msk [vmem:[%s751] ss:$16 sm:$0x30] %vm746, %v745
  %s753 = scalar_lea.vmem %s1, 398
  %754 = vst.msk [vmem:[%s753] ss:$16 sm:$0xc0] %vm746, %v745
  %v755 = vld [vmem:[%s0] sm:$0xff]
  %756 = vrot.lane.b32.xlu0 %v755, 113
  %v757 = vpop.permute.xlu0 %756
  %vm758 = vcmask 7168
  %s759 = scalar_lea.vmem %s1, 15
  %760 = vst.msk [vmem:[%s759] ss:$16 sm:$0x3] %vm758, %v757
  %s761 = scalar_lea.vmem %s1, 15
  %762 = vst.msk [vmem:[%s761] ss:$16 sm:$0xc] %vm758, %v757
  %s763 = scalar_lea.vmem %s1, 15
  %764 = vst.msk [vmem:[%s763] ss:$16 sm:$0x30] %vm758, %v757
  %s765 = scalar_lea.vmem %s1, 15
  %766 = vst.msk [vmem:[%s765] ss:$16 sm:$0xc0] %vm758, %v757
  %s767 = scalar_lea.vmem %s0, 8
  %v768 = vld [vmem:[%s767] sm:$0xff]
  %769 = vrot.lane.b32.xlu0 %v768, 113
  %v770 = vpop.permute.xlu0 %769
  %vm771 = vcmask 7168
  %s772 = scalar_lea.vmem %s1, 143
  %773 = vst.msk [vmem:[%s772] ss:$16 sm:$0x3] %vm771, %v770
  %s774 = scalar_lea.vmem %s1, 143
  %775 = vst.msk [vmem:[%s774] ss:$16 sm:$0xc] %vm771, %v770
  %s776 = scalar_lea.vmem %s1, 143
  %777 = vst.msk [vmem:[%s776] ss:$16 sm:$0x30] %vm771, %v770
  %s778 = scalar_lea.vmem %s1, 143
  %779 = vst.msk [vmem:[%s778] ss:$16 sm:$0xc0] %vm771, %v770
  %s780 = scalar_lea.vmem %s0, 16
  %v781 = vld [vmem:[%s780] sm:$0xff]
  %782 = vrot.lane.b32.xlu0 %v781, 113
  %v783 = vpop.permute.xlu0 %782
  %vm784 = vcmask 7168
  %s785 = scalar_lea.vmem %s1, 271
  %786 = vst.msk [vmem:[%s785] ss:$16 sm:$0x3] %vm784, %v783
  %s787 = scalar_lea.vmem %s1, 271
  %788 = vst.msk [vmem:[%s787] ss:$16 sm:$0xc] %vm784, %v783
  %s789 = scalar_lea.vmem %s1, 271
  %790 = vst.msk [vmem:[%s789] ss:$16 sm:$0x30] %vm784, %v783
  %s791 = scalar_lea.vmem %s1, 271
  %792 = vst.msk [vmem:[%s791] ss:$16 sm:$0xc0] %vm784, %v783
  %s793 = scalar_lea.vmem %s0, 24
  %v794 = vld [vmem:[%s793] sm:$0xff]
  %795 = vrot.lane.b32.xlu0 %v794, 113
  %v796 = vpop.permute.xlu0 %795
  %vm797 = vcmask 7168
  %s798 = scalar_lea.vmem %s1, 399
  %799 = vst.msk [vmem:[%s798] ss:$16 sm:$0x3] %vm797, %v796
  %s800 = scalar_lea.vmem %s1, 399
  %801 = vst.msk [vmem:[%s800] ss:$16 sm:$0xc] %vm797, %v796
  %s802 = scalar_lea.vmem %s1, 399
  %803 = vst.msk [vmem:[%s802] ss:$16 sm:$0x30] %vm797, %v796
  %s804 = scalar_lea.vmem %s1, 399
  %805 = vst.msk [vmem:[%s804] ss:$16 sm:$0xc0] %vm797, %v796

// kernel: multi_attention_block_2d.3
$region0: #{multi_attention_block_2d.3}
  #allocation0 [shape = 'u32[]', space=smem, size = 0x4, offset = 0x4, fixed_abs, tag = 'smem constant byte address 0x4 - core index']
  #allocation1 [shape = 'u32[144,128]{1,0:T(1,128)}', space=vmem, size = 0x12000, scoped, tag = 'internal scratch']
  %s0 = inlined_call_operand.vmem [shape: bf16[2,64,32], index: 0, kind: input, shape index: {}]
  %s1 = inlined_call_operand.vmem [shape: f32[2,64,16], index: 1, kind: input, shape index: {}]
  %s2 = inlined_call_operand.vmem [shape: bf16[32,16], index: 2, kind: input, shape index: {}]
  %s3 = inlined_call_operand.vmem [shape: f32[16,2], index: 3, kind: input, shape index: {}]
  %s4 = inlined_call_operand.vmem [shape: f32[1,2], index: 4, kind: input, shape index: {}]
  %s5 = inlined_call_operand.vmem [shape: f32[2,64,2], index: 5, kind: output, shape index: {}]
  %s6 = sld [smem:[#allocation0]]
  $region53: #{multi_attention_block_2d.3} parent=0
    _
  %s8 = ssub.s32 1, %s6
  %s9 = scalar_select 0, %s8, %s6
  loop: start=0, step=1, limit=4
  $region2: #{multi_attention_block_2d.3} parent=0 // loop_pre_header
    _
  $region3: #{multi_attention_block_2d.3} parent=0 // loop_header
    %s11 = sphi 0, %s15
    %p12 = scmp.ge.s32.totalorder %s11, 4
    %s18 = sphi 0, %s30
    %s19 = sphi 0, %s26
    %s20 = sphi 0, %s18
    %s21 = sphi 0, %s19
    %s22 = sphi 0, %s20
    %s23 = sphi 0, %s21
    %s35 = sphi 0, %s37
    %s38 = sphi 0, %s35
    %s39 = sphi 0, %s38
    %s55 = sphi 0, %s39
    %s63 = sphi 0, %s65
    %s66 = sphi 0, %s63
    %s67 = sphi 0, %s66
    %s83 = sphi 0, %s67
    %s87 = sphi 0, %s87
    %s89 = sphi 0, %s87
    %s90 = sphi 0, %s89
    %s104 = sphi 0, %s90
    %s108 = sphi 0, %s108
    %s110 = sphi 0, %s108
    %s111 = sphi 0, %s110
    %s125 = sphi 0, %s111
    %s129 = sphi 0, %s129
    %s131 = sphi 0, %s129
    %s132 = sphi 0, %s131
    %s146 = sphi 0, %s132
    %s154 = sphi 0, %s156
    %s157 = sphi 0, %s154
    %s158 = sphi 0, %s157
    %s174 = sphi 0, %s158
  $region4: #{multi_attention_block_2d.3} parent=0 // loop_header_branch
    %14 = sbr.rel (%p12) target = $region8
  $region5: #{multi_attention_block_2d.3} parent=0 // loop_body
    %s16 = ssub.s32 %s11, 1
    %s17 = ssub.s32 %s11, 2
    %s24 = sadd.s32 1, %s19
    %p25 = scmp.ge.s32.totalorder %s24, 1
    %s26 = scalar_select %p25, 0, %s24
    %s27 = sadd.s32 1, %s18
    %s28 = scalar_select %p25, %s27, %s18
    %p29 = scmp.ge.s32.totalorder %s28, 2
    %s30 = scalar_select %p29, 0, %s28
    %s31 = ssub.s32 %s18, %s30
    %s32 = ssub.s32 %s19, %s26
    %s33 = sor.u32 %s31, %s32
    %p34 = scmp.eq.s32.totalorder %s33, 0
    %s36 = sadd.s32 %s35, 1
    %s37 = scalar_select %p34, %s35, %s36
    %p40 = pneg %p34
    %p41 = scmp.eq.s32.totalorder %s11, 1
    %p42 = por %p40, %p41
    %p43 = scmp.ne.s32.totalorder %s35, %s38
    %p44 = scmp.eq.s32.totalorder %s11, 0
    %p45 = por %p43, %p44
    %p46 = scmp.ne.s32.totalorder %s35, %s38
    %p47 = scmp.eq.s32.totalorder %s16, 1
    %p48 = por %p46, %p47
    %p49 = scmp.ne.s32.totalorder %s38, %s39
    %p50 = scmp.eq.s32.totalorder %s16, 0
    %p51 = por %p49, %p50
    %p52 = scmp.ne.s32.totalorder %s38, %s39
    %p53 = scmp.eq.s32.totalorder %s17, 1
    %p54 = por %p52, %p53
    %p56 = scmp.ne.s32.totalorder %s39, %s55
    %p57 = scmp.eq.s32.totalorder %s17, 0
    %p58 = por %p56, %p57
    %s59 = ssub.s32 %s18, %s30
    %s60 = ssub.s32 %s19, %s26
    %s61 = sor.u32 %s59, %s60
    %p62 = scmp.eq.s32.totalorder %s61, 0
    %s64 = sadd.s32 %s63, 1
    %s65 = scalar_select %p62, %s63, %s64
    %p68 = pneg %p62
    %p69 = scmp.eq.s32.totalorder %s11, 1
    %p70 = por %p68, %p69
    %p71 = scmp.ne.s32.totalorder %s63, %s66
    %p72 = scmp.eq.s32.totalorder %s11, 0
    %p73 = por %p71, %p72
    %p74 = scmp.ne.s32.totalorder %s63, %s66
    %p75 = scmp.eq.s32.totalorder %s16, 1
    %p76 = por %p74, %p75
    %p77 = scmp.ne.s32.totalorder %s66, %s67
    %p78 = scmp.eq.s32.totalorder %s16, 0
    %p79 = por %p77, %p78
    %p80 = scmp.ne.s32.totalorder %s66, %s67
    %p81 = scmp.eq.s32.totalorder %s17, 1
    %p82 = por %p80, %p81
    %p84 = scmp.ne.s32.totalorder %s67, %s83
    %p85 = scmp.eq.s32.totalorder %s17, 0
    %p86 = por %p84, %p85
    %s88 = sadd.s32 %s87, 1
    %p91 = scmp.eq.s32.totalorder %s11, 1
    %p92 = scmp.ne.s32.totalorder %s87, %s89
    %p93 = scmp.eq.s32.totalorder %s11, 0
    %p94 = por %p92, %p93
    %p95 = scmp.ne.s32.totalorder %s87, %s89
    %p96 = scmp.eq.s32.totalorder %s16, 1
    %p97 = por %p95, %p96
    %p98 = scmp.ne.s32.totalorder %s89, %s90
    %p99 = scmp.eq.s32.totalorder %s16, 0
    %p100 = por %p98, %p99
    %p101 = scmp.ne.s32.totalorder %s89, %s90
    %p102 = scmp.eq.s32.totalorder %s17, 1
    %p103 = por %p101, %p102
    %p105 = scmp.ne.s32.totalorder %s90, %s104
    %p106 = scmp.eq.s32.totalorder %s17, 0
    %p107 = por %p105, %p106
    %s109 = sadd.s32 %s108, 1
    %p112 = scmp.eq.s32.totalorder %s11, 1
    %p113 = scmp.ne.s32.totalorder %s108, %s110
    %p114 = scmp.eq.s32.totalorder %s11, 0
    %p115 = por %p113, %p114
    %p116 = scmp.ne.s32.totalorder %s108, %s110
    %p117 = scmp.eq.s32.totalorder %s16, 1
    %p118 = por %p116, %p117
    %p119 = scmp.ne.s32.totalorder %s110, %s111
    %p120 = scmp.eq.s32.totalorder %s16, 0
    %p121 = por %p119, %p120
    %p122 = scmp.ne.s32.totalorder %s110, %s111
    %p123 = scmp.eq.s32.totalorder %s17, 1
    %p124 = por %p122, %p123
    %p126 = scmp.ne.s32.totalorder %s111, %s125
    %p127 = scmp.eq.s32.totalorder %s17, 0
    %p128 = por %p126, %p127
    %s130 = sadd.s32 %s129, 1
    %p133 = scmp.eq.s32.totalorder %s11, 1
    %p134 = scmp.ne.s32.totalorder %s129, %s131
    %p135 = scmp.eq.s32.totalorder %s11, 0
    %p136 = por %p134, %p135
    %p137 = scmp.ne.s32.totalorder %s129, %s131
    %p138 = scmp.eq.s32.totalorder %s16, 1
    %p139 = por %p137, %p138
    %p140 = scmp.ne.s32.totalorder %s131, %s132
    %p141 = scmp.eq.s32.totalorder %s16, 0
    %p142 = por %p140, %p141
    %p143 = scmp.ne.s32.totalorder %s131, %s132
    %p144 = scmp.eq.s32.totalorder %s17, 1
    %p145 = por %p143, %p144
    %p147 = scmp.ne.s32.totalorder %s132, %s146
    %p148 = scmp.eq.s32.totalorder %s17, 0
    %p149 = por %p147, %p148
    %s150 = ssub.s32 %s18, %s30
    %s151 = ssub.s32 %s19, %s26
    %s152 = sor.u32 %s150, %s151
    %p153 = scmp.eq.s32.totalorder %s152, 0
    %s155 = sadd.s32 %s154, 1
    %s156 = scalar_select %p153, %s154, %s155
    %p159 = pneg %p153
    %p160 = scmp.eq.s32.totalorder %s11, 1
    %p161 = por %p159, %p160
    %p162 = scmp.ne.s32.totalorder %s154, %s157
    %p163 = scmp.eq.s32.totalorder %s11, 0
    %p164 = por %p162, %p163
    %p165 = scmp.ne.s32.totalorder %s154, %s157
    %p166 = scmp.eq.s32.totalorder %s16, 1
    %p167 = por %p165, %p166
    %p168 = scmp.ne.s32.totalorder %s157, %s158
    %p169 = scmp.eq.s32.totalorder %s16, 0
    %p170 = por %p168, %p169
    %p171 = scmp.ne.s32.totalorder %s157, %s158
    %p172 = scmp.eq.s32.totalorder %s17, 1
    %p173 = por %p171, %p172
    %p175 = scmp.ne.s32.totalorder %s158, %s174
    %p176 = scmp.eq.s32.totalorder %s17, 0
    %p177 = por %p175, %p176
    %p178 = scmp.le.s32.totalorder 1, %s11
    %p179 = scmp.lt.s32.totalorder %s11, 3
    %p180 = pnand %p178, %p179
    %p181 = pneg %p180
    // Predicated region
    $region9: #{multi_attention_block_2d.3} parent=5 // pred_check
      _
    $region10: #{multi_attention_block_2d.3} parent=5 // pred_check_branch
      %183 = sbr.rel (%p180) target = $region12
    $region11: #{multi_attention_block_2d.3} parent=5 // pred_region
      %s184 = ssub.s32 %s11, 1
      // Predicated region
      $region13: #{multi_attention_block_2d.3} parent=11 // pred_check
        %p185 = pneg %p100
      $region14: #{multi_attention_block_2d.3} parent=11 // pred_check_branch
        %187 = sbr.rel (%p185) target = $region16
      $region15: #{multi_attention_block_2d.3} parent=11 // pred_region
        _
      $region16: #{multi_attention_block_2d.3} parent=11 // pred_fallthru
        _
      // Predicated region
      $region17: #{multi_attention_block_2d.3} parent=11 // pred_check
        %p188 = pneg %p121
      $region18: #{multi_attention_block_2d.3} parent=11 // pred_check_branch
        %190 = sbr.rel (%p188) target = $region20
      $region19: #{multi_attention_block_2d.3} parent=11 // pred_region
        _
      $region20: #{multi_attention_block_2d.3} parent=11 // pred_fallthru
        _
      // Predicated region
      $region21: #{multi_attention_block_2d.3} parent=11 // pred_check
        %p191 = pneg %p142
      $region22: #{multi_attention_block_2d.3} parent=11 // pred_check_branch
        %193 = sbr.rel (%p191) target = $region24
      $region23: #{multi_attention_block_2d.3} parent=11 // pred_region
        _
      $region24: #{multi_attention_block_2d.3} parent=11 // pred_fallthru
        _
    $region12: #{multi_attention_block_2d.3} parent=5 // pred_fallthru
      _
    %p194 = scmp.lt.s32.totalorder %s11, 2
    // Predicated region
    $region25: #{multi_attention_block_2d.3} parent=5 // pred_check
      %p195 = pneg %p194
    $region26: #{multi_attention_block_2d.3} parent=5 // pred_check_branch
      %197 = sbr.rel (%p195) target = $region28
    $region27: #{multi_attention_block_2d.3} parent=5 // pred_region
      // Predicated region
      $region29: #{multi_attention_block_2d.3} parent=27 // pred_check
        %p198 = pneg %p45
      $region30: #{multi_attention_block_2d.3} parent=27 // pred_check_branch
        %200 = sbr.rel (%p198) target = $region32
      $region31: #{multi_attention_block_2d.3} parent=27 // pred_region
        %s201 = smul.u32 8, %s19
        %p202 = scmp.lt.s32.totalorder %s18, 1
        %s203 = scalar_select %p202, %s18, 1
        %p204 = scmp.lt.s32.totalorder %s201, 7
        %s205 = scalar_select %p204, %s201, 7
        %s206 = smul.addr %s203, 8
        %s207 = sadd.s32 %s205, %s206
        %s208 = smul.addr %s207, 4
        %s209 = scalar_lea.vmem %s0, %s208
        %s210 = smul.u32 8, %s19
      $region32: #{multi_attention_block_2d.3} parent=27 // pred_fallthru
        _
      // Predicated region
      $region33: #{multi_attention_block_2d.3} parent=27 // pred_check
        %p211 = pneg %p73
      $region34: #{multi_attention_block_2d.3} parent=27 // pred_check_branch
        %213 = sbr.rel (%p211) target = $region36
      $region35: #{multi_attention_block_2d.3} parent=27 // pred_region
        %s214 = smul.u32 8, %s19
        %p215 = scmp.lt.s32.totalorder %s18, 1
        %s216 = scalar_select %p215, %s18, 1
        %p217 = scmp.lt.s32.totalorder %s214, 7
        %s218 = scalar_select %p217, %s214, 7
        %s219 = smul.addr %s216, 8
        %s220 = sadd.s32 %s218, %s219
        %s221 = smul.addr %s220, 8
        %s222 = scalar_lea.vmem %s1, %s221
        %s223 = smul.u32 8, %s19
      $region36: #{multi_attention_block_2d.3} parent=27 // pred_fallthru
        _
    $region28: #{multi_attention_block_2d.3} parent=5 // pred_fallthru
      _
    %p224 = scmp.le.s32.totalorder 1, %s11
    %p225 = scmp.lt.s32.totalorder %s11, 3
    %p226 = pnand %p224, %p225
    %p227 = pneg %p226
    // Predicated region
    $region37: #{multi_attention_block_2d.3} parent=5 // pred_check
      _
    $region38: #{multi_attention_block_2d.3} parent=5 // pred_check_branch
      %229 = sbr.rel (%p226) target = $region40
    $region39: #{multi_attention_block_2d.3} parent=5 // pred_region
      %s230 = ssub.s32 %s11, 1
      %s231 = smul.u32 8, %s21
      %p232 = scmp.lt.s32.totalorder %s20, 1
      %s233 = scalar_select %p232, %s20, 1
      %p234 = scmp.lt.s32.totalorder %s231, 7
      %s235 = scalar_select %p234, %s231, 7
      %s236 = smul.addr %s233, 8
      %s237 = sadd.s32 %s235, %s236
      %s238 = smul.addr %s237, 4
      %s239 = scalar_lea.vmem %s0, %s238
      %p240 = pneg %p51
      %p241 = pneg %p48
      %s242 = smul.u32 8, %s21
      %p243 = scmp.lt.s32.totalorder %s20, 1
      %s244 = scalar_select %p243, %s20, 1
      %p245 = scmp.lt.s32.totalorder %s242, 7
      %s246 = scalar_select %p245, %s242, 7
      %s247 = smul.addr %s244, 8
      %s248 = sadd.s32 %s246, %s247
      %s249 = smul.addr %s248, 8
      %s250 = scalar_lea.vmem %s1, %s249
      %p251 = pneg %p79
      %p252 = pneg %p76
      %p253 = pneg %p100
      %p254 = pneg %p97
      %p255 = pneg %p121
      %p256 = pneg %p118
      %p257 = pneg %p142
      %p258 = pneg %p139
      %p259 = pneg %p170
      %p260 = pneg %p167
      %s261 = smul.u32 8, %s21
      %p262 = scmp.lt.s32.totalorder %s20, 1
      %s263 = scalar_select %p262, %s20, 1
      %p264 = scmp.lt.s32.totalorder %s261, 7
      %s265 = scalar_select %p264, %s261, 7
      %s266 = smul.addr %s263, 8
      %s267 = sadd.s32 %s265, %s266
      %s268 = smul.addr %s267, 8
      %s269 = scalar_lea.vmem %s5, %s268
      %s270 = smul.u32 8, %s21
      %p271 = scmp.lt.s32.totalorder %s20, 1
      %s272 = scalar_select %p271, %s20, 1
      %p273 = scmp.lt.s32.totalorder %s270, 7
      %s274 = scalar_select %p273, %s270, 7
      %s275 = smul.addr %s272, 8
      %s276 = sadd.s32 %s274, %s275
      %s277 = smul.addr %s276, 4
      %s278 = scalar_lea.vmem %s0, %s277
      %s279 = smul.u32 8, %s21
      %s280 = smul.u32 8, %s21
      %p281 = scmp.lt.s32.totalorder %s20, 1
      %s282 = scalar_select %p281, %s20, 1
      %p283 = scmp.lt.s32.totalorder %s280, 7
      %s284 = scalar_select %p283, %s280, 7
      %s285 = smul.addr %s282, 8
      %s286 = sadd.s32 %s284, %s285
      %s287 = smul.addr %s286, 8
      %s288 = scalar_lea.vmem %s1, %s287
      %s289 = smul.u32 8, %s21
      %s290 = smul.u32 8, %s21
      %p291 = scmp.lt.s32.totalorder %s20, 1
      %s292 = scalar_select %p291, %s20, 1
      %p293 = scmp.lt.s32.totalorder %s290, 7
      %s294 = scalar_select %p293, %s290, 7
      %s295 = smul.addr %s292, 8
      %s296 = sadd.s32 %s294, %s295
      %s297 = smul.addr %s296, 8
      %s298 = scalar_lea.vmem %s5, %s297
      %s299 = smul.u32 8, %s21
      %v301 = vld [vmem:[%s278] sm:$0xf]
      %v302 = vld [vmem:[%s278 + $0x4] sm:$0xf]
      %v303 = vld [vmem:[%s278 + $0x8] sm:$0xf]
      %v304 = vld [vmem:[%s278 + $0xc] sm:$0xf]
      %v305 = vld [vmem:[%s278 + $0x10] sm:$0xf]
      %v306 = vld [vmem:[%s278 + $0x14] sm:$0xf]
      %v307 = vld [vmem:[%s278 + $0x18] sm:$0xf]
      %v308 = vld [vmem:[%s278 + $0x1c] sm:$0xf]
      %v309 = vld [vmem:[%s2] sm:$0xf]
      %v310 = vld [vmem:[%s2 + $0x4] sm:$0xf]
      %v311 = vld [vmem:[%s2 + $0x8] sm:$0xf]
      %v312 = vld [vmem:[%s2 + $0xc] sm:$0xf]
      %v313 = vld [vmem:[%s288] sm:$0xff]
      %v314 = vld [vmem:[%s288 + $0x8] sm:$0xff]
      %v315 = vld [vmem:[%s288 + $0x10] sm:$0xff]
      %v316 = vld [vmem:[%s288 + $0x18] sm:$0xff]
      %v317 = vld [vmem:[%s288 + $0x20] sm:$0xff]
      %v318 = vld [vmem:[%s288 + $0x28] sm:$0xff]
      %v319 = vld [vmem:[%s288 + $0x30] sm:$0xff]
      %v320 = vld [vmem:[%s288 + $0x38] sm:$0xff]
      %v329 = vunpack.c.l.b16 %v301
      %v330 = vunpack.c.l.b16 %v302
      %v331 = vunpack.c.l.b16 %v303
      %v332 = vunpack.c.l.b16 %v304
      %v333 = vunpack.c.l.b16 %v305
      %v334 = vunpack.c.l.b16 %v306
      %v335 = vunpack.c.l.b16 %v307
      %v336 = vunpack.c.l.b16 %v308
      %v337 = vpack.c.b16 %v330, %v329
      %v338 = vpack.c.b16 %v332, %v331
      %v339 = vpack.c.b16 %v334, %v333
      %v340 = vpack.c.b16 %v336, %v335
      %v345 = vunpack.c.l.b16 %v309
      %v346 = vunpack.c.l.b16 %v310
      %v347 = vunpack.c.l.b16 %v311
      %v348 = vunpack.c.l.b16 %v312
      %v349 = vpack.c.b16 %v346, %v345
      %v350 = vpack.c.b16 %v348, %v347
      %vm353 = vcmask 261120
      %v355 = vsel %vm353, %v337, 0
      %v358 = vsel %vm353, %v338, 0
      %v361 = vsel %vm353, %v339, 0
      %v364 = vsel %vm353, %v340, 0
      %366 = vmatprep.subr.bf16.mxu0 0
      %367 = vmatpush1.bf16.msra.mxu0 %v349
      %368 = vmatprep.subr.bf16.mxu0 0
      %369 = vmatpush1.bf16.msra.mxu0 %v350
      %370 = vmatprep.subr.bf16.mxu0 0
      %371 = vmatpush1.bf16.msra.mxu0 0
      %372 = vmatprep.subr.bf16.mxu0 0
      %373 = vmatpush1.bf16.msra.mxu0 0
      %374 = vmatprep.subr.bf16.mxu0 0
      %375 = vmatpush1.bf16.msra.mxu0 0
      %376 = vmatprep.subr.bf16.mxu0 0
      %377 = vmatpush1.bf16.msra.mxu0 0
      %378 = vmatprep.subr.bf16.mxu0 0
      %379 = vmatpush1.bf16.msra.mxu0 0
      %380 = vmatprep.subr.bf16.mxu0 0
      %381 = vmatpush1.bf16.msra.mxu0 0
      %382 = vmatprep.subr.bf16.mxu0 0
      %383 = vmatpush1.bf16.msra.mxu0 0
      %384 = vmatprep.subr.bf16.mxu0 0
      %385 = vmatpush1.bf16.msra.mxu0 0
      %386 = vmatprep.subr.bf16.mxu0 0
      %387 = vmatpush1.bf16.msra.mxu0 0
      %388 = vmatprep.subr.bf16.mxu0 0
      %389 = vmatpush1.bf16.msra.mxu0 0
      %390 = vmatprep.subr.bf16.mxu0 0
      %391 = vmatpush1.bf16.msra.mxu0 0
      %392 = vmatprep.subr.bf16.mxu0 0
      %393 = vmatpush1.bf16.msra.mxu0 0
      %394 = vmatprep.subr.bf16.mxu0 0
      %395 = vmatpush1.bf16.msra.mxu0 0
      %396 = vmatprep.subr.bf16.mxu0 0
      %397 = vmatpush1.bf16.msra.mxu0 0
      %398 = vmatprep.mubr.bf16.mxu0 0
      %399 = vmatmul.mubr.bf16.gmra.mrb[0].mxu0 %v355
      %v400 = vpop.f32.mrb[0].mxu0
      %v401 = vadd.f32 %v313, %v400
      %v402 = vpop.f32.mrb[0].mxu0
      %v403 = vpop.f32.mrb[0].mxu0
      %v404 = vadd.f32 %v314, %v403
      %v405 = vpop.f32.mrb[0].mxu0
      %406 = vmatprep.mubr.bf16.mxu0 0
      %407 = vmatmul.mubr.bf16.gmra.mrb[0].mxu0 %v358
      %v408 = vpop.f32.mrb[0].mxu0
      %v409 = vadd.f32 %v315, %v408
      %v410 = vpop.f32.mrb[0].mxu0
      %v411 = vpop.f32.mrb[0].mxu0
      %v412 = vadd.f32 %v316, %v411
      %v413 = vpop.f32.mrb[0].mxu0
      %414 = vmatprep.mubr.bf16.mxu0 0
      %415 = vmatmul.mubr.bf16.gmra.mrb[0].mxu0 %v361
      %v416 = vpop.f32.mrb[0].mxu0
      %v417 = vadd.f32 %v317, %v416
      %v418 = vpop.f32.mrb[0].mxu0
      %v419 = vpop.f32.mrb[0].mxu0
      %v420 = vadd.f32 %v318, %v419
      %v421 = vpop.f32.mrb[0].mxu0
      %422 = vmatprep.mubr.bf16.mxu0 0
      %423 = vmatmul.mubr.bf16.gmra.mrb[0].mxu0 %v364
      %v424 = vpop.f32.mrb[0].mxu0
      %v425 = vadd.f32 %v319, %v424
      %v426 = vpop.f32.mrb[0].mxu0
      %v427 = vpop.f32.mrb[0].mxu0
      %v428 = vadd.f32 %v320, %v427
      %v429 = vpop.f32.mrb[0].mxu0
      %430 = vdwg.mxu0
      %v431 = vmax.f32 %v401, 0.0
      %v432 = vmax.f32 %v404, 0.0
      %v433 = vmax.f32 %v409, 0.0
      %v434 = vmax.f32 %v412, 0.0
      %v435 = vmax.f32 %v417, 0.0
      %v436 = vmax.f32 %v420, 0.0
      %v437 = vmax.f32 %v425, 0.0
      %v438 = vmax.f32 %v428, 0.0
      %v439 = vld [vmem:[%s3] sm:$0xff]
      %v440 = vld [vmem:[%s3 + $0x8] sm:$0xff]
      %v441 = vld [vmem:[%s4] sm:$0x1]
      %v443 = vlaneseq
      %v444 = vshrl.u32 %v443, 7
      %v445 = vsub.s32 0, %v444
      %v446 = vrot.slane %v441, %v445
      %vm448 = vcmask 130048
      %v450 = vsel %vm448, %v431, 0
      %v453 = vsel %vm448, %v432, 0
      %v456 = vsel %vm448, %v433, 0
      %v459 = vsel %vm448, %v434, 0
      %v462 = vsel %vm448, %v435, 0
      %v465 = vsel %vm448, %v436, 0
      %v468 = vsel %vm448, %v437, 0
      %v471 = vsel %vm448, %v438, 0
      %473 = vmatprep.subr.mxu0 0.0
      %474 = vmatpush1.msra.mxu0 %v439
      %475 = vmatprep.subr.mxu0 0.0
      %476 = vmatpush1.msra.mxu0 %v440
      %477 = vmatprep.subr.mxu0 0.0
      %478 = vmatpush1.msra.mxu0 0.0
      %479 = vmatprep.subr.mxu0 0.0
      %480 = vmatpush1.msra.mxu0 0.0
      %481 = vmatprep.subr.mxu0 0.0
      %482 = vmatpush1.msra.mxu0 0.0
      %483 = vmatprep.subr.mxu0 0.0
      %484 = vmatpush1.msra.mxu0 0.0
      %485 = vmatprep.subr.mxu0 0.0
      %486 = vmatpush1.msra.mxu0 0.0
      %487 = vmatprep.subr.mxu0 0.0
      %488 = vmatpush1.msra.mxu0 0.0
      %489 = vmatprep.subr.mxu0 0.0
      %490 = vmatpush1.msra.mxu0 0.0
      %491 = vmatprep.subr.mxu0 0.0
      %492 = vmatpush1.msra.mxu0 0.0
      %493 = vmatprep.subr.mxu0 0.0
      %494 = vmatpush1.msra.mxu0 0.0
      %495 = vmatprep.subr.mxu0 0.0
      %496 = vmatpush1.msra.mxu0 0.0
      %497 = vmatprep.subr.mxu0 0.0
      %498 = vmatpush1.msra.mxu0 0.0
      %499 = vmatprep.subr.mxu0 0.0
      %500 = vmatpush1.msra.mxu0 0.0
      %501 = vmatprep.subr.mxu0 0.0
      %502 = vmatpush1.msra.mxu0 0.0
      %503 = vmatprep.subr.mxu0 0.0
      %504 = vmatpush1.msra.mxu0 0.0
      %505 = vmatprep.subr.mxu0 0.0
      %506 = vmatpush1.msra.mxu0 0.0
      %507 = vmatprep.subr.mxu0 0.0
      %508 = vmatpush1.msra.mxu0 0.0
      %509 = vmatprep.subr.mxu0 0.0
      %510 = vmatpush1.msra.mxu0 0.0
      %511 = vmatprep.subr.mxu0 0.0
      %512 = vmatpush1.msra.mxu0 0.0
      %513 = vmatprep.subr.mxu0 0.0
      %514 = vmatpush1.msra.mxu0 0.0
      %515 = vmatprep.subr.mxu0 0.0
      %516 = vmatpush1.msra.mxu0 0.0
      %517 = vmatprep.subr.mxu0 0.0
      %518 = vmatpush1.msra.mxu0 0.0
      %519 = vmatprep.subr.mxu0 0.0
      %520 = vmatpush1.msra.mxu0 0.0
      %521 = vmatprep.subr.mxu0 0.0
      %522 = vmatpush1.msra.mxu0 0.0
      %523 = vmatprep.subr.mxu0 0.0
      %524 = vmatpush1.msra.mxu0 0.0
      %525 = vmatprep.subr.mxu0 0.0
      %526 = vmatpush1.msra.mxu0 0.0
      %527 = vmatprep.subr.mxu0 0.0
      %528 = vmatpush1.msra.mxu0 0.0
      %529 = vmatprep.subr.mxu0 0.0
      %530 = vmatpush1.msra.mxu0 0.0
      %531 = vmatprep.subr.mxu0 0.0
      %532 = vmatpush1.msra.mxu0 0.0
      %533 = vmatprep.subr.mxu0 0.0
      %534 = vmatpush1.msra.mxu0 0.0
      %535 = vmatprep.subr.mxu0 0.0
      %536 = vmatpush1.msra.mxu0 0.0
      %537 = vmatprep.mubr.f32.mxu0 0.0
      %538 = vmatmul.mubr.f32.gmra.mrb[0].mxu0 %v450
      %v539 = vpop.f32.mrb[0].mxu0
      %v540 = vadd.f32 %v446, %v539
      %v541 = vpop.f32.mrb[0].mxu0
      %542 = vmatprep.mubr.f32.mxu0 0.0
      %543 = vmatmul.mubr.f32.gmra.mrb[0].mxu0 %v453
      %v544 = vpop.f32.mrb[0].mxu0
      %v545 = vadd.f32 %v446, %v544
      %v546 = vpop.f32.mrb[0].mxu0
      %547 = vmatprep.mubr.f32.mxu0 0.0
      %548 = vmatmul.mubr.f32.gmra.mrb[0].mxu0 %v456
      %v549 = vpop.f32.mrb[0].mxu0
      %v550 = vadd.f32 %v446, %v549
      %v551 = vpop.f32.mrb[0].mxu0
      %552 = vmatprep.mubr.f32.mxu0 0.0
      %553 = vmatmul.mubr.f32.gmra.mrb[0].mxu0 %v459
      %v554 = vpop.f32.mrb[0].mxu0
      %v555 = vadd.f32 %v446, %v554
      %v556 = vpop.f32.mrb[0].mxu0
      %557 = vmatprep.mubr.f32.mxu0 0.0
      %558 = vmatmul.mubr.f32.gmra.mrb[0].mxu0 %v462
      %v559 = vpop.f32.mrb[0].mxu0
      %v560 = vadd.f32 %v446, %v559
      %v561 = vpop.f32.mrb[0].mxu0
      %562 = vmatprep.mubr.f32.mxu0 0.0
      %563 = vmatmul.mubr.f32.gmra.mrb[0].mxu0 %v465
      %v564 = vpop.f32.mrb[0].mxu0
      %v565 = vadd.f32 %v446, %v564
      %v566 = vpop.f32.mrb[0].mxu0
      %567 = vmatprep.mubr.f32.mxu0 0.0
      %568 = vmatmul.mubr.f32.gmra.mrb[0].mxu0 %v468
      %v569 = vpop.f32.mrb[0].mxu0
      %v570 = vadd.f32 %v446, %v569
      %v571 = vpop.f32.mrb[0].mxu0
      %572 = vmatprep.mubr.f32.mxu0 0.0
      %573 = vmatmul.mubr.f32.gmra.mrb[0].mxu0 %v471
      %v574 = vpop.f32.mrb[0].mxu0
      %v575 = vadd.f32 %v446, %v574
      %v576 = vpop.f32.mrb[0].mxu0
      %577 = vdwg.mxu0
      %v578 = vsub.f32 0.0, %v540
      %v579 = vsub.f32 0.0, %v545
      %v580 = vsub.f32 0.0, %v550
      %v581 = vsub.f32 0.0, %v555
      %v582 = vsub.f32 0.0, %v560
      %v583 = vsub.f32 0.0, %v565
      %v584 = vsub.f32 0.0, %v570
      %v585 = vsub.f32 0.0, %v575
      %v586 = vmul.f32 %v578, 1.442695
      %v587 = vpow.pop %v586
      %v588 = vmul.f32 %v579, 1.442695
      %v589 = vpow.pop %v588
      %v590 = vmul.f32 %v580, 1.442695
      %v591 = vpow.pop %v590
      %v592 = vmul.f32 %v581, 1.442695
      %v593 = vpow.pop %v592
      %v594 = vmul.f32 %v582, 1.442695
      %v595 = vpow.pop %v594
      %v596 = vmul.f32 %v583, 1.442695
      %v597 = vpow.pop %v596
      %v598 = vmul.f32 %v584, 1.442695
      %v599 = vpow.pop %v598
      %v600 = vmul.f32 %v585, 1.442695
      %v601 = vpow.pop %v600
      %v602 = vadd.f32 %v587, 1.0
      %v603 = vadd.f32 %v589, 1.0
      %v604 = vadd.f32 %v591, 1.0
      %v605 = vadd.f32 %v593, 1.0
      %v606 = vadd.f32 %v595, 1.0
      %v607 = vadd.f32 %v597, 1.0
      %v608 = vadd.f32 %v599, 1.0
      %v609 = vadd.f32 %v601, 1.0
      %v610 = vrcp.pop %v602
      %v611 = vmul.f32 1.0, %v610
      %v612 = vrcp.pop %v603
      %v613 = vmul.f32 1.0, %v612
      %v614 = vrcp.pop %v604
      %v615 = vmul.f32 1.0, %v614
      %v616 = vrcp.pop %v605
      %v617 = vmul.f32 1.0, %v616
      %v618 = vrcp.pop %v606
      %v619 = vmul.f32 1.0, %v618
      %v620 = vrcp.pop %v607
      %v621 = vmul.f32 1.0, %v620
      %v622 = vrcp.pop %v608
      %v623 = vmul.f32 1.0, %v622
      %v624 = vrcp.pop %v609
      %v625 = vmul.f32 1.0, %v624
      %vm626 = vcmask 15360
      %627 = vst.msk [vmem:[%s298] sm:$0xff] %vm626, %v611
      %628 = vst.msk [vmem:[%s298 + $0x8] sm:$0xff] %vm626, %v613
      %629 = vst.msk [vmem:[%s298 + $0x10] sm:$0xff] %vm626, %v615
      %630 = vst.msk [vmem:[%s298 + $0x18] sm:$0xff] %vm626, %v617
      %631 = vst.msk [vmem:[%s298 + $0x20] sm:$0xff] %vm626, %v619
      %632 = vst.msk [vmem:[%s298 + $0x28] sm:$0xff] %vm626, %v621
      %633 = vst.msk [vmem:[%s298 + $0x30] sm:$0xff] %vm626, %v623
      %634 = vst.msk [vmem:[%s298 + $0x38] sm:$0xff] %vm626, %v625
      %s635 = smul.u32 8, %s21
      %p636 = scmp.lt.s32.totalorder %s20, 1
      %s637 = scalar_select %p636, %s20, 1
      %p638 = scmp.lt.s32.totalorder %s635, 7
      %s639 = scalar_select %p638, %s635, 7
      %s640 = smul.addr %s637, 8
      %s641 = sadd.s32 %s639, %s640
      %s642 = smul.addr %s641, 8
      %s643 = scalar_lea.vmem %s5, %s642
      // Predicated region
      $region41: #{multi_attention_block_2d.3} parent=39 // pred_check
        %p644 = pneg %p167
      $region42: #{multi_attention_block_2d.3} parent=39 // pred_check_branch
        %646 = sbr.rel (%p644) target = $region44
      $region43: #{multi_attention_block_2d.3} parent=39 // pred_region
        %s647 = smul.u32 8, %s21
      $region44: #{multi_attention_block_2d.3} parent=39 // pred_fallthru
        _
    $region40: #{multi_attention_block_2d.3} parent=5 // pred_fallthru
      _
    %p648 = scmp.le.s32.totalorder 2, %s11
    // Predicated region
    $region45: #{multi_attention_block_2d.3} parent=5 // pred_check
      %p649 = pneg %p648
    $region46: #{multi_attention_block_2d.3} parent=5 // pred_check_branch
      %651 = sbr.rel (%p649) target = $region48
    $region47: #{multi_attention_block_2d.3} parent=5 // pred_region
      %s652 = ssub.s32 %s11, 2
      // Predicated region
      $region49: #{multi_attention_block_2d.3} parent=47 // pred_check
        %p653 = pneg %p173
      $region50: #{multi_attention_block_2d.3} parent=47 // pred_check_branch
        %655 = sbr.rel (%p653) target = $region52
      $region51: #{multi_attention_block_2d.3} parent=47 // pred_region
        %s656 = smul.u32 8, %s23
        %p657 = scmp.lt.s32.totalorder %s22, 1
        %s658 = scalar_select %p657, %s22, 1
        %p659 = scmp.lt.s32.totalorder %s656, 7
        %s660 = scalar_select %p659, %s656, 7
        %s661 = smul.addr %s658, 8
        %s662 = sadd.s32 %s660, %s661
        %s663 = smul.addr %s662, 8
        %s664 = scalar_lea.vmem %s5, %s663
      $region52: #{multi_attention_block_2d.3} parent=47 // pred_fallthru
        _
    $region48: #{multi_attention_block_2d.3} parent=5 // pred_fallthru
      _
  $region6: #{multi_attention_block_2d.3} parent=0 // loop_footer
    %s15 = sadd.s32 1, %s11
  $region7: #{multi_attention_block_2d.3} parent=0 // loop_footer_branch
    %10 = sbr.rel target = $region3
  $region8: #{multi_attention_block_2d.3} parent=0 // loop_exit
    _

// kernel: multi_attention_block_2d.5
$region0: #{multi_attention_block_2d.5}
  #allocation0 [shape = 'u32[]', space=smem, size = 0x4, offset = 0x4, fixed_abs, tag = 'smem constant byte address 0x4 - core index']
  #allocation1 [shape = 'u32[144,128]{1,0:T(1,128)}', space=vmem, size = 0x12000, scoped, tag = 'internal scratch']
  %s0 = inlined_call_operand.vmem [shape: bf16[512,8], index: 0, kind: input, shape index: {}]
  %s1 = inlined_call_operand.vmem [shape: bf16[512,8], index: 1, kind: input, shape index: {}]
  %s2 = inlined_call_operand.vmem [shape: f32[1,8], index: 2, kind: input, shape index: {}]
  %s3 = inlined_call_operand.vmem [shape: f32[1,8], index: 3, kind: input, shape index: {}]
  %s4 = inlined_call_operand.vmem [shape: f32[1,8], index: 4, kind: input, shape index: {}]
  %s5 = inlined_call_operand.vmem [shape: f32[1,8], index: 5, kind: input, shape index: {}]
  %s6 = inlined_call_operand.vmem [shape: bf16[8,8], index: 6, kind: input, shape index: {}]
  %s7 = inlined_call_operand.vmem [shape: bf16[8,8], index: 7, kind: input, shape index: {}]
  %s8 = inlined_call_operand.vmem [shape: f32[1,8], index: 8, kind: input, shape index: {}]
  %s9 = inlined_call_operand.vmem [shape: f32[512,8], index: 9, kind: output, shape index: {0}]
  %s10 = inlined_call_operand.vmem [shape: f32[1,1,8], index: 10, kind: output, shape index: {1}]
  %s11 = inlined_call_operand.vmem [shape: f32[1,1,8], index: 11, kind: output, shape index: {2}]
  %12 = xla_tuple %s9, %s10, %s11
  %s13 = sld [smem:[#allocation0]]
  $region62: #{multi_attention_block_2d.5} parent=0
    _
  %s15 = ssub.s32 1, %s13
  %s16 = scalar_select 0, %s15, %s13
  // Predicated region
  $region2: #{multi_attention_block_2d.5} parent=0 // pred_check
    _
  $region3: #{multi_attention_block_2d.5} parent=0 // pred_check_branch
    %18 = sbr.rel (0) target = $region5
  $region4: #{multi_attention_block_2d.5} parent=0 // pred_region
    _
  $region5: #{multi_attention_block_2d.5} parent=0 // pred_fallthru
    _
  // Predicated region
  $region6: #{multi_attention_block_2d.5} parent=0 // pred_check
    _
  $region7: #{multi_attention_block_2d.5} parent=0 // pred_check_branch
    %20 = sbr.rel (0) target = $region9
  $region8: #{multi_attention_block_2d.5} parent=0 // pred_region
    _
  $region9: #{multi_attention_block_2d.5} parent=0 // pred_fallthru
    _
  // Predicated region
  $region10: #{multi_attention_block_2d.5} parent=0 // pred_check
    _
  $region11: #{multi_attention_block_2d.5} parent=0 // pred_check_branch
    %22 = sbr.rel (0) target = $region13
  $region12: #{multi_attention_block_2d.5} parent=0 // pred_region
    _
  $region13: #{multi_attention_block_2d.5} parent=0 // pred_fallthru
    _
  // Predicated region
  $region14: #{multi_attention_block_2d.5} parent=0 // pred_check
    _
  $region15: #{multi_attention_block_2d.5} parent=0 // pred_check_branch
    %24 = sbr.rel (0) target = $region17
  $region16: #{multi_attention_block_2d.5} parent=0 // pred_region
    _
  $region17: #{multi_attention_block_2d.5} parent=0 // pred_fallthru
    _
  // Predicated region
  $region18: #{multi_attention_block_2d.5} parent=0 // pred_check
    _
  $region19: #{multi_attention_block_2d.5} parent=0 // pred_check_branch
    %26 = sbr.rel (0) target = $region21
  $region20: #{multi_attention_block_2d.5} parent=0 // pred_region
    _
  $region21: #{multi_attention_block_2d.5} parent=0 // pred_fallthru
    _
  // Predicated region
  $region22: #{multi_attention_block_2d.5} parent=0 // pred_check
    _
  $region23: #{multi_attention_block_2d.5} parent=0 // pred_check_branch
    %28 = sbr.rel (0) target = $region25
  $region24: #{multi_attention_block_2d.5} parent=0 // pred_region
    _
  $region25: #{multi_attention_block_2d.5} parent=0 // pred_fallthru
    _
  // Predicated region
  $region26: #{multi_attention_block_2d.5} parent=0 // pred_check
    _
  $region27: #{multi_attention_block_2d.5} parent=0 // pred_check_branch
    %30 = sbr.rel (0) target = $region29
  $region28: #{multi_attention_block_2d.5} parent=0 // pred_region
    _
  $region29: #{multi_attention_block_2d.5} parent=0 // pred_fallthru
    _
  // Predicated region
  $region30: #{multi_attention_block_2d.5} parent=0 // pred_check
    _
  $region31: #{multi_attention_block_2d.5} parent=0 // pred_check_branch
    %32 = sbr.rel (0) target = $region33
  $region32: #{multi_attention_block_2d.5} parent=0 // pred_region
    _
  $region33: #{multi_attention_block_2d.5} parent=0 // pred_fallthru
    _
  // Predicated region
  $region34: #{multi_attention_block_2d.5} parent=0 // pred_check
    _
  $region35: #{multi_attention_block_2d.5} parent=0 // pred_check_branch
    %34 = sbr.rel (0) target = $region37
  $region36: #{multi_attention_block_2d.5} parent=0 // pred_region
    _
  $region37: #{multi_attention_block_2d.5} parent=0 // pred_fallthru
    _
  %v36 = vld [vmem:[%s0] sm:$0xf]
  %v37 = vld [vmem:[%s0 + $0x4] sm:$0xf]
  %v38 = vld [vmem:[%s0 + $0x8] sm:$0xf]
  %v39 = vld [vmem:[%s0 + $0xc] sm:$0xf]
  %v40 = vld [vmem:[%s0 + $0x10] sm:$0xf]
  %v41 = vld [vmem:[%s0 + $0x14] sm:$0xf]
  %v42 = vld [vmem:[%s0 + $0x18] sm:$0xf]
  %v43 = vld [vmem:[%s0 + $0x1c] sm:$0xf]
  %v44 = vld [vmem:[%s0 + $0x20] sm:$0xf]
  %v45 = vld [vmem:[%s0 + $0x24] sm:$0xf]
  %v46 = vld [vmem:[%s0 + $0x28] sm:$0xf]
  %v47 = vld [vmem:[%s0 + $0x2c] sm:$0xf]
  %v48 = vld [vmem:[%s0 + $0x30] sm:$0xf]
  %v49 = vld [vmem:[%s0 + $0x34] sm:$0xf]
  %v50 = vld [vmem:[%s0 + $0x38] sm:$0xf]
  %v51 = vld [vmem:[%s0 + $0x3c] sm:$0xf]
  %v52 = vld [vmem:[%s0 + $0x40] sm:$0xf]
  %v53 = vld [vmem:[%s0 + $0x44] sm:$0xf]
  %v54 = vld [vmem:[%s0 + $0x48] sm:$0xf]
  %v55 = vld [vmem:[%s0 + $0x4c] sm:$0xf]
  %v56 = vld [vmem:[%s0 + $0x50] sm:$0xf]
  %v57 = vld [vmem:[%s0 + $0x54] sm:$0xf]
  %v58 = vld [vmem:[%s0 + $0x58] sm:$0xf]
  %v59 = vld [vmem:[%s0 + $0x5c] sm:$0xf]
  %v60 = vld [vmem:[%s0 + $0x60] sm:$0xf]
  %v61 = vld [vmem:[%s0 + $0x64] sm:$0xf]
  %v62 = vld [vmem:[%s0 + $0x68] sm:$0xf]
  %v63 = vld [vmem:[%s0 + $0x6c] sm:$0xf]
  %v64 = vld [vmem:[%s0 + $0x70] sm:$0xf]
  %v65 = vld [vmem:[%s0 + $0x74] sm:$0xf]
  %v66 = vld [vmem:[%s0 + $0x78] sm:$0xf]
  %v67 = vld [vmem:[%s0 + $0x7c] sm:$0xf]
  %v68 = vld [vmem:[%s0 + $0x80] sm:$0xf]
  %v69 = vld [vmem:[%s0 + $0x84] sm:$0xf]
  %v70 = vld [vmem:[%s0 + $0x88] sm:$0xf]
  %v71 = vld [vmem:[%s0 + $0x8c] sm:$0xf]
  %v72 = vld [vmem:[%s0 + $0x90] sm:$0xf]
  %v73 = vld [vmem:[%s0 + $0x94] sm:$0xf]
  %v74 = vld [vmem:[%s0 + $0x98] sm:$0xf]
  %v75 = vld [vmem:[%s0 + $0x9c] sm:$0xf]
  %v76 = vld [vmem:[%s0 + $0xa0] sm:$0xf]
  %v77 = vld [vmem:[%s0 + $0xa4] sm:$0xf]
  %v78 = vld [vmem:[%s0 + $0xa8] sm:$0xf]
  %v79 = vld [vmem:[%s0 + $0xac] sm:$0xf]
  %v80 = vld [vmem:[%s0 + $0xb0] sm:$0xf]
  %v81 = vld [vmem:[%s0 + $0xb4] sm:$0xf]
  %v82 = vld [vmem:[%s0 + $0xb8] sm:$0xf]
  %v83 = vld [vmem:[%s0 + $0xbc] sm:$0xf]
  %v84 = vld [vmem:[%s0 + $0xc0] sm:$0xf]
  %v85 = vld [vmem:[%s0 + $0xc4] sm:$0xf]
  %v86 = vld [vmem:[%s0 + $0xc8] sm:$0xf]
  %v87 = vld [vmem:[%s0 + $0xcc] sm:$0xf]
  %v88 = vld [vmem:[%s0 + $0xd0] sm:$0xf]
  %v89 = vld [vmem:[%s0 + $0xd4] sm:$0xf]
  %v90 = vld [vmem:[%s0 + $0xd8] sm:$0xf]
  %v91 = vld [vmem:[%s0 + $0xdc] sm:$0xf]
  %v92 = vld [vmem:[%s0 + $0xe0] sm:$0xf]
  %v93 = vld [vmem:[%s0 + $0xe4] sm:$0xf]
  %v94 = vld [vmem:[%s0 + $0xe8] sm:$0xf]
  %v95 = vld [vmem:[%s0 + $0xec] sm:$0xf]
  %v96 = vld [vmem:[%s0 + $0xf0] sm:$0xf]
  %v97 = vld [vmem:[%s0 + $0xf4] sm:$0xf]
  %v98 = vld [vmem:[%s0 + $0xf8] sm:$0xf]
  %v99 = vld [vmem:[%s0 + $0xfc] sm:$0xf]
  %v100 = vunpack.c.l.bf16 %v36
  %v101 = vunpack.c.l.bf16 %v37
  %v102 = vunpack.c.l.bf16 %v38
  %v103 = vunpack.c.l.bf16 %v39
  %v104 = vunpack.c.l.bf16 %v40
  %v105 = vunpack.c.l.bf16 %v41
  %v106 = vunpack.c.l.bf16 %v42
  %v107 = vunpack.c.l.bf16 %v43
  %v108 = vunpack.c.l.bf16 %v44
  %v109 = vunpack.c.l.bf16 %v45
  %v110 = vunpack.c.l.bf16 %v46
  %v111 = vunpack.c.l.bf16 %v47
  %v112 = vunpack.c.l.bf16 %v48
  %v113 = vunpack.c.l.bf16 %v49
  %v114 = vunpack.c.l.bf16 %v50
  %v115 = vunpack.c.l.bf16 %v51
  %v116 = vunpack.c.l.bf16 %v52
  %v117 = vunpack.c.l.bf16 %v53
  %v118 = vunpack.c.l.bf16 %v54
  %v119 = vunpack.c.l.bf16 %v55
  %v120 = vunpack.c.l.bf16 %v56
  %v121 = vunpack.c.l.bf16 %v57
  %v122 = vunpack.c.l.bf16 %v58
  %v123 = vunpack.c.l.bf16 %v59
  %v124 = vunpack.c.l.bf16 %v60
  %v125 = vunpack.c.l.bf16 %v61
  %v126 = vunpack.c.l.bf16 %v62
  %v127 = vunpack.c.l.bf16 %v63
  %v128 = vunpack.c.l.bf16 %v64
  %v129 = vunpack.c.l.bf16 %v65
  %v130 = vunpack.c.l.bf16 %v66
  %v131 = vunpack.c.l.bf16 %v67
  %v132 = vunpack.c.l.bf16 %v68
  %v133 = vunpack.c.l.bf16 %v69
  %v134 = vunpack.c.l.bf16 %v70
  %v135 = vunpack.c.l.bf16 %v71
  %v136 = vunpack.c.l.bf16 %v72
  %v137 = vunpack.c.l.bf16 %v73
  %v138 = vunpack.c.l.bf16 %v74
  %v139 = vunpack.c.l.bf16 %v75
  %v140 = vunpack.c.l.bf16 %v76
  %v141 = vunpack.c.l.bf16 %v77
  %v142 = vunpack.c.l.bf16 %v78
  %v143 = vunpack.c.l.bf16 %v79
  %v144 = vunpack.c.l.bf16 %v80
  %v145 = vunpack.c.l.bf16 %v81
  %v146 = vunpack.c.l.bf16 %v82
  %v147 = vunpack.c.l.bf16 %v83
  %v148 = vunpack.c.l.bf16 %v84
  %v149 = vunpack.c.l.bf16 %v85
  %v150 = vunpack.c.l.bf16 %v86
  %v151 = vunpack.c.l.bf16 %v87
  %v152 = vunpack.c.l.bf16 %v88
  %v153 = vunpack.c.l.bf16 %v89
  %v154 = vunpack.c.l.bf16 %v90
  %v155 = vunpack.c.l.bf16 %v91
  %v156 = vunpack.c.l.bf16 %v92
  %v157 = vunpack.c.l.bf16 %v93
  %v158 = vunpack.c.l.bf16 %v94
  %v159 = vunpack.c.l.bf16 %v95
  %v160 = vunpack.c.l.bf16 %v96
  %v161 = vunpack.c.l.bf16 %v97
  %v162 = vunpack.c.l.bf16 %v98
  %v163 = vunpack.c.l.bf16 %v99
  %v164 = vld [vmem:[%s2] sm:$0x1]
  %v166 = vlaneseq
  %v167 = vshrl.u32 %v166, 7
  %v168 = vsub.s32 0, %v167
  %v169 = vrot.slane %v164, %v168
  %v171 = vmul.f32 %v100, %v169
  %v172 = vmul.f32 %v101, %v169
  %v173 = vmul.f32 %v102, %v169
  %v174 = vmul.f32 %v103, %v169
  %v175 = vmul.f32 %v104, %v169
  %v176 = vmul.f32 %v105, %v169
  %v177 = vmul.f32 %v106, %v169
  %v178 = vmul.f32 %v107, %v169
  %v179 = vmul.f32 %v108, %v169
  %v180 = vmul.f32 %v109, %v169
  %v181 = vmul.f32 %v110, %v169
  %v182 = vmul.f32 %v111, %v169
  %v183 = vmul.f32 %v112, %v169
  %v184 = vmul.f32 %v113, %v169
  %v185 = vmul.f32 %v114, %v169
  %v186 = vmul.f32 %v115, %v169
  %v187 = vmul.f32 %v116, %v169
  %v188 = vmul.f32 %v117, %v169
  %v189 = vmul.f32 %v118, %v169
  %v190 = vmul.f32 %v119, %v169
  %v191 = vmul.f32 %v120, %v169
  %v192 = vmul.f32 %v121, %v169
  %v193 = vmul.f32 %v122, %v169
  %v194 = vmul.f32 %v123, %v169
  %v195 = vmul.f32 %v124, %v169
  %v196 = vmul.f32 %v125, %v169
  %v197 = vmul.f32 %v126, %v169
  %v198 = vmul.f32 %v127, %v169
  %v199 = vmul.f32 %v128, %v169
  %v200 = vmul.f32 %v129, %v169
  %v201 = vmul.f32 %v130, %v169
  %v202 = vmul.f32 %v131, %v169
  %v203 = vmul.f32 %v132, %v169
  %v204 = vmul.f32 %v133, %v169
  %v205 = vmul.f32 %v134, %v169
  %v206 = vmul.f32 %v135, %v169
  %v207 = vmul.f32 %v136, %v169
  %v208 = vmul.f32 %v137, %v169
  %v209 = vmul.f32 %v138, %v169
  %v210 = vmul.f32 %v139, %v169
  %v211 = vmul.f32 %v140, %v169
  %v212 = vmul.f32 %v141, %v169
  %v213 = vmul.f32 %v142, %v169
  %v214 = vmul.f32 %v143, %v169
  %v215 = vmul.f32 %v144, %v169
  %v216 = vmul.f32 %v145, %v169
  %v217 = vmul.f32 %v146, %v169
  %v218 = vmul.f32 %v147, %v169
  %v219 = vmul.f32 %v148, %v169
  %v220 = vmul.f32 %v149, %v169
  %v221 = vmul.f32 %v150, %v169
  %v222 = vmul.f32 %v151, %v169
  %v223 = vmul.f32 %v152, %v169
  %v224 = vmul.f32 %v153, %v169
  %v225 = vmul.f32 %v154, %v169
  %v226 = vmul.f32 %v155, %v169
  %v227 = vmul.f32 %v156, %v169
  %v228 = vmul.f32 %v157, %v169
  %v229 = vmul.f32 %v158, %v169
  %v230 = vmul.f32 %v159, %v169
  %v231 = vmul.f32 %v160, %v169
  %v232 = vmul.f32 %v161, %v169
  %v233 = vmul.f32 %v162, %v169
  %v234 = vmul.f32 %v163, %v169
  %v235 = vld [vmem:[%s3] sm:$0x1]
  %v237 = vlaneseq
  %v238 = vshrl.u32 %v237, 7
  %v239 = vsub.s32 0, %v238
  %v240 = vrot.slane %v235, %v239
  %v242 = vadd.f32 %v171, %v240
  %v243 = vadd.f32 %v172, %v240
  %v244 = vadd.f32 %v173, %v240
  %v245 = vadd.f32 %v174, %v240
  %v246 = vadd.f32 %v175, %v240
  %v247 = vadd.f32 %v176, %v240
  %v248 = vadd.f32 %v177, %v240
  %v249 = vadd.f32 %v178, %v240
  %v250 = vadd.f32 %v179, %v240
  %v251 = vadd.f32 %v180, %v240
  %v252 = vadd.f32 %v181, %v240
  %v253 = vadd.f32 %v182, %v240
  %v254 = vadd.f32 %v183, %v240
  %v255 = vadd.f32 %v184, %v240
  %v256 = vadd.f32 %v185, %v240
  %v257 = vadd.f32 %v186, %v240
  %v258 = vadd.f32 %v187, %v240
  %v259 = vadd.f32 %v188, %v240
  %v260 = vadd.f32 %v189, %v240
  %v261 = vadd.f32 %v190, %v240
  %v262 = vadd.f32 %v191, %v240
  %v263 = vadd.f32 %v192, %v240
  %v264 = vadd.f32 %v193, %v240
  %v265 = vadd.f32 %v194, %v240
  %v266 = vadd.f32 %v195, %v240
  %v267 = vadd.f32 %v196, %v240
  %v268 = vadd.f32 %v197, %v240
  %v269 = vadd.f32 %v198, %v240
  %v270 = vadd.f32 %v199, %v240
  %v271 = vadd.f32 %v200, %v240
  %v272 = vadd.f32 %v201, %v240
  %v273 = vadd.f32 %v202, %v240
  %v274 = vadd.f32 %v203, %v240
  %v275 = vadd.f32 %v204, %v240
  %v276 = vadd.f32 %v205, %v240
  %v277 = vadd.f32 %v206, %v240
  %v278 = vadd.f32 %v207, %v240
  %v279 = vadd.f32 %v208, %v240
  %v280 = vadd.f32 %v209, %v240
  %v281 = vadd.f32 %v210, %v240
  %v282 = vadd.f32 %v211, %v240
  %v283 = vadd.f32 %v212, %v240
  %v284 = vadd.f32 %v213, %v240
  %v285 = vadd.f32 %v214, %v240
  %v286 = vadd.f32 %v215, %v240
  %v287 = vadd.f32 %v216, %v240
  %v288 = vadd.f32 %v217, %v240
  %v289 = vadd.f32 %v218, %v240
  %v290 = vadd.f32 %v219, %v240
  %v291 = vadd.f32 %v220, %v240
  %v292 = vadd.f32 %v221, %v240
  %v293 = vadd.f32 %v222, %v240
  %v294 = vadd.f32 %v223, %v240
  %v295 = vadd.f32 %v224, %v240
  %v296 = vadd.f32 %v225, %v240
  %v297 = vadd.f32 %v226, %v240
  %v298 = vadd.f32 %v227, %v240
  %v299 = vadd.f32 %v228, %v240
  %v300 = vadd.f32 %v229, %v240
  %v301 = vadd.f32 %v230, %v240
  %v302 = vadd.f32 %v231, %v240
  %v303 = vadd.f32 %v232, %v240
  %v304 = vadd.f32 %v233, %v240
  %v305 = vadd.f32 %v234, %v240
  %v306 = vpack.c.bf16 %v243, %v242
  %v307 = vpack.c.bf16 %v245, %v244
  %v308 = vpack.c.bf16 %v247, %v246
  %v309 = vpack.c.bf16 %v249, %v248
  %v310 = vpack.c.bf16 %v251, %v250
  %v311 = vpack.c.bf16 %v253, %v252
  %v312 = vpack.c.bf16 %v255, %v254
  %v313 = vpack.c.bf16 %v257, %v256
  %v314 = vpack.c.bf16 %v259, %v258
  %v315 = vpack.c.bf16 %v261, %v260
  %v316 = vpack.c.bf16 %v263, %v262
  %v317 = vpack.c.bf16 %v265, %v264
  %v318 = vpack.c.bf16 %v267, %v266
  %v319 = vpack.c.bf16 %v269, %v268
  %v320 = vpack.c.bf16 %v271, %v270
  %v321 = vpack.c.bf16 %v273, %v272
  %v322 = vpack.c.bf16 %v275, %v274
  %v323 = vpack.c.bf16 %v277, %v276
  %v324 = vpack.c.bf16 %v279, %v278
  %v325 = vpack.c.bf16 %v281, %v280
  %v326 = vpack.c.bf16 %v283, %v282
  %v327 = vpack.c.bf16 %v285, %v284
  %v328 = vpack.c.bf16 %v287, %v286
  %v329 = vpack.c.bf16 %v289, %v288
  %v330 = vpack.c.bf16 %v291, %v290
  %v331 = vpack.c.bf16 %v293, %v292
  %v332 = vpack.c.bf16 %v295, %v294
  %v333 = vpack.c.bf16 %v297, %v296
  %v334 = vpack.c.bf16 %v299, %v298
  %v335 = vpack.c.bf16 %v301, %v300
  %v336 = vpack.c.bf16 %v303, %v302
  %v337 = vpack.c.bf16 %v305, %v304
  %v338 = vld [vmem:[%s1] sm:$0xf]
  %v339 = vld [vmem:[%s1 + $0x4] sm:$0xf]
  %v340 = vld [vmem:[%s1 + $0x8] sm:$0xf]
  %v341 = vld [vmem:[%s1 + $0xc] sm:$0xf]
  %v342 = vld [vmem:[%s1 + $0x10] sm:$0xf]
  %v343 = vld [vmem:[%s1 + $0x14] sm:$0xf]
  %v344 = vld [vmem:[%s1 + $0x18] sm:$0xf]
  %v345 = vld [vmem:[%s1 + $0x1c] sm:$0xf]
  %v346 = vld [vmem:[%s1 + $0x20] sm:$0xf]
  %v347 = vld [vmem:[%s1 + $0x24] sm:$0xf]
  %v348 = vld [vmem:[%s1 + $0x28] sm:$0xf]
  %v349 = vld [vmem:[%s1 + $0x2c] sm:$0xf]
  %v350 = vld [vmem:[%s1 + $0x30] sm:$0xf]
  %v351 = vld [vmem:[%s1 + $0x34] sm:$0xf]
  %v352 = vld [vmem:[%s1 + $0x38] sm:$0xf]
  %v353 = vld [vmem:[%s1 + $0x3c] sm:$0xf]
  %v354 = vld [vmem:[%s1 + $0x40] sm:$0xf]
  %v355 = vld [vmem:[%s1 + $0x44] sm:$0xf]
  %v356 = vld [vmem:[%s1 + $0x48] sm:$0xf]
  %v357 = vld [vmem:[%s1 + $0x4c] sm:$0xf]
  %v358 = vld [vmem:[%s1 + $0x50] sm:$0xf]
  %v359 = vld [vmem:[%s1 + $0x54] sm:$0xf]
  %v360 = vld [vmem:[%s1 + $0x58] sm:$0xf]
  %v361 = vld [vmem:[%s1 + $0x5c] sm:$0xf]
  %v362 = vld [vmem:[%s1 + $0x60] sm:$0xf]
  %v363 = vld [vmem:[%s1 + $0x64] sm:$0xf]
  %v364 = vld [vmem:[%s1 + $0x68] sm:$0xf]
  %v365 = vld [vmem:[%s1 + $0x6c] sm:$0xf]
  %v366 = vld [vmem:[%s1 + $0x70] sm:$0xf]
  %v367 = vld [vmem:[%s1 + $0x74] sm:$0xf]
  %v368 = vld [vmem:[%s1 + $0x78] sm:$0xf]
  %v369 = vld [vmem:[%s1 + $0x7c] sm:$0xf]
  %v370 = vld [vmem:[%s1 + $0x80] sm:$0xf]
  %v371 = vld [vmem:[%s1 + $0x84] sm:$0xf]
  %v372 = vld [vmem:[%s1 + $0x88] sm:$0xf]
  %v373 = vld [vmem:[%s1 + $0x8c] sm:$0xf]
  %v374 = vld [vmem:[%s1 + $0x90] sm:$0xf]
  %v375 = vld [vmem:[%s1 + $0x94] sm:$0xf]
  %v376 = vld [vmem:[%s1 + $0x98] sm:$0xf]
  %v377 = vld [vmem:[%s1 + $0x9c] sm:$0xf]
  %v378 = vld [vmem:[%s1 + $0xa0] sm:$0xf]
  %v379 = vld [vmem:[%s1 + $0xa4] sm:$0xf]
  %v380 = vld [vmem:[%s1 + $0xa8] sm:$0xf]
  %v381 = vld [vmem:[%s1 + $0xac] sm:$0xf]
  %v382 = vld [vmem:[%s1 + $0xb0] sm:$0xf]
  %v383 = vld [vmem:[%s1 + $0xb4] sm:$0xf]
  %v384 = vld [vmem:[%s1 + $0xb8] sm:$0xf]
  %v385 = vld [vmem:[%s1 + $0xbc] sm:$0xf]
  %v386 = vld [vmem:[%s1 + $0xc0] sm:$0xf]
  %v387 = vld [vmem:[%s1 + $0xc4] sm:$0xf]
  %v388 = vld [vmem:[%s1 + $0xc8] sm:$0xf]
  %v389 = vld [vmem:[%s1 + $0xcc] sm:$0xf]
  %v390 = vld [vmem:[%s1 + $0xd0] sm:$0xf]
  %v391 = vld [vmem:[%s1 + $0xd4] sm:$0xf]
  %v392 = vld [vmem:[%s1 + $0xd8] sm:$0xf]
  %v393 = vld [vmem:[%s1 + $0xdc] sm:$0xf]
  %v394 = vld [vmem:[%s1 + $0xe0] sm:$0xf]
  %v395 = vld [vmem:[%s1 + $0xe4] sm:$0xf]
  %v396 = vld [vmem:[%s1 + $0xe8] sm:$0xf]
  %v397 = vld [vmem:[%s1 + $0xec] sm:$0xf]
  %v398 = vld [vmem:[%s1 + $0xf0] sm:$0xf]
  %v399 = vld [vmem:[%s1 + $0xf4] sm:$0xf]
  %v400 = vld [vmem:[%s1 + $0xf8] sm:$0xf]
  %v401 = vld [vmem:[%s1 + $0xfc] sm:$0xf]
  %v402 = vunpack.c.l.bf16 %v338
  %v403 = vunpack.c.l.bf16 %v339
  %v404 = vunpack.c.l.bf16 %v340
  %v405 = vunpack.c.l.bf16 %v341
  %v406 = vunpack.c.l.bf16 %v342
  %v407 = vunpack.c.l.bf16 %v343
  %v408 = vunpack.c.l.bf16 %v344
  %v409 = vunpack.c.l.bf16 %v345
  %v410 = vunpack.c.l.bf16 %v346
  %v411 = vunpack.c.l.bf16 %v347
  %v412 = vunpack.c.l.bf16 %v348
  %v413 = vunpack.c.l.bf16 %v349
  %v414 = vunpack.c.l.bf16 %v350
  %v415 = vunpack.c.l.bf16 %v351
  %v416 = vunpack.c.l.bf16 %v352
  %v417 = vunpack.c.l.bf16 %v353
  %v418 = vunpack.c.l.bf16 %v354
  %v419 = vunpack.c.l.bf16 %v355
  %v420 = vunpack.c.l.bf16 %v356
  %v421 = vunpack.c.l.bf16 %v357
  %v422 = vunpack.c.l.bf16 %v358
  %v423 = vunpack.c.l.bf16 %v359
  %v424 = vunpack.c.l.bf16 %v360
  %v425 = vunpack.c.l.bf16 %v361
  %v426 = vunpack.c.l.bf16 %v362
  %v427 = vunpack.c.l.bf16 %v363
  %v428 = vunpack.c.l.bf16 %v364
  %v429 = vunpack.c.l.bf16 %v365
  %v430 = vunpack.c.l.bf16 %v366
  %v431 = vunpack.c.l.bf16 %v367
  %v432 = vunpack.c.l.bf16 %v368
  %v433 = vunpack.c.l.bf16 %v369
  %v434 = vunpack.c.l.bf16 %v370
  %v435 = vunpack.c.l.bf16 %v371
  %v436 = vunpack.c.l.bf16 %v372
  %v437 = vunpack.c.l.bf16 %v373
  %v438 = vunpack.c.l.bf16 %v374
  %v439 = vunpack.c.l.bf16 %v375
  %v440 = vunpack.c.l.bf16 %v376
  %v441 = vunpack.c.l.bf16 %v377
  %v442 = vunpack.c.l.bf16 %v378
  %v443 = vunpack.c.l.bf16 %v379
  %v444 = vunpack.c.l.bf16 %v380
  %v445 = vunpack.c.l.bf16 %v381
  %v446 = vunpack.c.l.bf16 %v382
  %v447 = vunpack.c.l.bf16 %v383
  %v448 = vunpack.c.l.bf16 %v384
  %v449 = vunpack.c.l.bf16 %v385
  %v450 = vunpack.c.l.bf16 %v386
  %v451 = vunpack.c.l.bf16 %v387
  %v452 = vunpack.c.l.bf16 %v388
  %v453 = vunpack.c.l.bf16 %v389
  %v454 = vunpack.c.l.bf16 %v390
  %v455 = vunpack.c.l.bf16 %v391
  %v456 = vunpack.c.l.bf16 %v392
  %v457 = vunpack.c.l.bf16 %v393
  %v458 = vunpack.c.l.bf16 %v394
  %v459 = vunpack.c.l.bf16 %v395
  %v460 = vunpack.c.l.bf16 %v396
  %v461 = vunpack.c.l.bf16 %v397
  %v462 = vunpack.c.l.bf16 %v398
  %v463 = vunpack.c.l.bf16 %v399
  %v464 = vunpack.c.l.bf16 %v400
  %v465 = vunpack.c.l.bf16 %v401
  %v466 = vld [vmem:[%s4] sm:$0x1]
  %v468 = vlaneseq
  %v469 = vshrl.u32 %v468, 7
  %v470 = vsub.s32 0, %v469
  %v471 = vrot.slane %v466, %v470
  %v473 = vmul.f32 %v402, %v471
  %v474 = vmul.f32 %v403, %v471
  %v475 = vmul.f32 %v404, %v471
  %v476 = vmul.f32 %v405, %v471
  %v477 = vmul.f32 %v406, %v471
  %v478 = vmul.f32 %v407, %v471
  %v479 = vmul.f32 %v408, %v471
  %v480 = vmul.f32 %v409, %v471
  %v481 = vmul.f32 %v410, %v471
  %v482 = vmul.f32 %v411, %v471
  %v483 = vmul.f32 %v412, %v471
  %v484 = vmul.f32 %v413, %v471
  %v485 = vmul.f32 %v414, %v471
  %v486 = vmul.f32 %v415, %v471
  %v487 = vmul.f32 %v416, %v471
  %v488 = vmul.f32 %v417, %v471
  %v489 = vmul.f32 %v418, %v471
  %v490 = vmul.f32 %v419, %v471
  %v491 = vmul.f32 %v420, %v471
  %v492 = vmul.f32 %v421, %v471
  %v493 = vmul.f32 %v422, %v471
  %v494 = vmul.f32 %v423, %v471
  %v495 = vmul.f32 %v424, %v471
  %v496 = vmul.f32 %v425, %v471
  %v497 = vmul.f32 %v426, %v471
  %v498 = vmul.f32 %v427, %v471
  %v499 = vmul.f32 %v428, %v471
  %v500 = vmul.f32 %v429, %v471
  %v501 = vmul.f32 %v430, %v471
  %v502 = vmul.f32 %v431, %v471
  %v503 = vmul.f32 %v432, %v471
  %v504 = vmul.f32 %v433, %v471
  %v505 = vmul.f32 %v434, %v471
  %v506 = vmul.f32 %v435, %v471
  %v507 = vmul.f32 %v436, %v471
  %v508 = vmul.f32 %v437, %v471
  %v509 = vmul.f32 %v438, %v471
  %v510 = vmul.f32 %v439, %v471
  %v511 = vmul.f32 %v440, %v471
  %v512 = vmul.f32 %v441, %v471
  %v513 = vmul.f32 %v442, %v471
  %v514 = vmul.f32 %v443, %v471
  %v515 = vmul.f32 %v444, %v471
  %v516 = vmul.f32 %v445, %v471
  %v517 = vmul.f32 %v446, %v471
  %v518 = vmul.f32 %v447, %v471
  %v519 = vmul.f32 %v448, %v471
  %v520 = vmul.f32 %v449, %v471
  %v521 = vmul.f32 %v450, %v471
  %v522 = vmul.f32 %v451, %v471
  %v523 = vmul.f32 %v452, %v471
  %v524 = vmul.f32 %v453, %v471
  %v525 = vmul.f32 %v454, %v471
  %v526 = vmul.f32 %v455, %v471
  %v527 = vmul.f32 %v456, %v471
  %v528 = vmul.f32 %v457, %v471
  %v529 = vmul.f32 %v458, %v471
  %v530 = vmul.f32 %v459, %v471
  %v531 = vmul.f32 %v460, %v471
  %v532 = vmul.f32 %v461, %v471
  %v533 = vmul.f32 %v462, %v471
  %v534 = vmul.f32 %v463, %v471
  %v535 = vmul.f32 %v464, %v471
  %v536 = vmul.f32 %v465, %v471
  %v537 = vld [vmem:[%s5] sm:$0x1]
  %v539 = vlaneseq
  %v540 = vshrl.u32 %v539, 7
  %v541 = vsub.s32 0, %v540
  %v542 = vrot.slane %v537, %v541
  %v544 = vadd.f32 %v473, %v542
  %v545 = vadd.f32 %v474, %v542
  %v546 = vadd.f32 %v475, %v542
  %v547 = vadd.f32 %v476, %v542
  %v548 = vadd.f32 %v477, %v542
  %v549 = vadd.f32 %v478, %v542
  %v550 = vadd.f32 %v479, %v542
  %v551 = vadd.f32 %v480, %v542
  %v552 = vadd.f32 %v481, %v542
  %v553 = vadd.f32 %v482, %v542
  %v554 = vadd.f32 %v483, %v542
  %v555 = vadd.f32 %v484, %v542
  %v556 = vadd.f32 %v485, %v542
  %v557 = vadd.f32 %v486, %v542
  %v558 = vadd.f32 %v487, %v542
  %v559 = vadd.f32 %v488, %v542
  %v560 = vadd.f32 %v489, %v542
  %v561 = vadd.f32 %v490, %v542
  %v562 = vadd.f32 %v491, %v542
  %v563 = vadd.f32 %v492, %v542
  %v564 = vadd.f32 %v493, %v542
  %v565 = vadd.f32 %v494, %v542
  %v566 = vadd.f32 %v495, %v542
  %v567 = vadd.f32 %v496, %v542
  %v568 = vadd.f32 %v497, %v542
  %v569 = vadd.f32 %v498, %v542
  %v570 = vadd.f32 %v499, %v542
  %v571 = vadd.f32 %v500, %v542
  %v572 = vadd.f32 %v501, %v542
  %v573 = vadd.f32 %v502, %v542
  %v574 = vadd.f32 %v503, %v542
  %v575 = vadd.f32 %v504, %v542
  %v576 = vadd.f32 %v505, %v542
  %v577 = vadd.f32 %v506, %v542
  %v578 = vadd.f32 %v507, %v542
  %v579 = vadd.f32 %v508, %v542
  %v580 = vadd.f32 %v509, %v542
  %v581 = vadd.f32 %v510, %v542
  %v582 = vadd.f32 %v511, %v542
  %v583 = vadd.f32 %v512, %v542
  %v584 = vadd.f32 %v513, %v542
  %v585 = vadd.f32 %v514, %v542
  %v586 = vadd.f32 %v515, %v542
  %v587 = vadd.f32 %v516, %v542
  %v588 = vadd.f32 %v517, %v542
  %v589 = vadd.f32 %v518, %v542
  %v590 = vadd.f32 %v519, %v542
  %v591 = vadd.f32 %v520, %v542
  %v592 = vadd.f32 %v521, %v542
  %v593 = vadd.f32 %v522, %v542
  %v594 = vadd.f32 %v523, %v542
  %v595 = vadd.f32 %v524, %v542
  %v596 = vadd.f32 %v525, %v542
  %v597 = vadd.f32 %v526, %v542
  %v598 = vadd.f32 %v527, %v542
  %v599 = vadd.f32 %v528, %v542
  %v600 = vadd.f32 %v529, %v542
  %v601 = vadd.f32 %v530, %v542
  %v602 = vadd.f32 %v531, %v542
  %v603 = vadd.f32 %v532, %v542
  %v604 = vadd.f32 %v533, %v542
  %v605 = vadd.f32 %v534, %v542
  %v606 = vadd.f32 %v535, %v542
  %v607 = vadd.f32 %v536, %v542
  %v608 = vpack.c.bf16 %v545, %v544
  %v609 = vpack.c.bf16 %v547, %v546
  %v610 = vpack.c.bf16 %v549, %v548
  %v611 = vpack.c.bf16 %v551, %v550
  %v612 = vpack.c.bf16 %v553, %v552
  %v613 = vpack.c.bf16 %v555, %v554
  %v614 = vpack.c.bf16 %v557, %v556
  %v615 = vpack.c.bf16 %v559, %v558
  %v616 = vpack.c.bf16 %v561, %v560
  %v617 = vpack.c.bf16 %v563, %v562
  %v618 = vpack.c.bf16 %v565, %v564
  %v619 = vpack.c.bf16 %v567, %v566
  %v620 = vpack.c.bf16 %v569, %v568
  %v621 = vpack.c.bf16 %v571, %v570
  %v622 = vpack.c.bf16 %v573, %v572
  %v623 = vpack.c.bf16 %v575, %v574
  %v624 = vpack.c.bf16 %v577, %v576
  %v625 = vpack.c.bf16 %v579, %v578
  %v626 = vpack.c.bf16 %v581, %v580
  %v627 = vpack.c.bf16 %v583, %v582
  %v628 = vpack.c.bf16 %v585, %v584
  %v629 = vpack.c.bf16 %v587, %v586
  %v630 = vpack.c.bf16 %v589, %v588
  %v631 = vpack.c.bf16 %v591, %v590
  %v632 = vpack.c.bf16 %v593, %v592
  %v633 = vpack.c.bf16 %v595, %v594
  %v634 = vpack.c.bf16 %v597, %v596
  %v635 = vpack.c.bf16 %v599, %v598
  %v636 = vpack.c.bf16 %v601, %v600
  %v637 = vpack.c.bf16 %v603, %v602
  %v638 = vpack.c.bf16 %v605, %v604
  %v639 = vpack.c.bf16 %v607, %v606
  %v640 = vld [vmem:[%s6] sm:$0xf]
  %v641 = vld [vmem:[%s7] sm:$0xf]
  %vm642 = vcmask 64512
  %v644 = vsel %vm642, %v608, 0
  %v647 = vsel %vm642, %v609, 0
  %v650 = vsel %vm642, %v610, 0
  %v653 = vsel %vm642, %v611, 0
  %v656 = vsel %vm642, %v612, 0
  %v659 = vsel %vm642, %v613, 0
  %v662 = vsel %vm642, %v614, 0
  %v665 = vsel %vm642, %v615, 0
  %v668 = vsel %vm642, %v616, 0
  %v671 = vsel %vm642, %v617, 0
  %v674 = vsel %vm642, %v618, 0
  %v677 = vsel %vm642, %v619, 0
  %v680 = vsel %vm642, %v620, 0
  %v683 = vsel %vm642, %v621, 0
  %v686 = vsel %vm642, %v622, 0
  %v689 = vsel %vm642, %v623, 0
  %v692 = vsel %vm642, %v624, 0
  %v695 = vsel %vm642, %v625, 0
  %v698 = vsel %vm642, %v626, 0
  %v701 = vsel %vm642, %v627, 0
  %v704 = vsel %vm642, %v628, 0
  %v707 = vsel %vm642, %v629, 0
  %v710 = vsel %vm642, %v630, 0
  %v713 = vsel %vm642, %v631, 0
  %v716 = vsel %vm642, %v632, 0
  %v719 = vsel %vm642, %v633, 0
  %v722 = vsel %vm642, %v634, 0
  %v725 = vsel %vm642, %v635, 0
  %v728 = vsel %vm642, %v636, 0
  %v731 = vsel %vm642, %v637, 0
  %v734 = vsel %vm642, %v638, 0
  %v737 = vsel %vm642, %v639, 0
  %vm739 = vcmask 1043456
  %v741 = vsel %vm739, %v641, 0
  %743 = vmatprep.subr.bf16.mxu0 0
  %744 = vmatpush1.bf16.msra.mxu0 %v741
  %745 = vmatprep.subr.bf16.mxu0 0
  %746 = vmatpush1.bf16.msra.mxu0 0
  %747 = vmatprep.subr.bf16.mxu0 0
  %748 = vmatpush1.bf16.msra.mxu0 0
  %749 = vmatprep.subr.bf16.mxu0 0
  %750 = vmatpush1.bf16.msra.mxu0 0
  %751 = vmatprep.subr.bf16.mxu0 0
  %752 = vmatpush1.bf16.msra.mxu0 0
  %753 = vmatprep.subr.bf16.mxu0 0
  %754 = vmatpush1.bf16.msra.mxu0 0
  %755 = vmatprep.subr.bf16.mxu0 0
  %756 = vmatpush1.bf16.msra.mxu0 0
  %757 = vmatprep.subr.bf16.mxu0 0
  %758 = vmatpush1.bf16.msra.mxu0 0
  %759 = vmatprep.subr.bf16.mxu0 0
  %760 = vmatpush1.bf16.msra.mxu0 0
  %761 = vmatprep.subr.bf16.mxu0 0
  %762 = vmatpush1.bf16.msra.mxu0 0
  %763 = vmatprep.subr.bf16.mxu0 0
  %764 = vmatpush1.bf16.msra.mxu0 0
  %765 = vmatprep.subr.bf16.mxu0 0
  %766 = vmatpush1.bf16.msra.mxu0 0
  %767 = vmatprep.subr.bf16.mxu0 0
  %768 = vmatpush1.bf16.msra.mxu0 0
  %769 = vmatprep.subr.bf16.mxu0 0
  %770 = vmatpush1.bf16.msra.mxu0 0
  %771 = vmatprep.subr.bf16.mxu0 0
  %772 = vmatpush1.bf16.msra.mxu0 0
  %773 = vmatprep.subr.bf16.mxu0 0
  %774 = vmatpush1.bf16.msra.mxu0 0
  %775 = vmatprep.mubr.bf16.mxu0 0
  %776 = vmatmul.mubr.bf16.gmra.mrb[0].mxu0 %v644
  %v777 = vpop.f32.mrb[0].mxu0
  %v778 = vadd.f32 0.0, %v777
  %v779 = vpop.f32.mrb[0].mxu0
  %v780 = vpop.f32.mrb[0].mxu0
  %v781 = vadd.f32 0.0, %v780
  %v782 = vpop.f32.mrb[0].mxu0
  %783 = vmatprep.mubr.bf16.mxu0 0
  %784 = vmatmul.mubr.bf16.gmra.mrb[0].mxu0 %v647
  %v785 = vpop.f32.mrb[0].mxu0
  %v786 = vadd.f32 0.0, %v785
  %v787 = vpop.f32.mrb[0].mxu0
  %v788 = vpop.f32.mrb[0].mxu0
  %v789 = vadd.f32 0.0, %v788
  %v790 = vpop.f32.mrb[0].mxu0
  %791 = vmatprep.mubr.bf16.mxu0 0
  %792 = vmatmul.mubr.bf16.gmra.mrb[0].mxu0 %v650
  %v793 = vpop.f32.mrb[0].mxu0
  %v794 = vadd.f32 0.0, %v793
  %v795 = vpop.f32.mrb[0].mxu0
  %v796 = vpop.f32.mrb[0].mxu0
  %v797 = vadd.f32 0.0, %v796
  %v798 = vpop.f32.mrb[0].mxu0
  %799 = vmatprep.mubr.bf16.mxu0 0
  %800 = vmatmul.mubr.bf16.gmra.mrb[0].mxu0 %v653
  %v801 = vpop.f32.mrb[0].mxu0
  %v802 = vadd.f32 0.0, %v801
  %v803 = vpop.f32.mrb[0].mxu0
  %v804 = vpop.f32.mrb[0].mxu0
  %v805 = vadd.f32 0.0, %v804
  %v806 = vpop.f32.mrb[0].mxu0
  %807 = vmatprep.mubr.bf16.mxu0 0
  %808 = vmatmul.mubr.bf16.gmra.mrb[0].mxu0 %v656
  %v809 = vpop.f32.mrb[0].mxu0
  %v810 = vadd.f32 0.0, %v809
  %v811 = vpop.f32.mrb[0].mxu0
  %v812 = vpop.f32.mrb[0].mxu0
  %v813 = vadd.f32 0.0, %v812
  %v814 = vpop.f32.mrb[0].mxu0
  %815 = vmatprep.mubr.bf16.mxu0 0
  %816 = vmatmul.mubr.bf16.gmra.mrb[0].mxu0 %v659
  %v817 = vpop.f32.mrb[0].mxu0
  %v818 = vadd.f32 0.0, %v817
  %v819 = vpop.f32.mrb[0].mxu0
  %v820 = vpop.f32.mrb[0].mxu0
  %v821 = vadd.f32 0.0, %v820
  %v822 = vpop.f32.mrb[0].mxu0
  %823 = vmatprep.mubr.bf16.mxu0 0
  %824 = vmatmul.mubr.bf16.gmra.mrb[0].mxu0 %v662
  %v825 = vpop.f32.mrb[0].mxu0
  %v826 = vadd.f32 0.0, %v825
  %v827 = vpop.f32.mrb[0].mxu0
  %v828 = vpop.f32.mrb[0].mxu0
  %v829 = vadd.f32 0.0, %v828
  %v830 = vpop.f32.mrb[0].mxu0
  %831 = vmatprep.mubr.bf16.mxu0 0
  %832 = vmatmul.mubr.bf16.gmra.mrb[0].mxu0 %v665
  %v833 = vpop.f32.mrb[0].mxu0
  %v834 = vadd.f32 0.0, %v833
  %v835 = vpop.f32.mrb[0].mxu0
  %v836 = vpop.f32.mrb[0].mxu0
  %v837 = vadd.f32 0.0, %v836
  %v838 = vpop.f32.mrb[0].mxu0
  %839 = vmatprep.mubr.bf16.mxu0 0
  %840 = vmatmul.mubr.bf16.gmra.mrb[0].mxu0 %v668
  %v841 = vpop.f32.mrb[0].mxu0
  %v842 = vadd.f32 0.0, %v841
  %v843 = vpop.f32.mrb[0].mxu0
  %v844 = vpop.f32.mrb[0].mxu0
  %v845 = vadd.f32 0.0, %v844
  %v846 = vpop.f32.mrb[0].mxu0
  %847 = vmatprep.mubr.bf16.mxu0 0
  %848 = vmatmul.mubr.bf16.gmra.mrb[0].mxu0 %v671
  %v849 = vpop.f32.mrb[0].mxu0
  %v850 = vadd.f32 0.0, %v849
  %v851 = vpop.f32.mrb[0].mxu0
  %v852 = vpop.f32.mrb[0].mxu0
  %v853 = vadd.f32 0.0, %v852
  %v854 = vpop.f32.mrb[0].mxu0
  %855 = vmatprep.mubr.bf16.mxu0 0
  %856 = vmatmul.mubr.bf16.gmra.mrb[0].mxu0 %v674
  %v857 = vpop.f32.mrb[0].mxu0
  %v858 = vadd.f32 0.0, %v857
  %v859 = vpop.f32.mrb[0].mxu0
  %v860 = vpop.f32.mrb[0].mxu0
  %v861 = vadd.f32 0.0, %v860
  %v862 = vpop.f32.mrb[0].mxu0
  %863 = vmatprep.mubr.bf16.mxu0 0
  %864 = vmatmul.mubr.bf16.gmra.mrb[0].mxu0 %v677
  %v865 = vpop.f32.mrb[0].mxu0
  %v866 = vadd.f32 0.0, %v865
  %v867 = vpop.f32.mrb[0].mxu0
  %v868 = vpop.f32.mrb[0].mxu0
  %v869 = vadd.f32 0.0, %v868
  %v870 = vpop.f32.mrb[0].mxu0
  %871 = vmatprep.mubr.bf16.mxu0 0
  %872 = vmatmul.mubr.bf16.gmra.mrb[0].mxu0 %v680
  %v873 = vpop.f32.mrb[0].mxu0
  %v874 = vadd.f32 0.0, %v873
  %v875 = vpop.f32.mrb[0].mxu0
  %v876 = vpop.f32.mrb[0].mxu0
  %v877 = vadd.f32 0.0, %v876
  %v878 = vpop.f32.mrb[0].mxu0
  %879 = vmatprep.mubr.bf16.mxu0 0
  %880 = vmatmul.mubr.bf16.gmra.mrb[0].mxu0 %v683
  %v881 = vpop.f32.mrb[0].mxu0
  %v882 = vadd.f32 0.0, %v881
  %v883 = vpop.f32.mrb[0].mxu0
  %v884 = vpop.f32.mrb[0].mxu0
  %v885 = vadd.f32 0.0, %v884
  %v886 = vpop.f32.mrb[0].mxu0
  %887 = vmatprep.mubr.bf16.mxu0 0
  %888 = vmatmul.mubr.bf16.gmra.mrb[0].mxu0 %v686
  %v889 = vpop.f32.mrb[0].mxu0
  %v890 = vadd.f32 0.0, %v889
  %v891 = vpop.f32.mrb[0].mxu0
  %v892 = vpop.f32.mrb[0].mxu0
  %v893 = vadd.f32 0.0, %v892
  %v894 = vpop.f32.mrb[0].mxu0
  %895 = vmatprep.mubr.bf16.mxu0 0
  %896 = vmatmul.mubr.bf16.gmra.mrb[0].mxu0 %v689
  %v897 = vpop.f32.mrb[0].mxu0
  %v898 = vadd.f32 0.0, %v897
  %v899 = vpop.f32.mrb[0].mxu0
  %v900 = vpop.f32.mrb[0].mxu0
  %v901 = vadd.f32 0.0, %v900
  %v902 = vpop.f32.mrb[0].mxu0
  %903 = vmatprep.mubr.bf16.mxu0 0
  %904 = vmatmul.mubr.bf16.gmra.mrb[0].mxu0 %v692
  %v905 = vpop.f32.mrb[0].mxu0
  %v906 = vadd.f32 0.0, %v905
  %v907 = vpop.f32.mrb[0].mxu0
  %v908 = vpop.f32.mrb[0].mxu0
  %v909 = vadd.f32 0.0, %v908
  %v910 = vpop.f32.mrb[0].mxu0
  %911 = vmatprep.mubr.bf16.mxu0 0
  %912 = vmatmul.mubr.bf16.gmra.mrb[0].mxu0 %v695
  %v913 = vpop.f32.mrb[0].mxu0
  %v914 = vadd.f32 0.0, %v913
  %v915 = vpop.f32.mrb[0].mxu0
  %v916 = vpop.f32.mrb[0].mxu0
  %v917 = vadd.f32 0.0, %v916
  %v918 = vpop.f32.mrb[0].mxu0
  %919 = vmatprep.mubr.bf16.mxu0 0
  %920 = vmatmul.mubr.bf16.gmra.mrb[0].mxu0 %v698
  %v921 = vpop.f32.mrb[0].mxu0
  %v922 = vadd.f32 0.0, %v921
  %v923 = vpop.f32.mrb[0].mxu0
  %v924 = vpop.f32.mrb[0].mxu0
  %v925 = vadd.f32 0.0, %v924
  %v926 = vpop.f32.mrb[0].mxu0
  %927 = vmatprep.mubr.bf16.mxu0 0
  %928 = vmatmul.mubr.bf16.gmra.mrb[0].mxu0 %v701
  %v929 = vpop.f32.mrb[0].mxu0
  %v930 = vadd.f32 0.0, %v929
  %v931 = vpop.f32.mrb[0].mxu0
  %v932 = vpop.f32.mrb[0].mxu0
  %v933 = vadd.f32 0.0, %v932
  %v934 = vpop.f32.mrb[0].mxu0
  %935 = vmatprep.mubr.bf16.mxu0 0
  %936 = vmatmul.mubr.bf16.gmra.mrb[0].mxu0 %v704
  %v937 = vpop.f32.mrb[0].mxu0
  %v938 = vadd.f32 0.0, %v937
  %v939 = vpop.f32.mrb[0].mxu0
  %v940 = vpop.f32.mrb[0].mxu0
  %v941 = vadd.f32 0.0, %v940
  %v942 = vpop.f32.mrb[0].mxu0
  %943 = vmatprep.mubr.bf16.mxu0 0
  %944 = vmatmul.mubr.bf16.gmra.mrb[0].mxu0 %v707
  %v945 = vpop.f32.mrb[0].mxu0
  %v946 = vadd.f32 0.0, %v945
  %v947 = vpop.f32.mrb[0].mxu0
  %v948 = vpop.f32.mrb[0].mxu0
  %v949 = vadd.f32 0.0, %v948
  %v950 = vpop.f32.mrb[0].mxu0
  %951 = vmatprep.mubr.bf16.mxu0 0
  %952 = vmatmul.mubr.bf16.gmra.mrb[0].mxu0 %v710
  %v953 = vpop.f32.mrb[0].mxu0
  %v954 = vadd.f32 0.0, %v953
  %v955 = vpop.f32.mrb[0].mxu0
  %v956 = vpop.f32.mrb[0].mxu0
  %v957 = vadd.f32 0.0, %v956
  %v958 = vpop.f32.mrb[0].mxu0
  %959 = vmatprep.mubr.bf16.mxu0 0
  %960 = vmatmul.mubr.bf16.gmra.mrb[0].mxu0 %v713
  %v961 = vpop.f32.mrb[0].mxu0
  %v962 = vadd.f32 0.0, %v961
  %v963 = vpop.f32.mrb[0].mxu0
  %v964 = vpop.f32.mrb[0].mxu0
  %v965 = vadd.f32 0.0, %v964
  %v966 = vpop.f32.mrb[0].mxu0
  %967 = vmatprep.mubr.bf16.mxu0 0
  %968 = vmatmul.mubr.bf16.gmra.mrb[0].mxu0 %v716
  %v969 = vpop.f32.mrb[0].mxu0
  %v970 = vadd.f32 0.0, %v969
  %v971 = vpop.f32.mrb[0].mxu0
  %v972 = vpop.f32.mrb[0].mxu0
  %v973 = vadd.f32 0.0, %v972
  %v974 = vpop.f32.mrb[0].mxu0
  %975 = vmatprep.mubr.bf16.mxu0 0
  %976 = vmatmul.mubr.bf16.gmra.mrb[0].mxu0 %v719
  %v977 = vpop.f32.mrb[0].mxu0
  %v978 = vadd.f32 0.0, %v977
  %v979 = vpop.f32.mrb[0].mxu0
  %v980 = vpop.f32.mrb[0].mxu0
  %v981 = vadd.f32 0.0, %v980
  %v982 = vpop.f32.mrb[0].mxu0
  %983 = vmatprep.mubr.bf16.mxu0 0
  %984 = vmatmul.mubr.bf16.gmra.mrb[0].mxu0 %v722
  %v985 = vpop.f32.mrb[0].mxu0
  %v986 = vadd.f32 0.0, %v985
  %v987 = vpop.f32.mrb[0].mxu0
  %v988 = vpop.f32.mrb[0].mxu0
  %v989 = vadd.f32 0.0, %v988
  %v990 = vpop.f32.mrb[0].mxu0
  %991 = vmatprep.mubr.bf16.mxu0 0
  %992 = vmatmul.mubr.bf16.gmra.mrb[0].mxu0 %v725
  %v993 = vpop.f32.mrb[0].mxu0
  %v994 = vadd.f32 0.0, %v993
  %v995 = vpop.f32.mrb[0].mxu0
  %v996 = vpop.f32.mrb[0].mxu0
  %v997 = vadd.f32 0.0, %v996
  %v998 = vpop.f32.mrb[0].mxu0
  %999 = vmatprep.mubr.bf16.mxu0 0
  %1000 = vmatmul.mubr.bf16.gmra.mrb[0].mxu0 %v728
  %v1001 = vpop.f32.mrb[0].mxu0
  %v1002 = vadd.f32 0.0, %v1001
  %v1003 = vpop.f32.mrb[0].mxu0
  %v1004 = vpop.f32.mrb[0].mxu0
  %v1005 = vadd.f32 0.0, %v1004
  %v1006 = vpop.f32.mrb[0].mxu0
  %1007 = vmatprep.mubr.bf16.mxu0 0
  %1008 = vmatmul.mubr.bf16.gmra.mrb[0].mxu0 %v731
  %v1009 = vpop.f32.mrb[0].mxu0
  %v1010 = vadd.f32 0.0, %v1009
  %v1011 = vpop.f32.mrb[0].mxu0
  %v1012 = vpop.f32.mrb[0].mxu0
  %v1013 = vadd.f32 0.0, %v1012
  %v1014 = vpop.f32.mrb[0].mxu0
  %1015 = vmatprep.mubr.bf16.mxu0 0
  %1016 = vmatmul.mubr.bf16.gmra.mrb[0].mxu0 %v734
  %v1017 = vpop.f32.mrb[0].mxu0
  %v1018 = vadd.f32 0.0, %v1017
  %v1019 = vpop.f32.mrb[0].mxu0
  %v1020 = vpop.f32.mrb[0].mxu0
  %v1021 = vadd.f32 0.0, %v1020
  %v1022 = vpop.f32.mrb[0].mxu0
  %1023 = vmatprep.mubr.bf16.mxu0 0
  %1024 = vmatmul.mubr.bf16.gmra.mrb[0].mxu0 %v737
  %v1025 = vpop.f32.mrb[0].mxu0
  %v1026 = vadd.f32 0.0, %v1025
  %v1027 = vpop.f32.mrb[0].mxu0
  %v1028 = vpop.f32.mrb[0].mxu0
  %v1029 = vadd.f32 0.0, %v1028
  %v1030 = vpop.f32.mrb[0].mxu0
  %1031 = vdwg.mxu0
  %v1033 = vsel %vm642, %v306, 0
  %v1036 = vsel %vm642, %v307, 0
  %v1039 = vsel %vm642, %v308, 0
  %v1042 = vsel %vm642, %v309, 0
  %v1045 = vsel %vm642, %v310, 0
  %v1048 = vsel %vm642, %v311, 0
  %v1051 = vsel %vm642, %v312, 0
  %v1054 = vsel %vm642, %v313, 0
  %v1057 = vsel %vm642, %v314, 0
  %v1060 = vsel %vm642, %v315, 0
  %v1063 = vsel %vm642, %v316, 0
  %v1066 = vsel %vm642, %v317, 0
  %v1069 = vsel %vm642, %v318, 0
  %v1072 = vsel %vm642, %v319, 0
  %v1075 = vsel %vm642, %v320, 0
  %v1078 = vsel %vm642, %v321, 0
  %v1081 = vsel %vm642, %v322, 0
  %v1084 = vsel %vm642, %v323, 0
  %v1087 = vsel %vm642, %v324, 0
  %v1090 = vsel %vm642, %v325, 0
  %v1093 = vsel %vm642, %v326, 0
  %v1096 = vsel %vm642, %v327, 0
  %v1099 = vsel %vm642, %v328, 0
  %v1102 = vsel %vm642, %v329, 0
  %v1105 = vsel %vm642, %v330, 0
  %v1108 = vsel %vm642, %v331, 0
  %v1111 = vsel %vm642, %v332, 0
  %v1114 = vsel %vm642, %v333, 0
  %v1117 = vsel %vm642, %v334, 0
  %v1120 = vsel %vm642, %v335, 0
  %v1123 = vsel %vm642, %v336, 0
  %v1126 = vsel %vm642, %v337, 0
  %v1129 = vsel %vm739, %v640, 0
  %1131 = vmatprep.subr.bf16.mxu0 0
  %1132 = vmatpush1.bf16.msra.mxu0 %v1129
  %1133 = vmatprep.subr.bf16.mxu0 0
  %1134 = vmatpush1.bf16.msra.mxu0 0
  %1135 = vmatprep.subr.bf16.mxu0 0
  %1136 = vmatpush1.bf16.msra.mxu0 0
  %1137 = vmatprep.subr.bf16.mxu0 0
  %1138 = vmatpush1.bf16.msra.mxu0 0
  %1139 = vmatprep.subr.bf16.mxu0 0
  %1140 = vmatpush1.bf16.msra.mxu0 0
  %1141 = vmatprep.subr.bf16.mxu0 0
  %1142 = vmatpush1.bf16.msra.mxu0 0
  %1143 = vmatprep.subr.bf16.mxu0 0
  %1144 = vmatpush1.bf16.msra.mxu0 0
  %1145 = vmatprep.subr.bf16.mxu0 0
  %1146 = vmatpush1.bf16.msra.mxu0 0
  %1147 = vmatprep.subr.bf16.mxu0 0
  %1148 = vmatpush1.bf16.msra.mxu0 0
  %1149 = vmatprep.subr.bf16.mxu0 0
  %1150 = vmatpush1.bf16.msra.mxu0 0
  %1151 = vmatprep.subr.bf16.mxu0 0
  %1152 = vmatpush1.bf16.msra.mxu0 0
  %1153 = vmatprep.subr.bf16.mxu0 0
  %1154 = vmatpush1.bf16.msra.mxu0 0
  %1155 = vmatprep.subr.bf16.mxu0 0
  %1156 = vmatpush1.bf16.msra.mxu0 0
  %1157 = vmatprep.subr.bf16.mxu0 0
  %1158 = vmatpush1.bf16.msra.mxu0 0
  %1159 = vmatprep.subr.bf16.mxu0 0
  %1160 = vmatpush1.bf16.msra.mxu0 0
  %1161 = vmatprep.subr.bf16.mxu0 0
  %1162 = vmatpush1.bf16.msra.mxu0 0
  %1163 = vmatprep.mubr.bf16.mxu0 0
  %1164 = vmatmul.mubr.bf16.gmra.mrb[0].mxu0 %v1033
  %v1165 = vpop.f32.mrb[0].mxu0
  %v1166 = vadd.f32 %v778, %v1165
  %v1167 = vpop.f32.mrb[0].mxu0
  %v1168 = vpop.f32.mrb[0].mxu0
  %v1169 = vadd.f32 %v781, %v1168
  %v1170 = vpop.f32.mrb[0].mxu0
  %1171 = vmatprep.mubr.bf16.mxu0 0
  %1172 = vmatmul.mubr.bf16.gmra.mrb[0].mxu0 %v1036
  %v1173 = vpop.f32.mrb[0].mxu0
  %v1174 = vadd.f32 %v786, %v1173
  %v1175 = vpop.f32.mrb[0].mxu0
  %v1176 = vpop.f32.mrb[0].mxu0
  %v1177 = vadd.f32 %v789, %v1176
  %v1178 = vpop.f32.mrb[0].mxu0
  %1179 = vmatprep.mubr.bf16.mxu0 0
  %1180 = vmatmul.mubr.bf16.gmra.mrb[0].mxu0 %v1039
  %v1181 = vpop.f32.mrb[0].mxu0
  %v1182 = vadd.f32 %v794, %v1181
  %v1183 = vpop.f32.mrb[0].mxu0
  %v1184 = vpop.f32.mrb[0].mxu0
  %v1185 = vadd.f32 %v797, %v1184
  %v1186 = vpop.f32.mrb[0].mxu0
  %1187 = vmatprep.mubr.bf16.mxu0 0
  %1188 = vmatmul.mubr.bf16.gmra.mrb[0].mxu0 %v1042
  %v1189 = vpop.f32.mrb[0].mxu0
  %v1190 = vadd.f32 %v802, %v1189
  %v1191 = vpop.f32.mrb[0].mxu0
  %v1192 = vpop.f32.mrb[0].mxu0
  %v1193 = vadd.f32 %v805, %v1192
  %v1194 = vpop.f32.mrb[0].mxu0
  %1195 = vmatprep.mubr.bf16.mxu0 0
  %1196 = vmatmul.mubr.bf16.gmra.mrb[0].mxu0 %v1045
  %v1197 = vpop.f32.mrb[0].mxu0
  %v1198 = vadd.f32 %v810, %v1197
  %v1199 = vpop.f32.mrb[0].mxu0
  %v1200 = vpop.f32.mrb[0].mxu0
  %v1201 = vadd.f32 %v813, %v1200
  %v1202 = vpop.f32.mrb[0].mxu0
  %1203 = vmatprep.mubr.bf16.mxu0 0
  %1204 = vmatmul.mubr.bf16.gmra.mrb[0].mxu0 %v1048
  %v1205 = vpop.f32.mrb[0].mxu0
  %v1206 = vadd.f32 %v818, %v1205
  %v1207 = vpop.f32.mrb[0].mxu0
  %v1208 = vpop.f32.mrb[0].mxu0
  %v1209 = vadd.f32 %v821, %v1208
  %v1210 = vpop.f32.mrb[0].mxu0
  %1211 = vmatprep.mubr.bf16.mxu0 0
  %1212 = vmatmul.mubr.bf16.gmra.mrb[0].mxu0 %v1051
  %v1213 = vpop.f32.mrb[0].mxu0
  %v1214 = vadd.f32 %v826, %v1213
  %v1215 = vpop.f32.mrb[0].mxu0
  %v1216 = vpop.f32.mrb[0].mxu0
  %v1217 = vadd.f32 %v829, %v1216
  %v1218 = vpop.f32.mrb[0].mxu0
  %1219 = vmatprep.mubr.bf16.mxu0 0
  %1220 = vmatmul.mubr.bf16.gmra.mrb[0].mxu0 %v1054
  %v1221 = vpop.f32.mrb[0].mxu0
  %v1222 = vadd.f32 %v834, %v1221
  %v1223 = vpop.f32.mrb[0].mxu0
  %v1224 = vpop.f32.mrb[0].mxu0
  %v1225 = vadd.f32 %v837, %v1224
  %v1226 = vpop.f32.mrb[0].mxu0
  %1227 = vmatprep.mubr.bf16.mxu0 0
  %1228 = vmatmul.mubr.bf16.gmra.mrb[0].mxu0 %v1057
  %v1229 = vpop.f32.mrb[0].mxu0
  %v1230 = vadd.f32 %v842, %v1229
  %v1231 = vpop.f32.mrb[0].mxu0
  %v1232 = vpop.f32.mrb[0].mxu0
  %v1233 = vadd.f32 %v845, %v1232
  %v1234 = vpop.f32.mrb[0].mxu0
  %1235 = vmatprep.mubr.bf16.mxu0 0
  %1236 = vmatmul.mubr.bf16.gmra.mrb[0].mxu0 %v1060
  %v1237 = vpop.f32.mrb[0].mxu0
  %v1238 = vadd.f32 %v850, %v1237
  %v1239 = vpop.f32.mrb[0].mxu0
  %v1240 = vpop.f32.mrb[0].mxu0
  %v1241 = vadd.f32 %v853, %v1240
  %v1242 = vpop.f32.mrb[0].mxu0
  %1243 = vmatprep.mubr.bf16.mxu0 0
  %1244 = vmatmul.mubr.bf16.gmra.mrb[0].mxu0 %v1063
  %v1245 = vpop.f32.mrb[0].mxu0
  %v1246 = vadd.f32 %v858, %v1245
  %v1247 = vpop.f32.mrb[0].mxu0
  %v1248 = vpop.f32.mrb[0].mxu0
  %v1249 = vadd.f32 %v861, %v1248
  %v1250 = vpop.f32.mrb[0].mxu0
  %1251 = vmatprep.mubr.bf16.mxu0 0
  %1252 = vmatmul.mubr.bf16.gmra.mrb[0].mxu0 %v1066
  %v1253 = vpop.f32.mrb[0].mxu0
  %v1254 = vadd.f32 %v866, %v1253
  %v1255 = vpop.f32.mrb[0].mxu0
  %v1256 = vpop.f32.mrb[0].mxu0
  %v1257 = vadd.f32 %v869, %v1256
  %v1258 = vpop.f32.mrb[0].mxu0
  %1259 = vmatprep.mubr.bf16.mxu0 0
  %1260 = vmatmul.mubr.bf16.gmra.mrb[0].mxu0 %v1069
  %v1261 = vpop.f32.mrb[0].mxu0
  %v1262 = vadd.f32 %v874, %v1261
  %v1263 = vpop.f32.mrb[0].mxu0
  %v1264 = vpop.f32.mrb[0].mxu0
  %v1265 = vadd.f32 %v877, %v1264
  %v1266 = vpop.f32.mrb[0].mxu0
  %1267 = vmatprep.mubr.bf16.mxu0 0
  %1268 = vmatmul.mubr.bf16.gmra.mrb[0].mxu0 %v1072
  %v1269 = vpop.f32.mrb[0].mxu0
  %v1270 = vadd.f32 %v882, %v1269
  %v1271 = vpop.f32.mrb[0].mxu0
  %v1272 = vpop.f32.mrb[0].mxu0
  %v1273 = vadd.f32 %v885, %v1272
  %v1274 = vpop.f32.mrb[0].mxu0
  %1275 = vmatprep.mubr.bf16.mxu0 0
  %1276 = vmatmul.mubr.bf16.gmra.mrb[0].mxu0 %v1075
  %v1277 = vpop.f32.mrb[0].mxu0
  %v1278 = vadd.f32 %v890, %v1277
  %v1279 = vpop.f32.mrb[0].mxu0
  %v1280 = vpop.f32.mrb[0].mxu0
  %v1281 = vadd.f32 %v893, %v1280
  %v1282 = vpop.f32.mrb[0].mxu0
  %1283 = vmatprep.mubr.bf16.mxu0 0
  %1284 = vmatmul.mubr.bf16.gmra.mrb[0].mxu0 %v1078
  %v1285 = vpop.f32.mrb[0].mxu0
  %v1286 = vadd.f32 %v898, %v1285
  %v1287 = vpop.f32.mrb[0].mxu0
  %v1288 = vpop.f32.mrb[0].mxu0
  %v1289 = vadd.f32 %v901, %v1288
  %v1290 = vpop.f32.mrb[0].mxu0
  %1291 = vmatprep.mubr.bf16.mxu0 0
  %1292 = vmatmul.mubr.bf16.gmra.mrb[0].mxu0 %v1081
  %v1293 = vpop.f32.mrb[0].mxu0
  %v1294 = vadd.f32 %v906, %v1293
  %v1295 = vpop.f32.mrb[0].mxu0
  %v1296 = vpop.f32.mrb[0].mxu0
  %v1297 = vadd.f32 %v909, %v1296
  %v1298 = vpop.f32.mrb[0].mxu0
  %1299 = vmatprep.mubr.bf16.mxu0 0
  %1300 = vmatmul.mubr.bf16.gmra.mrb[0].mxu0 %v1084
  %v1301 = vpop.f32.mrb[0].mxu0
  %v1302 = vadd.f32 %v914, %v1301
  %v1303 = vpop.f32.mrb[0].mxu0
  %v1304 = vpop.f32.mrb[0].mxu0
  %v1305 = vadd.f32 %v917, %v1304
  %v1306 = vpop.f32.mrb[0].mxu0
  %1307 = vmatprep.mubr.bf16.mxu0 0
  %1308 = vmatmul.mubr.bf16.gmra.mrb[0].mxu0 %v1087
  %v1309 = vpop.f32.mrb[0].mxu0
  %v1310 = vadd.f32 %v922, %v1309
  %v1311 = vpop.f32.mrb[0].mxu0
  %v1312 = vpop.f32.mrb[0].mxu0
  %v1313 = vadd.f32 %v925, %v1312
  %v1314 = vpop.f32.mrb[0].mxu0
  %1315 = vmatprep.mubr.bf16.mxu0 0
  %1316 = vmatmul.mubr.bf16.gmra.mrb[0].mxu0 %v1090
  %v1317 = vpop.f32.mrb[0].mxu0
  %v1318 = vadd.f32 %v930, %v1317
  %v1319 = vpop.f32.mrb[0].mxu0
  %v1320 = vpop.f32.mrb[0].mxu0
  %v1321 = vadd.f32 %v933, %v1320
  %v1322 = vpop.f32.mrb[0].mxu0
  %1323 = vmatprep.mubr.bf16.mxu0 0
  %1324 = vmatmul.mubr.bf16.gmra.mrb[0].mxu0 %v1093
  %v1325 = vpop.f32.mrb[0].mxu0
  %v1326 = vadd.f32 %v938, %v1325
  %v1327 = vpop.f32.mrb[0].mxu0
  %v1328 = vpop.f32.mrb[0].mxu0
  %v1329 = vadd.f32 %v941, %v1328
  %v1330 = vpop.f32.mrb[0].mxu0
  %1331 = vmatprep.mubr.bf16.mxu0 0
  %1332 = vmatmul.mubr.bf16.gmra.mrb[0].mxu0 %v1096
  %v1333 = vpop.f32.mrb[0].mxu0
  %v1334 = vadd.f32 %v946, %v1333
  %v1335 = vpop.f32.mrb[0].mxu0
  %v1336 = vpop.f32.mrb[0].mxu0
  %v1337 = vadd.f32 %v949, %v1336
  %v1338 = vpop.f32.mrb[0].mxu0
  %1339 = vmatprep.mubr.bf16.mxu0 0
  %1340 = vmatmul.mubr.bf16.gmra.mrb[0].mxu0 %v1099
  %v1341 = vpop.f32.mrb[0].mxu0
  %v1342 = vadd.f32 %v954, %v1341
  %v1343 = vpop.f32.mrb[0].mxu0
  %v1344 = vpop.f32.mrb[0].mxu0
  %v1345 = vadd.f32 %v957, %v1344
  %v1346 = vpop.f32.mrb[0].mxu0
  %1347 = vmatprep.mubr.bf16.mxu0 0
  %1348 = vmatmul.mubr.bf16.gmra.mrb[0].mxu0 %v1102
  %v1349 = vpop.f32.mrb[0].mxu0
  %v1350 = vadd.f32 %v962, %v1349
  %v1351 = vpop.f32.mrb[0].mxu0
  %v1352 = vpop.f32.mrb[0].mxu0
  %v1353 = vadd.f32 %v965, %v1352
  %v1354 = vpop.f32.mrb[0].mxu0
  %1355 = vmatprep.mubr.bf16.mxu0 0
  %1356 = vmatmul.mubr.bf16.gmra.mrb[0].mxu0 %v1105
  %v1357 = vpop.f32.mrb[0].mxu0
  %v1358 = vadd.f32 %v970, %v1357
  %v1359 = vpop.f32.mrb[0].mxu0
  %v1360 = vpop.f32.mrb[0].mxu0
  %v1361 = vadd.f32 %v973, %v1360
  %v1362 = vpop.f32.mrb[0].mxu0
  %1363 = vmatprep.mubr.bf16.mxu0 0
  %1364 = vmatmul.mubr.bf16.gmra.mrb[0].mxu0 %v1108
  %v1365 = vpop.f32.mrb[0].mxu0
  %v1366 = vadd.f32 %v978, %v1365
  %v1367 = vpop.f32.mrb[0].mxu0
  %v1368 = vpop.f32.mrb[0].mxu0
  %v1369 = vadd.f32 %v981, %v1368
  %v1370 = vpop.f32.mrb[0].mxu0
  %1371 = vmatprep.mubr.bf16.mxu0 0
  %1372 = vmatmul.mubr.bf16.gmra.mrb[0].mxu0 %v1111
  %v1373 = vpop.f32.mrb[0].mxu0
  %v1374 = vadd.f32 %v986, %v1373
  %v1375 = vpop.f32.mrb[0].mxu0
  %v1376 = vpop.f32.mrb[0].mxu0
  %v1377 = vadd.f32 %v989, %v1376
  %v1378 = vpop.f32.mrb[0].mxu0
  %1379 = vmatprep.mubr.bf16.mxu0 0
  %1380 = vmatmul.mubr.bf16.gmra.mrb[0].mxu0 %v1114
  %v1381 = vpop.f32.mrb[0].mxu0
  %v1382 = vadd.f32 %v994, %v1381
  %v1383 = vpop.f32.mrb[0].mxu0
  %v1384 = vpop.f32.mrb[0].mxu0
  %v1385 = vadd.f32 %v997, %v1384
  %v1386 = vpop.f32.mrb[0].mxu0
  %1387 = vmatprep.mubr.bf16.mxu0 0
  %1388 = vmatmul.mubr.bf16.gmra.mrb[0].mxu0 %v1117
  %v1389 = vpop.f32.mrb[0].mxu0
  %v1390 = vadd.f32 %v1002, %v1389
  %v1391 = vpop.f32.mrb[0].mxu0
  %v1392 = vpop.f32.mrb[0].mxu0
  %v1393 = vadd.f32 %v1005, %v1392
  %v1394 = vpop.f32.mrb[0].mxu0
  %1395 = vmatprep.mubr.bf16.mxu0 0
  %1396 = vmatmul.mubr.bf16.gmra.mrb[0].mxu0 %v1120
  %v1397 = vpop.f32.mrb[0].mxu0
  %v1398 = vadd.f32 %v1010, %v1397
  %v1399 = vpop.f32.mrb[0].mxu0
  %v1400 = vpop.f32.mrb[0].mxu0
  %v1401 = vadd.f32 %v1013, %v1400
  %v1402 = vpop.f32.mrb[0].mxu0
  %1403 = vmatprep.mubr.bf16.mxu0 0
  %1404 = vmatmul.mubr.bf16.gmra.mrb[0].mxu0 %v1123
  %v1405 = vpop.f32.mrb[0].mxu0
  %v1406 = vadd.f32 %v1018, %v1405
  %v1407 = vpop.f32.mrb[0].mxu0
  %v1408 = vpop.f32.mrb[0].mxu0
  %v1409 = vadd.f32 %v1021, %v1408
  %v1410 = vpop.f32.mrb[0].mxu0
  %1411 = vmatprep.mubr.bf16.mxu0 0
  %1412 = vmatmul.mubr.bf16.gmra.mrb[0].mxu0 %v1126
  %v1413 = vpop.f32.mrb[0].mxu0
  %v1414 = vadd.f32 %v1026, %v1413
  %v1415 = vpop.f32.mrb[0].mxu0
  %v1416 = vpop.f32.mrb[0].mxu0
  %v1417 = vadd.f32 %v1029, %v1416
  %v1418 = vpop.f32.mrb[0].mxu0
  %1419 = vdwg.mxu0
  %v1420 = vld [vmem:[%s8] sm:$0x1]
  %v1422 = vlaneseq
  %v1423 = vshrl.u32 %v1422, 7
  %v1424 = vsub.s32 0, %v1423
  %v1425 = vrot.slane %v1420, %v1424
  %v1427 = vadd.f32 %v1166, %v1425
  %v1428 = vadd.f32 %v1169, %v1425
  %v1429 = vadd.f32 %v1174, %v1425
  %v1430 = vadd.f32 %v1177, %v1425
  %v1431 = vadd.f32 %v1182, %v1425
  %v1432 = vadd.f32 %v1185, %v1425
  %v1433 = vadd.f32 %v1190, %v1425
  %v1434 = vadd.f32 %v1193, %v1425
  %v1435 = vadd.f32 %v1198, %v1425
  %v1436 = vadd.f32 %v1201, %v1425
  %v1437 = vadd.f32 %v1206, %v1425
  %v1438 = vadd.f32 %v1209, %v1425
  %v1439 = vadd.f32 %v1214, %v1425
  %v1440 = vadd.f32 %v1217, %v1425
  %v1441 = vadd.f32 %v1222, %v1425
  %v1442 = vadd.f32 %v1225, %v1425
  %v1443 = vadd.f32 %v1230, %v1425
  %v1444 = vadd.f32 %v1233, %v1425
  %v1445 = vadd.f32 %v1238, %v1425
  %v1446 = vadd.f32 %v1241, %v1425
  %v1447 = vadd.f32 %v1246, %v1425
  %v1448 = vadd.f32 %v1249, %v1425
  %v1449 = vadd.f32 %v1254, %v1425
  %v1450 = vadd.f32 %v1257, %v1425
  %v1451 = vadd.f32 %v1262, %v1425
  %v1452 = vadd.f32 %v1265, %v1425
  %v1453 = vadd.f32 %v1270, %v1425
  %v1454 = vadd.f32 %v1273, %v1425
  %v1455 = vadd.f32 %v1278, %v1425
  %v1456 = vadd.f32 %v1281, %v1425
  %v1457 = vadd.f32 %v1286, %v1425
  %v1458 = vadd.f32 %v1289, %v1425
  %v1459 = vadd.f32 %v1294, %v1425
  %v1460 = vadd.f32 %v1297, %v1425
  %v1461 = vadd.f32 %v1302, %v1425
  %v1462 = vadd.f32 %v1305, %v1425
  %v1463 = vadd.f32 %v1310, %v1425
  %v1464 = vadd.f32 %v1313, %v1425
  %v1465 = vadd.f32 %v1318, %v1425
  %v1466 = vadd.f32 %v1321, %v1425
  %v1467 = vadd.f32 %v1326, %v1425
  %v1468 = vadd.f32 %v1329, %v1425
  %v1469 = vadd.f32 %v1334, %v1425
  %v1470 = vadd.f32 %v1337, %v1425
  %v1471 = vadd.f32 %v1342, %v1425
  %v1472 = vadd.f32 %v1345, %v1425
  %v1473 = vadd.f32 %v1350, %v1425
  %v1474 = vadd.f32 %v1353, %v1425
  %v1475 = vadd.f32 %v1358, %v1425
  %v1476 = vadd.f32 %v1361, %v1425
  %v1477 = vadd.f32 %v1366, %v1425
  %v1478 = vadd.f32 %v1369, %v1425
  %v1479 = vadd.f32 %v1374, %v1425
  %v1480 = vadd.f32 %v1377, %v1425
  %v1481 = vadd.f32 %v1382, %v1425
  %v1482 = vadd.f32 %v1385, %v1425
  %v1483 = vadd.f32 %v1390, %v1425
  %v1484 = vadd.f32 %v1393, %v1425
  %v1485 = vadd.f32 %v1398, %v1425
  %v1486 = vadd.f32 %v1401, %v1425
  %v1487 = vadd.f32 %v1406, %v1425
  %v1488 = vadd.f32 %v1409, %v1425
  %v1489 = vadd.f32 %v1414, %v1425
  %v1490 = vadd.f32 %v1417, %v1425
  %1491 = vst.msk [vmem:[%s9] sm:$0xff] %vm642, %v1427
  %1492 = vst.msk [vmem:[%s9 + $0x8] sm:$0xff] %vm642, %v1428
  %1493 = vst.msk [vmem:[%s9 + $0x10] sm:$0xff] %vm642, %v1429
  %1494 = vst.msk [vmem:[%s9 + $0x18] sm:$0xff] %vm642, %v1430
  %1495 = vst.msk [vmem:[%s9 + $0x20] sm:$0xff] %vm642, %v1431
  %1496 = vst.msk [vmem:[%s9 + $0x28] sm:$0xff] %vm642, %v1432
  %1497 = vst.msk [vmem:[%s9 + $0x30] sm:$0xff] %vm642, %v1433
  %1498 = vst.msk [vmem:[%s9 + $0x38] sm:$0xff] %vm642, %v1434
  %1499 = vst.msk [vmem:[%s9 + $0x40] sm:$0xff] %vm642, %v1435
  %1500 = vst.msk [vmem:[%s9 + $0x48] sm:$0xff] %vm642, %v1436
  %1501 = vst.msk [vmem:[%s9 + $0x50] sm:$0xff] %vm642, %v1437
  %1502 = vst.msk [vmem:[%s9 + $0x58] sm:$0xff] %vm642, %v1438
  %1503 = vst.msk [vmem:[%s9 + $0x60] sm:$0xff] %vm642, %v1439
  %1504 = vst.msk [vmem:[%s9 + $0x68] sm:$0xff] %vm642, %v1440
  %1505 = vst.msk [vmem:[%s9 + $0x70] sm:$0xff] %vm642, %v1441
  %1506 = vst.msk [vmem:[%s9 + $0x78] sm:$0xff] %vm642, %v1442
  %1507 = vst.msk [vmem:[%s9 + $0x80] sm:$0xff] %vm642, %v1443
  %1508 = vst.msk [vmem:[%s9 + $0x88] sm:$0xff] %vm642, %v1444
  %1509 = vst.msk [vmem:[%s9 + $0x90] sm:$0xff] %vm642, %v1445
  %1510 = vst.msk [vmem:[%s9 + $0x98] sm:$0xff] %vm642, %v1446
  %1511 = vst.msk [vmem:[%s9 + $0xa0] sm:$0xff] %vm642, %v1447
  %1512 = vst.msk [vmem:[%s9 + $0xa8] sm:$0xff] %vm642, %v1448
  %1513 = vst.msk [vmem:[%s9 + $0xb0] sm:$0xff] %vm642, %v1449
  %1514 = vst.msk [vmem:[%s9 + $0xb8] sm:$0xff] %vm642, %v1450
  %1515 = vst.msk [vmem:[%s9 + $0xc0] sm:$0xff] %vm642, %v1451
  %1516 = vst.msk [vmem:[%s9 + $0xc8] sm:$0xff] %vm642, %v1452
  %1517 = vst.msk [vmem:[%s9 + $0xd0] sm:$0xff] %vm642, %v1453
  %1518 = vst.msk [vmem:[%s9 + $0xd8] sm:$0xff] %vm642, %v1454
  %1519 = vst.msk [vmem:[%s9 + $0xe0] sm:$0xff] %vm642, %v1455
  %1520 = vst.msk [vmem:[%s9 + $0xe8] sm:$0xff] %vm642, %v1456
  %1521 = vst.msk [vmem:[%s9 + $0xf0] sm:$0xff] %vm642, %v1457
  %1522 = vst.msk [vmem:[%s9 + $0xf8] sm:$0xff] %vm642, %v1458
  %1523 = vst.msk [vmem:[%s9 + $0x100] sm:$0xff] %vm642, %v1459
  %1524 = vst.msk [vmem:[%s9 + $0x108] sm:$0xff] %vm642, %v1460
  %1525 = vst.msk [vmem:[%s9 + $0x110] sm:$0xff] %vm642, %v1461
  %1526 = vst.msk [vmem:[%s9 + $0x118] sm:$0xff] %vm642, %v1462
  %1527 = vst.msk [vmem:[%s9 + $0x120] sm:$0xff] %vm642, %v1463
  %1528 = vst.msk [vmem:[%s9 + $0x128] sm:$0xff] %vm642, %v1464
  %1529 = vst.msk [vmem:[%s9 + $0x130] sm:$0xff] %vm642, %v1465
  %1530 = vst.msk [vmem:[%s9 + $0x138] sm:$0xff] %vm642, %v1466
  %1531 = vst.msk [vmem:[%s9 + $0x140] sm:$0xff] %vm642, %v1467
  %1532 = vst.msk [vmem:[%s9 + $0x148] sm:$0xff] %vm642, %v1468
  %1533 = vst.msk [vmem:[%s9 + $0x150] sm:$0xff] %vm642, %v1469
  %1534 = vst.msk [vmem:[%s9 + $0x158] sm:$0xff] %vm642, %v1470
  %1535 = vst.msk [vmem:[%s9 + $0x160] sm:$0xff] %vm642, %v1471
  %1536 = vst.msk [vmem:[%s9 + $0x168] sm:$0xff] %vm642, %v1472
  %1537 = vst.msk [vmem:[%s9 + $0x170] sm:$0xff] %vm642, %v1473
  %1538 = vst.msk [vmem:[%s9 + $0x178] sm:$0xff] %vm642, %v1474
  %1539 = vst.msk [vmem:[%s9 + $0x180] sm:$0xff] %vm642, %v1475
  %1540 = vst.msk [vmem:[%s9 + $0x188] sm:$0xff] %vm642, %v1476
  %1541 = vst.msk [vmem:[%s9 + $0x190] sm:$0xff] %vm642, %v1477
  %1542 = vst.msk [vmem:[%s9 + $0x198] sm:$0xff] %vm642, %v1478
  %1543 = vst.msk [vmem:[%s9 + $0x1a0] sm:$0xff] %vm642, %v1479
  %1544 = vst.msk [vmem:[%s9 + $0x1a8] sm:$0xff] %vm642, %v1480
  %1545 = vst.msk [vmem:[%s9 + $0x1b0] sm:$0xff] %vm642, %v1481
  %1546 = vst.msk [vmem:[%s9 + $0x1b8] sm:$0xff] %vm642, %v1482
  %1547 = vst.msk [vmem:[%s9 + $0x1c0] sm:$0xff] %vm642, %v1483
  %1548 = vst.msk [vmem:[%s9 + $0x1c8] sm:$0xff] %vm642, %v1484
  %1549 = vst.msk [vmem:[%s9 + $0x1d0] sm:$0xff] %vm642, %v1485
  %1550 = vst.msk [vmem:[%s9 + $0x1d8] sm:$0xff] %vm642, %v1486
  %1551 = vst.msk [vmem:[%s9 + $0x1e0] sm:$0xff] %vm642, %v1487
  %1552 = vst.msk [vmem:[%s9 + $0x1e8] sm:$0xff] %vm642, %v1488
  %1553 = vst.msk [vmem:[%s9 + $0x1f0] sm:$0xff] %vm642, %v1489
  %1554 = vst.msk [vmem:[%s9 + $0x1f8] sm:$0xff] %vm642, %v1490
  %s1555 = smul.u32 0, 512
  %v1556 = vlaneseq
  %v1557 = vshrl.u32 %v1556, 7
  %v1558 = vadd.s32 %v1557, 8
  %v1559 = vadd.s32 %v1557, 16
  %v1560 = vadd.s32 %v1557, 24
  %v1561 = vadd.s32 %v1557, 32
  %v1562 = vadd.s32 %v1557, 40
  %v1563 = vadd.s32 %v1557, 48
  %v1564 = vadd.s32 %v1557, 56
  %v1565 = vadd.s32 %v1557, 64
  %v1566 = vadd.s32 %v1557, 72
  %v1567 = vadd.s32 %v1557, 80
  %v1568 = vadd.s32 %v1557, 88
  %v1569 = vadd.s32 %v1557, 96
  %v1570 = vadd.s32 %v1557, 104
  %v1571 = vadd.s32 %v1557, 112
  %v1572 = vadd.s32 %v1557, 120
  %v1573 = vadd.s32 %v1557, 128
  %v1574 = vadd.s32 %v1557, 136
  %v1575 = vadd.s32 %v1557, 144
  %v1576 = vadd.s32 %v1557, 152
  %v1577 = vadd.s32 %v1557, 160
  %v1578 = vadd.s32 %v1557, 168
  %v1579 = vadd.s32 %v1557, 176
  %v1580 = vadd.s32 %v1557, 184
  %v1581 = vadd.s32 %v1557, 192
  %v1582 = vadd.s32 %v1557, 200
  %v1583 = vadd.s32 %v1557, 208
  %v1584 = vadd.s32 %v1557, 216
  %v1585 = vadd.s32 %v1557, 224
  %v1586 = vadd.s32 %v1557, 232
  %v1587 = vadd.s32 %v1557, 240
  %v1588 = vadd.s32 %v1557, 248
  %v1589 = vadd.s32 %v1557, 256
  %v1590 = vadd.s32 %v1557, 264
  %v1591 = vadd.s32 %v1557, 272
  %v1592 = vadd.s32 %v1557, 280
  %v1593 = vadd.s32 %v1557, 288
  %v1594 = vadd.s32 %v1557, 296
  %v1595 = vadd.s32 %v1557, 304
  %v1596 = vadd.s32 %v1557, 312
  %v1597 = vadd.s32 %v1557, 320
  %v1598 = vadd.s32 %v1557, 328
  %v1599 = vadd.s32 %v1557, 336
  %v1600 = vadd.s32 %v1557, 344
  %v1601 = vadd.s32 %v1557, 352
  %v1602 = vadd.s32 %v1557, 360
  %v1603 = vadd.s32 %v1557, 368
  %v1604 = vadd.s32 %v1557, 376
  %v1605 = vadd.s32 %v1557, 384
  %v1606 = vadd.s32 %v1557, 392
  %v1607 = vadd.s32 %v1557, 400
  %v1608 = vadd.s32 %v1557, 408
  %v1609 = vadd.s32 %v1557, 416
  %v1610 = vadd.s32 %v1557, 424
  %v1611 = vadd.s32 %v1557, 432
  %v1612 = vadd.s32 %v1557, 440
  %v1613 = vadd.s32 %v1557, 448
  %v1614 = vadd.s32 %v1557, 456
  %v1615 = vadd.s32 %v1557, 464
  %v1616 = vadd.s32 %v1557, 472
  %v1617 = vadd.s32 %v1557, 480
  %v1618 = vadd.s32 %v1557, 488
  %v1619 = vadd.s32 %v1557, 496
  %v1620 = vadd.s32 %v1557, 504
  %v1621 = vstv %s1555
  %v1622 = vadd.s32 %v1621, %v1557
  %v1623 = vadd.s32 %v1621, %v1558
  %v1624 = vadd.s32 %v1621, %v1559
  %v1625 = vadd.s32 %v1621, %v1560
  %v1626 = vadd.s32 %v1621, %v1561
  %v1627 = vadd.s32 %v1621, %v1562
  %v1628 = vadd.s32 %v1621, %v1563
  %v1629 = vadd.s32 %v1621, %v1564
  %v1630 = vadd.s32 %v1621, %v1565
  %v1631 = vadd.s32 %v1621, %v1566
  %v1632 = vadd.s32 %v1621, %v1567
  %v1633 = vadd.s32 %v1621, %v1568
  %v1634 = vadd.s32 %v1621, %v1569
  %v1635 = vadd.s32 %v1621, %v1570
  %v1636 = vadd.s32 %v1621, %v1571
  %v1637 = vadd.s32 %v1621, %v1572
  %v1638 = vadd.s32 %v1621, %v1573
  %v1639 = vadd.s32 %v1621, %v1574
  %v1640 = vadd.s32 %v1621, %v1575
  %v1641 = vadd.s32 %v1621, %v1576
  %v1642 = vadd.s32 %v1621, %v1577
  %v1643 = vadd.s32 %v1621, %v1578
  %v1644 = vadd.s32 %v1621, %v1579
  %v1645 = vadd.s32 %v1621, %v1580
  %v1646 = vadd.s32 %v1621, %v1581
  %v1647 = vadd.s32 %v1621, %v1582
  %v1648 = vadd.s32 %v1621, %v1583
  %v1649 = vadd.s32 %v1621, %v1584
  %v1650 = vadd.s32 %v1621, %v1585
  %v1651 = vadd.s32 %v1621, %v1586
  %v1652 = vadd.s32 %v1621, %v1587
  %v1653 = vadd.s32 %v1621, %v1588
  %v1654 = vadd.s32 %v1621, %v1589
  %v1655 = vadd.s32 %v1621, %v1590
  %v1656 = vadd.s32 %v1621, %v1591
  %v1657 = vadd.s32 %v1621, %v1592
  %v1658 = vadd.s32 %v1621, %v1593
  %v1659 = vadd.s32 %v1621, %v1594
  %v1660 = vadd.s32 %v1621, %v1595
  %v1661 = vadd.s32 %v1621, %v1596
  %v1662 = vadd.s32 %v1621, %v1597
  %v1663 = vadd.s32 %v1621, %v1598
  %v1664 = vadd.s32 %v1621, %v1599
  %v1665 = vadd.s32 %v1621, %v1600
  %v1666 = vadd.s32 %v1621, %v1601
  %v1667 = vadd.s32 %v1621, %v1602
  %v1668 = vadd.s32 %v1621, %v1603
  %v1669 = vadd.s32 %v1621, %v1604
  %v1670 = vadd.s32 %v1621, %v1605
  %v1671 = vadd.s32 %v1621, %v1606
  %v1672 = vadd.s32 %v1621, %v1607
  %v1673 = vadd.s32 %v1621, %v1608
  %v1674 = vadd.s32 %v1621, %v1609
  %v1675 = vadd.s32 %v1621, %v1610
  %v1676 = vadd.s32 %v1621, %v1611
  %v1677 = vadd.s32 %v1621, %v1612
  %v1678 = vadd.s32 %v1621, %v1613
  %v1679 = vadd.s32 %v1621, %v1614
  %v1680 = vadd.s32 %v1621, %v1615
  %v1681 = vadd.s32 %v1621, %v1616
  %v1682 = vadd.s32 %v1621, %v1617
  %v1683 = vadd.s32 %v1621, %v1618
  %v1684 = vadd.s32 %v1621, %v1619
  %v1685 = vadd.s32 %v1621, %v1620
  %vm1686 = vcmp.lt.s32.totalorder %v1622, 512
  %vm1687 = vcmp.lt.s32.totalorder %v1623, 512
  %vm1688 = vcmp.lt.s32.totalorder %v1624, 512
  %vm1689 = vcmp.lt.s32.totalorder %v1625, 512
  %vm1690 = vcmp.lt.s32.totalorder %v1626, 512
  %vm1691 = vcmp.lt.s32.totalorder %v1627, 512
  %vm1692 = vcmp.lt.s32.totalorder %v1628, 512
  %vm1693 = vcmp.lt.s32.totalorder %v1629, 512
  %vm1694 = vcmp.lt.s32.totalorder %v1630, 512
  %vm1695 = vcmp.lt.s32.totalorder %v1631, 512
  %vm1696 = vcmp.lt.s32.totalorder %v1632, 512
  %vm1697 = vcmp.lt.s32.totalorder %v1633, 512
  %vm1698 = vcmp.lt.s32.totalorder %v1634, 512
  %vm1699 = vcmp.lt.s32.totalorder %v1635, 512
  %vm1700 = vcmp.lt.s32.totalorder %v1636, 512
  %vm1701 = vcmp.lt.s32.totalorder %v1637, 512
  %vm1702 = vcmp.lt.s32.totalorder %v1638, 512
  %vm1703 = vcmp.lt.s32.totalorder %v1639, 512
  %vm1704 = vcmp.lt.s32.totalorder %v1640, 512
  %vm1705 = vcmp.lt.s32.totalorder %v1641, 512
  %vm1706 = vcmp.lt.s32.totalorder %v1642, 512
  %vm1707 = vcmp.lt.s32.totalorder %v1643, 512
  %vm1708 = vcmp.lt.s32.totalorder %v1644, 512
  %vm1709 = vcmp.lt.s32.totalorder %v1645, 512
  %vm1710 = vcmp.lt.s32.totalorder %v1646, 512
  %vm1711 = vcmp.lt.s32.totalorder %v1647, 512
  %vm1712 = vcmp.lt.s32.totalorder %v1648, 512
  %vm1713 = vcmp.lt.s32.totalorder %v1649, 512
  %vm1714 = vcmp.lt.s32.totalorder %v1650, 512
  %vm1715 = vcmp.lt.s32.totalorder %v1651, 512
  %vm1716 = vcmp.lt.s32.totalorder %v1652, 512
  %vm1717 = vcmp.lt.s32.totalorder %v1653, 512
  %vm1718 = vcmp.lt.s32.totalorder %v1654, 512
  %vm1719 = vcmp.lt.s32.totalorder %v1655, 512
  %vm1720 = vcmp.lt.s32.totalorder %v1656, 512
  %vm1721 = vcmp.lt.s32.totalorder %v1657, 512
  %vm1722 = vcmp.lt.s32.totalorder %v1658, 512
  %vm1723 = vcmp.lt.s32.totalorder %v1659, 512
  %vm1724 = vcmp.lt.s32.totalorder %v1660, 512
  %vm1725 = vcmp.lt.s32.totalorder %v1661, 512
  %vm1726 = vcmp.lt.s32.totalorder %v1662, 512
  %vm1727 = vcmp.lt.s32.totalorder %v1663, 512
  %vm1728 = vcmp.lt.s32.totalorder %v1664, 512
  %vm1729 = vcmp.lt.s32.totalorder %v1665, 512
  %vm1730 = vcmp.lt.s32.totalorder %v1666, 512
  %vm1731 = vcmp.lt.s32.totalorder %v1667, 512
  %vm1732 = vcmp.lt.s32.totalorder %v1668, 512
  %vm1733 = vcmp.lt.s32.totalorder %v1669, 512
  %vm1734 = vcmp.lt.s32.totalorder %v1670, 512
  %vm1735 = vcmp.lt.s32.totalorder %v1671, 512
  %vm1736 = vcmp.lt.s32.totalorder %v1672, 512
  %vm1737 = vcmp.lt.s32.totalorder %v1673, 512
  %vm1738 = vcmp.lt.s32.totalorder %v1674, 512
  %vm1739 = vcmp.lt.s32.totalorder %v1675, 512
  %vm1740 = vcmp.lt.s32.totalorder %v1676, 512
  %vm1741 = vcmp.lt.s32.totalorder %v1677, 512
  %vm1742 = vcmp.lt.s32.totalorder %v1678, 512
  %vm1743 = vcmp.lt.s32.totalorder %v1679, 512
  %vm1744 = vcmp.lt.s32.totalorder %v1680, 512
  %vm1745 = vcmp.lt.s32.totalorder %v1681, 512
  %vm1746 = vcmp.lt.s32.totalorder %v1682, 512
  %vm1747 = vcmp.lt.s32.totalorder %v1683, 512
  %vm1748 = vcmp.lt.s32.totalorder %v1684, 512
  %vm1749 = vcmp.lt.s32.totalorder %v1685, 512
  %v1750 = vsel %vm1686, 1, 0
  %v1751 = vsel %vm1687, 1, 0
  %v1752 = vsel %vm1688, 1, 0
  %v1753 = vsel %vm1689, 1, 0
  %v1754 = vsel %vm1690, 1, 0
  %v1755 = vsel %vm1691, 1, 0
  %v1756 = vsel %vm1692, 1, 0
  %v1757 = vsel %vm1693, 1, 0
  %v1758 = vsel %vm1694, 1, 0
  %v1759 = vsel %vm1695, 1, 0
  %v1760 = vsel %vm1696, 1, 0
  %v1761 = vsel %vm1697, 1, 0
  %v1762 = vsel %vm1698, 1, 0
  %v1763 = vsel %vm1699, 1, 0
  %v1764 = vsel %vm1700, 1, 0
  %v1765 = vsel %vm1701, 1, 0
  %v1766 = vsel %vm1702, 1, 0
  %v1767 = vsel %vm1703, 1, 0
  %v1768 = vsel %vm1704, 1, 0
  %v1769 = vsel %vm1705, 1, 0
  %v1770 = vsel %vm1706, 1, 0
  %v1771 = vsel %vm1707, 1, 0
  %v1772 = vsel %vm1708, 1, 0
  %v1773 = vsel %vm1709, 1, 0
  %v1774 = vsel %vm1710, 1, 0
  %v1775 = vsel %vm1711, 1, 0
  %v1776 = vsel %vm1712, 1, 0
  %v1777 = vsel %vm1713, 1, 0
  %v1778 = vsel %vm1714, 1, 0
  %v1779 = vsel %vm1715, 1, 0
  %v1780 = vsel %vm1716, 1, 0
  %v1781 = vsel %vm1717, 1, 0
  %v1782 = vsel %vm1718, 1, 0
  %v1783 = vsel %vm1719, 1, 0
  %v1784 = vsel %vm1720, 1, 0
  %v1785 = vsel %vm1721, 1, 0
  %v1786 = vsel %vm1722, 1, 0
  %v1787 = vsel %vm1723, 1, 0
  %v1788 = vsel %vm1724, 1, 0
  %v1789 = vsel %vm1725, 1, 0
  %v1790 = vsel %vm1726, 1, 0
  %v1791 = vsel %vm1727, 1, 0
  %v1792 = vsel %vm1728, 1, 0
  %v1793 = vsel %vm1729, 1, 0
  %v1794 = vsel %vm1730, 1, 0
  %v1795 = vsel %vm1731, 1, 0
  %v1796 = vsel %vm1732, 1, 0
  %v1797 = vsel %vm1733, 1, 0
  %v1798 = vsel %vm1734, 1, 0
  %v1799 = vsel %vm1735, 1, 0
  %v1800 = vsel %vm1736, 1, 0
  %v1801 = vsel %vm1737, 1, 0
  %v1802 = vsel %vm1738, 1, 0
  %v1803 = vsel %vm1739, 1, 0
  %v1804 = vsel %vm1740, 1, 0
  %v1805 = vsel %vm1741, 1, 0
  %v1806 = vsel %vm1742, 1, 0
  %v1807 = vsel %vm1743, 1, 0
  %v1808 = vsel %vm1744, 1, 0
  %v1809 = vsel %vm1745, 1, 0
  %v1810 = vsel %vm1746, 1, 0
  %v1811 = vsel %vm1747, 1, 0
  %v1812 = vsel %vm1748, 1, 0
  %v1813 = vsel %vm1749, 1, 0
  %vm1814 = vcmp.eq.s32.totalorder %v1750, 1
  %vm1815 = vcmp.eq.s32.totalorder %v1751, 1
  %vm1816 = vcmp.eq.s32.totalorder %v1752, 1
  %vm1817 = vcmp.eq.s32.totalorder %v1753, 1
  %vm1818 = vcmp.eq.s32.totalorder %v1754, 1
  %vm1819 = vcmp.eq.s32.totalorder %v1755, 1
  %vm1820 = vcmp.eq.s32.totalorder %v1756, 1
  %vm1821 = vcmp.eq.s32.totalorder %v1757, 1
  %vm1822 = vcmp.eq.s32.totalorder %v1758, 1
  %vm1823 = vcmp.eq.s32.totalorder %v1759, 1
  %vm1824 = vcmp.eq.s32.totalorder %v1760, 1
  %vm1825 = vcmp.eq.s32.totalorder %v1761, 1
  %vm1826 = vcmp.eq.s32.totalorder %v1762, 1
  %vm1827 = vcmp.eq.s32.totalorder %v1763, 1
  %vm1828 = vcmp.eq.s32.totalorder %v1764, 1
  %vm1829 = vcmp.eq.s32.totalorder %v1765, 1
  %vm1830 = vcmp.eq.s32.totalorder %v1766, 1
  %vm1831 = vcmp.eq.s32.totalorder %v1767, 1
  %vm1832 = vcmp.eq.s32.totalorder %v1768, 1
  %vm1833 = vcmp.eq.s32.totalorder %v1769, 1
  %vm1834 = vcmp.eq.s32.totalorder %v1770, 1
  %vm1835 = vcmp.eq.s32.totalorder %v1771, 1
  %vm1836 = vcmp.eq.s32.totalorder %v1772, 1
  %vm1837 = vcmp.eq.s32.totalorder %v1773, 1
  %vm1838 = vcmp.eq.s32.totalorder %v1774, 1
  %vm1839 = vcmp.eq.s32.totalorder %v1775, 1
  %vm1840 = vcmp.eq.s32.totalorder %v1776, 1
  %vm1841 = vcmp.eq.s32.totalorder %v1777, 1
  %vm1842 = vcmp.eq.s32.totalorder %v1778, 1
  %vm1843 = vcmp.eq.s32.totalorder %v1779, 1
  %vm1844 = vcmp.eq.s32.totalorder %v1780, 1
  %vm1845 = vcmp.eq.s32.totalorder %v1781, 1
  %vm1846 = vcmp.eq.s32.totalorder %v1782, 1
  %vm1847 = vcmp.eq.s32.totalorder %v1783, 1
  %vm1848 = vcmp.eq.s32.totalorder %v1784, 1
  %vm1849 = vcmp.eq.s32.totalorder %v1785, 1
  %vm1850 = vcmp.eq.s32.totalorder %v1786, 1
  %vm1851 = vcmp.eq.s32.totalorder %v1787, 1
  %vm1852 = vcmp.eq.s32.totalorder %v1788, 1
  %vm1853 = vcmp.eq.s32.totalorder %v1789, 1
  %vm1854 = vcmp.eq.s32.totalorder %v1790, 1
  %vm1855 = vcmp.eq.s32.totalorder %v1791, 1
  %vm1856 = vcmp.eq.s32.totalorder %v1792, 1
  %vm1857 = vcmp.eq.s32.totalorder %v1793, 1
  %vm1858 = vcmp.eq.s32.totalorder %v1794, 1
  %vm1859 = vcmp.eq.s32.totalorder %v1795, 1
  %vm1860 = vcmp.eq.s32.totalorder %v1796, 1
  %vm1861 = vcmp.eq.s32.totalorder %v1797, 1
  %vm1862 = vcmp.eq.s32.totalorder %v1798, 1
  %vm1863 = vcmp.eq.s32.totalorder %v1799, 1
  %vm1864 = vcmp.eq.s32.totalorder %v1800, 1
  %vm1865 = vcmp.eq.s32.totalorder %v1801, 1
  %vm1866 = vcmp.eq.s32.totalorder %v1802, 1
  %vm1867 = vcmp.eq.s32.totalorder %v1803, 1
  %vm1868 = vcmp.eq.s32.totalorder %v1804, 1
  %vm1869 = vcmp.eq.s32.totalorder %v1805, 1
  %vm1870 = vcmp.eq.s32.totalorder %v1806, 1
  %vm1871 = vcmp.eq.s32.totalorder %v1807, 1
  %vm1872 = vcmp.eq.s32.totalorder %v1808, 1
  %vm1873 = vcmp.eq.s32.totalorder %v1809, 1
  %vm1874 = vcmp.eq.s32.totalorder %v1810, 1
  %vm1875 = vcmp.eq.s32.totalorder %v1811, 1
  %vm1876 = vcmp.eq.s32.totalorder %v1812, 1
  %vm1877 = vcmp.eq.s32.totalorder %v1813, 1
  %v1878 = vsel %vm1814, %v1427, 0.0
  %v1879 = vsel %vm1815, %v1428, 0.0
  %v1880 = vsel %vm1816, %v1429, 0.0
  %v1881 = vsel %vm1817, %v1430, 0.0
  %v1882 = vsel %vm1818, %v1431, 0.0
  %v1883 = vsel %vm1819, %v1432, 0.0
  %v1884 = vsel %vm1820, %v1433, 0.0
  %v1885 = vsel %vm1821, %v1434, 0.0
  %v1886 = vsel %vm1822, %v1435, 0.0
  %v1887 = vsel %vm1823, %v1436, 0.0
  %v1888 = vsel %vm1824, %v1437, 0.0
  %v1889 = vsel %vm1825, %v1438, 0.0
  %v1890 = vsel %vm1826, %v1439, 0.0
  %v1891 = vsel %vm1827, %v1440, 0.0
  %v1892 = vsel %vm1828, %v1441, 0.0
  %v1893 = vsel %vm1829, %v1442, 0.0
  %v1894 = vsel %vm1830, %v1443, 0.0
  %v1895 = vsel %vm1831, %v1444, 0.0
  %v1896 = vsel %vm1832, %v1445, 0.0
  %v1897 = vsel %vm1833, %v1446, 0.0
  %v1898 = vsel %vm1834, %v1447, 0.0
  %v1899 = vsel %vm1835, %v1448, 0.0
  %v1900 = vsel %vm1836, %v1449, 0.0
  %v1901 = vsel %vm1837, %v1450, 0.0
  %v1902 = vsel %vm1838, %v1451, 0.0
  %v1903 = vsel %vm1839, %v1452, 0.0
  %v1904 = vsel %vm1840, %v1453, 0.0
  %v1905 = vsel %vm1841, %v1454, 0.0
  %v1906 = vsel %vm1842, %v1455, 0.0
  %v1907 = vsel %vm1843, %v1456, 0.0
  %v1908 = vsel %vm1844, %v1457, 0.0
  %v1909 = vsel %vm1845, %v1458, 0.0
  %v1910 = vsel %vm1846, %v1459, 0.0
  %v1911 = vsel %vm1847, %v1460, 0.0
  %v1912 = vsel %vm1848, %v1461, 0.0
  %v1913 = vsel %vm1849, %v1462, 0.0
  %v1914 = vsel %vm1850, %v1463, 0.0
  %v1915 = vsel %vm1851, %v1464, 0.0
  %v1916 = vsel %vm1852, %v1465, 0.0
  %v1917 = vsel %vm1853, %v1466, 0.0
  %v1918 = vsel %vm1854, %v1467, 0.0
  %v1919 = vsel %vm1855, %v1468, 0.0
  %v1920 = vsel %vm1856, %v1469, 0.0
  %v1921 = vsel %vm1857, %v1470, 0.0
  %v1922 = vsel %vm1858, %v1471, 0.0
  %v1923 = vsel %vm1859, %v1472, 0.0
  %v1924 = vsel %vm1860, %v1473, 0.0
  %v1925 = vsel %vm1861, %v1474, 0.0
  %v1926 = vsel %vm1862, %v1475, 0.0
  %v1927 = vsel %vm1863, %v1476, 0.0
  %v1928 = vsel %vm1864, %v1477, 0.0
  %v1929 = vsel %vm1865, %v1478, 0.0
  %v1930 = vsel %vm1866, %v1479, 0.0
  %v1931 = vsel %vm1867, %v1480, 0.0
  %v1932 = vsel %vm1868, %v1481, 0.0
  %v1933 = vsel %vm1869, %v1482, 0.0
  %v1934 = vsel %vm1870, %v1483, 0.0
  %v1935 = vsel %vm1871, %v1484, 0.0
  %v1936 = vsel %vm1872, %v1485, 0.0
  %v1937 = vsel %vm1873, %v1486, 0.0
  %v1938 = vsel %vm1874, %v1487, 0.0
  %v1939 = vsel %vm1875, %v1488, 0.0
  %v1940 = vsel %vm1876, %v1489, 0.0
  %v1941 = vsel %vm1877, %v1490, 0.0
  %v1942 = vsel %vm642, %v1878, 0.0
  %v1943 = vsel %vm642, %v1879, 0.0
  %v1944 = vadd.f32 %v1942, %v1943
  %v1945 = vsel %vm642, %v1880, 0.0
  %v1946 = vadd.f32 %v1944, %v1945
  %v1947 = vsel %vm642, %v1881, 0.0
  %v1948 = vadd.f32 %v1946, %v1947
  %v1949 = vsel %vm642, %v1882, 0.0
  %v1950 = vadd.f32 %v1948, %v1949
  %v1951 = vsel %vm642, %v1883, 0.0
  %v1952 = vadd.f32 %v1950, %v1951
  %v1953 = vsel %vm642, %v1884, 0.0
  %v1954 = vadd.f32 %v1952, %v1953
  %v1955 = vsel %vm642, %v1885, 0.0
  %v1956 = vadd.f32 %v1954, %v1955
  %v1957 = vsel %vm642, %v1886, 0.0
  %v1958 = vadd.f32 %v1956, %v1957
  %v1959 = vsel %vm642, %v1887, 0.0
  %v1960 = vadd.f32 %v1958, %v1959
  %v1961 = vsel %vm642, %v1888, 0.0
  %v1962 = vadd.f32 %v1960, %v1961
  %v1963 = vsel %vm642, %v1889, 0.0
  %v1964 = vadd.f32 %v1962, %v1963
  %v1965 = vsel %vm642, %v1890, 0.0
  %v1966 = vadd.f32 %v1964, %v1965
  %v1967 = vsel %vm642, %v1891, 0.0
  %v1968 = vadd.f32 %v1966, %v1967
  %v1969 = vsel %vm642, %v1892, 0.0
  %v1970 = vadd.f32 %v1968, %v1969
  %v1971 = vsel %vm642, %v1893, 0.0
  %v1972 = vadd.f32 %v1970, %v1971
  %v1973 = vsel %vm642, %v1894, 0.0
  %v1974 = vadd.f32 %v1972, %v1973
  %v1975 = vsel %vm642, %v1895, 0.0
  %v1976 = vadd.f32 %v1974, %v1975
  %v1977 = vsel %vm642, %v1896, 0.0
  %v1978 = vadd.f32 %v1976, %v1977
  %v1979 = vsel %vm642, %v1897, 0.0
  %v1980 = vadd.f32 %v1978, %v1979
  %v1981 = vsel %vm642, %v1898, 0.0
  %v1982 = vadd.f32 %v1980, %v1981
  %v1983 = vsel %vm642, %v1899, 0.0
  %v1984 = vadd.f32 %v1982, %v1983
  %v1985 = vsel %vm642, %v1900, 0.0
  %v1986 = vadd.f32 %v1984, %v1985
  %v1987 = vsel %vm642, %v1901, 0.0
  %v1988 = vadd.f32 %v1986, %v1987
  %v1989 = vsel %vm642, %v1902, 0.0
  %v1990 = vadd.f32 %v1988, %v1989
  %v1991 = vsel %vm642, %v1903, 0.0
  %v1992 = vadd.f32 %v1990, %v1991
  %v1993 = vsel %vm642, %v1904, 0.0
  %v1994 = vadd.f32 %v1992, %v1993
  %v1995 = vsel %vm642, %v1905, 0.0
  %v1996 = vadd.f32 %v1994, %v1995
  %v1997 = vsel %vm642, %v1906, 0.0
  %v1998 = vadd.f32 %v1996, %v1997
  %v1999 = vsel %vm642, %v1907, 0.0
  %v2000 = vadd.f32 %v1998, %v1999
  %v2001 = vsel %vm642, %v1908, 0.0
  %v2002 = vadd.f32 %v2000, %v2001
  %v2003 = vsel %vm642, %v1909, 0.0
  %v2004 = vadd.f32 %v2002, %v2003
  %v2005 = vsel %vm642, %v1910, 0.0
  %v2006 = vadd.f32 %v2004, %v2005
  %v2007 = vsel %vm642, %v1911, 0.0
  %v2008 = vadd.f32 %v2006, %v2007
  %v2009 = vsel %vm642, %v1912, 0.0
  %v2010 = vadd.f32 %v2008, %v2009
  %v2011 = vsel %vm642, %v1913, 0.0
  %v2012 = vadd.f32 %v2010, %v2011
  %v2013 = vsel %vm642, %v1914, 0.0
  %v2014 = vadd.f32 %v2012, %v2013
  %v2015 = vsel %vm642, %v1915, 0.0
  %v2016 = vadd.f32 %v2014, %v2015
  %v2017 = vsel %vm642, %v1916, 0.0
  %v2018 = vadd.f32 %v2016, %v2017
  %v2019 = vsel %vm642, %v1917, 0.0
  %v2020 = vadd.f32 %v2018, %v2019
  %v2021 = vsel %vm642, %v1918, 0.0
  %v2022 = vadd.f32 %v2020, %v2021
  %v2023 = vsel %vm642, %v1919, 0.0
  %v2024 = vadd.f32 %v2022, %v2023
  %v2025 = vsel %vm642, %v1920, 0.0
  %v2026 = vadd.f32 %v2024, %v2025
  %v2027 = vsel %vm642, %v1921, 0.0
  %v2028 = vadd.f32 %v2026, %v2027
  %v2029 = vsel %vm642, %v1922, 0.0
  %v2030 = vadd.f32 %v2028, %v2029
  %v2031 = vsel %vm642, %v1923, 0.0
  %v2032 = vadd.f32 %v2030, %v2031
  %v2033 = vsel %vm642, %v1924, 0.0
  %v2034 = vadd.f32 %v2032, %v2033
  %v2035 = vsel %vm642, %v1925, 0.0
  %v2036 = vadd.f32 %v2034, %v2035
  %v2037 = vsel %vm642, %v1926, 0.0
  %v2038 = vadd.f32 %v2036, %v2037
  %v2039 = vsel %vm642, %v1927, 0.0
  %v2040 = vadd.f32 %v2038, %v2039
  %v2041 = vsel %vm642, %v1928, 0.0
  %v2042 = vadd.f32 %v2040, %v2041
  %v2043 = vsel %vm642, %v1929, 0.0
  %v2044 = vadd.f32 %v2042, %v2043
  %v2045 = vsel %vm642, %v1930, 0.0
  %v2046 = vadd.f32 %v2044, %v2045
  %v2047 = vsel %vm642, %v1931, 0.0
  %v2048 = vadd.f32 %v2046, %v2047
  %v2049 = vsel %vm642, %v1932, 0.0
  %v2050 = vadd.f32 %v2048, %v2049
  %v2051 = vsel %vm642, %v1933, 0.0
  %v2052 = vadd.f32 %v2050, %v2051
  %v2053 = vsel %vm642, %v1934, 0.0
  %v2054 = vadd.f32 %v2052, %v2053
  %v2055 = vsel %vm642, %v1935, 0.0
  %v2056 = vadd.f32 %v2054, %v2055
  %v2057 = vsel %vm642, %v1936, 0.0
  %v2058 = vadd.f32 %v2056, %v2057
  %v2059 = vsel %vm642, %v1937, 0.0
  %v2060 = vadd.f32 %v2058, %v2059
  %v2061 = vsel %vm642, %v1938, 0.0
  %v2062 = vadd.f32 %v2060, %v2061
  %v2063 = vsel %vm642, %v1939, 0.0
  %v2064 = vadd.f32 %v2062, %v2063
  %v2065 = vsel %vm642, %v1940, 0.0
  %v2066 = vadd.f32 %v2064, %v2065
  %v2067 = vsel %vm642, %v1941, 0.0
  %v2068 = vadd.f32 %v2066, %v2067
  %v2069 = vrot.slane %v2068, 4
  %v2070 = vadd.f32 %v2068, %v2069
  %v2071 = vrot.slane %v2070, 2
  %v2072 = vadd.f32 %v2070, %v2071
  %v2073 = vrot.slane %v2072, 1
  %v2074 = vadd.f32 %v2072, %v2073
  %vm2075 = vcmask 57344
  %2076 = vst.msk [vmem:[%s10] sm:$0x1] %vm2075, %v2074
  %v2077 = vmul.f32 %v1878, %v1878
  %v2078 = vmul.f32 %v1879, %v1879
  %v2079 = vmul.f32 %v1880, %v1880
  %v2080 = vmul.f32 %v1881, %v1881
  %v2081 = vmul.f32 %v1882, %v1882
  %v2082 = vmul.f32 %v1883, %v1883
  %v2083 = vmul.f32 %v1884, %v1884
  %v2084 = vmul.f32 %v1885, %v1885
  %v2085 = vmul.f32 %v1886, %v1886
  %v2086 = vmul.f32 %v1887, %v1887
  %v2087 = vmul.f32 %v1888, %v1888
  %v2088 = vmul.f32 %v1889, %v1889
  %v2089 = vmul.f32 %v1890, %v1890
  %v2090 = vmul.f32 %v1891, %v1891
  %v2091 = vmul.f32 %v1892, %v1892
  %v2092 = vmul.f32 %v1893, %v1893
  %v2093 = vmul.f32 %v1894, %v1894
  %v2094 = vmul.f32 %v1895, %v1895
  %v2095 = vmul.f32 %v1896, %v1896
  %v2096 = vmul.f32 %v1897, %v1897
  %v2097 = vmul.f32 %v1898, %v1898
  %v2098 = vmul.f32 %v1899, %v1899
  %v2099 = vmul.f32 %v1900, %v1900
  %v2100 = vmul.f32 %v1901, %v1901
  %v2101 = vmul.f32 %v1902, %v1902
  %v2102 = vmul.f32 %v1903, %v1903
  %v2103 = vmul.f32 %v1904, %v1904
  %v2104 = vmul.f32 %v1905, %v1905
  %v2105 = vmul.f32 %v1906, %v1906
  %v2106 = vmul.f32 %v1907, %v1907
  %v2107 = vmul.f32 %v1908, %v1908
  %v2108 = vmul.f32 %v1909, %v1909
  %v2109 = vmul.f32 %v1910, %v1910
  %v2110 = vmul.f32 %v1911, %v1911
  %v2111 = vmul.f32 %v1912, %v1912
  %v2112 = vmul.f32 %v1913, %v1913
  %v2113 = vmul.f32 %v1914, %v1914
  %v2114 = vmul.f32 %v1915, %v1915
  %v2115 = vmul.f32 %v1916, %v1916
  %v2116 = vmul.f32 %v1917, %v1917
  %v2117 = vmul.f32 %v1918, %v1918
  %v2118 = vmul.f32 %v1919, %v1919
  %v2119 = vmul.f32 %v1920, %v1920
  %v2120 = vmul.f32 %v1921, %v1921
  %v2121 = vmul.f32 %v1922, %v1922
  %v2122 = vmul.f32 %v1923, %v1923
  %v2123 = vmul.f32 %v1924, %v1924
  %v2124 = vmul.f32 %v1925, %v1925
  %v2125 = vmul.f32 %v1926, %v1926
  %v2126 = vmul.f32 %v1927, %v1927
  %v2127 = vmul.f32 %v1928, %v1928
  %v2128 = vmul.f32 %v1929, %v1929
  %v2129 = vmul.f32 %v1930, %v1930
  %v2130 = vmul.f32 %v1931, %v1931
  %v2131 = vmul.f32 %v1932, %v1932
  %v2132 = vmul.f32 %v1933, %v1933
  %v2133 = vmul.f32 %v1934, %v1934
  %v2134 = vmul.f32 %v1935, %v1935
  %v2135 = vmul.f32 %v1936, %v1936
  %v2136 = vmul.f32 %v1937, %v1937
  %v2137 = vmul.f32 %v1938, %v1938
  %v2138 = vmul.f32 %v1939, %v1939
  %v2139 = vmul.f32 %v1940, %v1940
  %v2140 = vmul.f32 %v1941, %v1941
  %v2141 = vsel %vm642, %v2077, 0.0
  %v2142 = vsel %vm642, %v2078, 0.0
  %v2143 = vadd.f32 %v2141, %v2142
  %v2144 = vsel %vm642, %v2079, 0.0
  %v2145 = vadd.f32 %v2143, %v2144
  %v2146 = vsel %vm642, %v2080, 0.0
  %v2147 = vadd.f32 %v2145, %v2146
  %v2148 = vsel %vm642, %v2081, 0.0
  %v2149 = vadd.f32 %v2147, %v2148
  %v2150 = vsel %vm642, %v2082, 0.0
  %v2151 = vadd.f32 %v2149, %v2150
  %v2152 = vsel %vm642, %v2083, 0.0
  %v2153 = vadd.f32 %v2151, %v2152
  %v2154 = vsel %vm642, %v2084, 0.0
  %v2155 = vadd.f32 %v2153, %v2154
  %v2156 = vsel %vm642, %v2085, 0.0
  %v2157 = vadd.f32 %v2155, %v2156
  %v2158 = vsel %vm642, %v2086, 0.0
  %v2159 = vadd.f32 %v2157, %v2158
  %v2160 = vsel %vm642, %v2087, 0.0
  %v2161 = vadd.f32 %v2159, %v2160
  %v2162 = vsel %vm642, %v2088, 0.0
  %v2163 = vadd.f32 %v2161, %v2162
  %v2164 = vsel %vm642, %v2089, 0.0
  %v2165 = vadd.f32 %v2163, %v2164
  %v2166 = vsel %vm642, %v2090, 0.0
  %v2167 = vadd.f32 %v2165, %v2166
  %v2168 = vsel %vm642, %v2091, 0.0
  %v2169 = vadd.f32 %v2167, %v2168
  %v2170 = vsel %vm642, %v2092, 0.0
  %v2171 = vadd.f32 %v2169, %v2170
  %v2172 = vsel %vm642, %v2093, 0.0
  %v2173 = vadd.f32 %v2171, %v2172
  %v2174 = vsel %vm642, %v2094, 0.0
  %v2175 = vadd.f32 %v2173, %v2174
  %v2176 = vsel %vm642, %v2095, 0.0
  %v2177 = vadd.f32 %v2175, %v2176
  %v2178 = vsel %vm642, %v2096, 0.0
  %v2179 = vadd.f32 %v2177, %v2178
  %v2180 = vsel %vm642, %v2097, 0.0
  %v2181 = vadd.f32 %v2179, %v2180
  %v2182 = vsel %vm642, %v2098, 0.0
  %v2183 = vadd.f32 %v2181, %v2182
  %v2184 = vsel %vm642, %v2099, 0.0
  %v2185 = vadd.f32 %v2183, %v2184
  %v2186 = vsel %vm642, %v2100, 0.0
  %v2187 = vadd.f32 %v2185, %v2186
  %v2188 = vsel %vm642, %v2101, 0.0
  %v2189 = vadd.f32 %v2187, %v2188
  %v2190 = vsel %vm642, %v2102, 0.0
  %v2191 = vadd.f32 %v2189, %v2190
  %v2192 = vsel %vm642, %v2103, 0.0
  %v2193 = vadd.f32 %v2191, %v2192
  %v2194 = vsel %vm642, %v2104, 0.0
  %v2195 = vadd.f32 %v2193, %v2194
  %v2196 = vsel %vm642, %v2105, 0.0
  %v2197 = vadd.f32 %v2195, %v2196
  %v2198 = vsel %vm642, %v2106, 0.0
  %v2199 = vadd.f32 %v2197, %v2198
  %v2200 = vsel %vm642, %v2107, 0.0
  %v2201 = vadd.f32 %v2199, %v2200
  %v2202 = vsel %vm642, %v2108, 0.0
  %v2203 = vadd.f32 %v2201, %v2202
  %v2204 = vsel %vm642, %v2109, 0.0
  %v2205 = vadd.f32 %v2203, %v2204
  %v2206 = vsel %vm642, %v2110, 0.0
  %v2207 = vadd.f32 %v2205, %v2206
  %v2208 = vsel %vm642, %v2111, 0.0
  %v2209 = vadd.f32 %v2207, %v2208
  %v2210 = vsel %vm642, %v2112, 0.0
  %v2211 = vadd.f32 %v2209, %v2210
  %v2212 = vsel %vm642, %v2113, 0.0
  %v2213 = vadd.f32 %v2211, %v2212
  %v2214 = vsel %vm642, %v2114, 0.0
  %v2215 = vadd.f32 %v2213, %v2214
  %v2216 = vsel %vm642, %v2115, 0.0
  %v2217 = vadd.f32 %v2215, %v2216
  %v2218 = vsel %vm642, %v2116, 0.0
  %v2219 = vadd.f32 %v2217, %v2218
  %v2220 = vsel %vm642, %v2117, 0.0
  %v2221 = vadd.f32 %v2219, %v2220
  %v2222 = vsel %vm642, %v2118, 0.0
  %v2223 = vadd.f32 %v2221, %v2222
  %v2224 = vsel %vm642, %v2119, 0.0
  %v2225 = vadd.f32 %v2223, %v2224
  %v2226 = vsel %vm642, %v2120, 0.0
  %v2227 = vadd.f32 %v2225, %v2226
  %v2228 = vsel %vm642, %v2121, 0.0
  %v2229 = vadd.f32 %v2227, %v2228
  %v2230 = vsel %vm642, %v2122, 0.0
  %v2231 = vadd.f32 %v2229, %v2230
  %v2232 = vsel %vm642, %v2123, 0.0
  %v2233 = vadd.f32 %v2231, %v2232
  %v2234 = vsel %vm642, %v2124, 0.0
  %v2235 = vadd.f32 %v2233, %v2234
  %v2236 = vsel %vm642, %v2125, 0.0
  %v2237 = vadd.f32 %v2235, %v2236
  %v2238 = vsel %vm642, %v2126, 0.0
  %v2239 = vadd.f32 %v2237, %v2238
  %v2240 = vsel %vm642, %v2127, 0.0
  %v2241 = vadd.f32 %v2239, %v2240
  %v2242 = vsel %vm642, %v2128, 0.0
  %v2243 = vadd.f32 %v2241, %v2242
  %v2244 = vsel %vm642, %v2129, 0.0
  %v2245 = vadd.f32 %v2243, %v2244
  %v2246 = vsel %vm642, %v2130, 0.0
  %v2247 = vadd.f32 %v2245, %v2246
  %v2248 = vsel %vm642, %v2131, 0.0
  %v2249 = vadd.f32 %v2247, %v2248
  %v2250 = vsel %vm642, %v2132, 0.0
  %v2251 = vadd.f32 %v2249, %v2250
  %v2252 = vsel %vm642, %v2133, 0.0
  %v2253 = vadd.f32 %v2251, %v2252
  %v2254 = vsel %vm642, %v2134, 0.0
  %v2255 = vadd.f32 %v2253, %v2254
  %v2256 = vsel %vm642, %v2135, 0.0
  %v2257 = vadd.f32 %v2255, %v2256
  %v2258 = vsel %vm642, %v2136, 0.0
  %v2259 = vadd.f32 %v2257, %v2258
  %v2260 = vsel %vm642, %v2137, 0.0
  %v2261 = vadd.f32 %v2259, %v2260
  %v2262 = vsel %vm642, %v2138, 0.0
  %v2263 = vadd.f32 %v2261, %v2262
  %v2264 = vsel %vm642, %v2139, 0.0
  %v2265 = vadd.f32 %v2263, %v2264
  %v2266 = vsel %vm642, %v2140, 0.0
  %v2267 = vadd.f32 %v2265, %v2266
  %v2268 = vrot.slane %v2267, 4
  %v2269 = vadd.f32 %v2267, %v2268
  %v2270 = vrot.slane %v2269, 2
  %v2271 = vadd.f32 %v2269, %v2270
  %v2272 = vrot.slane %v2271, 1
  %v2273 = vadd.f32 %v2271, %v2272
  %2274 = vst.msk [vmem:[%s11] sm:$0x1] %vm2075, %v2273
  // Predicated region
  $region38: #{multi_attention_block_2d.5} parent=0 // pred_check
    _
  $region39: #{multi_attention_block_2d.5} parent=0 // pred_check_branch
    %2276 = sbr.rel (0) target = $region41
  $region40: #{multi_attention_block_2d.5} parent=0 // pred_region
    _
  $region41: #{multi_attention_block_2d.5} parent=0 // pred_fallthru
    _
  // Predicated region
  $region42: #{multi_attention_block_2d.5} parent=0 // pred_check
    _
  $region43: #{multi_attention_block_2d.5} parent=0 // pred_check_branch
    %2278 = sbr.rel (0) target = $region45
  $region44: #{multi_attention_block_2d.5} parent=0 // pred_region
    _
  $region45: #{multi_attention_block_2d.5} parent=0 // pred_fallthru
    _
  // Predicated region
  $region46: #{multi_attention_block_2d.5} parent=0 // pred_check
    _
  $region47: #{multi_attention_block_2d.5} parent=0 // pred_check_branch
    %2280 = sbr.rel (0) target = $region49
  $region48: #{multi_attention_block_2d.5} parent=0 // pred_region
    _
  $region49: #{multi_attention_block_2d.5} parent=0 // pred_fallthru
    _
  // Predicated region
  $region50: #{multi_attention_block_2d.5} parent=0 // pred_check
    _
  $region51: #{multi_attention_block_2d.5} parent=0 // pred_check_branch
    %2282 = sbr.rel (0) target = $region53
  $region52: #{multi_attention_block_2d.5} parent=0 // pred_region
    _
  $region53: #{multi_attention_block_2d.5} parent=0 // pred_fallthru
    _
  // Predicated region
  $region54: #{multi_attention_block_2d.5} parent=0 // pred_check
    _
  $region55: #{multi_attention_block_2d.5} parent=0 // pred_check_branch
    %2284 = sbr.rel (0) target = $region57
  $region56: #{multi_attention_block_2d.5} parent=0 // pred_region
    _
  $region57: #{multi_attention_block_2d.5} parent=0 // pred_fallthru
    _
  // Predicated region
  $region58: #{multi_attention_block_2d.5} parent=0 // pred_check
    _
  $region59: #{multi_attention_block_2d.5} parent=0 // pred_check_branch
    %2286 = sbr.rel (0) target = $region61
  $region60: #{multi_attention_block_2d.5} parent=0 // pred_region
    _
  $region61: #{multi_attention_block_2d.5} parent=0 // pred_fallthru
    _

// kernel: multi_attention_block_2d.4
$region0: #{multi_attention_block_2d.4}
  #allocation0 [shape = 'u32[]', space=smem, size = 0x4, offset = 0x4, fixed_abs, tag = 'smem constant byte address 0x4 - core index']
  #allocation1 [shape = 'u32[144,128]{1,0:T(1,128)}', space=vmem, size = 0x12000, scoped, tag = 'internal scratch']
  %s0 = inlined_call_operand.vmem [shape: bf16[512,8], index: 0, kind: input, shape index: {}]
  %s1 = inlined_call_operand.vmem [shape: f32[512,1], index: 1, kind: input, shape index: {}]
  %s2 = inlined_call_operand.vmem [shape: f32[512,1], index: 2, kind: input, shape index: {}]
  %s3 = inlined_call_operand.vmem [shape: bf16[8,8], index: 3, kind: input, shape index: {}]
  %s4 = inlined_call_operand.vmem [shape: bf16[8,8], index: 4, kind: input, shape index: {}]
  %s5 = inlined_call_operand.vmem [shape: f32[1,8], index: 5, kind: input, shape index: {}]
  %s6 = inlined_call_operand.vmem [shape: f32[1,8], index: 6, kind: input, shape index: {}]
  %s7 = inlined_call_operand.vmem [shape: bf16[512,8], index: 7, kind: output, shape index: {0}]
  %s8 = inlined_call_operand.vmem [shape: bf16[512,8], index: 8, kind: output, shape index: {1}]
  %s9 = inlined_call_operand.vmem [shape: f32[1,1,8], index: 9, kind: output, shape index: {2}]
  %s10 = inlined_call_operand.vmem [shape: f32[1,1,8], index: 10, kind: output, shape index: {3}]
  %s11 = inlined_call_operand.vmem [shape: f32[1,1,8], index: 11, kind: output, shape index: {4}]
  %s12 = inlined_call_operand.vmem [shape: f32[1,1,8], index: 12, kind: output, shape index: {5}]
  %13 = xla_tuple %s7, %s8, %s9, %s10, %s11, %s12
  %s14 = sld [smem:[#allocation0]]
  $region78: #{multi_attention_block_2d.4} parent=0
    _
  %s16 = ssub.s32 1, %s14
  %s17 = scalar_select 0, %s16, %s14
  // Predicated region
  $region2: #{multi_attention_block_2d.4} parent=0 // pred_check
    _
  $region3: #{multi_attention_block_2d.4} parent=0 // pred_check_branch
    %19 = sbr.rel (0) target = $region5
  $region4: #{multi_attention_block_2d.4} parent=0 // pred_region
    _
  $region5: #{multi_attention_block_2d.4} parent=0 // pred_fallthru
    _
  // Predicated region
  $region6: #{multi_attention_block_2d.4} parent=0 // pred_check
    _
  $region7: #{multi_attention_block_2d.4} parent=0 // pred_check_branch
    %21 = sbr.rel (0) target = $region9
  $region8: #{multi_attention_block_2d.4} parent=0 // pred_region
    _
  $region9: #{multi_attention_block_2d.4} parent=0 // pred_fallthru
    _
  // Predicated region
  $region10: #{multi_attention_block_2d.4} parent=0 // pred_check
    _
  $region11: #{multi_attention_block_2d.4} parent=0 // pred_check_branch
    %23 = sbr.rel (0) target = $region13
  $region12: #{multi_attention_block_2d.4} parent=0 // pred_region
    _
  $region13: #{multi_attention_block_2d.4} parent=0 // pred_fallthru
    _
  // Predicated region
  $region14: #{multi_attention_block_2d.4} parent=0 // pred_check
    _
  $region15: #{multi_attention_block_2d.4} parent=0 // pred_check_branch
    %25 = sbr.rel (0) target = $region17
  $region16: #{multi_attention_block_2d.4} parent=0 // pred_region
    _
  $region17: #{multi_attention_block_2d.4} parent=0 // pred_fallthru
    _
  // Predicated region
  $region18: #{multi_attention_block_2d.4} parent=0 // pred_check
    _
  $region19: #{multi_attention_block_2d.4} parent=0 // pred_check_branch
    %27 = sbr.rel (0) target = $region21
  $region20: #{multi_attention_block_2d.4} parent=0 // pred_region
    _
  $region21: #{multi_attention_block_2d.4} parent=0 // pred_fallthru
    _
  // Predicated region
  $region22: #{multi_attention_block_2d.4} parent=0 // pred_check
    _
  $region23: #{multi_attention_block_2d.4} parent=0 // pred_check_branch
    %29 = sbr.rel (0) target = $region25
  $region24: #{multi_attention_block_2d.4} parent=0 // pred_region
    _
  $region25: #{multi_attention_block_2d.4} parent=0 // pred_fallthru
    _
  // Predicated region
  $region26: #{multi_attention_block_2d.4} parent=0 // pred_check
    _
  $region27: #{multi_attention_block_2d.4} parent=0 // pred_check_branch
    %31 = sbr.rel (0) target = $region29
  $region28: #{multi_attention_block_2d.4} parent=0 // pred_region
    _
  $region29: #{multi_attention_block_2d.4} parent=0 // pred_fallthru
    _
  %v33 = vld [vmem:[%s0] sm:$0xf]
  %v34 = vld [vmem:[%s0 + $0x4] sm:$0xf]
  %v35 = vld [vmem:[%s0 + $0x8] sm:$0xf]
  %v36 = vld [vmem:[%s0 + $0xc] sm:$0xf]
  %v37 = vld [vmem:[%s0 + $0x10] sm:$0xf]
  %v38 = vld [vmem:[%s0 + $0x14] sm:$0xf]
  %v39 = vld [vmem:[%s0 + $0x18] sm:$0xf]
  %v40 = vld [vmem:[%s0 + $0x1c] sm:$0xf]
  %v41 = vld [vmem:[%s0 + $0x20] sm:$0xf]
  %v42 = vld [vmem:[%s0 + $0x24] sm:$0xf]
  %v43 = vld [vmem:[%s0 + $0x28] sm:$0xf]
  %v44 = vld [vmem:[%s0 + $0x2c] sm:$0xf]
  %v45 = vld [vmem:[%s0 + $0x30] sm:$0xf]
  %v46 = vld [vmem:[%s0 + $0x34] sm:$0xf]
  %v47 = vld [vmem:[%s0 + $0x38] sm:$0xf]
  %v48 = vld [vmem:[%s0 + $0x3c] sm:$0xf]
  %v49 = vld [vmem:[%s0 + $0x40] sm:$0xf]
  %v50 = vld [vmem:[%s0 + $0x44] sm:$0xf]
  %v51 = vld [vmem:[%s0 + $0x48] sm:$0xf]
  %v52 = vld [vmem:[%s0 + $0x4c] sm:$0xf]
  %v53 = vld [vmem:[%s0 + $0x50] sm:$0xf]
  %v54 = vld [vmem:[%s0 + $0x54] sm:$0xf]
  %v55 = vld [vmem:[%s0 + $0x58] sm:$0xf]
  %v56 = vld [vmem:[%s0 + $0x5c] sm:$0xf]
  %v57 = vld [vmem:[%s0 + $0x60] sm:$0xf]
  %v58 = vld [vmem:[%s0 + $0x64] sm:$0xf]
  %v59 = vld [vmem:[%s0 + $0x68] sm:$0xf]
  %v60 = vld [vmem:[%s0 + $0x6c] sm:$0xf]
  %v61 = vld [vmem:[%s0 + $0x70] sm:$0xf]
  %v62 = vld [vmem:[%s0 + $0x74] sm:$0xf]
  %v63 = vld [vmem:[%s0 + $0x78] sm:$0xf]
  %v64 = vld [vmem:[%s0 + $0x7c] sm:$0xf]
  %v65 = vld [vmem:[%s0 + $0x80] sm:$0xf]
  %v66 = vld [vmem:[%s0 + $0x84] sm:$0xf]
  %v67 = vld [vmem:[%s0 + $0x88] sm:$0xf]
  %v68 = vld [vmem:[%s0 + $0x8c] sm:$0xf]
  %v69 = vld [vmem:[%s0 + $0x90] sm:$0xf]
  %v70 = vld [vmem:[%s0 + $0x94] sm:$0xf]
  %v71 = vld [vmem:[%s0 + $0x98] sm:$0xf]
  %v72 = vld [vmem:[%s0 + $0x9c] sm:$0xf]
  %v73 = vld [vmem:[%s0 + $0xa0] sm:$0xf]
  %v74 = vld [vmem:[%s0 + $0xa4] sm:$0xf]
  %v75 = vld [vmem:[%s0 + $0xa8] sm:$0xf]
  %v76 = vld [vmem:[%s0 + $0xac] sm:$0xf]
  %v77 = vld [vmem:[%s0 + $0xb0] sm:$0xf]
  %v78 = vld [vmem:[%s0 + $0xb4] sm:$0xf]
  %v79 = vld [vmem:[%s0 + $0xb8] sm:$0xf]
  %v80 = vld [vmem:[%s0 + $0xbc] sm:$0xf]
  %v81 = vld [vmem:[%s0 + $0xc0] sm:$0xf]
  %v82 = vld [vmem:[%s0 + $0xc4] sm:$0xf]
  %v83 = vld [vmem:[%s0 + $0xc8] sm:$0xf]
  %v84 = vld [vmem:[%s0 + $0xcc] sm:$0xf]
  %v85 = vld [vmem:[%s0 + $0xd0] sm:$0xf]
  %v86 = vld [vmem:[%s0 + $0xd4] sm:$0xf]
  %v87 = vld [vmem:[%s0 + $0xd8] sm:$0xf]
  %v88 = vld [vmem:[%s0 + $0xdc] sm:$0xf]
  %v89 = vld [vmem:[%s0 + $0xe0] sm:$0xf]
  %v90 = vld [vmem:[%s0 + $0xe4] sm:$0xf]
  %v91 = vld [vmem:[%s0 + $0xe8] sm:$0xf]
  %v92 = vld [vmem:[%s0 + $0xec] sm:$0xf]
  %v93 = vld [vmem:[%s0 + $0xf0] sm:$0xf]
  %v94 = vld [vmem:[%s0 + $0xf4] sm:$0xf]
  %v95 = vld [vmem:[%s0 + $0xf8] sm:$0xf]
  %v96 = vld [vmem:[%s0 + $0xfc] sm:$0xf]
  %v97 = vld [vmem:[%s3] sm:$0xf]
  %v162 = vunpack.c.l.b16 %v33
  %v163 = vunpack.c.l.b16 %v34
  %v164 = vunpack.c.l.b16 %v35
  %v165 = vunpack.c.l.b16 %v36
  %v166 = vunpack.c.l.b16 %v37
  %v167 = vunpack.c.l.b16 %v38
  %v168 = vunpack.c.l.b16 %v39
  %v169 = vunpack.c.l.b16 %v40
  %v170 = vunpack.c.l.b16 %v41
  %v171 = vunpack.c.l.b16 %v42
  %v172 = vunpack.c.l.b16 %v43
  %v173 = vunpack.c.l.b16 %v44
  %v174 = vunpack.c.l.b16 %v45
  %v175 = vunpack.c.l.b16 %v46
  %v176 = vunpack.c.l.b16 %v47
  %v177 = vunpack.c.l.b16 %v48
  %v178 = vunpack.c.l.b16 %v49
  %v179 = vunpack.c.l.b16 %v50
  %v180 = vunpack.c.l.b16 %v51
  %v181 = vunpack.c.l.b16 %v52
  %v182 = vunpack.c.l.b16 %v53
  %v183 = vunpack.c.l.b16 %v54
  %v184 = vunpack.c.l.b16 %v55
  %v185 = vunpack.c.l.b16 %v56
  %v186 = vunpack.c.l.b16 %v57
  %v187 = vunpack.c.l.b16 %v58
  %v188 = vunpack.c.l.b16 %v59
  %v189 = vunpack.c.l.b16 %v60
  %v190 = vunpack.c.l.b16 %v61
  %v191 = vunpack.c.l.b16 %v62
  %v192 = vunpack.c.l.b16 %v63
  %v193 = vunpack.c.l.b16 %v64
  %v194 = vunpack.c.l.b16 %v65
  %v195 = vunpack.c.l.b16 %v66
  %v196 = vunpack.c.l.b16 %v67
  %v197 = vunpack.c.l.b16 %v68
  %v198 = vunpack.c.l.b16 %v69
  %v199 = vunpack.c.l.b16 %v70
  %v200 = vunpack.c.l.b16 %v71
  %v201 = vunpack.c.l.b16 %v72
  %v202 = vunpack.c.l.b16 %v73
  %v203 = vunpack.c.l.b16 %v74
  %v204 = vunpack.c.l.b16 %v75
  %v205 = vunpack.c.l.b16 %v76
  %v206 = vunpack.c.l.b16 %v77
  %v207 = vunpack.c.l.b16 %v78
  %v208 = vunpack.c.l.b16 %v79
  %v209 = vunpack.c.l.b16 %v80
  %v210 = vunpack.c.l.b16 %v81
  %v211 = vunpack.c.l.b16 %v82
  %v212 = vunpack.c.l.b16 %v83
  %v213 = vunpack.c.l.b16 %v84
  %v214 = vunpack.c.l.b16 %v85
  %v215 = vunpack.c.l.b16 %v86
  %v216 = vunpack.c.l.b16 %v87
  %v217 = vunpack.c.l.b16 %v88
  %v218 = vunpack.c.l.b16 %v89
  %v219 = vunpack.c.l.b16 %v90
  %v220 = vunpack.c.l.b16 %v91
  %v221 = vunpack.c.l.b16 %v92
  %v222 = vunpack.c.l.b16 %v93
  %v223 = vunpack.c.l.b16 %v94
  %v224 = vunpack.c.l.b16 %v95
  %v225 = vunpack.c.l.b16 %v96
  %v226 = vpack.c.b16 %v163, %v162
  %v227 = vpack.c.b16 %v165, %v164
  %v228 = vpack.c.b16 %v167, %v166
  %v229 = vpack.c.b16 %v169, %v168
  %v230 = vpack.c.b16 %v171, %v170
  %v231 = vpack.c.b16 %v173, %v172
  %v232 = vpack.c.b16 %v175, %v174
  %v233 = vpack.c.b16 %v177, %v176
  %v234 = vpack.c.b16 %v179, %v178
  %v235 = vpack.c.b16 %v181, %v180
  %v236 = vpack.c.b16 %v183, %v182
  %v237 = vpack.c.b16 %v185, %v184
  %v238 = vpack.c.b16 %v187, %v186
  %v239 = vpack.c.b16 %v189, %v188
  %v240 = vpack.c.b16 %v191, %v190
  %v241 = vpack.c.b16 %v193, %v192
  %v242 = vpack.c.b16 %v195, %v194
  %v243 = vpack.c.b16 %v197, %v196
  %v244 = vpack.c.b16 %v199, %v198
  %v245 = vpack.c.b16 %v201, %v200
  %v246 = vpack.c.b16 %v203, %v202
  %v247 = vpack.c.b16 %v205, %v204
  %v248 = vpack.c.b16 %v207, %v206
  %v249 = vpack.c.b16 %v209, %v208
  %v250 = vpack.c.b16 %v211, %v210
  %v251 = vpack.c.b16 %v213, %v212
  %v252 = vpack.c.b16 %v215, %v214
  %v253 = vpack.c.b16 %v217, %v216
  %v254 = vpack.c.b16 %v219, %v218
  %v255 = vpack.c.b16 %v221, %v220
  %v256 = vpack.c.b16 %v223, %v222
  %v257 = vpack.c.b16 %v225, %v224
  %vm258 = vcmask 64512
  %v260 = vsel %vm258, %v226, 0
  %v263 = vsel %vm258, %v227, 0
  %v266 = vsel %vm258, %v228, 0
  %v269 = vsel %vm258, %v229, 0
  %v272 = vsel %vm258, %v230, 0
  %v275 = vsel %vm258, %v231, 0
  %v278 = vsel %vm258, %v232, 0
  %v281 = vsel %vm258, %v233, 0
  %v284 = vsel %vm258, %v234, 0
  %v287 = vsel %vm258, %v235, 0
  %v290 = vsel %vm258, %v236, 0
  %v293 = vsel %vm258, %v237, 0
  %v296 = vsel %vm258, %v238, 0
  %v299 = vsel %vm258, %v239, 0
  %v302 = vsel %vm258, %v240, 0
  %v305 = vsel %vm258, %v241, 0
  %v308 = vsel %vm258, %v242, 0
  %v311 = vsel %vm258, %v243, 0
  %v314 = vsel %vm258, %v244, 0
  %v317 = vsel %vm258, %v245, 0
  %v320 = vsel %vm258, %v246, 0
  %v323 = vsel %vm258, %v247, 0
  %v326 = vsel %vm258, %v248, 0
  %v329 = vsel %vm258, %v249, 0
  %v332 = vsel %vm258, %v250, 0
  %v335 = vsel %vm258, %v251, 0
  %v338 = vsel %vm258, %v252, 0
  %v341 = vsel %vm258, %v253, 0
  %v344 = vsel %vm258, %v254, 0
  %v347 = vsel %vm258, %v255, 0
  %v350 = vsel %vm258, %v256, 0
  %v353 = vsel %vm258, %v257, 0
  %vm355 = vcmask 1043456
  %v357 = vsel %vm355, %v97, 0
  %359 = vmatprep.subr.bf16.mxu0 0
  %360 = vmatpush1.bf16.msra.mxu0 %v357
  %361 = vmatprep.subr.bf16.mxu0 0
  %362 = vmatpush1.bf16.msra.mxu0 0
  %363 = vmatprep.subr.bf16.mxu0 0
  %364 = vmatpush1.bf16.msra.mxu0 0
  %365 = vmatprep.subr.bf16.mxu0 0
  %366 = vmatpush1.bf16.msra.mxu0 0
  %367 = vmatprep.subr.bf16.mxu0 0
  %368 = vmatpush1.bf16.msra.mxu0 0
  %369 = vmatprep.subr.bf16.mxu0 0
  %370 = vmatpush1.bf16.msra.mxu0 0
  %371 = vmatprep.subr.bf16.mxu0 0
  %372 = vmatpush1.bf16.msra.mxu0 0
  %373 = vmatprep.subr.bf16.mxu0 0
  %374 = vmatpush1.bf16.msra.mxu0 0
  %375 = vmatprep.subr.bf16.mxu0 0
  %376 = vmatpush1.bf16.msra.mxu0 0
  %377 = vmatprep.subr.bf16.mxu0 0
  %378 = vmatpush1.bf16.msra.mxu0 0
  %379 = vmatprep.subr.bf16.mxu0 0
  %380 = vmatpush1.bf16.msra.mxu0 0
  %381 = vmatprep.subr.bf16.mxu0 0
  %382 = vmatpush1.bf16.msra.mxu0 0
  %383 = vmatprep.subr.bf16.mxu0 0
  %384 = vmatpush1.bf16.msra.mxu0 0
  %385 = vmatprep.subr.bf16.mxu0 0
  %386 = vmatpush1.bf16.msra.mxu0 0
  %387 = vmatprep.subr.bf16.mxu0 0
  %388 = vmatpush1.bf16.msra.mxu0 0
  %389 = vmatprep.subr.bf16.mxu0 0
  %390 = vmatpush1.bf16.msra.mxu0 0
  %391 = vmatprep.mubr.bf16.mxu0 0
  %392 = vmatmul.mubr.bf16.gmra.mrb[0].mxu0 %v260
  %v393 = vpop.f32.mrb[0].mxu0
  %v394 = vadd.f32 0.0, %v393
  %v395 = vpop.f32.mrb[0].mxu0
  %v396 = vpop.f32.mrb[0].mxu0
  %v397 = vadd.f32 0.0, %v396
  %v398 = vpop.f32.mrb[0].mxu0
  %399 = vmatprep.mubr.bf16.mxu0 0
  %400 = vmatmul.mubr.bf16.gmra.mrb[0].mxu0 %v263
  %v401 = vpop.f32.mrb[0].mxu0
  %v402 = vadd.f32 0.0, %v401
  %v403 = vpop.f32.mrb[0].mxu0
  %v404 = vpop.f32.mrb[0].mxu0
  %v405 = vadd.f32 0.0, %v404
  %v406 = vpop.f32.mrb[0].mxu0
  %407 = vmatprep.mubr.bf16.mxu0 0
  %408 = vmatmul.mubr.bf16.gmra.mrb[0].mxu0 %v266
  %v409 = vpop.f32.mrb[0].mxu0
  %v410 = vadd.f32 0.0, %v409
  %v411 = vpop.f32.mrb[0].mxu0
  %v412 = vpop.f32.mrb[0].mxu0
  %v413 = vadd.f32 0.0, %v412
  %v414 = vpop.f32.mrb[0].mxu0
  %415 = vmatprep.mubr.bf16.mxu0 0
  %416 = vmatmul.mubr.bf16.gmra.mrb[0].mxu0 %v269
  %v417 = vpop.f32.mrb[0].mxu0
  %v418 = vadd.f32 0.0, %v417
  %v419 = vpop.f32.mrb[0].mxu0
  %v420 = vpop.f32.mrb[0].mxu0
  %v421 = vadd.f32 0.0, %v420
  %v422 = vpop.f32.mrb[0].mxu0
  %423 = vmatprep.mubr.bf16.mxu0 0
  %424 = vmatmul.mubr.bf16.gmra.mrb[0].mxu0 %v272
  %v425 = vpop.f32.mrb[0].mxu0
  %v426 = vadd.f32 0.0, %v425
  %v427 = vpop.f32.mrb[0].mxu0
  %v428 = vpop.f32.mrb[0].mxu0
  %v429 = vadd.f32 0.0, %v428
  %v430 = vpop.f32.mrb[0].mxu0
  %431 = vmatprep.mubr.bf16.mxu0 0
  %432 = vmatmul.mubr.bf16.gmra.mrb[0].mxu0 %v275
  %v433 = vpop.f32.mrb[0].mxu0
  %v434 = vadd.f32 0.0, %v433
  %v435 = vpop.f32.mrb[0].mxu0
  %v436 = vpop.f32.mrb[0].mxu0
  %v437 = vadd.f32 0.0, %v436
  %v438 = vpop.f32.mrb[0].mxu0
  %439 = vmatprep.mubr.bf16.mxu0 0
  %440 = vmatmul.mubr.bf16.gmra.mrb[0].mxu0 %v278
  %v441 = vpop.f32.mrb[0].mxu0
  %v442 = vadd.f32 0.0, %v441
  %v443 = vpop.f32.mrb[0].mxu0
  %v444 = vpop.f32.mrb[0].mxu0
  %v445 = vadd.f32 0.0, %v444
  %v446 = vpop.f32.mrb[0].mxu0
  %447 = vmatprep.mubr.bf16.mxu0 0
  %448 = vmatmul.mubr.bf16.gmra.mrb[0].mxu0 %v281
  %v449 = vpop.f32.mrb[0].mxu0
  %v450 = vadd.f32 0.0, %v449
  %v451 = vpop.f32.mrb[0].mxu0
  %v452 = vpop.f32.mrb[0].mxu0
  %v453 = vadd.f32 0.0, %v452
  %v454 = vpop.f32.mrb[0].mxu0
  %455 = vmatprep.mubr.bf16.mxu0 0
  %456 = vmatmul.mubr.bf16.gmra.mrb[0].mxu0 %v284
  %v457 = vpop.f32.mrb[0].mxu0
  %v458 = vadd.f32 0.0, %v457
  %v459 = vpop.f32.mrb[0].mxu0
  %v460 = vpop.f32.mrb[0].mxu0
  %v461 = vadd.f32 0.0, %v460
  %v462 = vpop.f32.mrb[0].mxu0
  %463 = vmatprep.mubr.bf16.mxu0 0
  %464 = vmatmul.mubr.bf16.gmra.mrb[0].mxu0 %v287
  %v465 = vpop.f32.mrb[0].mxu0
  %v466 = vadd.f32 0.0, %v465
  %v467 = vpop.f32.mrb[0].mxu0
  %v468 = vpop.f32.mrb[0].mxu0
  %v469 = vadd.f32 0.0, %v468
  %v470 = vpop.f32.mrb[0].mxu0
  %471 = vmatprep.mubr.bf16.mxu0 0
  %472 = vmatmul.mubr.bf16.gmra.mrb[0].mxu0 %v290
  %v473 = vpop.f32.mrb[0].mxu0
  %v474 = vadd.f32 0.0, %v473
  %v475 = vpop.f32.mrb[0].mxu0
  %v476 = vpop.f32.mrb[0].mxu0
  %v477 = vadd.f32 0.0, %v476
  %v478 = vpop.f32.mrb[0].mxu0
  %479 = vmatprep.mubr.bf16.mxu0 0
  %480 = vmatmul.mubr.bf16.gmra.mrb[0].mxu0 %v293
  %v481 = vpop.f32.mrb[0].mxu0
  %v482 = vadd.f32 0.0, %v481
  %v483 = vpop.f32.mrb[0].mxu0
  %v484 = vpop.f32.mrb[0].mxu0
  %v485 = vadd.f32 0.0, %v484
  %v486 = vpop.f32.mrb[0].mxu0
  %487 = vmatprep.mubr.bf16.mxu0 0
  %488 = vmatmul.mubr.bf16.gmra.mrb[0].mxu0 %v296
  %v489 = vpop.f32.mrb[0].mxu0
  %v490 = vadd.f32 0.0, %v489
  %v491 = vpop.f32.mrb[0].mxu0
  %v492 = vpop.f32.mrb[0].mxu0
  %v493 = vadd.f32 0.0, %v492
  %v494 = vpop.f32.mrb[0].mxu0
  %495 = vmatprep.mubr.bf16.mxu0 0
  %496 = vmatmul.mubr.bf16.gmra.mrb[0].mxu0 %v299
  %v497 = vpop.f32.mrb[0].mxu0
  %v498 = vadd.f32 0.0, %v497
  %v499 = vpop.f32.mrb[0].mxu0
  %v500 = vpop.f32.mrb[0].mxu0
  %v501 = vadd.f32 0.0, %v500
  %v502 = vpop.f32.mrb[0].mxu0
  %503 = vmatprep.mubr.bf16.mxu0 0
  %504 = vmatmul.mubr.bf16.gmra.mrb[0].mxu0 %v302
  %v505 = vpop.f32.mrb[0].mxu0
  %v506 = vadd.f32 0.0, %v505
  %v507 = vpop.f32.mrb[0].mxu0
  %v508 = vpop.f32.mrb[0].mxu0
  %v509 = vadd.f32 0.0, %v508
  %v510 = vpop.f32.mrb[0].mxu0
  %511 = vmatprep.mubr.bf16.mxu0 0
  %512 = vmatmul.mubr.bf16.gmra.mrb[0].mxu0 %v305
  %v513 = vpop.f32.mrb[0].mxu0
  %v514 = vadd.f32 0.0, %v513
  %v515 = vpop.f32.mrb[0].mxu0
  %v516 = vpop.f32.mrb[0].mxu0
  %v517 = vadd.f32 0.0, %v516
  %v518 = vpop.f32.mrb[0].mxu0
  %519 = vmatprep.mubr.bf16.mxu0 0
  %520 = vmatmul.mubr.bf16.gmra.mrb[0].mxu0 %v308
  %v521 = vpop.f32.mrb[0].mxu0
  %v522 = vadd.f32 0.0, %v521
  %v523 = vpop.f32.mrb[0].mxu0
  %v524 = vpop.f32.mrb[0].mxu0
  %v525 = vadd.f32 0.0, %v524
  %v526 = vpop.f32.mrb[0].mxu0
  %527 = vmatprep.mubr.bf16.mxu0 0
  %528 = vmatmul.mubr.bf16.gmra.mrb[0].mxu0 %v311
  %v529 = vpop.f32.mrb[0].mxu0
  %v530 = vadd.f32 0.0, %v529
  %v531 = vpop.f32.mrb[0].mxu0
  %v532 = vpop.f32.mrb[0].mxu0
  %v533 = vadd.f32 0.0, %v532
  %v534 = vpop.f32.mrb[0].mxu0
  %535 = vmatprep.mubr.bf16.mxu0 0
  %536 = vmatmul.mubr.bf16.gmra.mrb[0].mxu0 %v314
  %v537 = vpop.f32.mrb[0].mxu0
  %v538 = vadd.f32 0.0, %v537
  %v539 = vpop.f32.mrb[0].mxu0
  %v540 = vpop.f32.mrb[0].mxu0
  %v541 = vadd.f32 0.0, %v540
  %v542 = vpop.f32.mrb[0].mxu0
  %543 = vmatprep.mubr.bf16.mxu0 0
  %544 = vmatmul.mubr.bf16.gmra.mrb[0].mxu0 %v317
  %v545 = vpop.f32.mrb[0].mxu0
  %v546 = vadd.f32 0.0, %v545
  %v547 = vpop.f32.mrb[0].mxu0
  %v548 = vpop.f32.mrb[0].mxu0
  %v549 = vadd.f32 0.0, %v548
  %v550 = vpop.f32.mrb[0].mxu0
  %551 = vmatprep.mubr.bf16.mxu0 0
  %552 = vmatmul.mubr.bf16.gmra.mrb[0].mxu0 %v320
  %v553 = vpop.f32.mrb[0].mxu0
  %v554 = vadd.f32 0.0, %v553
  %v555 = vpop.f32.mrb[0].mxu0
  %v556 = vpop.f32.mrb[0].mxu0
  %v557 = vadd.f32 0.0, %v556
  %v558 = vpop.f32.mrb[0].mxu0
  %559 = vmatprep.mubr.bf16.mxu0 0
  %560 = vmatmul.mubr.bf16.gmra.mrb[0].mxu0 %v323
  %v561 = vpop.f32.mrb[0].mxu0
  %v562 = vadd.f32 0.0, %v561
  %v563 = vpop.f32.mrb[0].mxu0
  %v564 = vpop.f32.mrb[0].mxu0
  %v565 = vadd.f32 0.0, %v564
  %v566 = vpop.f32.mrb[0].mxu0
  %567 = vmatprep.mubr.bf16.mxu0 0
  %568 = vmatmul.mubr.bf16.gmra.mrb[0].mxu0 %v326
  %v569 = vpop.f32.mrb[0].mxu0
  %v570 = vadd.f32 0.0, %v569
  %v571 = vpop.f32.mrb[0].mxu0
  %v572 = vpop.f32.mrb[0].mxu0
  %v573 = vadd.f32 0.0, %v572
  %v574 = vpop.f32.mrb[0].mxu0
  %575 = vmatprep.mubr.bf16.mxu0 0
  %576 = vmatmul.mubr.bf16.gmra.mrb[0].mxu0 %v329
  %v577 = vpop.f32.mrb[0].mxu0
  %v578 = vadd.f32 0.0, %v577
  %v579 = vpop.f32.mrb[0].mxu0
  %v580 = vpop.f32.mrb[0].mxu0
  %v581 = vadd.f32 0.0, %v580
  %v582 = vpop.f32.mrb[0].mxu0
  %583 = vmatprep.mubr.bf16.mxu0 0
  %584 = vmatmul.mubr.bf16.gmra.mrb[0].mxu0 %v332
  %v585 = vpop.f32.mrb[0].mxu0
  %v586 = vadd.f32 0.0, %v585
  %v587 = vpop.f32.mrb[0].mxu0
  %v588 = vpop.f32.mrb[0].mxu0
  %v589 = vadd.f32 0.0, %v588
  %v590 = vpop.f32.mrb[0].mxu0
  %591 = vmatprep.mubr.bf16.mxu0 0
  %592 = vmatmul.mubr.bf16.gmra.mrb[0].mxu0 %v335
  %v593 = vpop.f32.mrb[0].mxu0
  %v594 = vadd.f32 0.0, %v593
  %v595 = vpop.f32.mrb[0].mxu0
  %v596 = vpop.f32.mrb[0].mxu0
  %v597 = vadd.f32 0.0, %v596
  %v598 = vpop.f32.mrb[0].mxu0
  %599 = vmatprep.mubr.bf16.mxu0 0
  %600 = vmatmul.mubr.bf16.gmra.mrb[0].mxu0 %v338
  %v601 = vpop.f32.mrb[0].mxu0
  %v602 = vadd.f32 0.0, %v601
  %v603 = vpop.f32.mrb[0].mxu0
  %v604 = vpop.f32.mrb[0].mxu0
  %v605 = vadd.f32 0.0, %v604
  %v606 = vpop.f32.mrb[0].mxu0
  %607 = vmatprep.mubr.bf16.mxu0 0
  %608 = vmatmul.mubr.bf16.gmra.mrb[0].mxu0 %v341
  %v609 = vpop.f32.mrb[0].mxu0
  %v610 = vadd.f32 0.0, %v609
  %v611 = vpop.f32.mrb[0].mxu0
  %v612 = vpop.f32.mrb[0].mxu0
  %v613 = vadd.f32 0.0, %v612
  %v614 = vpop.f32.mrb[0].mxu0
  %615 = vmatprep.mubr.bf16.mxu0 0
  %616 = vmatmul.mubr.bf16.gmra.mrb[0].mxu0 %v344
  %v617 = vpop.f32.mrb[0].mxu0
  %v618 = vadd.f32 0.0, %v617
  %v619 = vpop.f32.mrb[0].mxu0
  %v620 = vpop.f32.mrb[0].mxu0
  %v621 = vadd.f32 0.0, %v620
  %v622 = vpop.f32.mrb[0].mxu0
  %623 = vmatprep.mubr.bf16.mxu0 0
  %624 = vmatmul.mubr.bf16.gmra.mrb[0].mxu0 %v347
  %v625 = vpop.f32.mrb[0].mxu0
  %v626 = vadd.f32 0.0, %v625
  %v627 = vpop.f32.mrb[0].mxu0
  %v628 = vpop.f32.mrb[0].mxu0
  %v629 = vadd.f32 0.0, %v628
  %v630 = vpop.f32.mrb[0].mxu0
  %631 = vmatprep.mubr.bf16.mxu0 0
  %632 = vmatmul.mubr.bf16.gmra.mrb[0].mxu0 %v350
  %v633 = vpop.f32.mrb[0].mxu0
  %v634 = vadd.f32 0.0, %v633
  %v635 = vpop.f32.mrb[0].mxu0
  %v636 = vpop.f32.mrb[0].mxu0
  %v637 = vadd.f32 0.0, %v636
  %v638 = vpop.f32.mrb[0].mxu0
  %639 = vmatprep.mubr.bf16.mxu0 0
  %640 = vmatmul.mubr.bf16.gmra.mrb[0].mxu0 %v353
  %v641 = vpop.f32.mrb[0].mxu0
  %v642 = vadd.f32 0.0, %v641
  %v643 = vpop.f32.mrb[0].mxu0
  %v644 = vpop.f32.mrb[0].mxu0
  %v645 = vadd.f32 0.0, %v644
  %v646 = vpop.f32.mrb[0].mxu0
  %647 = vdwg.mxu0
  %v648 = vld [vmem:[%s4] sm:$0xf]
  %v650 = vsel %vm355, %v648, 0
  %652 = vmatprep.subr.bf16.mxu0 0
  %653 = vmatpush1.bf16.msra.mxu0 %v650
  %654 = vmatprep.subr.bf16.mxu0 0
  %655 = vmatpush1.bf16.msra.mxu0 0
  %656 = vmatprep.subr.bf16.mxu0 0
  %657 = vmatpush1.bf16.msra.mxu0 0
  %658 = vmatprep.subr.bf16.mxu0 0
  %659 = vmatpush1.bf16.msra.mxu0 0
  %660 = vmatprep.subr.bf16.mxu0 0
  %661 = vmatpush1.bf16.msra.mxu0 0
  %662 = vmatprep.subr.bf16.mxu0 0
  %663 = vmatpush1.bf16.msra.mxu0 0
  %664 = vmatprep.subr.bf16.mxu0 0
  %665 = vmatpush1.bf16.msra.mxu0 0
  %666 = vmatprep.subr.bf16.mxu0 0
  %667 = vmatpush1.bf16.msra.mxu0 0
  %668 = vmatprep.subr.bf16.mxu0 0
  %669 = vmatpush1.bf16.msra.mxu0 0
  %670 = vmatprep.subr.bf16.mxu0 0
  %671 = vmatpush1.bf16.msra.mxu0 0
  %672 = vmatprep.subr.bf16.mxu0 0
  %673 = vmatpush1.bf16.msra.mxu0 0
  %674 = vmatprep.subr.bf16.mxu0 0
  %675 = vmatpush1.bf16.msra.mxu0 0
  %676 = vmatprep.subr.bf16.mxu0 0
  %677 = vmatpush1.bf16.msra.mxu0 0
  %678 = vmatprep.subr.bf16.mxu0 0
  %679 = vmatpush1.bf16.msra.mxu0 0
  %680 = vmatprep.subr.bf16.mxu0 0
  %681 = vmatpush1.bf16.msra.mxu0 0
  %682 = vmatprep.subr.bf16.mxu0 0
  %683 = vmatpush1.bf16.msra.mxu0 0
  %684 = vmatprep.mubr.bf16.mxu0 0
  %685 = vmatmul.mubr.bf16.gmra.mrb[0].mxu0 %v260
  %v686 = vpop.f32.mrb[0].mxu0
  %v687 = vadd.f32 0.0, %v686
  %v688 = vpop.f32.mrb[0].mxu0
  %v689 = vpop.f32.mrb[0].mxu0
  %v690 = vadd.f32 0.0, %v689
  %v691 = vpop.f32.mrb[0].mxu0
  %692 = vmatprep.mubr.bf16.mxu0 0
  %693 = vmatmul.mubr.bf16.gmra.mrb[0].mxu0 %v263
  %v694 = vpop.f32.mrb[0].mxu0
  %v695 = vadd.f32 0.0, %v694
  %v696 = vpop.f32.mrb[0].mxu0
  %v697 = vpop.f32.mrb[0].mxu0
  %v698 = vadd.f32 0.0, %v697
  %v699 = vpop.f32.mrb[0].mxu0
  %700 = vmatprep.mubr.bf16.mxu0 0
  %701 = vmatmul.mubr.bf16.gmra.mrb[0].mxu0 %v266
  %v702 = vpop.f32.mrb[0].mxu0
  %v703 = vadd.f32 0.0, %v702
  %v704 = vpop.f32.mrb[0].mxu0
  %v705 = vpop.f32.mrb[0].mxu0
  %v706 = vadd.f32 0.0, %v705
  %v707 = vpop.f32.mrb[0].mxu0
  %708 = vmatprep.mubr.bf16.mxu0 0
  %709 = vmatmul.mubr.bf16.gmra.mrb[0].mxu0 %v269
  %v710 = vpop.f32.mrb[0].mxu0
  %v711 = vadd.f32 0.0, %v710
  %v712 = vpop.f32.mrb[0].mxu0
  %v713 = vpop.f32.mrb[0].mxu0
  %v714 = vadd.f32 0.0, %v713
  %v715 = vpop.f32.mrb[0].mxu0
  %716 = vmatprep.mubr.bf16.mxu0 0
  %717 = vmatmul.mubr.bf16.gmra.mrb[0].mxu0 %v272
  %v718 = vpop.f32.mrb[0].mxu0
  %v719 = vadd.f32 0.0, %v718
  %v720 = vpop.f32.mrb[0].mxu0
  %v721 = vpop.f32.mrb[0].mxu0
  %v722 = vadd.f32 0.0, %v721
  %v723 = vpop.f32.mrb[0].mxu0
  %724 = vmatprep.mubr.bf16.mxu0 0
  %725 = vmatmul.mubr.bf16.gmra.mrb[0].mxu0 %v275
  %v726 = vpop.f32.mrb[0].mxu0
  %v727 = vadd.f32 0.0, %v726
  %v728 = vpop.f32.mrb[0].mxu0
  %v729 = vpop.f32.mrb[0].mxu0
  %v730 = vadd.f32 0.0, %v729
  %v731 = vpop.f32.mrb[0].mxu0
  %732 = vmatprep.mubr.bf16.mxu0 0
  %733 = vmatmul.mubr.bf16.gmra.mrb[0].mxu0 %v278
  %v734 = vpop.f32.mrb[0].mxu0
  %v735 = vadd.f32 0.0, %v734
  %v736 = vpop.f32.mrb[0].mxu0
  %v737 = vpop.f32.mrb[0].mxu0
  %v738 = vadd.f32 0.0, %v737
  %v739 = vpop.f32.mrb[0].mxu0
  %740 = vmatprep.mubr.bf16.mxu0 0
  %741 = vmatmul.mubr.bf16.gmra.mrb[0].mxu0 %v281
  %v742 = vpop.f32.mrb[0].mxu0
  %v743 = vadd.f32 0.0, %v742
  %v744 = vpop.f32.mrb[0].mxu0
  %v745 = vpop.f32.mrb[0].mxu0
  %v746 = vadd.f32 0.0, %v745
  %v747 = vpop.f32.mrb[0].mxu0
  %748 = vmatprep.mubr.bf16.mxu0 0
  %749 = vmatmul.mubr.bf16.gmra.mrb[0].mxu0 %v284
  %v750 = vpop.f32.mrb[0].mxu0
  %v751 = vadd.f32 0.0, %v750
  %v752 = vpop.f32.mrb[0].mxu0
  %v753 = vpop.f32.mrb[0].mxu0
  %v754 = vadd.f32 0.0, %v753
  %v755 = vpop.f32.mrb[0].mxu0
  %756 = vmatprep.mubr.bf16.mxu0 0
  %757 = vmatmul.mubr.bf16.gmra.mrb[0].mxu0 %v287
  %v758 = vpop.f32.mrb[0].mxu0
  %v759 = vadd.f32 0.0, %v758
  %v760 = vpop.f32.mrb[0].mxu0
  %v761 = vpop.f32.mrb[0].mxu0
  %v762 = vadd.f32 0.0, %v761
  %v763 = vpop.f32.mrb[0].mxu0
  %764 = vmatprep.mubr.bf16.mxu0 0
  %765 = vmatmul.mubr.bf16.gmra.mrb[0].mxu0 %v290
  %v766 = vpop.f32.mrb[0].mxu0
  %v767 = vadd.f32 0.0, %v766
  %v768 = vpop.f32.mrb[0].mxu0
  %v769 = vpop.f32.mrb[0].mxu0
  %v770 = vadd.f32 0.0, %v769
  %v771 = vpop.f32.mrb[0].mxu0
  %772 = vmatprep.mubr.bf16.mxu0 0
  %773 = vmatmul.mubr.bf16.gmra.mrb[0].mxu0 %v293
  %v774 = vpop.f32.mrb[0].mxu0
  %v775 = vadd.f32 0.0, %v774
  %v776 = vpop.f32.mrb[0].mxu0
  %v777 = vpop.f32.mrb[0].mxu0
  %v778 = vadd.f32 0.0, %v777
  %v779 = vpop.f32.mrb[0].mxu0
  %780 = vmatprep.mubr.bf16.mxu0 0
  %781 = vmatmul.mubr.bf16.gmra.mrb[0].mxu0 %v296
  %v782 = vpop.f32.mrb[0].mxu0
  %v783 = vadd.f32 0.0, %v782
  %v784 = vpop.f32.mrb[0].mxu0
  %v785 = vpop.f32.mrb[0].mxu0
  %v786 = vadd.f32 0.0, %v785
  %v787 = vpop.f32.mrb[0].mxu0
  %788 = vmatprep.mubr.bf16.mxu0 0
  %789 = vmatmul.mubr.bf16.gmra.mrb[0].mxu0 %v299
  %v790 = vpop.f32.mrb[0].mxu0
  %v791 = vadd.f32 0.0, %v790
  %v792 = vpop.f32.mrb[0].mxu0
  %v793 = vpop.f32.mrb[0].mxu0
  %v794 = vadd.f32 0.0, %v793
  %v795 = vpop.f32.mrb[0].mxu0
  %796 = vmatprep.mubr.bf16.mxu0 0
  %797 = vmatmul.mubr.bf16.gmra.mrb[0].mxu0 %v302
  %v798 = vpop.f32.mrb[0].mxu0
  %v799 = vadd.f32 0.0, %v798
  %v800 = vpop.f32.mrb[0].mxu0
  %v801 = vpop.f32.mrb[0].mxu0
  %v802 = vadd.f32 0.0, %v801
  %v803 = vpop.f32.mrb[0].mxu0
  %804 = vmatprep.mubr.bf16.mxu0 0
  %805 = vmatmul.mubr.bf16.gmra.mrb[0].mxu0 %v305
  %v806 = vpop.f32.mrb[0].mxu0
  %v807 = vadd.f32 0.0, %v806
  %v808 = vpop.f32.mrb[0].mxu0
  %v809 = vpop.f32.mrb[0].mxu0
  %v810 = vadd.f32 0.0, %v809
  %v811 = vpop.f32.mrb[0].mxu0
  %812 = vmatprep.mubr.bf16.mxu0 0
  %813 = vmatmul.mubr.bf16.gmra.mrb[0].mxu0 %v308
  %v814 = vpop.f32.mrb[0].mxu0
  %v815 = vadd.f32 0.0, %v814
  %v816 = vpop.f32.mrb[0].mxu0
  %v817 = vpop.f32.mrb[0].mxu0
  %v818 = vadd.f32 0.0, %v817
  %v819 = vpop.f32.mrb[0].mxu0
  %820 = vmatprep.mubr.bf16.mxu0 0
  %821 = vmatmul.mubr.bf16.gmra.mrb[0].mxu0 %v311
  %v822 = vpop.f32.mrb[0].mxu0
  %v823 = vadd.f32 0.0, %v822
  %v824 = vpop.f32.mrb[0].mxu0
  %v825 = vpop.f32.mrb[0].mxu0
  %v826 = vadd.f32 0.0, %v825
  %v827 = vpop.f32.mrb[0].mxu0
  %828 = vmatprep.mubr.bf16.mxu0 0
  %829 = vmatmul.mubr.bf16.gmra.mrb[0].mxu0 %v314
  %v830 = vpop.f32.mrb[0].mxu0
  %v831 = vadd.f32 0.0, %v830
  %v832 = vpop.f32.mrb[0].mxu0
  %v833 = vpop.f32.mrb[0].mxu0
  %v834 = vadd.f32 0.0, %v833
  %v835 = vpop.f32.mrb[0].mxu0
  %836 = vmatprep.mubr.bf16.mxu0 0
  %837 = vmatmul.mubr.bf16.gmra.mrb[0].mxu0 %v317
  %v838 = vpop.f32.mrb[0].mxu0
  %v839 = vadd.f32 0.0, %v838
  %v840 = vpop.f32.mrb[0].mxu0
  %v841 = vpop.f32.mrb[0].mxu0
  %v842 = vadd.f32 0.0, %v841
  %v843 = vpop.f32.mrb[0].mxu0
  %844 = vmatprep.mubr.bf16.mxu0 0
  %845 = vmatmul.mubr.bf16.gmra.mrb[0].mxu0 %v320
  %v846 = vpop.f32.mrb[0].mxu0
  %v847 = vadd.f32 0.0, %v846
  %v848 = vpop.f32.mrb[0].mxu0
  %v849 = vpop.f32.mrb[0].mxu0
  %v850 = vadd.f32 0.0, %v849
  %v851 = vpop.f32.mrb[0].mxu0
  %852 = vmatprep.mubr.bf16.mxu0 0
  %853 = vmatmul.mubr.bf16.gmra.mrb[0].mxu0 %v323
  %v854 = vpop.f32.mrb[0].mxu0
  %v855 = vadd.f32 0.0, %v854
  %v856 = vpop.f32.mrb[0].mxu0
  %v857 = vpop.f32.mrb[0].mxu0
  %v858 = vadd.f32 0.0, %v857
  %v859 = vpop.f32.mrb[0].mxu0
  %860 = vmatprep.mubr.bf16.mxu0 0
  %861 = vmatmul.mubr.bf16.gmra.mrb[0].mxu0 %v326
  %v862 = vpop.f32.mrb[0].mxu0
  %v863 = vadd.f32 0.0, %v862
  %v864 = vpop.f32.mrb[0].mxu0
  %v865 = vpop.f32.mrb[0].mxu0
  %v866 = vadd.f32 0.0, %v865
  %v867 = vpop.f32.mrb[0].mxu0
  %868 = vmatprep.mubr.bf16.mxu0 0
  %869 = vmatmul.mubr.bf16.gmra.mrb[0].mxu0 %v329
  %v870 = vpop.f32.mrb[0].mxu0
  %v871 = vadd.f32 0.0, %v870
  %v872 = vpop.f32.mrb[0].mxu0
  %v873 = vpop.f32.mrb[0].mxu0
  %v874 = vadd.f32 0.0, %v873
  %v875 = vpop.f32.mrb[0].mxu0
  %876 = vmatprep.mubr.bf16.mxu0 0
  %877 = vmatmul.mubr.bf16.gmra.mrb[0].mxu0 %v332
  %v878 = vpop.f32.mrb[0].mxu0
  %v879 = vadd.f32 0.0, %v878
  %v880 = vpop.f32.mrb[0].mxu0
  %v881 = vpop.f32.mrb[0].mxu0
  %v882 = vadd.f32 0.0, %v881
  %v883 = vpop.f32.mrb[0].mxu0
  %884 = vmatprep.mubr.bf16.mxu0 0
  %885 = vmatmul.mubr.bf16.gmra.mrb[0].mxu0 %v335
  %v886 = vpop.f32.mrb[0].mxu0
  %v887 = vadd.f32 0.0, %v886
  %v888 = vpop.f32.mrb[0].mxu0
  %v889 = vpop.f32.mrb[0].mxu0
  %v890 = vadd.f32 0.0, %v889
  %v891 = vpop.f32.mrb[0].mxu0
  %892 = vmatprep.mubr.bf16.mxu0 0
  %893 = vmatmul.mubr.bf16.gmra.mrb[0].mxu0 %v338
  %v894 = vpop.f32.mrb[0].mxu0
  %v895 = vadd.f32 0.0, %v894
  %v896 = vpop.f32.mrb[0].mxu0
  %v897 = vpop.f32.mrb[0].mxu0
  %v898 = vadd.f32 0.0, %v897
  %v899 = vpop.f32.mrb[0].mxu0
  %900 = vmatprep.mubr.bf16.mxu0 0
  %901 = vmatmul.mubr.bf16.gmra.mrb[0].mxu0 %v341
  %v902 = vpop.f32.mrb[0].mxu0
  %v903 = vadd.f32 0.0, %v902
  %v904 = vpop.f32.mrb[0].mxu0
  %v905 = vpop.f32.mrb[0].mxu0
  %v906 = vadd.f32 0.0, %v905
  %v907 = vpop.f32.mrb[0].mxu0
  %908 = vmatprep.mubr.bf16.mxu0 0
  %909 = vmatmul.mubr.bf16.gmra.mrb[0].mxu0 %v344
  %v910 = vpop.f32.mrb[0].mxu0
  %v911 = vadd.f32 0.0, %v910
  %v912 = vpop.f32.mrb[0].mxu0
  %v913 = vpop.f32.mrb[0].mxu0
  %v914 = vadd.f32 0.0, %v913
  %v915 = vpop.f32.mrb[0].mxu0
  %916 = vmatprep.mubr.bf16.mxu0 0
  %917 = vmatmul.mubr.bf16.gmra.mrb[0].mxu0 %v347
  %v918 = vpop.f32.mrb[0].mxu0
  %v919 = vadd.f32 0.0, %v918
  %v920 = vpop.f32.mrb[0].mxu0
  %v921 = vpop.f32.mrb[0].mxu0
  %v922 = vadd.f32 0.0, %v921
  %v923 = vpop.f32.mrb[0].mxu0
  %924 = vmatprep.mubr.bf16.mxu0 0
  %925 = vmatmul.mubr.bf16.gmra.mrb[0].mxu0 %v350
  %v926 = vpop.f32.mrb[0].mxu0
  %v927 = vadd.f32 0.0, %v926
  %v928 = vpop.f32.mrb[0].mxu0
  %v929 = vpop.f32.mrb[0].mxu0
  %v930 = vadd.f32 0.0, %v929
  %v931 = vpop.f32.mrb[0].mxu0
  %932 = vmatprep.mubr.bf16.mxu0 0
  %933 = vmatmul.mubr.bf16.gmra.mrb[0].mxu0 %v353
  %v934 = vpop.f32.mrb[0].mxu0
  %v935 = vadd.f32 0.0, %v934
  %v936 = vpop.f32.mrb[0].mxu0
  %v937 = vpop.f32.mrb[0].mxu0
  %v938 = vadd.f32 0.0, %v937
  %v939 = vpop.f32.mrb[0].mxu0
  %940 = vdwg.mxu0
  %v941 = vld [vmem:[%s1] sm:$0xff]
  %v942 = vld [vmem:[%s1 + $0x8] sm:$0xff]
  %v943 = vld [vmem:[%s1 + $0x10] sm:$0xff]
  %v944 = vld [vmem:[%s1 + $0x18] sm:$0xff]
  %v945 = vld [vmem:[%s1 + $0x20] sm:$0xff]
  %v946 = vld [vmem:[%s1 + $0x28] sm:$0xff]
  %v947 = vld [vmem:[%s1 + $0x30] sm:$0xff]
  %v948 = vld [vmem:[%s1 + $0x38] sm:$0xff]
  %v949 = vld [vmem:[%s1 + $0x40] sm:$0xff]
  %v950 = vld [vmem:[%s1 + $0x48] sm:$0xff]
  %v951 = vld [vmem:[%s1 + $0x50] sm:$0xff]
  %v952 = vld [vmem:[%s1 + $0x58] sm:$0xff]
  %v953 = vld [vmem:[%s1 + $0x60] sm:$0xff]
  %v954 = vld [vmem:[%s1 + $0x68] sm:$0xff]
  %v955 = vld [vmem:[%s1 + $0x70] sm:$0xff]
  %v956 = vld [vmem:[%s1 + $0x78] sm:$0xff]
  %v957 = vld [vmem:[%s1 + $0x80] sm:$0xff]
  %v958 = vld [vmem:[%s1 + $0x88] sm:$0xff]
  %v959 = vld [vmem:[%s1 + $0x90] sm:$0xff]
  %v960 = vld [vmem:[%s1 + $0x98] sm:$0xff]
  %v961 = vld [vmem:[%s1 + $0xa0] sm:$0xff]
  %v962 = vld [vmem:[%s1 + $0xa8] sm:$0xff]
  %v963 = vld [vmem:[%s1 + $0xb0] sm:$0xff]
  %v964 = vld [vmem:[%s1 + $0xb8] sm:$0xff]
  %v965 = vld [vmem:[%s1 + $0xc0] sm:$0xff]
  %v966 = vld [vmem:[%s1 + $0xc8] sm:$0xff]
  %v967 = vld [vmem:[%s1 + $0xd0] sm:$0xff]
  %v968 = vld [vmem:[%s1 + $0xd8] sm:$0xff]
  %v969 = vld [vmem:[%s1 + $0xe0] sm:$0xff]
  %v970 = vld [vmem:[%s1 + $0xe8] sm:$0xff]
  %v971 = vld [vmem:[%s1 + $0xf0] sm:$0xff]
  %v972 = vld [vmem:[%s1 + $0xf8] sm:$0xff]
  %v973 = vld [vmem:[%s1 + $0x100] sm:$0xff]
  %v974 = vld [vmem:[%s1 + $0x108] sm:$0xff]
  %v975 = vld [vmem:[%s1 + $0x110] sm:$0xff]
  %v976 = vld [vmem:[%s1 + $0x118] sm:$0xff]
  %v977 = vld [vmem:[%s1 + $0x120] sm:$0xff]
  %v978 = vld [vmem:[%s1 + $0x128] sm:$0xff]
  %v979 = vld [vmem:[%s1 + $0x130] sm:$0xff]
  %v980 = vld [vmem:[%s1 + $0x138] sm:$0xff]
  %v981 = vld [vmem:[%s1 + $0x140] sm:$0xff]
  %v982 = vld [vmem:[%s1 + $0x148] sm:$0xff]
  %v983 = vld [vmem:[%s1 + $0x150] sm:$0xff]
  %v984 = vld [vmem:[%s1 + $0x158] sm:$0xff]
  %v985 = vld [vmem:[%s1 + $0x160] sm:$0xff]
  %v986 = vld [vmem:[%s1 + $0x168] sm:$0xff]
  %v987 = vld [vmem:[%s1 + $0x170] sm:$0xff]
  %v988 = vld [vmem:[%s1 + $0x178] sm:$0xff]
  %v989 = vld [vmem:[%s1 + $0x180] sm:$0xff]
  %v990 = vld [vmem:[%s1 + $0x188] sm:$0xff]
  %v991 = vld [vmem:[%s1 + $0x190] sm:$0xff]
  %v992 = vld [vmem:[%s1 + $0x198] sm:$0xff]
  %v993 = vld [vmem:[%s1 + $0x1a0] sm:$0xff]
  %v994 = vld [vmem:[%s1 + $0x1a8] sm:$0xff]
  %v995 = vld [vmem:[%s1 + $0x1b0] sm:$0xff]
  %v996 = vld [vmem:[%s1 + $0x1b8] sm:$0xff]
  %v997 = vld [vmem:[%s1 + $0x1c0] sm:$0xff]
  %v998 = vld [vmem:[%s1 + $0x1c8] sm:$0xff]
  %v999 = vld [vmem:[%s1 + $0x1d0] sm:$0xff]
  %v1000 = vld [vmem:[%s1 + $0x1d8] sm:$0xff]
  %v1001 = vld [vmem:[%s1 + $0x1e0] sm:$0xff]
  %v1002 = vld [vmem:[%s1 + $0x1e8] sm:$0xff]
  %v1003 = vld [vmem:[%s1 + $0x1f0] sm:$0xff]
  %v1004 = vld [vmem:[%s1 + $0x1f8] sm:$0xff]
  %1006 = vset.pattern.permute.xlu0 0
  %1007 = vperm.xlu0 %1006, %v941
  %v1008 = vpop.permute.xlu0 %1007
  %1011 = vset.pattern.permute.xlu0 0
  %1012 = vperm.xlu0 %1011, %v942
  %v1013 = vpop.permute.xlu0 %1012
  %1016 = vset.pattern.permute.xlu0 0
  %1017 = vperm.xlu0 %1016, %v943
  %v1018 = vpop.permute.xlu0 %1017
  %1021 = vset.pattern.permute.xlu0 0
  %1022 = vperm.xlu0 %1021, %v944
  %v1023 = vpop.permute.xlu0 %1022
  %1026 = vset.pattern.permute.xlu0 0
  %1027 = vperm.xlu0 %1026, %v945
  %v1028 = vpop.permute.xlu0 %1027
  %1031 = vset.pattern.permute.xlu0 0
  %1032 = vperm.xlu0 %1031, %v946
  %v1033 = vpop.permute.xlu0 %1032
  %1036 = vset.pattern.permute.xlu0 0
  %1037 = vperm.xlu0 %1036, %v947
  %v1038 = vpop.permute.xlu0 %1037
  %1041 = vset.pattern.permute.xlu0 0
  %1042 = vperm.xlu0 %1041, %v948
  %v1043 = vpop.permute.xlu0 %1042
  %1046 = vset.pattern.permute.xlu0 0
  %1047 = vperm.xlu0 %1046, %v949
  %v1048 = vpop.permute.xlu0 %1047
  %1051 = vset.pattern.permute.xlu0 0
  %1052 = vperm.xlu0 %1051, %v950
  %v1053 = vpop.permute.xlu0 %1052
  %1056 = vset.pattern.permute.xlu0 0
  %1057 = vperm.xlu0 %1056, %v951
  %v1058 = vpop.permute.xlu0 %1057
  %1061 = vset.pattern.permute.xlu0 0
  %1062 = vperm.xlu0 %1061, %v952
  %v1063 = vpop.permute.xlu0 %1062
  %1066 = vset.pattern.permute.xlu0 0
  %1067 = vperm.xlu0 %1066, %v953
  %v1068 = vpop.permute.xlu0 %1067
  %1071 = vset.pattern.permute.xlu0 0
  %1072 = vperm.xlu0 %1071, %v954
  %v1073 = vpop.permute.xlu0 %1072
  %1076 = vset.pattern.permute.xlu0 0
  %1077 = vperm.xlu0 %1076, %v955
  %v1078 = vpop.permute.xlu0 %1077
  %1081 = vset.pattern.permute.xlu0 0
  %1082 = vperm.xlu0 %1081, %v956
  %v1083 = vpop.permute.xlu0 %1082
  %1086 = vset.pattern.permute.xlu0 0
  %1087 = vperm.xlu0 %1086, %v957
  %v1088 = vpop.permute.xlu0 %1087
  %1091 = vset.pattern.permute.xlu0 0
  %1092 = vperm.xlu0 %1091, %v958
  %v1093 = vpop.permute.xlu0 %1092
  %1096 = vset.pattern.permute.xlu0 0
  %1097 = vperm.xlu0 %1096, %v959
  %v1098 = vpop.permute.xlu0 %1097
  %1101 = vset.pattern.permute.xlu0 0
  %1102 = vperm.xlu0 %1101, %v960
  %v1103 = vpop.permute.xlu0 %1102
  %1106 = vset.pattern.permute.xlu0 0
  %1107 = vperm.xlu0 %1106, %v961
  %v1108 = vpop.permute.xlu0 %1107
  %1111 = vset.pattern.permute.xlu0 0
  %1112 = vperm.xlu0 %1111, %v962
  %v1113 = vpop.permute.xlu0 %1112
  %1116 = vset.pattern.permute.xlu0 0
  %1117 = vperm.xlu0 %1116, %v963
  %v1118 = vpop.permute.xlu0 %1117
  %1121 = vset.pattern.permute.xlu0 0
  %1122 = vperm.xlu0 %1121, %v964
  %v1123 = vpop.permute.xlu0 %1122
  %1126 = vset.pattern.permute.xlu0 0
  %1127 = vperm.xlu0 %1126, %v965
  %v1128 = vpop.permute.xlu0 %1127
  %1131 = vset.pattern.permute.xlu0 0
  %1132 = vperm.xlu0 %1131, %v966
  %v1133 = vpop.permute.xlu0 %1132
  %1136 = vset.pattern.permute.xlu0 0
  %1137 = vperm.xlu0 %1136, %v967
  %v1138 = vpop.permute.xlu0 %1137
  %1141 = vset.pattern.permute.xlu0 0
  %1142 = vperm.xlu0 %1141, %v968
  %v1143 = vpop.permute.xlu0 %1142
  %1146 = vset.pattern.permute.xlu0 0
  %1147 = vperm.xlu0 %1146, %v969
  %v1148 = vpop.permute.xlu0 %1147
  %1151 = vset.pattern.permute.xlu0 0
  %1152 = vperm.xlu0 %1151, %v970
  %v1153 = vpop.permute.xlu0 %1152
  %1156 = vset.pattern.permute.xlu0 0
  %1157 = vperm.xlu0 %1156, %v971
  %v1158 = vpop.permute.xlu0 %1157
  %1161 = vset.pattern.permute.xlu0 0
  %1162 = vperm.xlu0 %1161, %v972
  %v1163 = vpop.permute.xlu0 %1162
  %1166 = vset.pattern.permute.xlu0 0
  %1167 = vperm.xlu0 %1166, %v973
  %v1168 = vpop.permute.xlu0 %1167
  %1171 = vset.pattern.permute.xlu0 0
  %1172 = vperm.xlu0 %1171, %v974
  %v1173 = vpop.permute.xlu0 %1172
  %1176 = vset.pattern.permute.xlu0 0
  %1177 = vperm.xlu0 %1176, %v975
  %v1178 = vpop.permute.xlu0 %1177
  %1181 = vset.pattern.permute.xlu0 0
  %1182 = vperm.xlu0 %1181, %v976
  %v1183 = vpop.permute.xlu0 %1182
  %1186 = vset.pattern.permute.xlu0 0
  %1187 = vperm.xlu0 %1186, %v977
  %v1188 = vpop.permute.xlu0 %1187
  %1191 = vset.pattern.permute.xlu0 0
  %1192 = vperm.xlu0 %1191, %v978
  %v1193 = vpop.permute.xlu0 %1192
  %1196 = vset.pattern.permute.xlu0 0
  %1197 = vperm.xlu0 %1196, %v979
  %v1198 = vpop.permute.xlu0 %1197
  %1201 = vset.pattern.permute.xlu0 0
  %1202 = vperm.xlu0 %1201, %v980
  %v1203 = vpop.permute.xlu0 %1202
  %1206 = vset.pattern.permute.xlu0 0
  %1207 = vperm.xlu0 %1206, %v981
  %v1208 = vpop.permute.xlu0 %1207
  %1211 = vset.pattern.permute.xlu0 0
  %1212 = vperm.xlu0 %1211, %v982
  %v1213 = vpop.permute.xlu0 %1212
  %1216 = vset.pattern.permute.xlu0 0
  %1217 = vperm.xlu0 %1216, %v983
  %v1218 = vpop.permute.xlu0 %1217
  %1221 = vset.pattern.permute.xlu0 0
  %1222 = vperm.xlu0 %1221, %v984
  %v1223 = vpop.permute.xlu0 %1222
  %1226 = vset.pattern.permute.xlu0 0
  %1227 = vperm.xlu0 %1226, %v985
  %v1228 = vpop.permute.xlu0 %1227
  %1231 = vset.pattern.permute.xlu0 0
  %1232 = vperm.xlu0 %1231, %v986
  %v1233 = vpop.permute.xlu0 %1232
  %1236 = vset.pattern.permute.xlu0 0
  %1237 = vperm.xlu0 %1236, %v987
  %v1238 = vpop.permute.xlu0 %1237
  %1241 = vset.pattern.permute.xlu0 0
  %1242 = vperm.xlu0 %1241, %v988
  %v1243 = vpop.permute.xlu0 %1242
  %1246 = vset.pattern.permute.xlu0 0
  %1247 = vperm.xlu0 %1246, %v989
  %v1248 = vpop.permute.xlu0 %1247
  %1251 = vset.pattern.permute.xlu0 0
  %1252 = vperm.xlu0 %1251, %v990
  %v1253 = vpop.permute.xlu0 %1252
  %1256 = vset.pattern.permute.xlu0 0
  %1257 = vperm.xlu0 %1256, %v991
  %v1258 = vpop.permute.xlu0 %1257
  %1261 = vset.pattern.permute.xlu0 0
  %1262 = vperm.xlu0 %1261, %v992
  %v1263 = vpop.permute.xlu0 %1262
  %1266 = vset.pattern.permute.xlu0 0
  %1267 = vperm.xlu0 %1266, %v993
  %v1268 = vpop.permute.xlu0 %1267
  %1271 = vset.pattern.permute.xlu0 0
  %1272 = vperm.xlu0 %1271, %v994
  %v1273 = vpop.permute.xlu0 %1272
  %1276 = vset.pattern.permute.xlu0 0
  %1277 = vperm.xlu0 %1276, %v995
  %v1278 = vpop.permute.xlu0 %1277
  %1281 = vset.pattern.permute.xlu0 0
  %1282 = vperm.xlu0 %1281, %v996
  %v1283 = vpop.permute.xlu0 %1282
  %1286 = vset.pattern.permute.xlu0 0
  %1287 = vperm.xlu0 %1286, %v997
  %v1288 = vpop.permute.xlu0 %1287
  %1291 = vset.pattern.permute.xlu0 0
  %1292 = vperm.xlu0 %1291, %v998
  %v1293 = vpop.permute.xlu0 %1292
  %1296 = vset.pattern.permute.xlu0 0
  %1297 = vperm.xlu0 %1296, %v999
  %v1298 = vpop.permute.xlu0 %1297
  %1301 = vset.pattern.permute.xlu0 0
  %1302 = vperm.xlu0 %1301, %v1000
  %v1303 = vpop.permute.xlu0 %1302
  %1306 = vset.pattern.permute.xlu0 0
  %1307 = vperm.xlu0 %1306, %v1001
  %v1308 = vpop.permute.xlu0 %1307
  %1311 = vset.pattern.permute.xlu0 0
  %1312 = vperm.xlu0 %1311, %v1002
  %v1313 = vpop.permute.xlu0 %1312
  %1316 = vset.pattern.permute.xlu0 0
  %1317 = vperm.xlu0 %1316, %v1003
  %v1318 = vpop.permute.xlu0 %1317
  %1321 = vset.pattern.permute.xlu0 0
  %1322 = vperm.xlu0 %1321, %v1004
  %v1323 = vpop.permute.xlu0 %1322
  %v1325 = vmul.f32 %v1008, %v394
  %v1326 = vmul.f32 %v1013, %v397
  %v1327 = vmul.f32 %v1018, %v402
  %v1328 = vmul.f32 %v1023, %v405
  %v1329 = vmul.f32 %v1028, %v410
  %v1330 = vmul.f32 %v1033, %v413
  %v1331 = vmul.f32 %v1038, %v418
  %v1332 = vmul.f32 %v1043, %v421
  %v1333 = vmul.f32 %v1048, %v426
  %v1334 = vmul.f32 %v1053, %v429
  %v1335 = vmul.f32 %v1058, %v434
  %v1336 = vmul.f32 %v1063, %v437
  %v1337 = vmul.f32 %v1068, %v442
  %v1338 = vmul.f32 %v1073, %v445
  %v1339 = vmul.f32 %v1078, %v450
  %v1340 = vmul.f32 %v1083, %v453
  %v1341 = vmul.f32 %v1088, %v458
  %v1342 = vmul.f32 %v1093, %v461
  %v1343 = vmul.f32 %v1098, %v466
  %v1344 = vmul.f32 %v1103, %v469
  %v1345 = vmul.f32 %v1108, %v474
  %v1346 = vmul.f32 %v1113, %v477
  %v1347 = vmul.f32 %v1118, %v482
  %v1348 = vmul.f32 %v1123, %v485
  %v1349 = vmul.f32 %v1128, %v490
  %v1350 = vmul.f32 %v1133, %v493
  %v1351 = vmul.f32 %v1138, %v498
  %v1352 = vmul.f32 %v1143, %v501
  %v1353 = vmul.f32 %v1148, %v506
  %v1354 = vmul.f32 %v1153, %v509
  %v1355 = vmul.f32 %v1158, %v514
  %v1356 = vmul.f32 %v1163, %v517
  %v1357 = vmul.f32 %v1168, %v522
  %v1358 = vmul.f32 %v1173, %v525
  %v1359 = vmul.f32 %v1178, %v530
  %v1360 = vmul.f32 %v1183, %v533
  %v1361 = vmul.f32 %v1188, %v538
  %v1362 = vmul.f32 %v1193, %v541
  %v1363 = vmul.f32 %v1198, %v546
  %v1364 = vmul.f32 %v1203, %v549
  %v1365 = vmul.f32 %v1208, %v554
  %v1366 = vmul.f32 %v1213, %v557
  %v1367 = vmul.f32 %v1218, %v562
  %v1368 = vmul.f32 %v1223, %v565
  %v1369 = vmul.f32 %v1228, %v570
  %v1370 = vmul.f32 %v1233, %v573
  %v1371 = vmul.f32 %v1238, %v578
  %v1372 = vmul.f32 %v1243, %v581
  %v1373 = vmul.f32 %v1248, %v586
  %v1374 = vmul.f32 %v1253, %v589
  %v1375 = vmul.f32 %v1258, %v594
  %v1376 = vmul.f32 %v1263, %v597
  %v1377 = vmul.f32 %v1268, %v602
  %v1378 = vmul.f32 %v1273, %v605
  %v1379 = vmul.f32 %v1278, %v610
  %v1380 = vmul.f32 %v1283, %v613
  %v1381 = vmul.f32 %v1288, %v618
  %v1382 = vmul.f32 %v1293, %v621
  %v1383 = vmul.f32 %v1298, %v626
  %v1384 = vmul.f32 %v1303, %v629
  %v1385 = vmul.f32 %v1308, %v634
  %v1386 = vmul.f32 %v1313, %v637
  %v1387 = vmul.f32 %v1318, %v642
  %v1388 = vmul.f32 %v1323, %v645
  %v1389 = vld [vmem:[%s5] sm:$0x1]
  %v1391 = vlaneseq
  %v1392 = vshrl.u32 %v1391, 7
  %v1393 = vsub.s32 0, %v1392
  %v1394 = vrot.slane %v1389, %v1393
  %v1396 = vadd.f32 %v1325, %v1394
  %v1397 = vadd.f32 %v1326, %v1394
  %v1398 = vadd.f32 %v1327, %v1394
  %v1399 = vadd.f32 %v1328, %v1394
  %v1400 = vadd.f32 %v1329, %v1394
  %v1401 = vadd.f32 %v1330, %v1394
  %v1402 = vadd.f32 %v1331, %v1394
  %v1403 = vadd.f32 %v1332, %v1394
  %v1404 = vadd.f32 %v1333, %v1394
  %v1405 = vadd.f32 %v1334, %v1394
  %v1406 = vadd.f32 %v1335, %v1394
  %v1407 = vadd.f32 %v1336, %v1394
  %v1408 = vadd.f32 %v1337, %v1394
  %v1409 = vadd.f32 %v1338, %v1394
  %v1410 = vadd.f32 %v1339, %v1394
  %v1411 = vadd.f32 %v1340, %v1394
  %v1412 = vadd.f32 %v1341, %v1394
  %v1413 = vadd.f32 %v1342, %v1394
  %v1414 = vadd.f32 %v1343, %v1394
  %v1415 = vadd.f32 %v1344, %v1394
  %v1416 = vadd.f32 %v1345, %v1394
  %v1417 = vadd.f32 %v1346, %v1394
  %v1418 = vadd.f32 %v1347, %v1394
  %v1419 = vadd.f32 %v1348, %v1394
  %v1420 = vadd.f32 %v1349, %v1394
  %v1421 = vadd.f32 %v1350, %v1394
  %v1422 = vadd.f32 %v1351, %v1394
  %v1423 = vadd.f32 %v1352, %v1394
  %v1424 = vadd.f32 %v1353, %v1394
  %v1425 = vadd.f32 %v1354, %v1394
  %v1426 = vadd.f32 %v1355, %v1394
  %v1427 = vadd.f32 %v1356, %v1394
  %v1428 = vadd.f32 %v1357, %v1394
  %v1429 = vadd.f32 %v1358, %v1394
  %v1430 = vadd.f32 %v1359, %v1394
  %v1431 = vadd.f32 %v1360, %v1394
  %v1432 = vadd.f32 %v1361, %v1394
  %v1433 = vadd.f32 %v1362, %v1394
  %v1434 = vadd.f32 %v1363, %v1394
  %v1435 = vadd.f32 %v1364, %v1394
  %v1436 = vadd.f32 %v1365, %v1394
  %v1437 = vadd.f32 %v1366, %v1394
  %v1438 = vadd.f32 %v1367, %v1394
  %v1439 = vadd.f32 %v1368, %v1394
  %v1440 = vadd.f32 %v1369, %v1394
  %v1441 = vadd.f32 %v1370, %v1394
  %v1442 = vadd.f32 %v1371, %v1394
  %v1443 = vadd.f32 %v1372, %v1394
  %v1444 = vadd.f32 %v1373, %v1394
  %v1445 = vadd.f32 %v1374, %v1394
  %v1446 = vadd.f32 %v1375, %v1394
  %v1447 = vadd.f32 %v1376, %v1394
  %v1448 = vadd.f32 %v1377, %v1394
  %v1449 = vadd.f32 %v1378, %v1394
  %v1450 = vadd.f32 %v1379, %v1394
  %v1451 = vadd.f32 %v1380, %v1394
  %v1452 = vadd.f32 %v1381, %v1394
  %v1453 = vadd.f32 %v1382, %v1394
  %v1454 = vadd.f32 %v1383, %v1394
  %v1455 = vadd.f32 %v1384, %v1394
  %v1456 = vadd.f32 %v1385, %v1394
  %v1457 = vadd.f32 %v1386, %v1394
  %v1458 = vadd.f32 %v1387, %v1394
  %v1459 = vadd.f32 %v1388, %v1394
  %v1460 = vld [vmem:[%s2] sm:$0xff]
  %v1461 = vld [vmem:[%s2 + $0x8] sm:$0xff]
  %v1462 = vld [vmem:[%s2 + $0x10] sm:$0xff]
  %v1463 = vld [vmem:[%s2 + $0x18] sm:$0xff]
  %v1464 = vld [vmem:[%s2 + $0x20] sm:$0xff]
  %v1465 = vld [vmem:[%s2 + $0x28] sm:$0xff]
  %v1466 = vld [vmem:[%s2 + $0x30] sm:$0xff]
  %v1467 = vld [vmem:[%s2 + $0x38] sm:$0xff]
  %v1468 = vld [vmem:[%s2 + $0x40] sm:$0xff]
  %v1469 = vld [vmem:[%s2 + $0x48] sm:$0xff]
  %v1470 = vld [vmem:[%s2 + $0x50] sm:$0xff]
  %v1471 = vld [vmem:[%s2 + $0x58] sm:$0xff]
  %v1472 = vld [vmem:[%s2 + $0x60] sm:$0xff]
  %v1473 = vld [vmem:[%s2 + $0x68] sm:$0xff]
  %v1474 = vld [vmem:[%s2 + $0x70] sm:$0xff]
  %v1475 = vld [vmem:[%s2 + $0x78] sm:$0xff]
  %v1476 = vld [vmem:[%s2 + $0x80] sm:$0xff]
  %v1477 = vld [vmem:[%s2 + $0x88] sm:$0xff]
  %v1478 = vld [vmem:[%s2 + $0x90] sm:$0xff]
  %v1479 = vld [vmem:[%s2 + $0x98] sm:$0xff]
  %v1480 = vld [vmem:[%s2 + $0xa0] sm:$0xff]
  %v1481 = vld [vmem:[%s2 + $0xa8] sm:$0xff]
  %v1482 = vld [vmem:[%s2 + $0xb0] sm:$0xff]
  %v1483 = vld [vmem:[%s2 + $0xb8] sm:$0xff]
  %v1484 = vld [vmem:[%s2 + $0xc0] sm:$0xff]
  %v1485 = vld [vmem:[%s2 + $0xc8] sm:$0xff]
  %v1486 = vld [vmem:[%s2 + $0xd0] sm:$0xff]
  %v1487 = vld [vmem:[%s2 + $0xd8] sm:$0xff]
  %v1488 = vld [vmem:[%s2 + $0xe0] sm:$0xff]
  %v1489 = vld [vmem:[%s2 + $0xe8] sm:$0xff]
  %v1490 = vld [vmem:[%s2 + $0xf0] sm:$0xff]
  %v1491 = vld [vmem:[%s2 + $0xf8] sm:$0xff]
  %v1492 = vld [vmem:[%s2 + $0x100] sm:$0xff]
  %v1493 = vld [vmem:[%s2 + $0x108] sm:$0xff]
  %v1494 = vld [vmem:[%s2 + $0x110] sm:$0xff]
  %v1495 = vld [vmem:[%s2 + $0x118] sm:$0xff]
  %v1496 = vld [vmem:[%s2 + $0x120] sm:$0xff]
  %v1497 = vld [vmem:[%s2 + $0x128] sm:$0xff]
  %v1498 = vld [vmem:[%s2 + $0x130] sm:$0xff]
  %v1499 = vld [vmem:[%s2 + $0x138] sm:$0xff]
  %v1500 = vld [vmem:[%s2 + $0x140] sm:$0xff]
  %v1501 = vld [vmem:[%s2 + $0x148] sm:$0xff]
  %v1502 = vld [vmem:[%s2 + $0x150] sm:$0xff]
  %v1503 = vld [vmem:[%s2 + $0x158] sm:$0xff]
  %v1504 = vld [vmem:[%s2 + $0x160] sm:$0xff]
  %v1505 = vld [vmem:[%s2 + $0x168] sm:$0xff]
  %v1506 = vld [vmem:[%s2 + $0x170] sm:$0xff]
  %v1507 = vld [vmem:[%s2 + $0x178] sm:$0xff]
  %v1508 = vld [vmem:[%s2 + $0x180] sm:$0xff]
  %v1509 = vld [vmem:[%s2 + $0x188] sm:$0xff]
  %v1510 = vld [vmem:[%s2 + $0x190] sm:$0xff]
  %v1511 = vld [vmem:[%s2 + $0x198] sm:$0xff]
  %v1512 = vld [vmem:[%s2 + $0x1a0] sm:$0xff]
  %v1513 = vld [vmem:[%s2 + $0x1a8] sm:$0xff]
  %v1514 = vld [vmem:[%s2 + $0x1b0] sm:$0xff]
  %v1515 = vld [vmem:[%s2 + $0x1b8] sm:$0xff]
  %v1516 = vld [vmem:[%s2 + $0x1c0] sm:$0xff]
  %v1517 = vld [vmem:[%s2 + $0x1c8] sm:$0xff]
  %v1518 = vld [vmem:[%s2 + $0x1d0] sm:$0xff]
  %v1519 = vld [vmem:[%s2 + $0x1d8] sm:$0xff]
  %v1520 = vld [vmem:[%s2 + $0x1e0] sm:$0xff]
  %v1521 = vld [vmem:[%s2 + $0x1e8] sm:$0xff]
  %v1522 = vld [vmem:[%s2 + $0x1f0] sm:$0xff]
  %v1523 = vld [vmem:[%s2 + $0x1f8] sm:$0xff]
  %1525 = vset.pattern.permute.xlu0 0
  %1526 = vperm.xlu0 %1525, %v1460
  %v1527 = vpop.permute.xlu0 %1526
  %1530 = vset.pattern.permute.xlu0 0
  %1531 = vperm.xlu0 %1530, %v1461
  %v1532 = vpop.permute.xlu0 %1531
  %1535 = vset.pattern.permute.xlu0 0
  %1536 = vperm.xlu0 %1535, %v1462
  %v1537 = vpop.permute.xlu0 %1536
  %1540 = vset.pattern.permute.xlu0 0
  %1541 = vperm.xlu0 %1540, %v1463
  %v1542 = vpop.permute.xlu0 %1541
  %1545 = vset.pattern.permute.xlu0 0
  %1546 = vperm.xlu0 %1545, %v1464
  %v1547 = vpop.permute.xlu0 %1546
  %1550 = vset.pattern.permute.xlu0 0
  %1551 = vperm.xlu0 %1550, %v1465
  %v1552 = vpop.permute.xlu0 %1551
  %1555 = vset.pattern.permute.xlu0 0
  %1556 = vperm.xlu0 %1555, %v1466
  %v1557 = vpop.permute.xlu0 %1556
  %1560 = vset.pattern.permute.xlu0 0
  %1561 = vperm.xlu0 %1560, %v1467
  %v1562 = vpop.permute.xlu0 %1561
  %1565 = vset.pattern.permute.xlu0 0
  %1566 = vperm.xlu0 %1565, %v1468
  %v1567 = vpop.permute.xlu0 %1566
  %1570 = vset.pattern.permute.xlu0 0
  %1571 = vperm.xlu0 %1570, %v1469
  %v1572 = vpop.permute.xlu0 %1571
  %1575 = vset.pattern.permute.xlu0 0
  %1576 = vperm.xlu0 %1575, %v1470
  %v1577 = vpop.permute.xlu0 %1576
  %1580 = vset.pattern.permute.xlu0 0
  %1581 = vperm.xlu0 %1580, %v1471
  %v1582 = vpop.permute.xlu0 %1581
  %1585 = vset.pattern.permute.xlu0 0
  %1586 = vperm.xlu0 %1585, %v1472
  %v1587 = vpop.permute.xlu0 %1586
  %1590 = vset.pattern.permute.xlu0 0
  %1591 = vperm.xlu0 %1590, %v1473
  %v1592 = vpop.permute.xlu0 %1591
  %1595 = vset.pattern.permute.xlu0 0
  %1596 = vperm.xlu0 %1595, %v1474
  %v1597 = vpop.permute.xlu0 %1596
  %1600 = vset.pattern.permute.xlu0 0
  %1601 = vperm.xlu0 %1600, %v1475
  %v1602 = vpop.permute.xlu0 %1601
  %1605 = vset.pattern.permute.xlu0 0
  %1606 = vperm.xlu0 %1605, %v1476
  %v1607 = vpop.permute.xlu0 %1606
  %1610 = vset.pattern.permute.xlu0 0
  %1611 = vperm.xlu0 %1610, %v1477
  %v1612 = vpop.permute.xlu0 %1611
  %1615 = vset.pattern.permute.xlu0 0
  %1616 = vperm.xlu0 %1615, %v1478
  %v1617 = vpop.permute.xlu0 %1616
  %1620 = vset.pattern.permute.xlu0 0
  %1621 = vperm.xlu0 %1620, %v1479
  %v1622 = vpop.permute.xlu0 %1621
  %1625 = vset.pattern.permute.xlu0 0
  %1626 = vperm.xlu0 %1625, %v1480
  %v1627 = vpop.permute.xlu0 %1626
  %1630 = vset.pattern.permute.xlu0 0
  %1631 = vperm.xlu0 %1630, %v1481
  %v1632 = vpop.permute.xlu0 %1631
  %1635 = vset.pattern.permute.xlu0 0
  %1636 = vperm.xlu0 %1635, %v1482
  %v1637 = vpop.permute.xlu0 %1636
  %1640 = vset.pattern.permute.xlu0 0
  %1641 = vperm.xlu0 %1640, %v1483
  %v1642 = vpop.permute.xlu0 %1641
  %1645 = vset.pattern.permute.xlu0 0
  %1646 = vperm.xlu0 %1645, %v1484
  %v1647 = vpop.permute.xlu0 %1646
  %1650 = vset.pattern.permute.xlu0 0
  %1651 = vperm.xlu0 %1650, %v1485
  %v1652 = vpop.permute.xlu0 %1651
  %1655 = vset.pattern.permute.xlu0 0
  %1656 = vperm.xlu0 %1655, %v1486
  %v1657 = vpop.permute.xlu0 %1656
  %1660 = vset.pattern.permute.xlu0 0
  %1661 = vperm.xlu0 %1660, %v1487
  %v1662 = vpop.permute.xlu0 %1661
  %1665 = vset.pattern.permute.xlu0 0
  %1666 = vperm.xlu0 %1665, %v1488
  %v1667 = vpop.permute.xlu0 %1666
  %1670 = vset.pattern.permute.xlu0 0
  %1671 = vperm.xlu0 %1670, %v1489
  %v1672 = vpop.permute.xlu0 %1671
  %1675 = vset.pattern.permute.xlu0 0
  %1676 = vperm.xlu0 %1675, %v1490
  %v1677 = vpop.permute.xlu0 %1676
  %1680 = vset.pattern.permute.xlu0 0
  %1681 = vperm.xlu0 %1680, %v1491
  %v1682 = vpop.permute.xlu0 %1681
  %1685 = vset.pattern.permute.xlu0 0
  %1686 = vperm.xlu0 %1685, %v1492
  %v1687 = vpop.permute.xlu0 %1686
  %1690 = vset.pattern.permute.xlu0 0
  %1691 = vperm.xlu0 %1690, %v1493
  %v1692 = vpop.permute.xlu0 %1691
  %1695 = vset.pattern.permute.xlu0 0
  %1696 = vperm.xlu0 %1695, %v1494
  %v1697 = vpop.permute.xlu0 %1696
  %1700 = vset.pattern.permute.xlu0 0
  %1701 = vperm.xlu0 %1700, %v1495
  %v1702 = vpop.permute.xlu0 %1701
  %1705 = vset.pattern.permute.xlu0 0
  %1706 = vperm.xlu0 %1705, %v1496
  %v1707 = vpop.permute.xlu0 %1706
  %1710 = vset.pattern.permute.xlu0 0
  %1711 = vperm.xlu0 %1710, %v1497
  %v1712 = vpop.permute.xlu0 %1711
  %1715 = vset.pattern.permute.xlu0 0
  %1716 = vperm.xlu0 %1715, %v1498
  %v1717 = vpop.permute.xlu0 %1716
  %1720 = vset.pattern.permute.xlu0 0
  %1721 = vperm.xlu0 %1720, %v1499
  %v1722 = vpop.permute.xlu0 %1721
  %1725 = vset.pattern.permute.xlu0 0
  %1726 = vperm.xlu0 %1725, %v1500
  %v1727 = vpop.permute.xlu0 %1726
  %1730 = vset.pattern.permute.xlu0 0
  %1731 = vperm.xlu0 %1730, %v1501
  %v1732 = vpop.permute.xlu0 %1731
  %1735 = vset.pattern.permute.xlu0 0
  %1736 = vperm.xlu0 %1735, %v1502
  %v1737 = vpop.permute.xlu0 %1736
  %1740 = vset.pattern.permute.xlu0 0
  %1741 = vperm.xlu0 %1740, %v1503
  %v1742 = vpop.permute.xlu0 %1741
  %1745 = vset.pattern.permute.xlu0 0
  %1746 = vperm.xlu0 %1745, %v1504
  %v1747 = vpop.permute.xlu0 %1746
  %1750 = vset.pattern.permute.xlu0 0
  %1751 = vperm.xlu0 %1750, %v1505
  %v1752 = vpop.permute.xlu0 %1751
  %1755 = vset.pattern.permute.xlu0 0
  %1756 = vperm.xlu0 %1755, %v1506
  %v1757 = vpop.permute.xlu0 %1756
  %1760 = vset.pattern.permute.xlu0 0
  %1761 = vperm.xlu0 %1760, %v1507
  %v1762 = vpop.permute.xlu0 %1761
  %1765 = vset.pattern.permute.xlu0 0
  %1766 = vperm.xlu0 %1765, %v1508
  %v1767 = vpop.permute.xlu0 %1766
  %1770 = vset.pattern.permute.xlu0 0
  %1771 = vperm.xlu0 %1770, %v1509
  %v1772 = vpop.permute.xlu0 %1771
  %1775 = vset.pattern.permute.xlu0 0
  %1776 = vperm.xlu0 %1775, %v1510
  %v1777 = vpop.permute.xlu0 %1776
  %1780 = vset.pattern.permute.xlu0 0
  %1781 = vperm.xlu0 %1780, %v1511
  %v1782 = vpop.permute.xlu0 %1781
  %1785 = vset.pattern.permute.xlu0 0
  %1786 = vperm.xlu0 %1785, %v1512
  %v1787 = vpop.permute.xlu0 %1786
  %1790 = vset.pattern.permute.xlu0 0
  %1791 = vperm.xlu0 %1790, %v1513
  %v1792 = vpop.permute.xlu0 %1791
  %1795 = vset.pattern.permute.xlu0 0
  %1796 = vperm.xlu0 %1795, %v1514
  %v1797 = vpop.permute.xlu0 %1796
  %1800 = vset.pattern.permute.xlu0 0
  %1801 = vperm.xlu0 %1800, %v1515
  %v1802 = vpop.permute.xlu0 %1801
  %1805 = vset.pattern.permute.xlu0 0
  %1806 = vperm.xlu0 %1805, %v1516
  %v1807 = vpop.permute.xlu0 %1806
  %1810 = vset.pattern.permute.xlu0 0
  %1811 = vperm.xlu0 %1810, %v1517
  %v1812 = vpop.permute.xlu0 %1811
  %1815 = vset.pattern.permute.xlu0 0
  %1816 = vperm.xlu0 %1815, %v1518
  %v1817 = vpop.permute.xlu0 %1816
  %1820 = vset.pattern.permute.xlu0 0
  %1821 = vperm.xlu0 %1820, %v1519
  %v1822 = vpop.permute.xlu0 %1821
  %1825 = vset.pattern.permute.xlu0 0
  %1826 = vperm.xlu0 %1825, %v1520
  %v1827 = vpop.permute.xlu0 %1826
  %1830 = vset.pattern.permute.xlu0 0
  %1831 = vperm.xlu0 %1830, %v1521
  %v1832 = vpop.permute.xlu0 %1831
  %1835 = vset.pattern.permute.xlu0 0
  %1836 = vperm.xlu0 %1835, %v1522
  %v1837 = vpop.permute.xlu0 %1836
  %1840 = vset.pattern.permute.xlu0 0
  %1841 = vperm.xlu0 %1840, %v1523
  %v1842 = vpop.permute.xlu0 %1841
  %v1844 = vmul.f32 %v1527, %v687
  %v1845 = vmul.f32 %v1532, %v690
  %v1846 = vmul.f32 %v1537, %v695
  %v1847 = vmul.f32 %v1542, %v698
  %v1848 = vmul.f32 %v1547, %v703
  %v1849 = vmul.f32 %v1552, %v706
  %v1850 = vmul.f32 %v1557, %v711
  %v1851 = vmul.f32 %v1562, %v714
  %v1852 = vmul.f32 %v1567, %v719
  %v1853 = vmul.f32 %v1572, %v722
  %v1854 = vmul.f32 %v1577, %v727
  %v1855 = vmul.f32 %v1582, %v730
  %v1856 = vmul.f32 %v1587, %v735
  %v1857 = vmul.f32 %v1592, %v738
  %v1858 = vmul.f32 %v1597, %v743
  %v1859 = vmul.f32 %v1602, %v746
  %v1860 = vmul.f32 %v1607, %v751
  %v1861 = vmul.f32 %v1612, %v754
  %v1862 = vmul.f32 %v1617, %v759
  %v1863 = vmul.f32 %v1622, %v762
  %v1864 = vmul.f32 %v1627, %v767
  %v1865 = vmul.f32 %v1632, %v770
  %v1866 = vmul.f32 %v1637, %v775
  %v1867 = vmul.f32 %v1642, %v778
  %v1868 = vmul.f32 %v1647, %v783
  %v1869 = vmul.f32 %v1652, %v786
  %v1870 = vmul.f32 %v1657, %v791
  %v1871 = vmul.f32 %v1662, %v794
  %v1872 = vmul.f32 %v1667, %v799
  %v1873 = vmul.f32 %v1672, %v802
  %v1874 = vmul.f32 %v1677, %v807
  %v1875 = vmul.f32 %v1682, %v810
  %v1876 = vmul.f32 %v1687, %v815
  %v1877 = vmul.f32 %v1692, %v818
  %v1878 = vmul.f32 %v1697, %v823
  %v1879 = vmul.f32 %v1702, %v826
  %v1880 = vmul.f32 %v1707, %v831
  %v1881 = vmul.f32 %v1712, %v834
  %v1882 = vmul.f32 %v1717, %v839
  %v1883 = vmul.f32 %v1722, %v842
  %v1884 = vmul.f32 %v1727, %v847
  %v1885 = vmul.f32 %v1732, %v850
  %v1886 = vmul.f32 %v1737, %v855
  %v1887 = vmul.f32 %v1742, %v858
  %v1888 = vmul.f32 %v1747, %v863
  %v1889 = vmul.f32 %v1752, %v866
  %v1890 = vmul.f32 %v1757, %v871
  %v1891 = vmul.f32 %v1762, %v874
  %v1892 = vmul.f32 %v1767, %v879
  %v1893 = vmul.f32 %v1772, %v882
  %v1894 = vmul.f32 %v1777, %v887
  %v1895 = vmul.f32 %v1782, %v890
  %v1896 = vmul.f32 %v1787, %v895
  %v1897 = vmul.f32 %v1792, %v898
  %v1898 = vmul.f32 %v1797, %v903
  %v1899 = vmul.f32 %v1802, %v906
  %v1900 = vmul.f32 %v1807, %v911
  %v1901 = vmul.f32 %v1812, %v914
  %v1902 = vmul.f32 %v1817, %v919
  %v1903 = vmul.f32 %v1822, %v922
  %v1904 = vmul.f32 %v1827, %v927
  %v1905 = vmul.f32 %v1832, %v930
  %v1906 = vmul.f32 %v1837, %v935
  %v1907 = vmul.f32 %v1842, %v938
  %v1908 = vld [vmem:[%s6] sm:$0x1]
  %v1910 = vlaneseq
  %v1911 = vshrl.u32 %v1910, 7
  %v1912 = vsub.s32 0, %v1911
  %v1913 = vrot.slane %v1908, %v1912
  %v1915 = vadd.f32 %v1844, %v1913
  %v1916 = vadd.f32 %v1845, %v1913
  %v1917 = vadd.f32 %v1846, %v1913
  %v1918 = vadd.f32 %v1847, %v1913
  %v1919 = vadd.f32 %v1848, %v1913
  %v1920 = vadd.f32 %v1849, %v1913
  %v1921 = vadd.f32 %v1850, %v1913
  %v1922 = vadd.f32 %v1851, %v1913
  %v1923 = vadd.f32 %v1852, %v1913
  %v1924 = vadd.f32 %v1853, %v1913
  %v1925 = vadd.f32 %v1854, %v1913
  %v1926 = vadd.f32 %v1855, %v1913
  %v1927 = vadd.f32 %v1856, %v1913
  %v1928 = vadd.f32 %v1857, %v1913
  %v1929 = vadd.f32 %v1858, %v1913
  %v1930 = vadd.f32 %v1859, %v1913
  %v1931 = vadd.f32 %v1860, %v1913
  %v1932 = vadd.f32 %v1861, %v1913
  %v1933 = vadd.f32 %v1862, %v1913
  %v1934 = vadd.f32 %v1863, %v1913
  %v1935 = vadd.f32 %v1864, %v1913
  %v1936 = vadd.f32 %v1865, %v1913
  %v1937 = vadd.f32 %v1866, %v1913
  %v1938 = vadd.f32 %v1867, %v1913
  %v1939 = vadd.f32 %v1868, %v1913
  %v1940 = vadd.f32 %v1869, %v1913
  %v1941 = vadd.f32 %v1870, %v1913
  %v1942 = vadd.f32 %v1871, %v1913
  %v1943 = vadd.f32 %v1872, %v1913
  %v1944 = vadd.f32 %v1873, %v1913
  %v1945 = vadd.f32 %v1874, %v1913
  %v1946 = vadd.f32 %v1875, %v1913
  %v1947 = vadd.f32 %v1876, %v1913
  %v1948 = vadd.f32 %v1877, %v1913
  %v1949 = vadd.f32 %v1878, %v1913
  %v1950 = vadd.f32 %v1879, %v1913
  %v1951 = vadd.f32 %v1880, %v1913
  %v1952 = vadd.f32 %v1881, %v1913
  %v1953 = vadd.f32 %v1882, %v1913
  %v1954 = vadd.f32 %v1883, %v1913
  %v1955 = vadd.f32 %v1884, %v1913
  %v1956 = vadd.f32 %v1885, %v1913
  %v1957 = vadd.f32 %v1886, %v1913
  %v1958 = vadd.f32 %v1887, %v1913
  %v1959 = vadd.f32 %v1888, %v1913
  %v1960 = vadd.f32 %v1889, %v1913
  %v1961 = vadd.f32 %v1890, %v1913
  %v1962 = vadd.f32 %v1891, %v1913
  %v1963 = vadd.f32 %v1892, %v1913
  %v1964 = vadd.f32 %v1893, %v1913
  %v1965 = vadd.f32 %v1894, %v1913
  %v1966 = vadd.f32 %v1895, %v1913
  %v1967 = vadd.f32 %v1896, %v1913
  %v1968 = vadd.f32 %v1897, %v1913
  %v1969 = vadd.f32 %v1898, %v1913
  %v1970 = vadd.f32 %v1899, %v1913
  %v1971 = vadd.f32 %v1900, %v1913
  %v1972 = vadd.f32 %v1901, %v1913
  %v1973 = vadd.f32 %v1902, %v1913
  %v1974 = vadd.f32 %v1903, %v1913
  %v1975 = vadd.f32 %v1904, %v1913
  %v1976 = vadd.f32 %v1905, %v1913
  %v1977 = vadd.f32 %v1906, %v1913
  %v1978 = vadd.f32 %v1907, %v1913
  %v1979 = vpack.c.bf16 %v1397, %v1396
  %v1980 = vpack.c.bf16 %v1399, %v1398
  %v1981 = vpack.c.bf16 %v1401, %v1400
  %v1982 = vpack.c.bf16 %v1403, %v1402
  %v1983 = vpack.c.bf16 %v1405, %v1404
  %v1984 = vpack.c.bf16 %v1407, %v1406
  %v1985 = vpack.c.bf16 %v1409, %v1408
  %v1986 = vpack.c.bf16 %v1411, %v1410
  %v1987 = vpack.c.bf16 %v1413, %v1412
  %v1988 = vpack.c.bf16 %v1415, %v1414
  %v1989 = vpack.c.bf16 %v1417, %v1416
  %v1990 = vpack.c.bf16 %v1419, %v1418
  %v1991 = vpack.c.bf16 %v1421, %v1420
  %v1992 = vpack.c.bf16 %v1423, %v1422
  %v1993 = vpack.c.bf16 %v1425, %v1424
  %v1994 = vpack.c.bf16 %v1427, %v1426
  %v1995 = vpack.c.bf16 %v1429, %v1428
  %v1996 = vpack.c.bf16 %v1431, %v1430
  %v1997 = vpack.c.bf16 %v1433, %v1432
  %v1998 = vpack.c.bf16 %v1435, %v1434
  %v1999 = vpack.c.bf16 %v1437, %v1436
  %v2000 = vpack.c.bf16 %v1439, %v1438
  %v2001 = vpack.c.bf16 %v1441, %v1440
  %v2002 = vpack.c.bf16 %v1443, %v1442
  %v2003 = vpack.c.bf16 %v1445, %v1444
  %v2004 = vpack.c.bf16 %v1447, %v1446
  %v2005 = vpack.c.bf16 %v1449, %v1448
  %v2006 = vpack.c.bf16 %v1451, %v1450
  %v2007 = vpack.c.bf16 %v1453, %v1452
  %v2008 = vpack.c.bf16 %v1455, %v1454
  %v2009 = vpack.c.bf16 %v1457, %v1456
  %v2010 = vpack.c.bf16 %v1459, %v1458
  %v2043 = vunpack.c.l.b16 %v1979
  %v2044 = vunpack.c.h.b16 %v1979
  %v2045 = vunpack.c.l.b16 %v1980
  %v2046 = vunpack.c.h.b16 %v1980
  %v2047 = vunpack.c.l.b16 %v1981
  %v2048 = vunpack.c.h.b16 %v1981
  %v2049 = vunpack.c.l.b16 %v1982
  %v2050 = vunpack.c.h.b16 %v1982
  %v2051 = vunpack.c.l.b16 %v1983
  %v2052 = vunpack.c.h.b16 %v1983
  %v2053 = vunpack.c.l.b16 %v1984
  %v2054 = vunpack.c.h.b16 %v1984
  %v2055 = vunpack.c.l.b16 %v1985
  %v2056 = vunpack.c.h.b16 %v1985
  %v2057 = vunpack.c.l.b16 %v1986
  %v2058 = vunpack.c.h.b16 %v1986
  %v2059 = vunpack.c.l.b16 %v1987
  %v2060 = vunpack.c.h.b16 %v1987
  %v2061 = vunpack.c.l.b16 %v1988
  %v2062 = vunpack.c.h.b16 %v1988
  %v2063 = vunpack.c.l.b16 %v1989
  %v2064 = vunpack.c.h.b16 %v1989
  %v2065 = vunpack.c.l.b16 %v1990
  %v2066 = vunpack.c.h.b16 %v1990
  %v2067 = vunpack.c.l.b16 %v1991
  %v2068 = vunpack.c.h.b16 %v1991
  %v2069 = vunpack.c.l.b16 %v1992
  %v2070 = vunpack.c.h.b16 %v1992
  %v2071 = vunpack.c.l.b16 %v1993
  %v2072 = vunpack.c.h.b16 %v1993
  %v2073 = vunpack.c.l.b16 %v1994
  %v2074 = vunpack.c.h.b16 %v1994
  %v2075 = vunpack.c.l.b16 %v1995
  %v2076 = vunpack.c.h.b16 %v1995
  %v2077 = vunpack.c.l.b16 %v1996
  %v2078 = vunpack.c.h.b16 %v1996
  %v2079 = vunpack.c.l.b16 %v1997
  %v2080 = vunpack.c.h.b16 %v1997
  %v2081 = vunpack.c.l.b16 %v1998
  %v2082 = vunpack.c.h.b16 %v1998
  %v2083 = vunpack.c.l.b16 %v1999
  %v2084 = vunpack.c.h.b16 %v1999
  %v2085 = vunpack.c.l.b16 %v2000
  %v2086 = vunpack.c.h.b16 %v2000
  %v2087 = vunpack.c.l.b16 %v2001
  %v2088 = vunpack.c.h.b16 %v2001
  %v2089 = vunpack.c.l.b16 %v2002
  %v2090 = vunpack.c.h.b16 %v2002
  %v2091 = vunpack.c.l.b16 %v2003
  %v2092 = vunpack.c.h.b16 %v2003
  %v2093 = vunpack.c.l.b16 %v2004
  %v2094 = vunpack.c.h.b16 %v2004
  %v2095 = vunpack.c.l.b16 %v2005
  %v2096 = vunpack.c.h.b16 %v2005
  %v2097 = vunpack.c.l.b16 %v2006
  %v2098 = vunpack.c.h.b16 %v2006
  %v2099 = vunpack.c.l.b16 %v2007
  %v2100 = vunpack.c.h.b16 %v2007
  %v2101 = vunpack.c.l.b16 %v2008
  %v2102 = vunpack.c.h.b16 %v2008
  %v2103 = vunpack.c.l.b16 %v2009
  %v2104 = vunpack.c.h.b16 %v2009
  %v2105 = vunpack.c.l.b16 %v2010
  %v2106 = vunpack.c.h.b16 %v2010
  %v2107 = vpack.c.b16 %v2043, %v2043
  %v2108 = vpack.c.b16 %v2044, %v2044
  %v2109 = vpack.c.b16 %v2045, %v2045
  %v2110 = vpack.c.b16 %v2046, %v2046
  %v2111 = vpack.c.b16 %v2047, %v2047
  %v2112 = vpack.c.b16 %v2048, %v2048
  %v2113 = vpack.c.b16 %v2049, %v2049
  %v2114 = vpack.c.b16 %v2050, %v2050
  %v2115 = vpack.c.b16 %v2051, %v2051
  %v2116 = vpack.c.b16 %v2052, %v2052
  %v2117 = vpack.c.b16 %v2053, %v2053
  %v2118 = vpack.c.b16 %v2054, %v2054
  %v2119 = vpack.c.b16 %v2055, %v2055
  %v2120 = vpack.c.b16 %v2056, %v2056
  %v2121 = vpack.c.b16 %v2057, %v2057
  %v2122 = vpack.c.b16 %v2058, %v2058
  %v2123 = vpack.c.b16 %v2059, %v2059
  %v2124 = vpack.c.b16 %v2060, %v2060
  %v2125 = vpack.c.b16 %v2061, %v2061
  %v2126 = vpack.c.b16 %v2062, %v2062
  %v2127 = vpack.c.b16 %v2063, %v2063
  %v2128 = vpack.c.b16 %v2064, %v2064
  %v2129 = vpack.c.b16 %v2065, %v2065
  %v2130 = vpack.c.b16 %v2066, %v2066
  %v2131 = vpack.c.b16 %v2067, %v2067
  %v2132 = vpack.c.b16 %v2068, %v2068
  %v2133 = vpack.c.b16 %v2069, %v2069
  %v2134 = vpack.c.b16 %v2070, %v2070
  %v2135 = vpack.c.b16 %v2071, %v2071
  %v2136 = vpack.c.b16 %v2072, %v2072
  %v2137 = vpack.c.b16 %v2073, %v2073
  %v2138 = vpack.c.b16 %v2074, %v2074
  %v2139 = vpack.c.b16 %v2075, %v2075
  %v2140 = vpack.c.b16 %v2076, %v2076
  %v2141 = vpack.c.b16 %v2077, %v2077
  %v2142 = vpack.c.b16 %v2078, %v2078
  %v2143 = vpack.c.b16 %v2079, %v2079
  %v2144 = vpack.c.b16 %v2080, %v2080
  %v2145 = vpack.c.b16 %v2081, %v2081
  %v2146 = vpack.c.b16 %v2082, %v2082
  %v2147 = vpack.c.b16 %v2083, %v2083
  %v2148 = vpack.c.b16 %v2084, %v2084
  %v2149 = vpack.c.b16 %v2085, %v2085
  %v2150 = vpack.c.b16 %v2086, %v2086
  %v2151 = vpack.c.b16 %v2087, %v2087
  %v2152 = vpack.c.b16 %v2088, %v2088
  %v2153 = vpack.c.b16 %v2089, %v2089
  %v2154 = vpack.c.b16 %v2090, %v2090
  %v2155 = vpack.c.b16 %v2091, %v2091
  %v2156 = vpack.c.b16 %v2092, %v2092
  %v2157 = vpack.c.b16 %v2093, %v2093
  %v2158 = vpack.c.b16 %v2094, %v2094
  %v2159 = vpack.c.b16 %v2095, %v2095
  %v2160 = vpack.c.b16 %v2096, %v2096
  %v2161 = vpack.c.b16 %v2097, %v2097
  %v2162 = vpack.c.b16 %v2098, %v2098
  %v2163 = vpack.c.b16 %v2099, %v2099
  %v2164 = vpack.c.b16 %v2100, %v2100
  %v2165 = vpack.c.b16 %v2101, %v2101
  %v2166 = vpack.c.b16 %v2102, %v2102
  %v2167 = vpack.c.b16 %v2103, %v2103
  %v2168 = vpack.c.b16 %v2104, %v2104
  %v2169 = vpack.c.b16 %v2105, %v2105
  %v2170 = vpack.c.b16 %v2106, %v2106
  %vm2235 = vcmask 60416
  %2236 = vst.msk [vmem:[%s7] sm:$0xf] %vm2235, %v2107
  %2237 = vst.msk [vmem:[%s7 + $0x4] sm:$0xf] %vm2235, %v2108
  %2238 = vst.msk [vmem:[%s7 + $0x8] sm:$0xf] %vm2235, %v2109
  %2239 = vst.msk [vmem:[%s7 + $0xc] sm:$0xf] %vm2235, %v2110
  %2240 = vst.msk [vmem:[%s7 + $0x10] sm:$0xf] %vm2235, %v2111
  %2241 = vst.msk [vmem:[%s7 + $0x14] sm:$0xf] %vm2235, %v2112
  %2242 = vst.msk [vmem:[%s7 + $0x18] sm:$0xf] %vm2235, %v2113
  %2243 = vst.msk [vmem:[%s7 + $0x1c] sm:$0xf] %vm2235, %v2114
  %2244 = vst.msk [vmem:[%s7 + $0x20] sm:$0xf] %vm2235, %v2115
  %2245 = vst.msk [vmem:[%s7 + $0x24] sm:$0xf] %vm2235, %v2116
  %2246 = vst.msk [vmem:[%s7 + $0x28] sm:$0xf] %vm2235, %v2117
  %2247 = vst.msk [vmem:[%s7 + $0x2c] sm:$0xf] %vm2235, %v2118
  %2248 = vst.msk [vmem:[%s7 + $0x30] sm:$0xf] %vm2235, %v2119
  %2249 = vst.msk [vmem:[%s7 + $0x34] sm:$0xf] %vm2235, %v2120
  %2250 = vst.msk [vmem:[%s7 + $0x38] sm:$0xf] %vm2235, %v2121
  %2251 = vst.msk [vmem:[%s7 + $0x3c] sm:$0xf] %vm2235, %v2122
  %2252 = vst.msk [vmem:[%s7 + $0x40] sm:$0xf] %vm2235, %v2123
  %2253 = vst.msk [vmem:[%s7 + $0x44] sm:$0xf] %vm2235, %v2124
  %2254 = vst.msk [vmem:[%s7 + $0x48] sm:$0xf] %vm2235, %v2125
  %2255 = vst.msk [vmem:[%s7 + $0x4c] sm:$0xf] %vm2235, %v2126
  %2256 = vst.msk [vmem:[%s7 + $0x50] sm:$0xf] %vm2235, %v2127
  %2257 = vst.msk [vmem:[%s7 + $0x54] sm:$0xf] %vm2235, %v2128
  %2258 = vst.msk [vmem:[%s7 + $0x58] sm:$0xf] %vm2235, %v2129
  %2259 = vst.msk [vmem:[%s7 + $0x5c] sm:$0xf] %vm2235, %v2130
  %2260 = vst.msk [vmem:[%s7 + $0x60] sm:$0xf] %vm2235, %v2131
  %2261 = vst.msk [vmem:[%s7 + $0x64] sm:$0xf] %vm2235, %v2132
  %2262 = vst.msk [vmem:[%s7 + $0x68] sm:$0xf] %vm2235, %v2133
  %2263 = vst.msk [vmem:[%s7 + $0x6c] sm:$0xf] %vm2235, %v2134
  %2264 = vst.msk [vmem:[%s7 + $0x70] sm:$0xf] %vm2235, %v2135
  %2265 = vst.msk [vmem:[%s7 + $0x74] sm:$0xf] %vm2235, %v2136
  %2266 = vst.msk [vmem:[%s7 + $0x78] sm:$0xf] %vm2235, %v2137
  %2267 = vst.msk [vmem:[%s7 + $0x7c] sm:$0xf] %vm2235, %v2138
  %2268 = vst.msk [vmem:[%s7 + $0x80] sm:$0xf] %vm2235, %v2139
  %2269 = vst.msk [vmem:[%s7 + $0x84] sm:$0xf] %vm2235, %v2140
  %2270 = vst.msk [vmem:[%s7 + $0x88] sm:$0xf] %vm2235, %v2141
  %2271 = vst.msk [vmem:[%s7 + $0x8c] sm:$0xf] %vm2235, %v2142
  %2272 = vst.msk [vmem:[%s7 + $0x90] sm:$0xf] %vm2235, %v2143
  %2273 = vst.msk [vmem:[%s7 + $0x94] sm:$0xf] %vm2235, %v2144
  %2274 = vst.msk [vmem:[%s7 + $0x98] sm:$0xf] %vm2235, %v2145
  %2275 = vst.msk [vmem:[%s7 + $0x9c] sm:$0xf] %vm2235, %v2146
  %2276 = vst.msk [vmem:[%s7 + $0xa0] sm:$0xf] %vm2235, %v2147
  %2277 = vst.msk [vmem:[%s7 + $0xa4] sm:$0xf] %vm2235, %v2148
  %2278 = vst.msk [vmem:[%s7 + $0xa8] sm:$0xf] %vm2235, %v2149
  %2279 = vst.msk [vmem:[%s7 + $0xac] sm:$0xf] %vm2235, %v2150
  %2280 = vst.msk [vmem:[%s7 + $0xb0] sm:$0xf] %vm2235, %v2151
  %2281 = vst.msk [vmem:[%s7 + $0xb4] sm:$0xf] %vm2235, %v2152
  %2282 = vst.msk [vmem:[%s7 + $0xb8] sm:$0xf] %vm2235, %v2153
  %2283 = vst.msk [vmem:[%s7 + $0xbc] sm:$0xf] %vm2235, %v2154
  %2284 = vst.msk [vmem:[%s7 + $0xc0] sm:$0xf] %vm2235, %v2155
  %2285 = vst.msk [vmem:[%s7 + $0xc4] sm:$0xf] %vm2235, %v2156
  %2286 = vst.msk [vmem:[%s7 + $0xc8] sm:$0xf] %vm2235, %v2157
  %2287 = vst.msk [vmem:[%s7 + $0xcc] sm:$0xf] %vm2235, %v2158
  %2288 = vst.msk [vmem:[%s7 + $0xd0] sm:$0xf] %vm2235, %v2159
  %2289 = vst.msk [vmem:[%s7 + $0xd4] sm:$0xf] %vm2235, %v2160
  %2290 = vst.msk [vmem:[%s7 + $0xd8] sm:$0xf] %vm2235, %v2161
  %2291 = vst.msk [vmem:[%s7 + $0xdc] sm:$0xf] %vm2235, %v2162
  %2292 = vst.msk [vmem:[%s7 + $0xe0] sm:$0xf] %vm2235, %v2163
  %2293 = vst.msk [vmem:[%s7 + $0xe4] sm:$0xf] %vm2235, %v2164
  %2294 = vst.msk [vmem:[%s7 + $0xe8] sm:$0xf] %vm2235, %v2165
  %2295 = vst.msk [vmem:[%s7 + $0xec] sm:$0xf] %vm2235, %v2166
  %2296 = vst.msk [vmem:[%s7 + $0xf0] sm:$0xf] %vm2235, %v2167
  %2297 = vst.msk [vmem:[%s7 + $0xf4] sm:$0xf] %vm2235, %v2168
  %2298 = vst.msk [vmem:[%s7 + $0xf8] sm:$0xf] %vm2235, %v2169
  %2299 = vst.msk [vmem:[%s7 + $0xfc] sm:$0xf] %vm2235, %v2170
  %v2300 = vpack.c.bf16 %v1916, %v1915
  %v2301 = vpack.c.bf16 %v1918, %v1917
  %v2302 = vpack.c.bf16 %v1920, %v1919
  %v2303 = vpack.c.bf16 %v1922, %v1921
  %v2304 = vpack.c.bf16 %v1924, %v1923
  %v2305 = vpack.c.bf16 %v1926, %v1925
  %v2306 = vpack.c.bf16 %v1928, %v1927
  %v2307 = vpack.c.bf16 %v1930, %v1929
  %v2308 = vpack.c.bf16 %v1932, %v1931
  %v2309 = vpack.c.bf16 %v1934, %v1933
  %v2310 = vpack.c.bf16 %v1936, %v1935
  %v2311 = vpack.c.bf16 %v1938, %v1937
  %v2312 = vpack.c.bf16 %v1940, %v1939
  %v2313 = vpack.c.bf16 %v1942, %v1941
  %v2314 = vpack.c.bf16 %v1944, %v1943
  %v2315 = vpack.c.bf16 %v1946, %v1945
  %v2316 = vpack.c.bf16 %v1948, %v1947
  %v2317 = vpack.c.bf16 %v1950, %v1949
  %v2318 = vpack.c.bf16 %v1952, %v1951
  %v2319 = vpack.c.bf16 %v1954, %v1953
  %v2320 = vpack.c.bf16 %v1956, %v1955
  %v2321 = vpack.c.bf16 %v1958, %v1957
  %v2322 = vpack.c.bf16 %v1960, %v1959
  %v2323 = vpack.c.bf16 %v1962, %v1961
  %v2324 = vpack.c.bf16 %v1964, %v1963
  %v2325 = vpack.c.bf16 %v1966, %v1965
  %v2326 = vpack.c.bf16 %v1968, %v1967
  %v2327 = vpack.c.bf16 %v1970, %v1969
  %v2328 = vpack.c.bf16 %v1972, %v1971
  %v2329 = vpack.c.bf16 %v1974, %v1973
  %v2330 = vpack.c.bf16 %v1976, %v1975
  %v2331 = vpack.c.bf16 %v1978, %v1977
  %v2364 = vunpack.c.l.b16 %v2300
  %v2365 = vunpack.c.h.b16 %v2300
  %v2366 = vunpack.c.l.b16 %v2301
  %v2367 = vunpack.c.h.b16 %v2301
  %v2368 = vunpack.c.l.b16 %v2302
  %v2369 = vunpack.c.h.b16 %v2302
  %v2370 = vunpack.c.l.b16 %v2303
  %v2371 = vunpack.c.h.b16 %v2303
  %v2372 = vunpack.c.l.b16 %v2304
  %v2373 = vunpack.c.h.b16 %v2304
  %v2374 = vunpack.c.l.b16 %v2305
  %v2375 = vunpack.c.h.b16 %v2305
  %v2376 = vunpack.c.l.b16 %v2306
  %v2377 = vunpack.c.h.b16 %v2306
  %v2378 = vunpack.c.l.b16 %v2307
  %v2379 = vunpack.c.h.b16 %v2307
  %v2380 = vunpack.c.l.b16 %v2308
  %v2381 = vunpack.c.h.b16 %v2308
  %v2382 = vunpack.c.l.b16 %v2309
  %v2383 = vunpack.c.h.b16 %v2309
  %v2384 = vunpack.c.l.b16 %v2310
  %v2385 = vunpack.c.h.b16 %v2310
  %v2386 = vunpack.c.l.b16 %v2311
  %v2387 = vunpack.c.h.b16 %v2311
  %v2388 = vunpack.c.l.b16 %v2312
  %v2389 = vunpack.c.h.b16 %v2312
  %v2390 = vunpack.c.l.b16 %v2313
  %v2391 = vunpack.c.h.b16 %v2313
  %v2392 = vunpack.c.l.b16 %v2314
  %v2393 = vunpack.c.h.b16 %v2314
  %v2394 = vunpack.c.l.b16 %v2315
  %v2395 = vunpack.c.h.b16 %v2315
  %v2396 = vunpack.c.l.b16 %v2316
  %v2397 = vunpack.c.h.b16 %v2316
  %v2398 = vunpack.c.l.b16 %v2317
  %v2399 = vunpack.c.h.b16 %v2317
  %v2400 = vunpack.c.l.b16 %v2318
  %v2401 = vunpack.c.h.b16 %v2318
  %v2402 = vunpack.c.l.b16 %v2319
  %v2403 = vunpack.c.h.b16 %v2319
  %v2404 = vunpack.c.l.b16 %v2320
  %v2405 = vunpack.c.h.b16 %v2320
  %v2406 = vunpack.c.l.b16 %v2321
  %v2407 = vunpack.c.h.b16 %v2321
  %v2408 = vunpack.c.l.b16 %v2322
  %v2409 = vunpack.c.h.b16 %v2322
  %v2410 = vunpack.c.l.b16 %v2323
  %v2411 = vunpack.c.h.b16 %v2323
  %v2412 = vunpack.c.l.b16 %v2324
  %v2413 = vunpack.c.h.b16 %v2324
  %v2414 = vunpack.c.l.b16 %v2325
  %v2415 = vunpack.c.h.b16 %v2325
  %v2416 = vunpack.c.l.b16 %v2326
  %v2417 = vunpack.c.h.b16 %v2326
  %v2418 = vunpack.c.l.b16 %v2327
  %v2419 = vunpack.c.h.b16 %v2327
  %v2420 = vunpack.c.l.b16 %v2328
  %v2421 = vunpack.c.h.b16 %v2328
  %v2422 = vunpack.c.l.b16 %v2329
  %v2423 = vunpack.c.h.b16 %v2329
  %v2424 = vunpack.c.l.b16 %v2330
  %v2425 = vunpack.c.h.b16 %v2330
  %v2426 = vunpack.c.l.b16 %v2331
  %v2427 = vunpack.c.h.b16 %v2331
  %v2428 = vpack.c.b16 %v2364, %v2364
  %v2429 = vpack.c.b16 %v2365, %v2365
  %v2430 = vpack.c.b16 %v2366, %v2366
  %v2431 = vpack.c.b16 %v2367, %v2367
  %v2432 = vpack.c.b16 %v2368, %v2368
  %v2433 = vpack.c.b16 %v2369, %v2369
  %v2434 = vpack.c.b16 %v2370, %v2370
  %v2435 = vpack.c.b16 %v2371, %v2371
  %v2436 = vpack.c.b16 %v2372, %v2372
  %v2437 = vpack.c.b16 %v2373, %v2373
  %v2438 = vpack.c.b16 %v2374, %v2374
  %v2439 = vpack.c.b16 %v2375, %v2375
  %v2440 = vpack.c.b16 %v2376, %v2376
  %v2441 = vpack.c.b16 %v2377, %v2377
  %v2442 = vpack.c.b16 %v2378, %v2378
  %v2443 = vpack.c.b16 %v2379, %v2379
  %v2444 = vpack.c.b16 %v2380, %v2380
  %v2445 = vpack.c.b16 %v2381, %v2381
  %v2446 = vpack.c.b16 %v2382, %v2382
  %v2447 = vpack.c.b16 %v2383, %v2383
  %v2448 = vpack.c.b16 %v2384, %v2384
  %v2449 = vpack.c.b16 %v2385, %v2385
  %v2450 = vpack.c.b16 %v2386, %v2386
  %v2451 = vpack.c.b16 %v2387, %v2387
  %v2452 = vpack.c.b16 %v2388, %v2388
  %v2453 = vpack.c.b16 %v2389, %v2389
  %v2454 = vpack.c.b16 %v2390, %v2390
  %v2455 = vpack.c.b16 %v2391, %v2391
  %v2456 = vpack.c.b16 %v2392, %v2392
  %v2457 = vpack.c.b16 %v2393, %v2393
  %v2458 = vpack.c.b16 %v2394, %v2394
  %v2459 = vpack.c.b16 %v2395, %v2395
  %v2460 = vpack.c.b16 %v2396, %v2396
  %v2461 = vpack.c.b16 %v2397, %v2397
  %v2462 = vpack.c.b16 %v2398, %v2398
  %v2463 = vpack.c.b16 %v2399, %v2399
  %v2464 = vpack.c.b16 %v2400, %v2400
  %v2465 = vpack.c.b16 %v2401, %v2401
  %v2466 = vpack.c.b16 %v2402, %v2402
  %v2467 = vpack.c.b16 %v2403, %v2403
  %v2468 = vpack.c.b16 %v2404, %v2404
  %v2469 = vpack.c.b16 %v2405, %v2405
  %v2470 = vpack.c.b16 %v2406, %v2406
  %v2471 = vpack.c.b16 %v2407, %v2407
  %v2472 = vpack.c.b16 %v2408, %v2408
  %v2473 = vpack.c.b16 %v2409, %v2409
  %v2474 = vpack.c.b16 %v2410, %v2410
  %v2475 = vpack.c.b16 %v2411, %v2411
  %v2476 = vpack.c.b16 %v2412, %v2412
  %v2477 = vpack.c.b16 %v2413, %v2413
  %v2478 = vpack.c.b16 %v2414, %v2414
  %v2479 = vpack.c.b16 %v2415, %v2415
  %v2480 = vpack.c.b16 %v2416, %v2416
  %v2481 = vpack.c.b16 %v2417, %v2417
  %v2482 = vpack.c.b16 %v2418, %v2418
  %v2483 = vpack.c.b16 %v2419, %v2419
  %v2484 = vpack.c.b16 %v2420, %v2420
  %v2485 = vpack.c.b16 %v2421, %v2421
  %v2486 = vpack.c.b16 %v2422, %v2422
  %v2487 = vpack.c.b16 %v2423, %v2423
  %v2488 = vpack.c.b16 %v2424, %v2424
  %v2489 = vpack.c.b16 %v2425, %v2425
  %v2490 = vpack.c.b16 %v2426, %v2426
  %v2491 = vpack.c.b16 %v2427, %v2427
  %2556 = vst.msk [vmem:[%s8] sm:$0xf] %vm2235, %v2428
  %2557 = vst.msk [vmem:[%s8 + $0x4] sm:$0xf] %vm2235, %v2429
  %2558 = vst.msk [vmem:[%s8 + $0x8] sm:$0xf] %vm2235, %v2430
  %2559 = vst.msk [vmem:[%s8 + $0xc] sm:$0xf] %vm2235, %v2431
  %2560 = vst.msk [vmem:[%s8 + $0x10] sm:$0xf] %vm2235, %v2432
  %2561 = vst.msk [vmem:[%s8 + $0x14] sm:$0xf] %vm2235, %v2433
  %2562 = vst.msk [vmem:[%s8 + $0x18] sm:$0xf] %vm2235, %v2434
  %2563 = vst.msk [vmem:[%s8 + $0x1c] sm:$0xf] %vm2235, %v2435
  %2564 = vst.msk [vmem:[%s8 + $0x20] sm:$0xf] %vm2235, %v2436
  %2565 = vst.msk [vmem:[%s8 + $0x24] sm:$0xf] %vm2235, %v2437
  %2566 = vst.msk [vmem:[%s8 + $0x28] sm:$0xf] %vm2235, %v2438
  %2567 = vst.msk [vmem:[%s8 + $0x2c] sm:$0xf] %vm2235, %v2439
  %2568 = vst.msk [vmem:[%s8 + $0x30] sm:$0xf] %vm2235, %v2440
  %2569 = vst.msk [vmem:[%s8 + $0x34] sm:$0xf] %vm2235, %v2441
  %2570 = vst.msk [vmem:[%s8 + $0x38] sm:$0xf] %vm2235, %v2442
  %2571 = vst.msk [vmem:[%s8 + $0x3c] sm:$0xf] %vm2235, %v2443
  %2572 = vst.msk [vmem:[%s8 + $0x40] sm:$0xf] %vm2235, %v2444
  %2573 = vst.msk [vmem:[%s8 + $0x44] sm:$0xf] %vm2235, %v2445
  %2574 = vst.msk [vmem:[%s8 + $0x48] sm:$0xf] %vm2235, %v2446
  %2575 = vst.msk [vmem:[%s8 + $0x4c] sm:$0xf] %vm2235, %v2447
  %2576 = vst.msk [vmem:[%s8 + $0x50] sm:$0xf] %vm2235, %v2448
  %2577 = vst.msk [vmem:[%s8 + $0x54] sm:$0xf] %vm2235, %v2449
  %2578 = vst.msk [vmem:[%s8 + $0x58] sm:$0xf] %vm2235, %v2450
  %2579 = vst.msk [vmem:[%s8 + $0x5c] sm:$0xf] %vm2235, %v2451
  %2580 = vst.msk [vmem:[%s8 + $0x60] sm:$0xf] %vm2235, %v2452
  %2581 = vst.msk [vmem:[%s8 + $0x64] sm:$0xf] %vm2235, %v2453
  %2582 = vst.msk [vmem:[%s8 + $0x68] sm:$0xf] %vm2235, %v2454
  %2583 = vst.msk [vmem:[%s8 + $0x6c] sm:$0xf] %vm2235, %v2455
  %2584 = vst.msk [vmem:[%s8 + $0x70] sm:$0xf] %vm2235, %v2456
  %2585 = vst.msk [vmem:[%s8 + $0x74] sm:$0xf] %vm2235, %v2457
  %2586 = vst.msk [vmem:[%s8 + $0x78] sm:$0xf] %vm2235, %v2458
  %2587 = vst.msk [vmem:[%s8 + $0x7c] sm:$0xf] %vm2235, %v2459
  %2588 = vst.msk [vmem:[%s8 + $0x80] sm:$0xf] %vm2235, %v2460
  %2589 = vst.msk [vmem:[%s8 + $0x84] sm:$0xf] %vm2235, %v2461
  %2590 = vst.msk [vmem:[%s8 + $0x88] sm:$0xf] %vm2235, %v2462
  %2591 = vst.msk [vmem:[%s8 + $0x8c] sm:$0xf] %vm2235, %v2463
  %2592 = vst.msk [vmem:[%s8 + $0x90] sm:$0xf] %vm2235, %v2464
  %2593 = vst.msk [vmem:[%s8 + $0x94] sm:$0xf] %vm2235, %v2465
  %2594 = vst.msk [vmem:[%s8 + $0x98] sm:$0xf] %vm2235, %v2466
  %2595 = vst.msk [vmem:[%s8 + $0x9c] sm:$0xf] %vm2235, %v2467
  %2596 = vst.msk [vmem:[%s8 + $0xa0] sm:$0xf] %vm2235, %v2468
  %2597 = vst.msk [vmem:[%s8 + $0xa4] sm:$0xf] %vm2235, %v2469
  %2598 = vst.msk [vmem:[%s8 + $0xa8] sm:$0xf] %vm2235, %v2470
  %2599 = vst.msk [vmem:[%s8 + $0xac] sm:$0xf] %vm2235, %v2471
  %2600 = vst.msk [vmem:[%s8 + $0xb0] sm:$0xf] %vm2235, %v2472
  %2601 = vst.msk [vmem:[%s8 + $0xb4] sm:$0xf] %vm2235, %v2473
  %2602 = vst.msk [vmem:[%s8 + $0xb8] sm:$0xf] %vm2235, %v2474
  %2603 = vst.msk [vmem:[%s8 + $0xbc] sm:$0xf] %vm2235, %v2475
  %2604 = vst.msk [vmem:[%s8 + $0xc0] sm:$0xf] %vm2235, %v2476
  %2605 = vst.msk [vmem:[%s8 + $0xc4] sm:$0xf] %vm2235, %v2477
  %2606 = vst.msk [vmem:[%s8 + $0xc8] sm:$0xf] %vm2235, %v2478
  %2607 = vst.msk [vmem:[%s8 + $0xcc] sm:$0xf] %vm2235, %v2479
  %2608 = vst.msk [vmem:[%s8 + $0xd0] sm:$0xf] %vm2235, %v2480
  %2609 = vst.msk [vmem:[%s8 + $0xd4] sm:$0xf] %vm2235, %v2481
  %2610 = vst.msk [vmem:[%s8 + $0xd8] sm:$0xf] %vm2235, %v2482
  %2611 = vst.msk [vmem:[%s8 + $0xdc] sm:$0xf] %vm2235, %v2483
  %2612 = vst.msk [vmem:[%s8 + $0xe0] sm:$0xf] %vm2235, %v2484
  %2613 = vst.msk [vmem:[%s8 + $0xe4] sm:$0xf] %vm2235, %v2485
  %2614 = vst.msk [vmem:[%s8 + $0xe8] sm:$0xf] %vm2235, %v2486
  %2615 = vst.msk [vmem:[%s8 + $0xec] sm:$0xf] %vm2235, %v2487
  %2616 = vst.msk [vmem:[%s8 + $0xf0] sm:$0xf] %vm2235, %v2488
  %2617 = vst.msk [vmem:[%s8 + $0xf4] sm:$0xf] %vm2235, %v2489
  %2618 = vst.msk [vmem:[%s8 + $0xf8] sm:$0xf] %vm2235, %v2490
  %2619 = vst.msk [vmem:[%s8 + $0xfc] sm:$0xf] %vm2235, %v2491
  %s2620 = smul.u32 0, 512
  %v2621 = vlaneseq
  %v2622 = vshrl.u32 %v2621, 7
  %v2623 = vadd.s32 %v2622, 8
  %v2624 = vadd.s32 %v2622, 16
  %v2625 = vadd.s32 %v2622, 24
  %v2626 = vadd.s32 %v2622, 32
  %v2627 = vadd.s32 %v2622, 40
  %v2628 = vadd.s32 %v2622, 48
  %v2629 = vadd.s32 %v2622, 56
  %v2630 = vadd.s32 %v2622, 64
  %v2631 = vadd.s32 %v2622, 72
  %v2632 = vadd.s32 %v2622, 80
  %v2633 = vadd.s32 %v2622, 88
  %v2634 = vadd.s32 %v2622, 96
  %v2635 = vadd.s32 %v2622, 104
  %v2636 = vadd.s32 %v2622, 112
  %v2637 = vadd.s32 %v2622, 120
  %v2638 = vadd.s32 %v2622, 128
  %v2639 = vadd.s32 %v2622, 136
  %v2640 = vadd.s32 %v2622, 144
  %v2641 = vadd.s32 %v2622, 152
  %v2642 = vadd.s32 %v2622, 160
  %v2643 = vadd.s32 %v2622, 168
  %v2644 = vadd.s32 %v2622, 176
  %v2645 = vadd.s32 %v2622, 184
  %v2646 = vadd.s32 %v2622, 192
  %v2647 = vadd.s32 %v2622, 200
  %v2648 = vadd.s32 %v2622, 208
  %v2649 = vadd.s32 %v2622, 216
  %v2650 = vadd.s32 %v2622, 224
  %v2651 = vadd.s32 %v2622, 232
  %v2652 = vadd.s32 %v2622, 240
  %v2653 = vadd.s32 %v2622, 248
  %v2654 = vadd.s32 %v2622, 256
  %v2655 = vadd.s32 %v2622, 264
  %v2656 = vadd.s32 %v2622, 272
  %v2657 = vadd.s32 %v2622, 280
  %v2658 = vadd.s32 %v2622, 288
  %v2659 = vadd.s32 %v2622, 296
  %v2660 = vadd.s32 %v2622, 304
  %v2661 = vadd.s32 %v2622, 312
  %v2662 = vadd.s32 %v2622, 320
  %v2663 = vadd.s32 %v2622, 328
  %v2664 = vadd.s32 %v2622, 336
  %v2665 = vadd.s32 %v2622, 344
  %v2666 = vadd.s32 %v2622, 352
  %v2667 = vadd.s32 %v2622, 360
  %v2668 = vadd.s32 %v2622, 368
  %v2669 = vadd.s32 %v2622, 376
  %v2670 = vadd.s32 %v2622, 384
  %v2671 = vadd.s32 %v2622, 392
  %v2672 = vadd.s32 %v2622, 400
  %v2673 = vadd.s32 %v2622, 408
  %v2674 = vadd.s32 %v2622, 416
  %v2675 = vadd.s32 %v2622, 424
  %v2676 = vadd.s32 %v2622, 432
  %v2677 = vadd.s32 %v2622, 440
  %v2678 = vadd.s32 %v2622, 448
  %v2679 = vadd.s32 %v2622, 456
  %v2680 = vadd.s32 %v2622, 464
  %v2681 = vadd.s32 %v2622, 472
  %v2682 = vadd.s32 %v2622, 480
  %v2683 = vadd.s32 %v2622, 488
  %v2684 = vadd.s32 %v2622, 496
  %v2685 = vadd.s32 %v2622, 504
  %v2686 = vstv %s2620
  %v2687 = vadd.s32 %v2686, %v2622
  %v2688 = vadd.s32 %v2686, %v2623
  %v2689 = vadd.s32 %v2686, %v2624
  %v2690 = vadd.s32 %v2686, %v2625
  %v2691 = vadd.s32 %v2686, %v2626
  %v2692 = vadd.s32 %v2686, %v2627
  %v2693 = vadd.s32 %v2686, %v2628
  %v2694 = vadd.s32 %v2686, %v2629
  %v2695 = vadd.s32 %v2686, %v2630
  %v2696 = vadd.s32 %v2686, %v2631
  %v2697 = vadd.s32 %v2686, %v2632
  %v2698 = vadd.s32 %v2686, %v2633
  %v2699 = vadd.s32 %v2686, %v2634
  %v2700 = vadd.s32 %v2686, %v2635
  %v2701 = vadd.s32 %v2686, %v2636
  %v2702 = vadd.s32 %v2686, %v2637
  %v2703 = vadd.s32 %v2686, %v2638
  %v2704 = vadd.s32 %v2686, %v2639
  %v2705 = vadd.s32 %v2686, %v2640
  %v2706 = vadd.s32 %v2686, %v2641
  %v2707 = vadd.s32 %v2686, %v2642
  %v2708 = vadd.s32 %v2686, %v2643
  %v2709 = vadd.s32 %v2686, %v2644
  %v2710 = vadd.s32 %v2686, %v2645
  %v2711 = vadd.s32 %v2686, %v2646
  %v2712 = vadd.s32 %v2686, %v2647
  %v2713 = vadd.s32 %v2686, %v2648
  %v2714 = vadd.s32 %v2686, %v2649
  %v2715 = vadd.s32 %v2686, %v2650
  %v2716 = vadd.s32 %v2686, %v2651
  %v2717 = vadd.s32 %v2686, %v2652
  %v2718 = vadd.s32 %v2686, %v2653
  %v2719 = vadd.s32 %v2686, %v2654
  %v2720 = vadd.s32 %v2686, %v2655
  %v2721 = vadd.s32 %v2686, %v2656
  %v2722 = vadd.s32 %v2686, %v2657
  %v2723 = vadd.s32 %v2686, %v2658
  %v2724 = vadd.s32 %v2686, %v2659
  %v2725 = vadd.s32 %v2686, %v2660
  %v2726 = vadd.s32 %v2686, %v2661
  %v2727 = vadd.s32 %v2686, %v2662
  %v2728 = vadd.s32 %v2686, %v2663
  %v2729 = vadd.s32 %v2686, %v2664
  %v2730 = vadd.s32 %v2686, %v2665
  %v2731 = vadd.s32 %v2686, %v2666
  %v2732 = vadd.s32 %v2686, %v2667
  %v2733 = vadd.s32 %v2686, %v2668
  %v2734 = vadd.s32 %v2686, %v2669
  %v2735 = vadd.s32 %v2686, %v2670
  %v2736 = vadd.s32 %v2686, %v2671
  %v2737 = vadd.s32 %v2686, %v2672
  %v2738 = vadd.s32 %v2686, %v2673
  %v2739 = vadd.s32 %v2686, %v2674
  %v2740 = vadd.s32 %v2686, %v2675
  %v2741 = vadd.s32 %v2686, %v2676
  %v2742 = vadd.s32 %v2686, %v2677
  %v2743 = vadd.s32 %v2686, %v2678
  %v2744 = vadd.s32 %v2686, %v2679
  %v2745 = vadd.s32 %v2686, %v2680
  %v2746 = vadd.s32 %v2686, %v2681
  %v2747 = vadd.s32 %v2686, %v2682
  %v2748 = vadd.s32 %v2686, %v2683
  %v2749 = vadd.s32 %v2686, %v2684
  %v2750 = vadd.s32 %v2686, %v2685
  %vm2751 = vcmp.lt.s32.totalorder %v2687, 512
  %vm2752 = vcmp.lt.s32.totalorder %v2688, 512
  %vm2753 = vcmp.lt.s32.totalorder %v2689, 512
  %vm2754 = vcmp.lt.s32.totalorder %v2690, 512
  %vm2755 = vcmp.lt.s32.totalorder %v2691, 512
  %vm2756 = vcmp.lt.s32.totalorder %v2692, 512
  %vm2757 = vcmp.lt.s32.totalorder %v2693, 512
  %vm2758 = vcmp.lt.s32.totalorder %v2694, 512
  %vm2759 = vcmp.lt.s32.totalorder %v2695, 512
  %vm2760 = vcmp.lt.s32.totalorder %v2696, 512
  %vm2761 = vcmp.lt.s32.totalorder %v2697, 512
  %vm2762 = vcmp.lt.s32.totalorder %v2698, 512
  %vm2763 = vcmp.lt.s32.totalorder %v2699, 512
  %vm2764 = vcmp.lt.s32.totalorder %v2700, 512
  %vm2765 = vcmp.lt.s32.totalorder %v2701, 512
  %vm2766 = vcmp.lt.s32.totalorder %v2702, 512
  %vm2767 = vcmp.lt.s32.totalorder %v2703, 512
  %vm2768 = vcmp.lt.s32.totalorder %v2704, 512
  %vm2769 = vcmp.lt.s32.totalorder %v2705, 512
  %vm2770 = vcmp.lt.s32.totalorder %v2706, 512
  %vm2771 = vcmp.lt.s32.totalorder %v2707, 512
  %vm2772 = vcmp.lt.s32.totalorder %v2708, 512
  %vm2773 = vcmp.lt.s32.totalorder %v2709, 512
  %vm2774 = vcmp.lt.s32.totalorder %v2710, 512
  %vm2775 = vcmp.lt.s32.totalorder %v2711, 512
  %vm2776 = vcmp.lt.s32.totalorder %v2712, 512
  %vm2777 = vcmp.lt.s32.totalorder %v2713, 512
  %vm2778 = vcmp.lt.s32.totalorder %v2714, 512
  %vm2779 = vcmp.lt.s32.totalorder %v2715, 512
  %vm2780 = vcmp.lt.s32.totalorder %v2716, 512
  %vm2781 = vcmp.lt.s32.totalorder %v2717, 512
  %vm2782 = vcmp.lt.s32.totalorder %v2718, 512
  %vm2783 = vcmp.lt.s32.totalorder %v2719, 512
  %vm2784 = vcmp.lt.s32.totalorder %v2720, 512
  %vm2785 = vcmp.lt.s32.totalorder %v2721, 512
  %vm2786 = vcmp.lt.s32.totalorder %v2722, 512
  %vm2787 = vcmp.lt.s32.totalorder %v2723, 512
  %vm2788 = vcmp.lt.s32.totalorder %v2724, 512
  %vm2789 = vcmp.lt.s32.totalorder %v2725, 512
  %vm2790 = vcmp.lt.s32.totalorder %v2726, 512
  %vm2791 = vcmp.lt.s32.totalorder %v2727, 512
  %vm2792 = vcmp.lt.s32.totalorder %v2728, 512
  %vm2793 = vcmp.lt.s32.totalorder %v2729, 512
  %vm2794 = vcmp.lt.s32.totalorder %v2730, 512
  %vm2795 = vcmp.lt.s32.totalorder %v2731, 512
  %vm2796 = vcmp.lt.s32.totalorder %v2732, 512
  %vm2797 = vcmp.lt.s32.totalorder %v2733, 512
  %vm2798 = vcmp.lt.s32.totalorder %v2734, 512
  %vm2799 = vcmp.lt.s32.totalorder %v2735, 512
  %vm2800 = vcmp.lt.s32.totalorder %v2736, 512
  %vm2801 = vcmp.lt.s32.totalorder %v2737, 512
  %vm2802 = vcmp.lt.s32.totalorder %v2738, 512
  %vm2803 = vcmp.lt.s32.totalorder %v2739, 512
  %vm2804 = vcmp.lt.s32.totalorder %v2740, 512
  %vm2805 = vcmp.lt.s32.totalorder %v2741, 512
  %vm2806 = vcmp.lt.s32.totalorder %v2742, 512
  %vm2807 = vcmp.lt.s32.totalorder %v2743, 512
  %vm2808 = vcmp.lt.s32.totalorder %v2744, 512
  %vm2809 = vcmp.lt.s32.totalorder %v2745, 512
  %vm2810 = vcmp.lt.s32.totalorder %v2746, 512
  %vm2811 = vcmp.lt.s32.totalorder %v2747, 512
  %vm2812 = vcmp.lt.s32.totalorder %v2748, 512
  %vm2813 = vcmp.lt.s32.totalorder %v2749, 512
  %vm2814 = vcmp.lt.s32.totalorder %v2750, 512
  %v2815 = vsel %vm2751, 1, 0
  %v2816 = vsel %vm2752, 1, 0
  %v2817 = vsel %vm2753, 1, 0
  %v2818 = vsel %vm2754, 1, 0
  %v2819 = vsel %vm2755, 1, 0
  %v2820 = vsel %vm2756, 1, 0
  %v2821 = vsel %vm2757, 1, 0
  %v2822 = vsel %vm2758, 1, 0
  %v2823 = vsel %vm2759, 1, 0
  %v2824 = vsel %vm2760, 1, 0
  %v2825 = vsel %vm2761, 1, 0
  %v2826 = vsel %vm2762, 1, 0
  %v2827 = vsel %vm2763, 1, 0
  %v2828 = vsel %vm2764, 1, 0
  %v2829 = vsel %vm2765, 1, 0
  %v2830 = vsel %vm2766, 1, 0
  %v2831 = vsel %vm2767, 1, 0
  %v2832 = vsel %vm2768, 1, 0
  %v2833 = vsel %vm2769, 1, 0
  %v2834 = vsel %vm2770, 1, 0
  %v2835 = vsel %vm2771, 1, 0
  %v2836 = vsel %vm2772, 1, 0
  %v2837 = vsel %vm2773, 1, 0
  %v2838 = vsel %vm2774, 1, 0
  %v2839 = vsel %vm2775, 1, 0
  %v2840 = vsel %vm2776, 1, 0
  %v2841 = vsel %vm2777, 1, 0
  %v2842 = vsel %vm2778, 1, 0
  %v2843 = vsel %vm2779, 1, 0
  %v2844 = vsel %vm2780, 1, 0
  %v2845 = vsel %vm2781, 1, 0
  %v2846 = vsel %vm2782, 1, 0
  %v2847 = vsel %vm2783, 1, 0
  %v2848 = vsel %vm2784, 1, 0
  %v2849 = vsel %vm2785, 1, 0
  %v2850 = vsel %vm2786, 1, 0
  %v2851 = vsel %vm2787, 1, 0
  %v2852 = vsel %vm2788, 1, 0
  %v2853 = vsel %vm2789, 1, 0
  %v2854 = vsel %vm2790, 1, 0
  %v2855 = vsel %vm2791, 1, 0
  %v2856 = vsel %vm2792, 1, 0
  %v2857 = vsel %vm2793, 1, 0
  %v2858 = vsel %vm2794, 1, 0
  %v2859 = vsel %vm2795, 1, 0
  %v2860 = vsel %vm2796, 1, 0
  %v2861 = vsel %vm2797, 1, 0
  %v2862 = vsel %vm2798, 1, 0
  %v2863 = vsel %vm2799, 1, 0
  %v2864 = vsel %vm2800, 1, 0
  %v2865 = vsel %vm2801, 1, 0
  %v2866 = vsel %vm2802, 1, 0
  %v2867 = vsel %vm2803, 1, 0
  %v2868 = vsel %vm2804, 1, 0
  %v2869 = vsel %vm2805, 1, 0
  %v2870 = vsel %vm2806, 1, 0
  %v2871 = vsel %vm2807, 1, 0
  %v2872 = vsel %vm2808, 1, 0
  %v2873 = vsel %vm2809, 1, 0
  %v2874 = vsel %vm2810, 1, 0
  %v2875 = vsel %vm2811, 1, 0
  %v2876 = vsel %vm2812, 1, 0
  %v2877 = vsel %vm2813, 1, 0
  %v2878 = vsel %vm2814, 1, 0
  %vm2879 = vcmp.eq.s32.totalorder %v2815, 1
  %vm2880 = vcmp.eq.s32.totalorder %v2816, 1
  %vm2881 = vcmp.eq.s32.totalorder %v2817, 1
  %vm2882 = vcmp.eq.s32.totalorder %v2818, 1
  %vm2883 = vcmp.eq.s32.totalorder %v2819, 1
  %vm2884 = vcmp.eq.s32.totalorder %v2820, 1
  %vm2885 = vcmp.eq.s32.totalorder %v2821, 1
  %vm2886 = vcmp.eq.s32.totalorder %v2822, 1
  %vm2887 = vcmp.eq.s32.totalorder %v2823, 1
  %vm2888 = vcmp.eq.s32.totalorder %v2824, 1
  %vm2889 = vcmp.eq.s32.totalorder %v2825, 1
  %vm2890 = vcmp.eq.s32.totalorder %v2826, 1
  %vm2891 = vcmp.eq.s32.totalorder %v2827, 1
  %vm2892 = vcmp.eq.s32.totalorder %v2828, 1
  %vm2893 = vcmp.eq.s32.totalorder %v2829, 1
  %vm2894 = vcmp.eq.s32.totalorder %v2830, 1
  %vm2895 = vcmp.eq.s32.totalorder %v2831, 1
  %vm2896 = vcmp.eq.s32.totalorder %v2832, 1
  %vm2897 = vcmp.eq.s32.totalorder %v2833, 1
  %vm2898 = vcmp.eq.s32.totalorder %v2834, 1
  %vm2899 = vcmp.eq.s32.totalorder %v2835, 1
  %vm2900 = vcmp.eq.s32.totalorder %v2836, 1
  %vm2901 = vcmp.eq.s32.totalorder %v2837, 1
  %vm2902 = vcmp.eq.s32.totalorder %v2838, 1
  %vm2903 = vcmp.eq.s32.totalorder %v2839, 1
  %vm2904 = vcmp.eq.s32.totalorder %v2840, 1
  %vm2905 = vcmp.eq.s32.totalorder %v2841, 1
  %vm2906 = vcmp.eq.s32.totalorder %v2842, 1
  %vm2907 = vcmp.eq.s32.totalorder %v2843, 1
  %vm2908 = vcmp.eq.s32.totalorder %v2844, 1
  %vm2909 = vcmp.eq.s32.totalorder %v2845, 1
  %vm2910 = vcmp.eq.s32.totalorder %v2846, 1
  %vm2911 = vcmp.eq.s32.totalorder %v2847, 1
  %vm2912 = vcmp.eq.s32.totalorder %v2848, 1
  %vm2913 = vcmp.eq.s32.totalorder %v2849, 1
  %vm2914 = vcmp.eq.s32.totalorder %v2850, 1
  %vm2915 = vcmp.eq.s32.totalorder %v2851, 1
  %vm2916 = vcmp.eq.s32.totalorder %v2852, 1
  %vm2917 = vcmp.eq.s32.totalorder %v2853, 1
  %vm2918 = vcmp.eq.s32.totalorder %v2854, 1
  %vm2919 = vcmp.eq.s32.totalorder %v2855, 1
  %vm2920 = vcmp.eq.s32.totalorder %v2856, 1
  %vm2921 = vcmp.eq.s32.totalorder %v2857, 1
  %vm2922 = vcmp.eq.s32.totalorder %v2858, 1
  %vm2923 = vcmp.eq.s32.totalorder %v2859, 1
  %vm2924 = vcmp.eq.s32.totalorder %v2860, 1
  %vm2925 = vcmp.eq.s32.totalorder %v2861, 1
  %vm2926 = vcmp.eq.s32.totalorder %v2862, 1
  %vm2927 = vcmp.eq.s32.totalorder %v2863, 1
  %vm2928 = vcmp.eq.s32.totalorder %v2864, 1
  %vm2929 = vcmp.eq.s32.totalorder %v2865, 1
  %vm2930 = vcmp.eq.s32.totalorder %v2866, 1
  %vm2931 = vcmp.eq.s32.totalorder %v2867, 1
  %vm2932 = vcmp.eq.s32.totalorder %v2868, 1
  %vm2933 = vcmp.eq.s32.totalorder %v2869, 1
  %vm2934 = vcmp.eq.s32.totalorder %v2870, 1
  %vm2935 = vcmp.eq.s32.totalorder %v2871, 1
  %vm2936 = vcmp.eq.s32.totalorder %v2872, 1
  %vm2937 = vcmp.eq.s32.totalorder %v2873, 1
  %vm2938 = vcmp.eq.s32.totalorder %v2874, 1
  %vm2939 = vcmp.eq.s32.totalorder %v2875, 1
  %vm2940 = vcmp.eq.s32.totalorder %v2876, 1
  %vm2941 = vcmp.eq.s32.totalorder %v2877, 1
  %vm2942 = vcmp.eq.s32.totalorder %v2878, 1
  %v2943 = vsel %vm2879, %v1396, 0.0
  %v2944 = vsel %vm2880, %v1397, 0.0
  %v2945 = vsel %vm2881, %v1398, 0.0
  %v2946 = vsel %vm2882, %v1399, 0.0
  %v2947 = vsel %vm2883, %v1400, 0.0
  %v2948 = vsel %vm2884, %v1401, 0.0
  %v2949 = vsel %vm2885, %v1402, 0.0
  %v2950 = vsel %vm2886, %v1403, 0.0
  %v2951 = vsel %vm2887, %v1404, 0.0
  %v2952 = vsel %vm2888, %v1405, 0.0
  %v2953 = vsel %vm2889, %v1406, 0.0
  %v2954 = vsel %vm2890, %v1407, 0.0
  %v2955 = vsel %vm2891, %v1408, 0.0
  %v2956 = vsel %vm2892, %v1409, 0.0
  %v2957 = vsel %vm2893, %v1410, 0.0
  %v2958 = vsel %vm2894, %v1411, 0.0
  %v2959 = vsel %vm2895, %v1412, 0.0
  %v2960 = vsel %vm2896, %v1413, 0.0
  %v2961 = vsel %vm2897, %v1414, 0.0
  %v2962 = vsel %vm2898, %v1415, 0.0
  %v2963 = vsel %vm2899, %v1416, 0.0
  %v2964 = vsel %vm2900, %v1417, 0.0
  %v2965 = vsel %vm2901, %v1418, 0.0
  %v2966 = vsel %vm2902, %v1419, 0.0
  %v2967 = vsel %vm2903, %v1420, 0.0
  %v2968 = vsel %vm2904, %v1421, 0.0
  %v2969 = vsel %vm2905, %v1422, 0.0
  %v2970 = vsel %vm2906, %v1423, 0.0
  %v2971 = vsel %vm2907, %v1424, 0.0
  %v2972 = vsel %vm2908, %v1425, 0.0
  %v2973 = vsel %vm2909, %v1426, 0.0
  %v2974 = vsel %vm2910, %v1427, 0.0
  %v2975 = vsel %vm2911, %v1428, 0.0
  %v2976 = vsel %vm2912, %v1429, 0.0
  %v2977 = vsel %vm2913, %v1430, 0.0
  %v2978 = vsel %vm2914, %v1431, 0.0
  %v2979 = vsel %vm2915, %v1432, 0.0
  %v2980 = vsel %vm2916, %v1433, 0.0
  %v2981 = vsel %vm2917, %v1434, 0.0
  %v2982 = vsel %vm2918, %v1435, 0.0
  %v2983 = vsel %vm2919, %v1436, 0.0
  %v2984 = vsel %vm2920, %v1437, 0.0
  %v2985 = vsel %vm2921, %v1438, 0.0
  %v2986 = vsel %vm2922, %v1439, 0.0
  %v2987 = vsel %vm2923, %v1440, 0.0
  %v2988 = vsel %vm2924, %v1441, 0.0
  %v2989 = vsel %vm2925, %v1442, 0.0
  %v2990 = vsel %vm2926, %v1443, 0.0
  %v2991 = vsel %vm2927, %v1444, 0.0
  %v2992 = vsel %vm2928, %v1445, 0.0
  %v2993 = vsel %vm2929, %v1446, 0.0
  %v2994 = vsel %vm2930, %v1447, 0.0
  %v2995 = vsel %vm2931, %v1448, 0.0
  %v2996 = vsel %vm2932, %v1449, 0.0
  %v2997 = vsel %vm2933, %v1450, 0.0
  %v2998 = vsel %vm2934, %v1451, 0.0
  %v2999 = vsel %vm2935, %v1452, 0.0
  %v3000 = vsel %vm2936, %v1453, 0.0
  %v3001 = vsel %vm2937, %v1454, 0.0
  %v3002 = vsel %vm2938, %v1455, 0.0
  %v3003 = vsel %vm2939, %v1456, 0.0
  %v3004 = vsel %vm2940, %v1457, 0.0
  %v3005 = vsel %vm2941, %v1458, 0.0
  %v3006 = vsel %vm2942, %v1459, 0.0
  %v3007 = vsel %vm2879, %v1915, 0.0
  %v3008 = vsel %vm2880, %v1916, 0.0
  %v3009 = vsel %vm2881, %v1917, 0.0
  %v3010 = vsel %vm2882, %v1918, 0.0
  %v3011 = vsel %vm2883, %v1919, 0.0
  %v3012 = vsel %vm2884, %v1920, 0.0
  %v3013 = vsel %vm2885, %v1921, 0.0
  %v3014 = vsel %vm2886, %v1922, 0.0
  %v3015 = vsel %vm2887, %v1923, 0.0
  %v3016 = vsel %vm2888, %v1924, 0.0
  %v3017 = vsel %vm2889, %v1925, 0.0
  %v3018 = vsel %vm2890, %v1926, 0.0
  %v3019 = vsel %vm2891, %v1927, 0.0
  %v3020 = vsel %vm2892, %v1928, 0.0
  %v3021 = vsel %vm2893, %v1929, 0.0
  %v3022 = vsel %vm2894, %v1930, 0.0
  %v3023 = vsel %vm2895, %v1931, 0.0
  %v3024 = vsel %vm2896, %v1932, 0.0
  %v3025 = vsel %vm2897, %v1933, 0.0
  %v3026 = vsel %vm2898, %v1934, 0.0
  %v3027 = vsel %vm2899, %v1935, 0.0
  %v3028 = vsel %vm2900, %v1936, 0.0
  %v3029 = vsel %vm2901, %v1937, 0.0
  %v3030 = vsel %vm2902, %v1938, 0.0
  %v3031 = vsel %vm2903, %v1939, 0.0
  %v3032 = vsel %vm2904, %v1940, 0.0
  %v3033 = vsel %vm2905, %v1941, 0.0
  %v3034 = vsel %vm2906, %v1942, 0.0
  %v3035 = vsel %vm2907, %v1943, 0.0
  %v3036 = vsel %vm2908, %v1944, 0.0
  %v3037 = vsel %vm2909, %v1945, 0.0
  %v3038 = vsel %vm2910, %v1946, 0.0
  %v3039 = vsel %vm2911, %v1947, 0.0
  %v3040 = vsel %vm2912, %v1948, 0.0
  %v3041 = vsel %vm2913, %v1949, 0.0
  %v3042 = vsel %vm2914, %v1950, 0.0
  %v3043 = vsel %vm2915, %v1951, 0.0
  %v3044 = vsel %vm2916, %v1952, 0.0
  %v3045 = vsel %vm2917, %v1953, 0.0
  %v3046 = vsel %vm2918, %v1954, 0.0
  %v3047 = vsel %vm2919, %v1955, 0.0
  %v3048 = vsel %vm2920, %v1956, 0.0
  %v3049 = vsel %vm2921, %v1957, 0.0
  %v3050 = vsel %vm2922, %v1958, 0.0
  %v3051 = vsel %vm2923, %v1959, 0.0
  %v3052 = vsel %vm2924, %v1960, 0.0
  %v3053 = vsel %vm2925, %v1961, 0.0
  %v3054 = vsel %vm2926, %v1962, 0.0
  %v3055 = vsel %vm2927, %v1963, 0.0
  %v3056 = vsel %vm2928, %v1964, 0.0
  %v3057 = vsel %vm2929, %v1965, 0.0
  %v3058 = vsel %vm2930, %v1966, 0.0
  %v3059 = vsel %vm2931, %v1967, 0.0
  %v3060 = vsel %vm2932, %v1968, 0.0
  %v3061 = vsel %vm2933, %v1969, 0.0
  %v3062 = vsel %vm2934, %v1970, 0.0
  %v3063 = vsel %vm2935, %v1971, 0.0
  %v3064 = vsel %vm2936, %v1972, 0.0
  %v3065 = vsel %vm2937, %v1973, 0.0
  %v3066 = vsel %vm2938, %v1974, 0.0
  %v3067 = vsel %vm2939, %v1975, 0.0
  %v3068 = vsel %vm2940, %v1976, 0.0
  %v3069 = vsel %vm2941, %v1977, 0.0
  %v3070 = vsel %vm2942, %v1978, 0.0
  %v3071 = vsel %vm258, %v2943, 0.0
  %v3072 = vsel %vm258, %v2944, 0.0
  %v3073 = vadd.f32 %v3071, %v3072
  %v3074 = vsel %vm258, %v2945, 0.0
  %v3075 = vadd.f32 %v3073, %v3074
  %v3076 = vsel %vm258, %v2946, 0.0
  %v3077 = vadd.f32 %v3075, %v3076
  %v3078 = vsel %vm258, %v2947, 0.0
  %v3079 = vadd.f32 %v3077, %v3078
  %v3080 = vsel %vm258, %v2948, 0.0
  %v3081 = vadd.f32 %v3079, %v3080
  %v3082 = vsel %vm258, %v2949, 0.0
  %v3083 = vadd.f32 %v3081, %v3082
  %v3084 = vsel %vm258, %v2950, 0.0
  %v3085 = vadd.f32 %v3083, %v3084
  %v3086 = vsel %vm258, %v2951, 0.0
  %v3087 = vadd.f32 %v3085, %v3086
  %v3088 = vsel %vm258, %v2952, 0.0
  %v3089 = vadd.f32 %v3087, %v3088
  %v3090 = vsel %vm258, %v2953, 0.0
  %v3091 = vadd.f32 %v3089, %v3090
  %v3092 = vsel %vm258, %v2954, 0.0
  %v3093 = vadd.f32 %v3091, %v3092
  %v3094 = vsel %vm258, %v2955, 0.0
  %v3095 = vadd.f32 %v3093, %v3094
  %v3096 = vsel %vm258, %v2956, 0.0
  %v3097 = vadd.f32 %v3095, %v3096
  %v3098 = vsel %vm258, %v2957, 0.0
  %v3099 = vadd.f32 %v3097, %v3098
  %v3100 = vsel %vm258, %v2958, 0.0
  %v3101 = vadd.f32 %v3099, %v3100
  %v3102 = vsel %vm258, %v2959, 0.0
  %v3103 = vadd.f32 %v3101, %v3102
  %v3104 = vsel %vm258, %v2960, 0.0
  %v3105 = vadd.f32 %v3103, %v3104
  %v3106 = vsel %vm258, %v2961, 0.0
  %v3107 = vadd.f32 %v3105, %v3106
  %v3108 = vsel %vm258, %v2962, 0.0
  %v3109 = vadd.f32 %v3107, %v3108
  %v3110 = vsel %vm258, %v2963, 0.0
  %v3111 = vadd.f32 %v3109, %v3110
  %v3112 = vsel %vm258, %v2964, 0.0
  %v3113 = vadd.f32 %v3111, %v3112
  %v3114 = vsel %vm258, %v2965, 0.0
  %v3115 = vadd.f32 %v3113, %v3114
  %v3116 = vsel %vm258, %v2966, 0.0
  %v3117 = vadd.f32 %v3115, %v3116
  %v3118 = vsel %vm258, %v2967, 0.0
  %v3119 = vadd.f32 %v3117, %v3118
  %v3120 = vsel %vm258, %v2968, 0.0
  %v3121 = vadd.f32 %v3119, %v3120
  %v3122 = vsel %vm258, %v2969, 0.0
  %v3123 = vadd.f32 %v3121, %v3122
  %v3124 = vsel %vm258, %v2970, 0.0
  %v3125 = vadd.f32 %v3123, %v3124
  %v3126 = vsel %vm258, %v2971, 0.0
  %v3127 = vadd.f32 %v3125, %v3126
  %v3128 = vsel %vm258, %v2972, 0.0
  %v3129 = vadd.f32 %v3127, %v3128
  %v3130 = vsel %vm258, %v2973, 0.0
  %v3131 = vadd.f32 %v3129, %v3130
  %v3132 = vsel %vm258, %v2974, 0.0
  %v3133 = vadd.f32 %v3131, %v3132
  %v3134 = vsel %vm258, %v2975, 0.0
  %v3135 = vadd.f32 %v3133, %v3134
  %v3136 = vsel %vm258, %v2976, 0.0
  %v3137 = vadd.f32 %v3135, %v3136
  %v3138 = vsel %vm258, %v2977, 0.0
  %v3139 = vadd.f32 %v3137, %v3138
  %v3140 = vsel %vm258, %v2978, 0.0
  %v3141 = vadd.f32 %v3139, %v3140
  %v3142 = vsel %vm258, %v2979, 0.0
  %v3143 = vadd.f32 %v3141, %v3142
  %v3144 = vsel %vm258, %v2980, 0.0
  %v3145 = vadd.f32 %v3143, %v3144
  %v3146 = vsel %vm258, %v2981, 0.0
  %v3147 = vadd.f32 %v3145, %v3146
  %v3148 = vsel %vm258, %v2982, 0.0
  %v3149 = vadd.f32 %v3147, %v3148
  %v3150 = vsel %vm258, %v2983, 0.0
  %v3151 = vadd.f32 %v3149, %v3150
  %v3152 = vsel %vm258, %v2984, 0.0
  %v3153 = vadd.f32 %v3151, %v3152
  %v3154 = vsel %vm258, %v2985, 0.0
  %v3155 = vadd.f32 %v3153, %v3154
  %v3156 = vsel %vm258, %v2986, 0.0
  %v3157 = vadd.f32 %v3155, %v3156
  %v3158 = vsel %vm258, %v2987, 0.0
  %v3159 = vadd.f32 %v3157, %v3158
  %v3160 = vsel %vm258, %v2988, 0.0
  %v3161 = vadd.f32 %v3159, %v3160
  %v3162 = vsel %vm258, %v2989, 0.0
  %v3163 = vadd.f32 %v3161, %v3162
  %v3164 = vsel %vm258, %v2990, 0.0
  %v3165 = vadd.f32 %v3163, %v3164
  %v3166 = vsel %vm258, %v2991, 0.0
  %v3167 = vadd.f32 %v3165, %v3166
  %v3168 = vsel %vm258, %v2992, 0.0
  %v3169 = vadd.f32 %v3167, %v3168
  %v3170 = vsel %vm258, %v2993, 0.0
  %v3171 = vadd.f32 %v3169, %v3170
  %v3172 = vsel %vm258, %v2994, 0.0
  %v3173 = vadd.f32 %v3171, %v3172
  %v3174 = vsel %vm258, %v2995, 0.0
  %v3175 = vadd.f32 %v3173, %v3174
  %v3176 = vsel %vm258, %v2996, 0.0
  %v3177 = vadd.f32 %v3175, %v3176
  %v3178 = vsel %vm258, %v2997, 0.0
  %v3179 = vadd.f32 %v3177, %v3178
  %v3180 = vsel %vm258, %v2998, 0.0
  %v3181 = vadd.f32 %v3179, %v3180
  %v3182 = vsel %vm258, %v2999, 0.0
  %v3183 = vadd.f32 %v3181, %v3182
  %v3184 = vsel %vm258, %v3000, 0.0
  %v3185 = vadd.f32 %v3183, %v3184
  %v3186 = vsel %vm258, %v3001, 0.0
  %v3187 = vadd.f32 %v3185, %v3186
  %v3188 = vsel %vm258, %v3002, 0.0
  %v3189 = vadd.f32 %v3187, %v3188
  %v3190 = vsel %vm258, %v3003, 0.0
  %v3191 = vadd.f32 %v3189, %v3190
  %v3192 = vsel %vm258, %v3004, 0.0
  %v3193 = vadd.f32 %v3191, %v3192
  %v3194 = vsel %vm258, %v3005, 0.0
  %v3195 = vadd.f32 %v3193, %v3194
  %v3196 = vsel %vm258, %v3006, 0.0
  %v3197 = vadd.f32 %v3195, %v3196
  %v3198 = vrot.slane %v3197, 4
  %v3199 = vadd.f32 %v3197, %v3198
  %v3200 = vrot.slane %v3199, 2
  %v3201 = vadd.f32 %v3199, %v3200
  %v3202 = vrot.slane %v3201, 1
  %v3203 = vadd.f32 %v3201, %v3202
  %vm3204 = vcmask 57344
  %3205 = vst.msk [vmem:[%s9] sm:$0x1] %vm3204, %v3203
  %v3206 = vmul.f32 %v2943, %v2943
  %v3207 = vmul.f32 %v2944, %v2944
  %v3208 = vmul.f32 %v2945, %v2945
  %v3209 = vmul.f32 %v2946, %v2946
  %v3210 = vmul.f32 %v2947, %v2947
  %v3211 = vmul.f32 %v2948, %v2948
  %v3212 = vmul.f32 %v2949, %v2949
  %v3213 = vmul.f32 %v2950, %v2950
  %v3214 = vmul.f32 %v2951, %v2951
  %v3215 = vmul.f32 %v2952, %v2952
  %v3216 = vmul.f32 %v2953, %v2953
  %v3217 = vmul.f32 %v2954, %v2954
  %v3218 = vmul.f32 %v2955, %v2955
  %v3219 = vmul.f32 %v2956, %v2956
  %v3220 = vmul.f32 %v2957, %v2957
  %v3221 = vmul.f32 %v2958, %v2958
  %v3222 = vmul.f32 %v2959, %v2959
  %v3223 = vmul.f32 %v2960, %v2960
  %v3224 = vmul.f32 %v2961, %v2961
  %v3225 = vmul.f32 %v2962, %v2962
  %v3226 = vmul.f32 %v2963, %v2963
  %v3227 = vmul.f32 %v2964, %v2964
  %v3228 = vmul.f32 %v2965, %v2965
  %v3229 = vmul.f32 %v2966, %v2966
  %v3230 = vmul.f32 %v2967, %v2967
  %v3231 = vmul.f32 %v2968, %v2968
  %v3232 = vmul.f32 %v2969, %v2969
  %v3233 = vmul.f32 %v2970, %v2970
  %v3234 = vmul.f32 %v2971, %v2971
  %v3235 = vmul.f32 %v2972, %v2972
  %v3236 = vmul.f32 %v2973, %v2973
  %v3237 = vmul.f32 %v2974, %v2974
  %v3238 = vmul.f32 %v2975, %v2975
  %v3239 = vmul.f32 %v2976, %v2976
  %v3240 = vmul.f32 %v2977, %v2977
  %v3241 = vmul.f32 %v2978, %v2978
  %v3242 = vmul.f32 %v2979, %v2979
  %v3243 = vmul.f32 %v2980, %v2980
  %v3244 = vmul.f32 %v2981, %v2981
  %v3245 = vmul.f32 %v2982, %v2982
  %v3246 = vmul.f32 %v2983, %v2983
  %v3247 = vmul.f32 %v2984, %v2984
  %v3248 = vmul.f32 %v2985, %v2985
  %v3249 = vmul.f32 %v2986, %v2986
  %v3250 = vmul.f32 %v2987, %v2987
  %v3251 = vmul.f32 %v2988, %v2988
  %v3252 = vmul.f32 %v2989, %v2989
  %v3253 = vmul.f32 %v2990, %v2990
  %v3254 = vmul.f32 %v2991, %v2991
  %v3255 = vmul.f32 %v2992, %v2992
  %v3256 = vmul.f32 %v2993, %v2993
  %v3257 = vmul.f32 %v2994, %v2994
  %v3258 = vmul.f32 %v2995, %v2995
  %v3259 = vmul.f32 %v2996, %v2996
  %v3260 = vmul.f32 %v2997, %v2997
  %v3261 = vmul.f32 %v2998, %v2998
  %v3262 = vmul.f32 %v2999, %v2999
  %v3263 = vmul.f32 %v3000, %v3000
  %v3264 = vmul.f32 %v3001, %v3001
  %v3265 = vmul.f32 %v3002, %v3002
  %v3266 = vmul.f32 %v3003, %v3003
  %v3267 = vmul.f32 %v3004, %v3004
  %v3268 = vmul.f32 %v3005, %v3005
  %v3269 = vmul.f32 %v3006, %v3006
  %v3270 = vsel %vm258, %v3206, 0.0
  %v3271 = vsel %vm258, %v3207, 0.0
  %v3272 = vadd.f32 %v3270, %v3271
  %v3273 = vsel %vm258, %v3208, 0.0
  %v3274 = vadd.f32 %v3272, %v3273
  %v3275 = vsel %vm258, %v3209, 0.0
  %v3276 = vadd.f32 %v3274, %v3275
  %v3277 = vsel %vm258, %v3210, 0.0
  %v3278 = vadd.f32 %v3276, %v3277
  %v3279 = vsel %vm258, %v3211, 0.0
  %v3280 = vadd.f32 %v3278, %v3279
  %v3281 = vsel %vm258, %v3212, 0.0
  %v3282 = vadd.f32 %v3280, %v3281
  %v3283 = vsel %vm258, %v3213, 0.0
  %v3284 = vadd.f32 %v3282, %v3283
  %v3285 = vsel %vm258, %v3214, 0.0
  %v3286 = vadd.f32 %v3284, %v3285
  %v3287 = vsel %vm258, %v3215, 0.0
  %v3288 = vadd.f32 %v3286, %v3287
  %v3289 = vsel %vm258, %v3216, 0.0
  %v3290 = vadd.f32 %v3288, %v3289
  %v3291 = vsel %vm258, %v3217, 0.0
  %v3292 = vadd.f32 %v3290, %v3291
  %v3293 = vsel %vm258, %v3218, 0.0
  %v3294 = vadd.f32 %v3292, %v3293
  %v3295 = vsel %vm258, %v3219, 0.0
  %v3296 = vadd.f32 %v3294, %v3295
  %v3297 = vsel %vm258, %v3220, 0.0
  %v3298 = vadd.f32 %v3296, %v3297
  %v3299 = vsel %vm258, %v3221, 0.0
  %v3300 = vadd.f32 %v3298, %v3299
  %v3301 = vsel %vm258, %v3222, 0.0
  %v3302 = vadd.f32 %v3300, %v3301
  %v3303 = vsel %vm258, %v3223, 0.0
  %v3304 = vadd.f32 %v3302, %v3303
  %v3305 = vsel %vm258, %v3224, 0.0
  %v3306 = vadd.f32 %v3304, %v3305
  %v3307 = vsel %vm258, %v3225, 0.0
  %v3308 = vadd.f32 %v3306, %v3307
  %v3309 = vsel %vm258, %v3226, 0.0
  %v3310 = vadd.f32 %v3308, %v3309
  %v3311 = vsel %vm258, %v3227, 0.0
  %v3312 = vadd.f32 %v3310, %v3311
  %v3313 = vsel %vm258, %v3228, 0.0
  %v3314 = vadd.f32 %v3312, %v3313
  %v3315 = vsel %vm258, %v3229, 0.0
  %v3316 = vadd.f32 %v3314, %v3315
  %v3317 = vsel %vm258, %v3230, 0.0
  %v3318 = vadd.f32 %v3316, %v3317
  %v3319 = vsel %vm258, %v3231, 0.0
  %v3320 = vadd.f32 %v3318, %v3319
  %v3321 = vsel %vm258, %v3232, 0.0
  %v3322 = vadd.f32 %v3320, %v3321
  %v3323 = vsel %vm258, %v3233, 0.0
  %v3324 = vadd.f32 %v3322, %v3323
  %v3325 = vsel %vm258, %v3234, 0.0
  %v3326 = vadd.f32 %v3324, %v3325
  %v3327 = vsel %vm258, %v3235, 0.0
  %v3328 = vadd.f32 %v3326, %v3327
  %v3329 = vsel %vm258, %v3236, 0.0
  %v3330 = vadd.f32 %v3328, %v3329
  %v3331 = vsel %vm258, %v3237, 0.0
  %v3332 = vadd.f32 %v3330, %v3331
  %v3333 = vsel %vm258, %v3238, 0.0
  %v3334 = vadd.f32 %v3332, %v3333
  %v3335 = vsel %vm258, %v3239, 0.0
  %v3336 = vadd.f32 %v3334, %v3335
  %v3337 = vsel %vm258, %v3240, 0.0
  %v3338 = vadd.f32 %v3336, %v3337
  %v3339 = vsel %vm258, %v3241, 0.0
  %v3340 = vadd.f32 %v3338, %v3339
  %v3341 = vsel %vm258, %v3242, 0.0
  %v3342 = vadd.f32 %v3340, %v3341
  %v3343 = vsel %vm258, %v3243, 0.0
  %v3344 = vadd.f32 %v3342, %v3343
  %v3345 = vsel %vm258, %v3244, 0.0
  %v3346 = vadd.f32 %v3344, %v3345
  %v3347 = vsel %vm258, %v3245, 0.0
  %v3348 = vadd.f32 %v3346, %v3347
  %v3349 = vsel %vm258, %v3246, 0.0
  %v3350 = vadd.f32 %v3348, %v3349
  %v3351 = vsel %vm258, %v3247, 0.0
  %v3352 = vadd.f32 %v3350, %v3351
  %v3353 = vsel %vm258, %v3248, 0.0
  %v3354 = vadd.f32 %v3352, %v3353
  %v3355 = vsel %vm258, %v3249, 0.0
  %v3356 = vadd.f32 %v3354, %v3355
  %v3357 = vsel %vm258, %v3250, 0.0
  %v3358 = vadd.f32 %v3356, %v3357
  %v3359 = vsel %vm258, %v3251, 0.0
  %v3360 = vadd.f32 %v3358, %v3359
  %v3361 = vsel %vm258, %v3252, 0.0
  %v3362 = vadd.f32 %v3360, %v3361
  %v3363 = vsel %vm258, %v3253, 0.0
  %v3364 = vadd.f32 %v3362, %v3363
  %v3365 = vsel %vm258, %v3254, 0.0
  %v3366 = vadd.f32 %v3364, %v3365
  %v3367 = vsel %vm258, %v3255, 0.0
  %v3368 = vadd.f32 %v3366, %v3367
  %v3369 = vsel %vm258, %v3256, 0.0
  %v3370 = vadd.f32 %v3368, %v3369
  %v3371 = vsel %vm258, %v3257, 0.0
  %v3372 = vadd.f32 %v3370, %v3371
  %v3373 = vsel %vm258, %v3258, 0.0
  %v3374 = vadd.f32 %v3372, %v3373
  %v3375 = vsel %vm258, %v3259, 0.0
  %v3376 = vadd.f32 %v3374, %v3375
  %v3377 = vsel %vm258, %v3260, 0.0
  %v3378 = vadd.f32 %v3376, %v3377
  %v3379 = vsel %vm258, %v3261, 0.0
  %v3380 = vadd.f32 %v3378, %v3379
  %v3381 = vsel %vm258, %v3262, 0.0
  %v3382 = vadd.f32 %v3380, %v3381
  %v3383 = vsel %vm258, %v3263, 0.0
  %v3384 = vadd.f32 %v3382, %v3383
  %v3385 = vsel %vm258, %v3264, 0.0
  %v3386 = vadd.f32 %v3384, %v3385
  %v3387 = vsel %vm258, %v3265, 0.0
  %v3388 = vadd.f32 %v3386, %v3387
  %v3389 = vsel %vm258, %v3266, 0.0
  %v3390 = vadd.f32 %v3388, %v3389
  %v3391 = vsel %vm258, %v3267, 0.0
  %v3392 = vadd.f32 %v3390, %v3391
  %v3393 = vsel %vm258, %v3268, 0.0
  %v3394 = vadd.f32 %v3392, %v3393
  %v3395 = vsel %vm258, %v3269, 0.0
  %v3396 = vadd.f32 %v3394, %v3395
  %v3397 = vrot.slane %v3396, 4
  %v3398 = vadd.f32 %v3396, %v3397
  %v3399 = vrot.slane %v3398, 2
  %v3400 = vadd.f32 %v3398, %v3399
  %v3401 = vrot.slane %v3400, 1
  %v3402 = vadd.f32 %v3400, %v3401
  %3403 = vst.msk [vmem:[%s10] sm:$0x1] %vm3204, %v3402
  %v3404 = vsel %vm258, %v3007, 0.0
  %v3405 = vsel %vm258, %v3008, 0.0
  %v3406 = vadd.f32 %v3404, %v3405
  %v3407 = vsel %vm258, %v3009, 0.0
  %v3408 = vadd.f32 %v3406, %v3407
  %v3409 = vsel %vm258, %v3010, 0.0
  %v3410 = vadd.f32 %v3408, %v3409
  %v3411 = vsel %vm258, %v3011, 0.0
  %v3412 = vadd.f32 %v3410, %v3411
  %v3413 = vsel %vm258, %v3012, 0.0
  %v3414 = vadd.f32 %v3412, %v3413
  %v3415 = vsel %vm258, %v3013, 0.0
  %v3416 = vadd.f32 %v3414, %v3415
  %v3417 = vsel %vm258, %v3014, 0.0
  %v3418 = vadd.f32 %v3416, %v3417
  %v3419 = vsel %vm258, %v3015, 0.0
  %v3420 = vadd.f32 %v3418, %v3419
  %v3421 = vsel %vm258, %v3016, 0.0
  %v3422 = vadd.f32 %v3420, %v3421
  %v3423 = vsel %vm258, %v3017, 0.0
  %v3424 = vadd.f32 %v3422, %v3423
  %v3425 = vsel %vm258, %v3018, 0.0
  %v3426 = vadd.f32 %v3424, %v3425
  %v3427 = vsel %vm258, %v3019, 0.0
  %v3428 = vadd.f32 %v3426, %v3427
  %v3429 = vsel %vm258, %v3020, 0.0
  %v3430 = vadd.f32 %v3428, %v3429
  %v3431 = vsel %vm258, %v3021, 0.0
  %v3432 = vadd.f32 %v3430, %v3431
  %v3433 = vsel %vm258, %v3022, 0.0
  %v3434 = vadd.f32 %v3432, %v3433
  %v3435 = vsel %vm258, %v3023, 0.0
  %v3436 = vadd.f32 %v3434, %v3435
  %v3437 = vsel %vm258, %v3024, 0.0
  %v3438 = vadd.f32 %v3436, %v3437
  %v3439 = vsel %vm258, %v3025, 0.0
  %v3440 = vadd.f32 %v3438, %v3439
  %v3441 = vsel %vm258, %v3026, 0.0
  %v3442 = vadd.f32 %v3440, %v3441
  %v3443 = vsel %vm258, %v3027, 0.0
  %v3444 = vadd.f32 %v3442, %v3443
  %v3445 = vsel %vm258, %v3028, 0.0
  %v3446 = vadd.f32 %v3444, %v3445
  %v3447 = vsel %vm258, %v3029, 0.0
  %v3448 = vadd.f32 %v3446, %v3447
  %v3449 = vsel %vm258, %v3030, 0.0
  %v3450 = vadd.f32 %v3448, %v3449
  %v3451 = vsel %vm258, %v3031, 0.0
  %v3452 = vadd.f32 %v3450, %v3451
  %v3453 = vsel %vm258, %v3032, 0.0
  %v3454 = vadd.f32 %v3452, %v3453
  %v3455 = vsel %vm258, %v3033, 0.0
  %v3456 = vadd.f32 %v3454, %v3455
  %v3457 = vsel %vm258, %v3034, 0.0
  %v3458 = vadd.f32 %v3456, %v3457
  %v3459 = vsel %vm258, %v3035, 0.0
  %v3460 = vadd.f32 %v3458, %v3459
  %v3461 = vsel %vm258, %v3036, 0.0
  %v3462 = vadd.f32 %v3460, %v3461
  %v3463 = vsel %vm258, %v3037, 0.0
  %v3464 = vadd.f32 %v3462, %v3463
  %v3465 = vsel %vm258, %v3038, 0.0
  %v3466 = vadd.f32 %v3464, %v3465
  %v3467 = vsel %vm258, %v3039, 0.0
  %v3468 = vadd.f32 %v3466, %v3467
  %v3469 = vsel %vm258, %v3040, 0.0
  %v3470 = vadd.f32 %v3468, %v3469
  %v3471 = vsel %vm258, %v3041, 0.0
  %v3472 = vadd.f32 %v3470, %v3471
  %v3473 = vsel %vm258, %v3042, 0.0
  %v3474 = vadd.f32 %v3472, %v3473
  %v3475 = vsel %vm258, %v3043, 0.0
  %v3476 = vadd.f32 %v3474, %v3475
  %v3477 = vsel %vm258, %v3044, 0.0
  %v3478 = vadd.f32 %v3476, %v3477
  %v3479 = vsel %vm258, %v3045, 0.0
  %v3480 = vadd.f32 %v3478, %v3479
  %v3481 = vsel %vm258, %v3046, 0.0
  %v3482 = vadd.f32 %v3480, %v3481
  %v3483 = vsel %vm258, %v3047, 0.0
  %v3484 = vadd.f32 %v3482, %v3483
  %v3485 = vsel %vm258, %v3048, 0.0
  %v3486 = vadd.f32 %v3484, %v3485
  %v3487 = vsel %vm258, %v3049, 0.0
  %v3488 = vadd.f32 %v3486, %v3487
  %v3489 = vsel %vm258, %v3050, 0.0
  %v3490 = vadd.f32 %v3488, %v3489
  %v3491 = vsel %vm258, %v3051, 0.0
  %v3492 = vadd.f32 %v3490, %v3491
  %v3493 = vsel %vm258, %v3052, 0.0
  %v3494 = vadd.f32 %v3492, %v3493
  %v3495 = vsel %vm258, %v3053, 0.0
  %v3496 = vadd.f32 %v3494, %v3495
  %v3497 = vsel %vm258, %v3054, 0.0
  %v3498 = vadd.f32 %v3496, %v3497
  %v3499 = vsel %vm258, %v3055, 0.0
  %v3500 = vadd.f32 %v3498, %v3499
  %v3501 = vsel %vm258, %v3056, 0.0
  %v3502 = vadd.f32 %v3500, %v3501
  %v3503 = vsel %vm258, %v3057, 0.0
  %v3504 = vadd.f32 %v3502, %v3503
  %v3505 = vsel %vm258, %v3058, 0.0
  %v3506 = vadd.f32 %v3504, %v3505
  %v3507 = vsel %vm258, %v3059, 0.0
  %v3508 = vadd.f32 %v3506, %v3507
  %v3509 = vsel %vm258, %v3060, 0.0
  %v3510 = vadd.f32 %v3508, %v3509
  %v3511 = vsel %vm258, %v3061, 0.0
  %v3512 = vadd.f32 %v3510, %v3511
  %v3513 = vsel %vm258, %v3062, 0.0
  %v3514 = vadd.f32 %v3512, %v3513
  %v3515 = vsel %vm258, %v3063, 0.0
  %v3516 = vadd.f32 %v3514, %v3515
  %v3517 = vsel %vm258, %v3064, 0.0
  %v3518 = vadd.f32 %v3516, %v3517
  %v3519 = vsel %vm258, %v3065, 0.0
  %v3520 = vadd.f32 %v3518, %v3519
  %v3521 = vsel %vm258, %v3066, 0.0
  %v3522 = vadd.f32 %v3520, %v3521
  %v3523 = vsel %vm258, %v3067, 0.0
  %v3524 = vadd.f32 %v3522, %v3523
  %v3525 = vsel %vm258, %v3068, 0.0
  %v3526 = vadd.f32 %v3524, %v3525
  %v3527 = vsel %vm258, %v3069, 0.0
  %v3528 = vadd.f32 %v3526, %v3527
  %v3529 = vsel %vm258, %v3070, 0.0
  %v3530 = vadd.f32 %v3528, %v3529
  %v3531 = vrot.slane %v3530, 4
  %v3532 = vadd.f32 %v3530, %v3531
  %v3533 = vrot.slane %v3532, 2
  %v3534 = vadd.f32 %v3532, %v3533
  %v3535 = vrot.slane %v3534, 1
  %v3536 = vadd.f32 %v3534, %v3535
  %3537 = vst.msk [vmem:[%s11] sm:$0x1] %vm3204, %v3536
  %v3538 = vmul.f32 %v3007, %v3007
  %v3539 = vmul.f32 %v3008, %v3008
  %v3540 = vmul.f32 %v3009, %v3009
  %v3541 = vmul.f32 %v3010, %v3010
  %v3542 = vmul.f32 %v3011, %v3011
  %v3543 = vmul.f32 %v3012, %v3012
  %v3544 = vmul.f32 %v3013, %v3013
  %v3545 = vmul.f32 %v3014, %v3014
  %v3546 = vmul.f32 %v3015, %v3015
  %v3547 = vmul.f32 %v3016, %v3016
  %v3548 = vmul.f32 %v3017, %v3017
  %v3549 = vmul.f32 %v3018, %v3018
  %v3550 = vmul.f32 %v3019, %v3019
  %v3551 = vmul.f32 %v3020, %v3020
  %v3552 = vmul.f32 %v3021, %v3021
  %v3553 = vmul.f32 %v3022, %v3022
  %v3554 = vmul.f32 %v3023, %v3023
  %v3555 = vmul.f32 %v3024, %v3024
  %v3556 = vmul.f32 %v3025, %v3025
  %v3557 = vmul.f32 %v3026, %v3026
  %v3558 = vmul.f32 %v3027, %v3027
  %v3559 = vmul.f32 %v3028, %v3028
  %v3560 = vmul.f32 %v3029, %v3029
  %v3561 = vmul.f32 %v3030, %v3030
  %v3562 = vmul.f32 %v3031, %v3031
  %v3563 = vmul.f32 %v3032, %v3032
  %v3564 = vmul.f32 %v3033, %v3033
  %v3565 = vmul.f32 %v3034, %v3034
  %v3566 = vmul.f32 %v3035, %v3035
  %v3567 = vmul.f32 %v3036, %v3036
  %v3568 = vmul.f32 %v3037, %v3037
  %v3569 = vmul.f32 %v3038, %v3038
  %v3570 = vmul.f32 %v3039, %v3039
  %v3571 = vmul.f32 %v3040, %v3040
  %v3572 = vmul.f32 %v3041, %v3041
  %v3573 = vmul.f32 %v3042, %v3042
  %v3574 = vmul.f32 %v3043, %v3043
  %v3575 = vmul.f32 %v3044, %v3044
  %v3576 = vmul.f32 %v3045, %v3045
  %v3577 = vmul.f32 %v3046, %v3046
  %v3578 = vmul.f32 %v3047, %v3047
  %v3579 = vmul.f32 %v3048, %v3048
  %v3580 = vmul.f32 %v3049, %v3049
  %v3581 = vmul.f32 %v3050, %v3050
  %v3582 = vmul.f32 %v3051, %v3051
  %v3583 = vmul.f32 %v3052, %v3052
  %v3584 = vmul.f32 %v3053, %v3053
  %v3585 = vmul.f32 %v3054, %v3054
  %v3586 = vmul.f32 %v3055, %v3055
  %v3587 = vmul.f32 %v3056, %v3056
  %v3588 = vmul.f32 %v3057, %v3057
  %v3589 = vmul.f32 %v3058, %v3058
  %v3590 = vmul.f32 %v3059, %v3059
  %v3591 = vmul.f32 %v3060, %v3060
  %v3592 = vmul.f32 %v3061, %v3061
  %v3593 = vmul.f32 %v3062, %v3062
  %v3594 = vmul.f32 %v3063, %v3063
  %v3595 = vmul.f32 %v3064, %v3064
  %v3596 = vmul.f32 %v3065, %v3065
  %v3597 = vmul.f32 %v3066, %v3066
  %v3598 = vmul.f32 %v3067, %v3067
  %v3599 = vmul.f32 %v3068, %v3068
  %v3600 = vmul.f32 %v3069, %v3069
  %v3601 = vmul.f32 %v3070, %v3070
  %v3602 = vsel %vm258, %v3538, 0.0
  %v3603 = vsel %vm258, %v3539, 0.0
  %v3604 = vadd.f32 %v3602, %v3603
  %v3605 = vsel %vm258, %v3540, 0.0
  %v3606 = vadd.f32 %v3604, %v3605
  %v3607 = vsel %vm258, %v3541, 0.0
  %v3608 = vadd.f32 %v3606, %v3607
  %v3609 = vsel %vm258, %v3542, 0.0
  %v3610 = vadd.f32 %v3608, %v3609
  %v3611 = vsel %vm258, %v3543, 0.0
  %v3612 = vadd.f32 %v3610, %v3611
  %v3613 = vsel %vm258, %v3544, 0.0
  %v3614 = vadd.f32 %v3612, %v3613
  %v3615 = vsel %vm258, %v3545, 0.0
  %v3616 = vadd.f32 %v3614, %v3615
  %v3617 = vsel %vm258, %v3546, 0.0
  %v3618 = vadd.f32 %v3616, %v3617
  %v3619 = vsel %vm258, %v3547, 0.0
  %v3620 = vadd.f32 %v3618, %v3619
  %v3621 = vsel %vm258, %v3548, 0.0
  %v3622 = vadd.f32 %v3620, %v3621
  %v3623 = vsel %vm258, %v3549, 0.0
  %v3624 = vadd.f32 %v3622, %v3623
  %v3625 = vsel %vm258, %v3550, 0.0
  %v3626 = vadd.f32 %v3624, %v3625
  %v3627 = vsel %vm258, %v3551, 0.0
  %v3628 = vadd.f32 %v3626, %v3627
  %v3629 = vsel %vm258, %v3552, 0.0
  %v3630 = vadd.f32 %v3628, %v3629
  %v3631 = vsel %vm258, %v3553, 0.0
  %v3632 = vadd.f32 %v3630, %v3631
  %v3633 = vsel %vm258, %v3554, 0.0
  %v3634 = vadd.f32 %v3632, %v3633
  %v3635 = vsel %vm258, %v3555, 0.0
  %v3636 = vadd.f32 %v3634, %v3635
  %v3637 = vsel %vm258, %v3556, 0.0
  %v3638 = vadd.f32 %v3636, %v3637
  %v3639 = vsel %vm258, %v3557, 0.0
  %v3640 = vadd.f32 %v3638, %v3639
  %v3641 = vsel %vm258, %v3558, 0.0
  %v3642 = vadd.f32 %v3640, %v3641
  %v3643 = vsel %vm258, %v3559, 0.0
  %v3644 = vadd.f32 %v3642, %v3643
  %v3645 = vsel %vm258, %v3560, 0.0
  %v3646 = vadd.f32 %v3644, %v3645
  %v3647 = vsel %vm258, %v3561, 0.0
  %v3648 = vadd.f32 %v3646, %v3647
  %v3649 = vsel %vm258, %v3562, 0.0
  %v3650 = vadd.f32 %v3648, %v3649
  %v3651 = vsel %vm258, %v3563, 0.0
  %v3652 = vadd.f32 %v3650, %v3651
  %v3653 = vsel %vm258, %v3564, 0.0
  %v3654 = vadd.f32 %v3652, %v3653
  %v3655 = vsel %vm258, %v3565, 0.0
  %v3656 = vadd.f32 %v3654, %v3655
  %v3657 = vsel %vm258, %v3566, 0.0
  %v3658 = vadd.f32 %v3656, %v3657
  %v3659 = vsel %vm258, %v3567, 0.0
  %v3660 = vadd.f32 %v3658, %v3659
  %v3661 = vsel %vm258, %v3568, 0.0
  %v3662 = vadd.f32 %v3660, %v3661
  %v3663 = vsel %vm258, %v3569, 0.0
  %v3664 = vadd.f32 %v3662, %v3663
  %v3665 = vsel %vm258, %v3570, 0.0
  %v3666 = vadd.f32 %v3664, %v3665
  %v3667 = vsel %vm258, %v3571, 0.0
  %v3668 = vadd.f32 %v3666, %v3667
  %v3669 = vsel %vm258, %v3572, 0.0
  %v3670 = vadd.f32 %v3668, %v3669
  %v3671 = vsel %vm258, %v3573, 0.0
  %v3672 = vadd.f32 %v3670, %v3671
  %v3673 = vsel %vm258, %v3574, 0.0
  %v3674 = vadd.f32 %v3672, %v3673
  %v3675 = vsel %vm258, %v3575, 0.0
  %v3676 = vadd.f32 %v3674, %v3675
  %v3677 = vsel %vm258, %v3576, 0.0
  %v3678 = vadd.f32 %v3676, %v3677
  %v3679 = vsel %vm258, %v3577, 0.0
  %v3680 = vadd.f32 %v3678, %v3679
  %v3681 = vsel %vm258, %v3578, 0.0
  %v3682 = vadd.f32 %v3680, %v3681
  %v3683 = vsel %vm258, %v3579, 0.0
  %v3684 = vadd.f32 %v3682, %v3683
  %v3685 = vsel %vm258, %v3580, 0.0
  %v3686 = vadd.f32 %v3684, %v3685
  %v3687 = vsel %vm258, %v3581, 0.0
  %v3688 = vadd.f32 %v3686, %v3687
  %v3689 = vsel %vm258, %v3582, 0.0
  %v3690 = vadd.f32 %v3688, %v3689
  %v3691 = vsel %vm258, %v3583, 0.0
  %v3692 = vadd.f32 %v3690, %v3691
  %v3693 = vsel %vm258, %v3584, 0.0
  %v3694 = vadd.f32 %v3692, %v3693
  %v3695 = vsel %vm258, %v3585, 0.0
  %v3696 = vadd.f32 %v3694, %v3695
  %v3697 = vsel %vm258, %v3586, 0.0
  %v3698 = vadd.f32 %v3696, %v3697
  %v3699 = vsel %vm258, %v3587, 0.0
  %v3700 = vadd.f32 %v3698, %v3699
  %v3701 = vsel %vm258, %v3588, 0.0
  %v3702 = vadd.f32 %v3700, %v3701
  %v3703 = vsel %vm258, %v3589, 0.0
  %v3704 = vadd.f32 %v3702, %v3703
  %v3705 = vsel %vm258, %v3590, 0.0
  %v3706 = vadd.f32 %v3704, %v3705
  %v3707 = vsel %vm258, %v3591, 0.0
  %v3708 = vadd.f32 %v3706, %v3707
  %v3709 = vsel %vm258, %v3592, 0.0
  %v3710 = vadd.f32 %v3708, %v3709
  %v3711 = vsel %vm258, %v3593, 0.0
  %v3712 = vadd.f32 %v3710, %v3711
  %v3713 = vsel %vm258, %v3594, 0.0
  %v3714 = vadd.f32 %v3712, %v3713
  %v3715 = vsel %vm258, %v3595, 0.0
  %v3716 = vadd.f32 %v3714, %v3715
  %v3717 = vsel %vm258, %v3596, 0.0
  %v3718 = vadd.f32 %v3716, %v3717
  %v3719 = vsel %vm258, %v3597, 0.0
  %v3720 = vadd.f32 %v3718, %v3719
  %v3721 = vsel %vm258, %v3598, 0.0
  %v3722 = vadd.f32 %v3720, %v3721
  %v3723 = vsel %vm258, %v3599, 0.0
  %v3724 = vadd.f32 %v3722, %v3723
  %v3725 = vsel %vm258, %v3600, 0.0
  %v3726 = vadd.f32 %v3724, %v3725
  %v3727 = vsel %vm258, %v3601, 0.0
  %v3728 = vadd.f32 %v3726, %v3727
  %v3729 = vrot.slane %v3728, 4
  %v3730 = vadd.f32 %v3728, %v3729
  %v3731 = vrot.slane %v3730, 2
  %v3732 = vadd.f32 %v3730, %v3731
  %v3733 = vrot.slane %v3732, 1
  %v3734 = vadd.f32 %v3732, %v3733
  %3735 = vst.msk [vmem:[%s12] sm:$0x1] %vm3204, %v3734
  // Predicated region
  $region30: #{multi_attention_block_2d.4} parent=0 // pred_check
    _
  $region31: #{multi_attention_block_2d.4} parent=0 // pred_check_branch
    %3737 = sbr.rel (0) target = $region33
  $region32: #{multi_attention_block_2d.4} parent=0 // pred_region
    _
  $region33: #{multi_attention_block_2d.4} parent=0 // pred_fallthru
    _
  // Predicated region
  $region34: #{multi_attention_block_2d.4} parent=0 // pred_check
    _
  $region35: #{multi_attention_block_2d.4} parent=0 // pred_check_branch
    %3739 = sbr.rel (0) target = $region37
  $region36: #{multi_attention_block_2d.4} parent=0 // pred_region
    _
  $region37: #{multi_attention_block_2d.4} parent=0 // pred_fallthru
    _
  // Predicated region
  $region38: #{multi_attention_block_2d.4} parent=0 // pred_check
    _
  $region39: #{multi_attention_block_2d.4} parent=0 // pred_check_branch
    %3741 = sbr.rel (0) target = $region41
  $region40: #{multi_attention_block_2d.4} parent=0 // pred_region
    _
  $region41: #{multi_attention_block_2d.4} parent=0 // pred_fallthru
    _
  // Predicated region
  $region42: #{multi_attention_block_2d.4} parent=0 // pred_check
    _
  $region43: #{multi_attention_block_2d.4} parent=0 // pred_check_branch
    %3743 = sbr.rel (0) target = $region45
  $region44: #{multi_attention_block_2d.4} parent=0 // pred_region
    _
  $region45: #{multi_attention_block_2d.4} parent=0 // pred_fallthru
    _
  // Predicated region
  $region46: #{multi_attention_block_2d.4} parent=0 // pred_check
    _
  $region47: #{multi_attention_block_2d.4} parent=0 // pred_check_branch
    %3745 = sbr.rel (0) target = $region49
  $region48: #{multi_attention_block_2d.4} parent=0 // pred_region
    _
  $region49: #{multi_attention_block_2d.4} parent=0 // pred_fallthru
    _
  // Predicated region
  $region50: #{multi_attention_block_2d.4} parent=0 // pred_check
    _
  $region51: #{multi_attention_block_2d.4} parent=0 // pred_check_branch
    %3747 = sbr.rel (0) target = $region53
  $region52: #{multi_attention_block_2d.4} parent=0 // pred_region
    _
  $region53: #{multi_attention_block_2d.4} parent=0 // pred_fallthru
    _
  // Predicated region
  $region54: #{multi_attention_block_2d.4} parent=0 // pred_check
    _
  $region55: #{multi_attention_block_2d.4} parent=0 // pred_check_branch
    %3749 = sbr.rel (0) target = $region57
  $region56: #{multi_attention_block_2d.4} parent=0 // pred_region
    _
  $region57: #{multi_attention_block_2d.4} parent=0 // pred_fallthru
    _
  // Predicated region
  $region58: #{multi_attention_block_2d.4} parent=0 // pred_check
    _
  $region59: #{multi_attention_block_2d.4} parent=0 // pred_check_branch
    %3751 = sbr.rel (0) target = $region61
  $region60: #{multi_attention_block_2d.4} parent=0 // pred_region
    _
  $region61: #{multi_attention_block_2d.4} parent=0 // pred_fallthru
    _
  // Predicated region
  $region62: #{multi_attention_block_2d.4} parent=0 // pred_check
    _
  $region63: #{multi_attention_block_2d.4} parent=0 // pred_check_branch
    %3753 = sbr.rel (0) target = $region65
  $region64: #{multi_attention_block_2d.4} parent=0 // pred_region
    _
  $region65: #{multi_attention_block_2d.4} parent=0 // pred_fallthru
    _
  // Predicated region
  $region66: #{multi_attention_block_2d.4} parent=0 // pred_check
    _
  $region67: #{multi_attention_block_2d.4} parent=0 // pred_check_branch
    %3755 = sbr.rel (0) target = $region69
  $region68: #{multi_attention_block_2d.4} parent=0 // pred_region
    _
  $region69: #{multi_attention_block_2d.4} parent=0 // pred_fallthru
    _
  // Predicated region
  $region70: #{multi_attention_block_2d.4} parent=0 // pred_check
    _
  $region71: #{multi_attention_block_2d.4} parent=0 // pred_check_branch
    %3757 = sbr.rel (0) target = $region73
  $region72: #{multi_attention_block_2d.4} parent=0 // pred_region
    _
  $region73: #{multi_attention_block_2d.4} parent=0 // pred_fallthru
    _
  // Predicated region
  $region74: #{multi_attention_block_2d.4} parent=0 // pred_check
    _
  $region75: #{multi_attention_block_2d.4} parent=0 // pred_check_branch
    %3759 = sbr.rel (0) target = $region77
  $region76: #{multi_attention_block_2d.4} parent=0 // pred_region
    _
  $region77: #{multi_attention_block_2d.4} parent=0 // pred_fallthru
    _

</llo_original>
